<compile_context>
chip_gen: v6e
topology: v6e:2x2x1
jax: 0.10.0
libtpu: 0.0.40
codegen_flags: <defaults>
</compile_context>

<pallas_src>
import functools
import math

import jax
import jax.numpy as jnp
from jax import lax
from jax.experimental import pallas as pl
from jax.experimental.pallas import tpu as pltpu

EPS = 1e-6
NEG_INF = -1e9


# ------------------------------ helpers -----------------------------------

def _rep_spec(shape):
    """BlockSpec for an operand identical at every grid step (weights/biases/
    LN params). Block index never changes, so Pallas skips the re-DMA."""
    n = len(shape)
    return pl.BlockSpec(shape, lambda *_, n=n: (0,) * n)


def _vmem_limit_bytes(margin=16 * 1024 * 1024):
    """Generation-aware scoped-VMEM limit: large on 128-MiB chips (v5e/v6e),
    conservative on v7x's 64 MiB. Falls back safely if the query fails."""
    try:
        cap = int(pltpu.get_tpu_info().vmem_capacity_bytes)
    except Exception:
        cap = 64 * 1024 * 1024
    return max(32 * 1024 * 1024, cap - margin)


def _layernorm(x, a, b, eps):
    """Matches the PyTorch module: unbiased std (ddof=1), divide by (std+eps).
    Exact divide (approx reciprocal is reserved for the softmax denom)."""
    d = x.shape[-1]
    mean = jnp.mean(x, axis=-1, keepdims=True)
    xc = x - mean
    std = jnp.sqrt(jnp.sum(xc * xc, axis=-1, keepdims=True) * (1.0 / (d - 1)))
    return a * xc / (std + eps) + b


def _attend_into(q_ref, q_off, kv_ref, k_off, v_off, keep_mask, heads_ref,
                 *, h, dk, scale):
    """Multi-head attention. Each head's (Sq,dk) output is written into
    columns [i*dk:(i+1)*dk] of heads_ref (VMEM scratch); the caller then does
    ONE (Sq,D)@(D,D) Wo matmul instead of h K=dk matmuls + f32 adds."""
    for i in range(h):                                   # static unroll
        qs = slice(q_off + i * dk, q_off + (i + 1) * dk)
        ks = slice(k_off + i * dk, k_off + (i + 1) * dk)
        vs = slice(v_off + i * dk, v_off + (i + 1) * dk)
        qh = q_ref[:, qs].astype(jnp.bfloat16)
        kh = kv_ref[:, ks].astype(jnp.bfloat16)
        vh = kv_ref[:, vs].astype(jnp.bfloat16)
        # contract last dims directly (no k.T / XLU transpose)
        s = lax.dot_general(qh, kh, (((1,), (1,)), ((), ())),
                            preferred_element_type=jnp.float32) * scale
        s = jnp.where(keep_mask, s, NEG_INF)
        s = s - jnp.max(s, axis=-1, keepdims=True)
        p = jnp.exp(s)
        p = p * pl.reciprocal(jnp.sum(p, axis=-1, keepdims=True), approx=True)
        heads_ref[:, i * dk:(i + 1) * dk] = jnp.dot(
            p.astype(jnp.bfloat16), vh, preferred_element_type=jnp.float32)


# --------------------------- fused decoder-layer kernel ---------------------

def decoder_layer_kernel(x_ref, mem_ref, tmask_ref, smask_ref,
                         wqkv_ref, bqkv_ref, wo_s_ref, bo_s_ref,
                         wq_c_ref, bq_c_ref, wkv_c_ref, bkv_c_ref,
                         wo_c_ref, bo_c_ref,
                         w1_ref, b1_ref, w2_ref, b2_ref,
                         ln1a_ref, ln1b_ref, ln2a_ref, ln2b_ref,
                         ln3a_ref, ln3b_ref, fina_ref, finb_ref,
                         o_ref, qkv_s, kv_s, heads_s,
                         *, h, dk, eps, scale, apply_final_ln):
    x = x_ref[0]                                          # (S, D)  f32
    mem = mem_ref[0]                                      # (Sk, D) f32
    d = x.shape[-1]

    # ---- sublayer 1: pre-LN + fused-QKV causal/target self-attn + residual --
    xn = _layernorm(x, ln1a_ref[...], ln1b_ref[...], eps)
    qkv_s[...] = jnp.dot(xn.astype(jnp.bfloat16), wqkv_ref[...],
                         preferred_element_type=jnp.float32) + bqkv_ref[...]
    tmask = tmask_ref[0] != 0                             # (1|S, S)
    _attend_into(qkv_s, 0, qkv_s, d, 2 * d, tmask, heads_s,
                 h=h, dk=dk, scale=scale)
    x = x + jnp.dot(heads_s[...].astype(jnp.bfloat16), wo_s_ref[...],
                    preferred_element_type=jnp.float32) + bo_s_ref[...]

    # ---- sublayer 2: pre-LN + source attention + residual -------------------
    xn = _layernorm(x, ln2a_ref[...], ln2b_ref[...], eps)
    qkv_s[:, :d] = jnp.dot(xn.astype(jnp.bfloat16), wq_c_ref[...],
                           preferred_element_type=jnp.float32) + bq_c_ref[...]
    kv_s[...] = jnp.dot(mem.astype(jnp.bfloat16), wkv_c_ref[...],
                        preferred_element_type=jnp.float32) + bkv_c_ref[...]
    smask = smask_ref[0] != 0                             # (1|S, Sk)
    _attend_into(qkv_s, 0, kv_s, 0, d, smask, heads_s,
                 h=h, dk=dk, scale=scale)
    x = x + jnp.dot(heads_s[...].astype(jnp.bfloat16), wo_c_ref[...],
                    preferred_element_type=jnp.float32) + bo_c_ref[...]

    # ---- sublayer 3: pre-LN + FFN (matmul -> ReLU -> matmul) + residual ------
    xn = _layernorm(x, ln3a_ref[...], ln3b_ref[...], eps)
    hdn = jnp.maximum(
        jnp.dot(xn.astype(jnp.bfloat16), w1_ref[...],
                preferred_element_type=jnp.float32) + b1_ref[...], 0.0)
    x = x + jnp.dot(hdn.astype(jnp.bfloat16), w2_ref[...],
                    preferred_element_type=jnp.float32) + b2_ref[...]

    if apply_final_ln:                                    # static flag (last layer)
        x = _layernorm(x, fina_ref[...], finb_ref[...], eps)

    o_ref[0] = x.astype(o_ref.dtype)


def final_ln_kernel(x_ref, a_ref, b_ref, o_ref, *, eps):
    # Only used in the degenerate N_LAYERS == 0 case.
    o_ref[0] = _layernorm(x_ref[0], a_ref[...], b_ref[...], eps).astype(o_ref.dtype)


# ------------------------------ wrappers -----------------------------------

def decoder_layer(x, memory, tgt_mask3, src_mask3, lp, final_a, final_b,
                  *, h, eps=EPS, apply_final_ln=False):
    B, S, D = x.shape
    Sk = memory.shape[1]
    dk = D // h
    d_ff = lp['ff_w1'].shape[1]

    flops = B * (2 * S * D * 3 * D + 4 * S * S * D + 2 * S * D * D    # self-attn
                 + 2 * S * D * D + 4 * Sk * D * D + 4 * S * Sk * D
                 + 2 * S * D * D                                      # src-attn
                 + 4 * S * D * d_ff)                                  # FFN
    weight_bytes = 2 * (3 * D * D + D * D + D * D + 2 * D * D + D * D
                        + 2 * D * d_ff)
    ce = pl.CostEstimate(
        flops=flops,
        transcendentals=B * (S * S + S * Sk + 4 * S),
        bytes_accessed=4 * B * (2 * S * D + Sk * D) + weight_bytes)

    kern = functools.partial(decoder_layer_kernel, h=h, dk=dk, eps=eps,
                             scale=1.0 / math.sqrt(dk),
                             apply_final_ln=apply_final_ln)
    return pl.pallas_call(
        kern,
        out_shape=jax.ShapeDtypeStruct((B, S, D), x.dtype),
        grid=(B,),
        in_specs=[
            pl.BlockSpec((1, S, D), lambda b: (b, 0, 0)),
            pl.BlockSpec((1, Sk, D), lambda b: (b, 0, 0)),
            pl.BlockSpec((1,) + tgt_mask3.shape[1:], lambda b: (b, 0, 0)),
            pl.BlockSpec((1,) + src_mask3.shape[1:], lambda b: (b, 0, 0)),
            _rep_spec(lp['self_wqkv'].shape), _rep_spec(lp['self_bqkv'].shape),
            _rep_spec(lp['self_wo'].shape), _rep_spec(lp['self_bo'].shape),
            _rep_spec(lp['src_wq'].shape), _rep_spec(lp['src_bq'].shape),
            _rep_spec(lp['src_wkv'].shape), _rep_spec(lp['src_bkv'].shape),
            _rep_spec(lp['src_wo'].shape), _rep_spec(lp['src_bo'].shape),
            _rep_spec(lp['ff_w1'].shape), _rep_spec(lp['ff_b1'].shape),
            _rep_spec(lp['ff_w2'].shape), _rep_spec(lp['ff_b2'].shape),
            _rep_spec(lp['ln1_a'].shape), _rep_spec(lp['ln1_b'].shape),
            _rep_spec(lp['ln2_a'].shape), _rep_spec(lp['ln2_b'].shape),
            _rep_spec(lp['ln3_a'].shape), _rep_spec(lp['ln3_b'].shape),
            _rep_spec(final_a.shape), _rep_spec(final_b.shape),
        ],
        out_specs=pl.BlockSpec((1, S, D), lambda b: (b, 0, 0)),
        scratch_shapes=[
            pltpu.VMEM((S, 3 * D), jnp.float32),   # fused QKV / src-attn Q
            pltpu.VMEM((Sk, 2 * D), jnp.float32),  # src-attn fused KV
            pltpu.VMEM((S, D), jnp.float32),       # concatenated head outputs
        ],
        compiler_params=pltpu.CompilerParams(
            dimension_semantics=("parallel",),
            vmem_limit_bytes=_vmem_limit_bytes()),
        cost_estimate=ce,
    )(x, memory, tgt_mask3, src_mask3,
      lp['self_wqkv'], lp['self_bqkv'], lp['self_wo'], lp['self_bo'],
      lp['src_wq'], lp['src_bq'], lp['src_wkv'], lp['src_bkv'],
      lp['src_wo'], lp['src_bo'],
      lp['ff_w1'], lp['ff_b1'], lp['ff_w2'], lp['ff_b2'],
      lp['ln1_a'], lp['ln1_b'], lp['ln2_a'], lp['ln2_b'],
      lp['ln3_a'], lp['ln3_b'], final_a, final_b)


def final_layernorm(x, a, b, *, eps=EPS):
    B, S, D = x.shape
    return pl.pallas_call(
        functools.partial(final_ln_kernel, eps=eps),
        out_shape=jax.ShapeDtypeStruct((B, S, D), x.dtype),
        grid=(B,),
        in_specs=[pl.BlockSpec((1, S, D), lambda b: (b, 0, 0)),
                  _rep_spec(a.shape), _rep_spec(b.shape)],
        out_specs=pl.BlockSpec((1, S, D), lambda b: (b, 0, 0)),
        compiler_params=pltpu.CompilerParams(dimension_semantics=("parallel",)),
    )(x, a, b)


def _prep_mask(mask, B):
    """Collapse the broadcast head dim and broadcast batch -> (B, rows, cols)."""
    m = jnp.asarray(mask, jnp.int32)
    m = m.reshape((-1,) + m.shape[-2:])
    if m.shape[0] != B:
        m = jnp.broadcast_to(m, (B,) + m.shape[1:])
    return m


def decoder_forward_pallas(x, memory, src_mask, tgt_mask, pparams, *, heads,
                           eps=EPS):
    """Decoder forward (eval mode): one fused Pallas kernel per decoder layer;
    the final LayerNorm is folded into the last layer's kernel."""
    B = x.shape[0]
    tgt_mask3 = _prep_mask(tgt_mask, B)
    src_mask3 = _prep_mask(src_mask, B)
    layers = pparams['layers']
    if not layers:
        return final_layernorm(x, pparams['final_a'], pparams['final_b'], eps=eps)
    for li, lp in enumerate(layers):
        x = decoder_layer(x, memory, tgt_mask3, src_mask3, lp,
                          pparams['final_a'], pparams['final_b'],
                          h=heads, eps=eps,
                          apply_final_ln=(li == len(layers) - 1))
    return x


# ------------------------- parameter preparation ---------------------------

def prepare_pallas_params(params, compute_dtype=jnp.bfloat16):
    """Repack f32 module params into the fused layout the kernels consume
    (done ONCE, outside any kernel): Wq|Wk|Wv -> (D,3D), src Wk|Wv -> (D,2D),
    Wo stays (D,D); weights cast to bf16 (MXU-native, half the DMA bytes);
    biases / LN params stay f32, pre-reshaped to (1,N)."""

    def wcast(w):
        return w.astype(compute_dtype)

    def row(v):
        return v.reshape(1, -1)

    layers = []
    for lp in params['layers']:
        sa, ca = lp['self_attn'], lp['src_attn']
        layers.append(dict(
            self_wqkv=wcast(jnp.concatenate([sa['wq'], sa['wk'], sa['wv']], axis=1)),
            self_bqkv=row(jnp.concatenate([sa['bq'], sa['bk'], sa['bv']])),
            self_wo=wcast(sa['wo']), self_bo=row(sa['bo']),
            src_wq=wcast(ca['wq']), src_bq=row(ca['bq']),
            src_wkv=wcast(jnp.concatenate([ca['wk'], ca['wv']], axis=1)),
            src_bkv=row(jnp.concatenate([ca['bk'], ca['bv']])),
            src_wo=wcast(ca['wo']), src_bo=row(ca['bo']),
            ff_w1=wcast(lp['ff_w1']), ff_b1=row(lp['ff_b1']),
            ff_w2=wcast(lp['ff_w2']), ff_b2=row(lp['ff_b2']),
            ln1_a=row(lp['ln1_a']), ln1_b=row(lp['ln1_b']),
            ln2_a=row(lp['ln2_a']), ln2_b=row(lp['ln2_b']),
            ln3_a=row(lp['ln3_a']), ln3_b=row(lp['ln3_b']),
        ))
    return dict(layers=layers, final_a=row(params['final_a']),
                final_b=row(params['final_b']))


# --------------------------- pure-JAX reference -----------------------------

def _ln_ref(x, a, b, eps=EPS):
    mean = x.mean(-1, keepdims=True)
    xc = x - mean
    std = jnp.sqrt((xc * xc).sum(-1, keepdims=True) / (x.shape[-1] - 1))
    return a * xc / (std + eps) + b


def _mha_ref(xq, xkv, mask, p, h):
    B, Sq, D = xq.shape
    dk = D // h

    def proj(x, w, b):
        return (x @ w + b).reshape(x.shape[0], x.shape[1], h, dk).transpose(0, 2, 1, 3)

    q = proj(xq, p['wq'], p['bq'])
    k = proj(xkv, p['wk'], p['bk'])
    v = proj(xkv, p['wv'], p['bv'])
    s = jnp.einsum('bhqd,bhkd->bhqk', q, k) / math.sqrt(dk)
    s = jnp.where(mask == 0, -1e9, s)
    a = jax.nn.softmax(s, axis=-1)
    o = jnp.einsum('bhqk,bhkd->bhqd', a, v).transpose(0, 2, 1, 3).reshape(B, Sq, D)
    return o @ p['wo'] + p['bo']


def decoder_forward_ref(x, memory, src_mask, tgt_mask, params, eps=EPS):
    for lp in params['layers']:
        h = lp['h']
        xn = _ln_ref(x, lp['ln1_a'], lp['ln1_b'], eps)
        x = x + _mha_ref(xn, xn, tgt_mask, lp['self_attn'], h)
        xn = _ln_ref(x, lp['ln2_a'], lp['ln2_b'], eps)
        x = x + _mha_ref(xn, memory, src_mask, lp['src_attn'], h)
        xn = _ln_ref(x, lp['ln3_a'], lp['ln3_b'], eps)
        x = x + jnp.maximum(xn @ lp['ff_w1'] + lp['ff_b1'], 0.0) @ lp['ff_w2'] + lp['ff_b2']
    return _ln_ref(x, params['final_a'], params['final_b'], eps)


# ------------------------------ parameters ----------------------------------

def init_params(key, d_model, h, d_ff, n_layers):
    keys = jax.random.split(key, 10)

    def lin(k, fi, fo):
        kw, kb = jax.random.split(k)
        bound = 1.0 / math.sqrt(fi)
        w = jax.random.uniform(kw, (fi, fo), jnp.float32, -bound, bound)
        b = jax.random.uniform(kb, (fo,), jnp.float32, -bound, bound)
        return w, b

    def attn_params(ks):
        wq, bq = lin(ks[0], d_model, d_model)
        wk, bk = lin(ks[1], d_model, d_model)
        wv, bv = lin(ks[2], d_model, d_model)
        wo, bo = lin(ks[3], d_model, d_model)
        return dict(wq=wq, bq=bq, wk=wk, bk=bk, wv=wv, bv=bv, wo=wo, bo=bo)

    ff_w1, ff_b1 = lin(keys[8], d_model, d_ff)
    ff_w2, ff_b2 = lin(keys[9], d_ff, d_model)
    layer = dict(
        h=h,
        self_attn=attn_params(keys[0:4]),
        src_attn=attn_params(keys[4:8]),
        ff_w1=ff_w1, ff_b1=ff_b1, ff_w2=ff_w2, ff_b2=ff_b2,
        ln1_a=jnp.ones((d_model,), jnp.float32), ln1_b=jnp.zeros((d_model,), jnp.float32),
        ln2_a=jnp.ones((d_model,), jnp.float32), ln2_b=jnp.zeros((d_model,), jnp.float32),
        ln3_a=jnp.ones((d_model,), jnp.float32), ln3_b=jnp.zeros((d_model,), jnp.float32),
    )
    # clones() deep-copies -> all N layers start with identical weights.
    return dict(layers=[layer] * n_layers,
                final_a=jnp.ones((d_model,), jnp.float32),
                final_b=jnp.zeros((d_model,), jnp.float32))


# --------------------------------- main --------------------------------------

if __name__ == "__main__":
    B, S_TGT, S_SRC, D_MODEL, HEADS, D_FF, N_LAYERS = 2, 8, 8, 32, 4, 64, 2

    key = jax.random.PRNGKey(0)
    kx, km = jax.random.split(key)
    x = jax.random.normal(kx, (B, S_TGT, D_MODEL), jnp.float32)
    memory = jax.random.normal(km, (B, S_SRC, D_MODEL), jnp.float32)
    tgt_mask = jnp.tril(jnp.ones((S_TGT, S_TGT), jnp.int32))[None, None]  # causal
    src_mask = jnp.ones((B, 1, 1, S_SRC), jnp.int32)                      # attend everywhere

    params = init_params(jax.random.PRNGKey(42), D_MODEL, HEADS, D_FF, N_LAYERS)
    pparams = prepare_pallas_params(params)

    fwd = jax.jit(functools.partial(decoder_forward_pallas, heads=HEADS))
    out = jax.block_until_ready(fwd(x, memory, src_mask, tgt_mask, pparams))

    ref = jax.block_until_ready(
        decoder_forward_ref(x, memory, src_mask, tgt_mask, params))

    assert out.shape == (B, S_TGT, D_MODEL)
    # bf16 MXU operands + EUP approx-reciprocal softmax => looser tolerance.
    max_err = float(jnp.max(jnp.abs(out - ref)))
    assert jnp.allclose(out, ref, atol=5e-2, rtol=5e-2), \
        f"Pallas vs JAX reference mismatch (max abs err {max_err})"
    print("KERNEL_OK")
</pallas_src>

<mosaic_0001>
module attributes {stable_mosaic.version = 11 : i64} {
  func.func @decoder_layer_kernel(%arg0: i32, %arg1: memref<1x8x32xf32, #tpu.memory_space<vmem>>, %arg2: memref<1x8x32xf32, #tpu.memory_space<vmem>>, %arg3: memref<1x8x8xi32, #tpu.memory_space<vmem>>, %arg4: memref<1x1x8xi32, #tpu.memory_space<vmem>>, %arg5: memref<32x96xbf16, #tpu.memory_space<vmem>>, %arg6: memref<1x96xf32, #tpu.memory_space<vmem>>, %arg7: memref<32x32xbf16, #tpu.memory_space<vmem>>, %arg8: memref<1x32xf32, #tpu.memory_space<vmem>>, %arg9: memref<32x32xbf16, #tpu.memory_space<vmem>>, %arg10: memref<1x32xf32, #tpu.memory_space<vmem>>, %arg11: memref<32x64xbf16, #tpu.memory_space<vmem>>, %arg12: memref<1x64xf32, #tpu.memory_space<vmem>>, %arg13: memref<32x32xbf16, #tpu.memory_space<vmem>>, %arg14: memref<1x32xf32, #tpu.memory_space<vmem>>, %arg15: memref<32x64xbf16, #tpu.memory_space<vmem>>, %arg16: memref<1x64xf32, #tpu.memory_space<vmem>>, %arg17: memref<64x32xbf16, #tpu.memory_space<vmem>>, %arg18: memref<1x32xf32, #tpu.memory_space<vmem>>, %arg19: memref<1x32xf32, #tpu.memory_space<vmem>>, %arg20: memref<1x32xf32, #tpu.memory_space<vmem>>, %arg21: memref<1x32xf32, #tpu.memory_space<vmem>>, %arg22: memref<1x32xf32, #tpu.memory_space<vmem>>, %arg23: memref<1x32xf32, #tpu.memory_space<vmem>>, %arg24: memref<1x32xf32, #tpu.memory_space<vmem>>, %arg25: memref<1x32xf32, #tpu.memory_space<vmem>>, %arg26: memref<1x32xf32, #tpu.memory_space<vmem>>, %arg27: memref<1x8x32xf32, #tpu.memory_space<vmem>>, %arg28: memref<8x96xf32, #tpu.memory_space<vmem>>, %arg29: memref<8x64xf32, #tpu.memory_space<vmem>>, %arg30: memref<8x32xf32, #tpu.memory_space<vmem>>) attributes {dimension_semantics = [#tpu.dimension_semantics<parallel>], iteration_bounds = array<i64: 2>, scalar_prefetch = 0 : i64, scratch_operands = 3 : i64, tpu.core_type = #tpu.core_type<tc>, window_params = [{transform_indices = @transform_0, window_bounds = array<i64: 1, 8, 32>}, {transform_indices = @transform_1, window_bounds = array<i64: 1, 8, 32>}, {transform_indices = @transform_2, window_bounds = array<i64: 1, 8, 8>}, {transform_indices = @transform_3, window_bounds = array<i64: 1, 1, 8>}, {pipeline_mode = #tpu.pipeline_mode<synchronous>, transform_indices = @transform_4, window_bounds = array<i64: 32, 96>}, {pipeline_mode = #tpu.pipeline_mode<synchronous>, transform_indices = @transform_5, window_bounds = array<i64: 1, 96>}, {pipeline_mode = #tpu.pipeline_mode<synchronous>, transform_indices = @transform_6, window_bounds = array<i64: 32, 32>}, {pipeline_mode = #tpu.pipeline_mode<synchronous>, transform_indices = @transform_7, window_bounds = array<i64: 1, 32>}, {pipeline_mode = #tpu.pipeline_mode<synchronous>, transform_indices = @transform_8, window_bounds = array<i64: 32, 32>}, {pipeline_mode = #tpu.pipeline_mode<synchronous>, transform_indices = @transform_9, window_bounds = array<i64: 1, 32>}, {pipeline_mode = #tpu.pipeline_mode<synchronous>, transform_indices = @transform_10, window_bounds = array<i64: 32, 64>}, {pipeline_mode = #tpu.pipeline_mode<synchronous>, transform_indices = @transform_11, window_bounds = array<i64: 1, 64>}, {pipeline_mode = #tpu.pipeline_mode<synchronous>, transform_indices = @transform_12, window_bounds = array<i64: 32, 32>}, {pipeline_mode = #tpu.pipeline_mode<synchronous>, transform_indices = @transform_13, window_bounds = array<i64: 1, 32>}, {pipeline_mode = #tpu.pipeline_mode<synchronous>, transform_indices = @transform_14, window_bounds = array<i64: 32, 64>}, {pipeline_mode = #tpu.pipeline_mode<synchronous>, transform_indices = @transform_15, window_bounds = array<i64: 1, 64>}, {pipeline_mode = #tpu.pipeline_mode<synchronous>, transform_indices = @transform_16, window_bounds = array<i64: 64, 32>}, {pipeline_mode = #tpu.pipeline_mode<synchronous>, transform_indices = @transform_17, window_bounds = array<i64: 1, 32>}, {pipeline_mode = #tpu.pipeline_mode<synchronous>, transform_indices = @transform_18, window_bounds = array<i64: 1, 32>}, {pipeline_mode = #tpu.pipeline_mode<synchronous>, transform_indices = @transform_19, window_bounds = array<i64: 1, 32>}, {pipeline_mode = #tpu.pipeline_mode<synchronous>, transform_indices = @transform_20, window_bounds = array<i64: 1, 32>}, {pipeline_mode = #tpu.pipeline_mode<synchronous>, transform_indices = @transform_21, window_bounds = array<i64: 1, 32>}, {pipeline_mode = #tpu.pipeline_mode<synchronous>, transform_indices = @transform_22, window_bounds = array<i64: 1, 32>}, {pipeline_mode = #tpu.pipeline_mode<synchronous>, transform_indices = @transform_23, window_bounds = array<i64: 1, 32>}, {pipeline_mode = #tpu.pipeline_mode<synchronous>, transform_indices = @transform_24, window_bounds = array<i64: 1, 32>}, {pipeline_mode = #tpu.pipeline_mode<synchronous>, transform_indices = @transform_25, window_bounds = array<i64: 1, 32>}, {transform_indices = @transform_26, window_bounds = array<i64: 1, 8, 32>}]} {
    %c0 = arith.constant 0 : index
    %c0_0 = arith.constant 0 : index
    %c0_1 = arith.constant 0 : index
    %0 = vector.load %arg1[%c0, %c0_0, %c0_1] : memref<1x8x32xf32, #tpu.memory_space<vmem>>, vector<1x8x32xf32>
    %1 = vector.shape_cast %0 : vector<1x8x32xf32> to vector<8x32xf32>
    %c0_2 = arith.constant 0 : index
    %c0_3 = arith.constant 0 : index
    %c0_4 = arith.constant 0 : index
    %2 = vector.load %arg2[%c0_2, %c0_3, %c0_4] : memref<1x8x32xf32, #tpu.memory_space<vmem>>, vector<1x8x32xf32>
    %3 = vector.shape_cast %2 : vector<1x8x32xf32> to vector<8x32xf32>
    %c0_5 = arith.constant 0 : index
    %c0_6 = arith.constant 0 : index
    %4 = vector.load %arg19[%c0_5, %c0_6] : memref<1x32xf32, #tpu.memory_space<vmem>>, vector<1x32xf32>
    %c0_7 = arith.constant 0 : index
    %c0_8 = arith.constant 0 : index
    %5 = vector.load %arg20[%c0_7, %c0_8] : memref<1x32xf32, #tpu.memory_space<vmem>>, vector<1x32xf32>
    %cst = arith.constant dense<0.000000e+00> : vector<8xf32>
    %6 = vector.multi_reduction <add>, %1, %cst [1] : vector<8x32xf32> to vector<8xf32>
    %7 = vector.shape_cast %6 : vector<8xf32> to vector<8x1xf32>
    %cst_9 = arith.constant 3.200000e+01 : f32
    %8 = vector.broadcast %cst_9 : f32 to vector<8x1xf32>
    %9 = arith.divf %7, %8 : vector<8x1xf32>
    %10 = vector.broadcast %9 : vector<8x1xf32> to vector<8x32xf32>
    %11 = arith.subf %1, %10 : vector<8x32xf32>
    %12 = arith.mulf %11, %11 : vector<8x32xf32>
    %cst_10 = arith.constant dense<0.000000e+00> : vector<8xf32>
    %13 = vector.multi_reduction <add>, %12, %cst_10 [1] : vector<8x32xf32> to vector<8xf32>
    %14 = vector.shape_cast %13 : vector<8xf32> to vector<8x1xf32>
    %cst_11 = arith.constant 0.0322580636 : f32
    %15 = vector.broadcast %cst_11 : f32 to vector<8x1xf32>
    %16 = arith.mulf %14, %15 : vector<8x1xf32>
    %17 = math.sqrt %16 : vector<8x1xf32>
    %18 = vector.broadcast %4 : vector<1x32xf32> to vector<8x32xf32>
    %19 = arith.mulf %18, %11 : vector<8x32xf32>
    %cst_12 = arith.constant 9.99999997E-7 : f32
    %20 = vector.broadcast %cst_12 : f32 to vector<8x1xf32>
    %21 = arith.addf %17, %20 : vector<8x1xf32>
    %22 = vector.broadcast %21 : vector<8x1xf32> to vector<8x32xf32>
    %23 = arith.divf %19, %22 : vector<8x32xf32>
    %24 = vector.broadcast %5 : vector<1x32xf32> to vector<8x32xf32>
    %25 = arith.addf %23, %24 : vector<8x32xf32>
    %26 = arith.truncf %25 : vector<8x32xf32> to vector<8x32xbf16>
    %c0_13 = arith.constant 0 : index
    %c0_14 = arith.constant 0 : index
    %27 = vector.load %arg5[%c0_13, %c0_14] : memref<32x96xbf16, #tpu.memory_space<vmem>>, vector<32x96xbf16>
    %cst_15 = arith.constant dense<0.000000e+00> : vector<8x96xf32>
    %28 = tpu.matmul %26, %27, %cst_15 {dimension_numbers = #tpu.dot_dimension_numbers<[1], [0], [0], [1], [0, 0, 1, 1], [], []>} : vector<8x32xbf16>, vector<32x96xbf16>, vector<8x96xf32> -> vector<8x96xf32>
    %c0_16 = arith.constant 0 : index
    %c0_17 = arith.constant 0 : index
    %29 = vector.load %arg6[%c0_16, %c0_17] : memref<1x96xf32, #tpu.memory_space<vmem>>, vector<1x96xf32>
    %30 = vector.broadcast %29 : vector<1x96xf32> to vector<8x96xf32>
    %31 = arith.addf %28, %30 : vector<8x96xf32>
    %c0_18 = arith.constant 0 : index
    %c0_19 = arith.constant 0 : index
    %32 = vector.load %arg28[%c0_18, %c0_19] : memref<8x96xf32, #tpu.memory_space<vmem>>, vector<8x96xf32>
    tpu.vector_store %arg28[%c0_18, %c0_19], %31 {strides = array<i32>} : memref<8x96xf32, #tpu.memory_space<vmem>>, vector<8x96xf32>,
    %c0_20 = arith.constant 0 : index
    %c0_21 = arith.constant 0 : index
    %c0_22 = arith.constant 0 : index
    %33 = vector.load %arg3[%c0_20, %c0_21, %c0_22] : memref<1x8x8xi32, #tpu.memory_space<vmem>>, vector<1x8x8xi32>
    %34 = vector.shape_cast %33 : vector<1x8x8xi32> to vector<8x8xi32>
    %c0_i32 = arith.constant 0 : i32
    %35 = vector.broadcast %c0_i32 : i32 to vector<8x8xi32>
    %36 = arith.cmpi ne, %34, %35 : vector<8x8xi32>
    %c0_23 = arith.constant 0 : index
    %c0_24 = arith.constant 0 : index
    %37 = vector.load %arg28[%c0_23, %c0_24] : memref<8x96xf32, #tpu.memory_space<vmem>>, vector<8x8xf32>
    %38 = arith.truncf %37 : vector<8x8xf32> to vector<8x8xbf16>
    %c0_25 = arith.constant 0 : index
    %c32 = arith.constant 32 : index
    %39 = vector.load %arg28[%c0_25, %c32] : memref<8x96xf32, #tpu.memory_space<vmem>>, vector<8x8xf32>
    %40 = arith.truncf %39 : vector<8x8xf32> to vector<8x8xbf16>
    %c0_26 = arith.constant 0 : index
    %c64 = arith.constant 64 : index
    %41 = vector.load %arg28[%c0_26, %c64] : memref<8x96xf32, #tpu.memory_space<vmem>>, vector<8x8xf32>
    %42 = arith.truncf %41 : vector<8x8xf32> to vector<8x8xbf16>
    %cst_27 = arith.constant dense<0.000000e+00> : vector<8x8xf32>
    %43 = tpu.matmul %38, %40, %cst_27 {dimension_numbers = #tpu.dot_dimension_numbers<[1], [1], [0], [0], [0, 0, 1, 0], [], []>} : vector<8x8xbf16>, vector<8x8xbf16>, vector<8x8xf32> -> vector<8x8xf32>
    %cst_28 = arith.constant 0.353553385 : f32
    %44 = vector.broadcast %cst_28 : f32 to vector<8x8xf32>
    %45 = arith.mulf %43, %44 : vector<8x8xf32>
    %cst_29 = arith.constant -1.000000e+09 : f32
    %46 = vector.broadcast %cst_29 : f32 to vector<8x8xf32>
    %47 = arith.select %36, %45, %46 : vector<8x8xi1>, vector<8x8xf32>
    %cst_30 = arith.constant dense<0xFF800000> : vector<8xf32>
    %48 = vector.multi_reduction <maximumf>, %47, %cst_30 [1] : vector<8x8xf32> to vector<8xf32>
    %49 = vector.shape_cast %48 : vector<8xf32> to vector<8x1xf32>
    %50 = vector.broadcast %49 : vector<8x1xf32> to vector<8x8xf32>
    %51 = arith.subf %47, %50 : vector<8x8xf32>
    %52 = math.exp %51 : vector<8x8xf32>
    %cst_31 = arith.constant dense<0.000000e+00> : vector<8xf32>
    %53 = vector.multi_reduction <add>, %52, %cst_31 [1] : vector<8x8xf32> to vector<8xf32>
    %54 = vector.shape_cast %53 : vector<8xf32> to vector<8x1xf32>
    %55 = tpu.reciprocal %54 {approx = true} : vector<8x1xf32> -> vector<8x1xf32>
    %56 = vector.broadcast %55 : vector<8x1xf32> to vector<8x8xf32>
    %57 = arith.mulf %52, %56 : vector<8x8xf32>
    %58 = arith.truncf %57 : vector<8x8xf32> to vector<8x8xbf16>
    %cst_32 = arith.constant dense<0.000000e+00> : vector<8x8xf32>
    %59 = tpu.matmul %58, %42, %cst_32 {dimension_numbers = #tpu.dot_dimension_numbers<[1], [0], [0], [1], [0, 0, 1, 1], [], []>} : vector<8x8xbf16>, vector<8x8xbf16>, vector<8x8xf32> -> vector<8x8xf32>
    %c0_33 = arith.constant 0 : index
    %c0_34 = arith.constant 0 : index
    %60 = vector.load %arg30[%c0_33, %c0_34] : memref<8x32xf32, #tpu.memory_space<vmem>>, vector<8x8xf32>
    tpu.vector_store %arg30[%c0_33, %c0_34], %59 {strides = array<i32>} : memref<8x32xf32, #tpu.memory_space<vmem>>, vector<8x8xf32>,
    %c0_35 = arith.constant 0 : index
    %c8 = arith.constant 8 : index
    %61 = vector.load %arg28[%c0_35, %c8] : memref<8x96xf32, #tpu.memory_space<vmem>>, vector<8x8xf32>
    %62 = arith.truncf %61 : vector<8x8xf32> to vector<8x8xbf16>
    %c0_36 = arith.constant 0 : index
    %c40 = arith.constant 40 : index
    %63 = vector.load %arg28[%c0_36, %c40] : memref<8x96xf32, #tpu.memory_space<vmem>>, vector<8x8xf32>
    %64 = arith.truncf %63 : vector<8x8xf32> to vector<8x8xbf16>
    %c0_37 = arith.constant 0 : index
    %c72 = arith.constant 72 : index
    %65 = vector.load %arg28[%c0_37, %c72] : memref<8x96xf32, #tpu.memory_space<vmem>>, vector<8x8xf32>
    %66 = arith.truncf %65 : vector<8x8xf32> to vector<8x8xbf16>
    %cst_38 = arith.constant dense<0.000000e+00> : vector<8x8xf32>
    %67 = tpu.matmul %62, %64, %cst_38 {dimension_numbers = #tpu.dot_dimension_numbers<[1], [1], [0], [0], [0, 0, 1, 0], [], []>} : vector<8x8xbf16>, vector<8x8xbf16>, vector<8x8xf32> -> vector<8x8xf32>
    %cst_39 = arith.constant 0.353553385 : f32
    %68 = vector.broadcast %cst_39 : f32 to vector<8x8xf32>
    %69 = arith.mulf %67, %68 : vector<8x8xf32>
    %cst_40 = arith.constant -1.000000e+09 : f32
    %70 = vector.broadcast %cst_40 : f32 to vector<8x8xf32>
    %71 = arith.select %36, %69, %70 : vector<8x8xi1>, vector<8x8xf32>
    %cst_41 = arith.constant dense<0xFF800000> : vector<8xf32>
    %72 = vector.multi_reduction <maximumf>, %71, %cst_41 [1] : vector<8x8xf32> to vector<8xf32>
    %73 = vector.shape_cast %72 : vector<8xf32> to vector<8x1xf32>
    %74 = vector.broadcast %73 : vector<8x1xf32> to vector<8x8xf32>
    %75 = arith.subf %71, %74 : vector<8x8xf32>
    %76 = math.exp %75 : vector<8x8xf32>
    %cst_42 = arith.constant dense<0.000000e+00> : vector<8xf32>
    %77 = vector.multi_reduction <add>, %76, %cst_42 [1] : vector<8x8xf32> to vector<8xf32>
    %78 = vector.shape_cast %77 : vector<8xf32> to vector<8x1xf32>
    %79 = tpu.reciprocal %78 {approx = true} : vector<8x1xf32> -> vector<8x1xf32>
    %80 = vector.broadcast %79 : vector<8x1xf32> to vector<8x8xf32>
    %81 = arith.mulf %76, %80 : vector<8x8xf32>
    %82 = arith.truncf %81 : vector<8x8xf32> to vector<8x8xbf16>
    %cst_43 = arith.constant dense<0.000000e+00> : vector<8x8xf32>
    %83 = tpu.matmul %82, %66, %cst_43 {dimension_numbers = #tpu.dot_dimension_numbers<[1], [0], [0], [1], [0, 0, 1, 1], [], []>} : vector<8x8xbf16>, vector<8x8xbf16>, vector<8x8xf32> -> vector<8x8xf32>
    %c0_44 = arith.constant 0 : index
    %c8_45 = arith.constant 8 : index
    %84 = vector.load %arg30[%c0_44, %c8_45] : memref<8x32xf32, #tpu.memory_space<vmem>>, vector<8x8xf32>
    tpu.vector_store %arg30[%c0_44, %c8_45], %83 {strides = array<i32>} : memref<8x32xf32, #tpu.memory_space<vmem>>, vector<8x8xf32>,
    %c0_46 = arith.constant 0 : index
    %c16 = arith.constant 16 : index
    %85 = vector.load %arg28[%c0_46, %c16] : memref<8x96xf32, #tpu.memory_space<vmem>>, vector<8x8xf32>
    %86 = arith.truncf %85 : vector<8x8xf32> to vector<8x8xbf16>
    %c0_47 = arith.constant 0 : index
    %c48 = arith.constant 48 : index
    %87 = vector.load %arg28[%c0_47, %c48] : memref<8x96xf32, #tpu.memory_space<vmem>>, vector<8x8xf32>
    %88 = arith.truncf %87 : vector<8x8xf32> to vector<8x8xbf16>
    %c0_48 = arith.constant 0 : index
    %c80 = arith.constant 80 : index
    %89 = vector.load %arg28[%c0_48, %c80] : memref<8x96xf32, #tpu.memory_space<vmem>>, vector<8x8xf32>
    %90 = arith.truncf %89 : vector<8x8xf32> to vector<8x8xbf16>
    %cst_49 = arith.constant dense<0.000000e+00> : vector<8x8xf32>
    %91 = tpu.matmul %86, %88, %cst_49 {dimension_numbers = #tpu.dot_dimension_numbers<[1], [1], [0], [0], [0, 0, 1, 0], [], []>} : vector<8x8xbf16>, vector<8x8xbf16>, vector<8x8xf32> -> vector<8x8xf32>
    %cst_50 = arith.constant 0.353553385 : f32
    %92 = vector.broadcast %cst_50 : f32 to vector<8x8xf32>
    %93 = arith.mulf %91, %92 : vector<8x8xf32>
    %cst_51 = arith.constant -1.000000e+09 : f32
    %94 = vector.broadcast %cst_51 : f32 to vector<8x8xf32>
    %95 = arith.select %36, %93, %94 : vector<8x8xi1>, vector<8x8xf32>
    %cst_52 = arith.constant dense<0xFF800000> : vector<8xf32>
    %96 = vector.multi_reduction <maximumf>, %95, %cst_52 [1] : vector<8x8xf32> to vector<8xf32>
    %97 = vector.shape_cast %96 : vector<8xf32> to vector<8x1xf32>
    %98 = vector.broadcast %97 : vector<8x1xf32> to vector<8x8xf32>
    %99 = arith.subf %95, %98 : vector<8x8xf32>
    %100 = math.exp %99 : vector<8x8xf32>
    %cst_53 = arith.constant dense<0.000000e+00> : vector<8xf32>
    %101 = vector.multi_reduction <add>, %100, %cst_53 [1] : vector<8x8xf32> to vector<8xf32>
    %102 = vector.shape_cast %101 : vector<8xf32> to vector<8x1xf32>
    %103 = tpu.reciprocal %102 {approx = true} : vector<8x1xf32> -> vector<8x1xf32>
    %104 = vector.broadcast %103 : vector<8x1xf32> to vector<8x8xf32>
    %105 = arith.mulf %100, %104 : vector<8x8xf32>
    %106 = arith.truncf %105 : vector<8x8xf32> to vector<8x8xbf16>
    %cst_54 = arith.constant dense<0.000000e+00> : vector<8x8xf32>
    %107 = tpu.matmul %106, %90, %cst_54 {dimension_numbers = #tpu.dot_dimension_numbers<[1], [0], [0], [1], [0, 0, 1, 1], [], []>} : vector<8x8xbf16>, vector<8x8xbf16>, vector<8x8xf32> -> vector<8x8xf32>
    %c0_55 = arith.constant 0 : index
    %c16_56 = arith.constant 16 : index
    %108 = vector.load %arg30[%c0_55, %c16_56] : memref<8x32xf32, #tpu.memory_space<vmem>>, vector<8x8xf32>
    tpu.vector_store %arg30[%c0_55, %c16_56], %107 {strides = array<i32>} : memref<8x32xf32, #tpu.memory_space<vmem>>, vector<8x8xf32>,
    %c0_57 = arith.constant 0 : index
    %c24 = arith.constant 24 : index
    %109 = vector.load %arg28[%c0_57, %c24] : memref<8x96xf32, #tpu.memory_space<vmem>>, vector<8x8xf32>
    %110 = arith.truncf %109 : vector<8x8xf32> to vector<8x8xbf16>
    %c0_58 = arith.constant 0 : index
    %c56 = arith.constant 56 : index
    %111 = vector.load %arg28[%c0_58, %c56] : memref<8x96xf32, #tpu.memory_space<vmem>>, vector<8x8xf32>
    %112 = arith.truncf %111 : vector<8x8xf32> to vector<8x8xbf16>
    %c0_59 = arith.constant 0 : index
    %c88 = arith.constant 88 : index
    %113 = vector.load %arg28[%c0_59, %c88] : memref<8x96xf32, #tpu.memory_space<vmem>>, vector<8x8xf32>
    %114 = arith.truncf %113 : vector<8x8xf32> to vector<8x8xbf16>
    %cst_60 = arith.constant dense<0.000000e+00> : vector<8x8xf32>
    %115 = tpu.matmul %110, %112, %cst_60 {dimension_numbers = #tpu.dot_dimension_numbers<[1], [1], [0], [0], [0, 0, 1, 0], [], []>} : vector<8x8xbf16>, vector<8x8xbf16>, vector<8x8xf32> -> vector<8x8xf32>
    %cst_61 = arith.constant 0.353553385 : f32
    %116 = vector.broadcast %cst_61 : f32 to vector<8x8xf32>
    %117 = arith.mulf %115, %116 : vector<8x8xf32>
    %cst_62 = arith.constant -1.000000e+09 : f32
    %118 = vector.broadcast %cst_62 : f32 to vector<8x8xf32>
    %119 = arith.select %36, %117, %118 : vector<8x8xi1>, vector<8x8xf32>
    %cst_63 = arith.constant dense<0xFF800000> : vector<8xf32>
    %120 = vector.multi_reduction <maximumf>, %119, %cst_63 [1] : vector<8x8xf32> to vector<8xf32>
    %121 = vector.shape_cast %120 : vector<8xf32> to vector<8x1xf32>
    %122 = vector.broadcast %121 : vector<8x1xf32> to vector<8x8xf32>
    %123 = arith.subf %119, %122 : vector<8x8xf32>
    %124 = math.exp %123 : vector<8x8xf32>
    %cst_64 = arith.constant dense<0.000000e+00> : vector<8xf32>
    %125 = vector.multi_reduction <add>, %124, %cst_64 [1] : vector<8x8xf32> to vector<8xf32>
    %126 = vector.shape_cast %125 : vector<8xf32> to vector<8x1xf32>
    %127 = tpu.reciprocal %126 {approx = true} : vector<8x1xf32> -> vector<8x1xf32>
    %128 = vector.broadcast %127 : vector<8x1xf32> to vector<8x8xf32>
    %129 = arith.mulf %124, %128 : vector<8x8xf32>
    %130 = arith.truncf %129 : vector<8x8xf32> to vector<8x8xbf16>
    %cst_65 = arith.constant dense<0.000000e+00> : vector<8x8xf32>
    %131 = tpu.matmul %130, %114, %cst_65 {dimension_numbers = #tpu.dot_dimension_numbers<[1], [0], [0], [1], [0, 0, 1, 1], [], []>} : vector<8x8xbf16>, vector<8x8xbf16>, vector<8x8xf32> -> vector<8x8xf32>
    %c0_66 = arith.constant 0 : index
    %c24_67 = arith.constant 24 : index
    %132 = vector.load %arg30[%c0_66, %c24_67] : memref<8x32xf32, #tpu.memory_space<vmem>>, vector<8x8xf32>
    tpu.vector_store %arg30[%c0_66, %c24_67], %131 {strides = array<i32>} : memref<8x32xf32, #tpu.memory_space<vmem>>, vector<8x8xf32>,
    %c0_68 = arith.constant 0 : index
    %c0_69 = arith.constant 0 : index
    %133 = vector.load %arg30[%c0_68, %c0_69] : memref<8x32xf32, #tpu.memory_space<vmem>>, vector<8x32xf32>
    %134 = arith.truncf %133 : vector<8x32xf32> to vector<8x32xbf16>
    %c0_70 = arith.constant 0 : index
    %c0_71 = arith.constant 0 : index
    %135 = vector.load %arg7[%c0_70, %c0_71] : memref<32x32xbf16, #tpu.memory_space<vmem>>, vector<32x32xbf16>
    %cst_72 = arith.constant dense<0.000000e+00> : vector<8x32xf32>
    %136 = tpu.matmul %134, %135, %cst_72 {dimension_numbers = #tpu.dot_dimension_numbers<[1], [0], [0], [1], [0, 0, 1, 1], [], []>} : vector<8x32xbf16>, vector<32x32xbf16>, vector<8x32xf32> -> vector<8x32xf32>
    %137 = arith.addf %1, %136 : vector<8x32xf32>
    %c0_73 = arith.constant 0 : index
    %c0_74 = arith.constant 0 : index
    %138 = vector.load %arg8[%c0_73, %c0_74] : memref<1x32xf32, #tpu.memory_space<vmem>>, vector<1x32xf32>
    %139 = vector.broadcast %138 : vector<1x32xf32> to vector<8x32xf32>
    %140 = arith.addf %137, %139 : vector<8x32xf32>
    %c0_75 = arith.constant 0 : index
    %c0_76 = arith.constant 0 : index
    %141 = vector.load %arg21[%c0_75, %c0_76] : memref<1x32xf32, #tpu.memory_space<vmem>>, vector<1x32xf32>
    %c0_77 = arith.constant 0 : index
    %c0_78 = arith.constant 0 : index
    %142 = vector.load %arg22[%c0_77, %c0_78] : memref<1x32xf32, #tpu.memory_space<vmem>>, vector<1x32xf32>
    %cst_79 = arith.constant dense<0.000000e+00> : vector<8xf32>
    %143 = vector.multi_reduction <add>, %140, %cst_79 [1] : vector<8x32xf32> to vector<8xf32>
    %144 = vector.shape_cast %143 : vector<8xf32> to vector<8x1xf32>
    %cst_80 = arith.constant 3.200000e+01 : f32
    %145 = vector.broadcast %cst_80 : f32 to vector<8x1xf32>
    %146 = arith.divf %144, %145 : vector<8x1xf32>
    %147 = vector.broadcast %146 : vector<8x1xf32> to vector<8x32xf32>
    %148 = arith.subf %140, %147 : vector<8x32xf32>
    %149 = arith.mulf %148, %148 : vector<8x32xf32>
    %cst_81 = arith.constant dense<0.000000e+00> : vector<8xf32>
    %150 = vector.multi_reduction <add>, %149, %cst_81 [1] : vector<8x32xf32> to vector<8xf32>
    %151 = vector.shape_cast %150 : vector<8xf32> to vector<8x1xf32>
    %cst_82 = arith.constant 0.0322580636 : f32
    %152 = vector.broadcast %cst_82 : f32 to vector<8x1xf32>
    %153 = arith.mulf %151, %152 : vector<8x1xf32>
    %154 = math.sqrt %153 : vector<8x1xf32>
    %155 = vector.broadcast %141 : vector<1x32xf32> to vector<8x32xf32>
    %156 = arith.mulf %155, %148 : vector<8x32xf32>
    %cst_83 = arith.constant 9.99999997E-7 : f32
    %157 = vector.broadcast %cst_83 : f32 to vector<8x1xf32>
    %158 = arith.addf %154, %157 : vector<8x1xf32>
    %159 = vector.broadcast %158 : vector<8x1xf32> to vector<8x32xf32>
    %160 = arith.divf %156, %159 : vector<8x32xf32>
    %161 = vector.broadcast %142 : vector<1x32xf32> to vector<8x32xf32>
    %162 = arith.addf %160, %161 : vector<8x32xf32>
    %163 = arith.truncf %162 : vector<8x32xf32> to vector<8x32xbf16>
    %c0_84 = arith.constant 0 : index
    %c0_85 = arith.constant 0 : index
    %164 = vector.load %arg9[%c0_84, %c0_85] : memref<32x32xbf16, #tpu.memory_space<vmem>>, vector<32x32xbf16>
    %cst_86 = arith.constant dense<0.000000e+00> : vector<8x32xf32>
    %165 = tpu.matmul %163, %164, %cst_86 {dimension_numbers = #tpu.dot_dimension_numbers<[1], [0], [0], [1], [0, 0, 1, 1], [], []>} : vector<8x32xbf16>, vector<32x32xbf16>, vector<8x32xf32> -> vector<8x32xf32>
    %c0_87 = arith.constant 0 : index
    %c0_88 = arith.constant 0 : index
    %166 = vector.load %arg10[%c0_87, %c0_88] : memref<1x32xf32, #tpu.memory_space<vmem>>, vector<1x32xf32>
    %167 = vector.broadcast %166 : vector<1x32xf32> to vector<8x32xf32>
    %168 = arith.addf %165, %167 : vector<8x32xf32>
    %c0_89 = arith.constant 0 : index
    %c0_90 = arith.constant 0 : index
    %169 = vector.load %arg28[%c0_89, %c0_90] : memref<8x96xf32, #tpu.memory_space<vmem>>, vector<8x32xf32>
    tpu.vector_store %arg28[%c0_89, %c0_90], %168 {strides = array<i32>} : memref<8x96xf32, #tpu.memory_space<vmem>>, vector<8x32xf32>,
    %170 = arith.truncf %3 : vector<8x32xf32> to vector<8x32xbf16>
    %c0_91 = arith.constant 0 : index
    %c0_92 = arith.constant 0 : index
    %171 = vector.load %arg11[%c0_91, %c0_92] : memref<32x64xbf16, #tpu.memory_space<vmem>>, vector<32x64xbf16>
    %cst_93 = arith.constant dense<0.000000e+00> : vector<8x64xf32>
    %172 = tpu.matmul %170, %171, %cst_93 {dimension_numbers = #tpu.dot_dimension_numbers<[1], [0], [0], [1], [0, 0, 1, 1], [], []>} : vector<8x32xbf16>, vector<32x64xbf16>, vector<8x64xf32> -> vector<8x64xf32>
    %c0_94 = arith.constant 0 : index
    %c0_95 = arith.constant 0 : index
    %173 = vector.load %arg12[%c0_94, %c0_95] : memref<1x64xf32, #tpu.memory_space<vmem>>, vector<1x64xf32>
    %174 = vector.broadcast %173 : vector<1x64xf32> to vector<8x64xf32>
    %175 = arith.addf %172, %174 : vector<8x64xf32>
    %c0_96 = arith.constant 0 : index
    %c0_97 = arith.constant 0 : index
    %176 = vector.load %arg29[%c0_96, %c0_97] : memref<8x64xf32, #tpu.memory_space<vmem>>, vector<8x64xf32>
    tpu.vector_store %arg29[%c0_96, %c0_97], %175 {strides = array<i32>} : memref<8x64xf32, #tpu.memory_space<vmem>>, vector<8x64xf32>,
    %c0_98 = arith.constant 0 : index
    %c0_99 = arith.constant 0 : index
    %c0_100 = arith.constant 0 : index
    %177 = vector.load %arg4[%c0_98, %c0_99, %c0_100] : memref<1x1x8xi32, #tpu.memory_space<vmem>>, vector<1x1x8xi32>
    %178 = vector.shape_cast %177 : vector<1x1x8xi32> to vector<1x8xi32>
    %c0_i32_101 = arith.constant 0 : i32
    %179 = vector.broadcast %c0_i32_101 : i32 to vector<1x8xi32>
    %180 = arith.cmpi ne, %178, %179 : vector<1x8xi32>
    %c0_102 = arith.constant 0 : index
    %c0_103 = arith.constant 0 : index
    %181 = vector.load %arg28[%c0_102, %c0_103] : memref<8x96xf32, #tpu.memory_space<vmem>>, vector<8x8xf32>
    %182 = arith.truncf %181 : vector<8x8xf32> to vector<8x8xbf16>
    %c0_104 = arith.constant 0 : index
    %c0_105 = arith.constant 0 : index
    %183 = vector.load %arg29[%c0_104, %c0_105] : memref<8x64xf32, #tpu.memory_space<vmem>>, vector<8x8xf32>
    %184 = arith.truncf %183 : vector<8x8xf32> to vector<8x8xbf16>
    %c0_106 = arith.constant 0 : index
    %c32_107 = arith.constant 32 : index
    %185 = vector.load %arg29[%c0_106, %c32_107] : memref<8x64xf32, #tpu.memory_space<vmem>>, vector<8x8xf32>
    %186 = arith.truncf %185 : vector<8x8xf32> to vector<8x8xbf16>
    %cst_108 = arith.constant dense<0.000000e+00> : vector<8x8xf32>
    %187 = tpu.matmul %182, %184, %cst_108 {dimension_numbers = #tpu.dot_dimension_numbers<[1], [1], [0], [0], [0, 0, 1, 0], [], []>} : vector<8x8xbf16>, vector<8x8xbf16>, vector<8x8xf32> -> vector<8x8xf32>
    %cst_109 = arith.constant 0.353553385 : f32
    %188 = vector.broadcast %cst_109 : f32 to vector<8x8xf32>
    %189 = arith.mulf %187, %188 : vector<8x8xf32>
    %cst_110 = arith.constant -1.000000e+09 : f32
    %190 = vector.shape_cast %180 : vector<1x8xi1> to vector<1x8xi1>
    %191 = vector.broadcast %190 : vector<1x8xi1> to vector<8x8xi1>
    %192 = vector.broadcast %cst_110 : f32 to vector<8x8xf32>
    %193 = arith.select %191, %189, %192 : vector<8x8xi1>, vector<8x8xf32>
    %cst_111 = arith.constant dense<0xFF800000> : vector<8xf32>
    %194 = vector.multi_reduction <maximumf>, %193, %cst_111 [1] : vector<8x8xf32> to vector<8xf32>
    %195 = vector.shape_cast %194 : vector<8xf32> to vector<8x1xf32>
    %196 = vector.broadcast %195 : vector<8x1xf32> to vector<8x8xf32>
    %197 = arith.subf %193, %196 : vector<8x8xf32>
    %198 = math.exp %197 : vector<8x8xf32>
    %cst_112 = arith.constant dense<0.000000e+00> : vector<8xf32>
    %199 = vector.multi_reduction <add>, %198, %cst_112 [1] : vector<8x8xf32> to vector<8xf32>
    %200 = vector.shape_cast %199 : vector<8xf32> to vector<8x1xf32>
    %201 = tpu.reciprocal %200 {approx = true} : vector<8x1xf32> -> vector<8x1xf32>
    %202 = vector.broadcast %201 : vector<8x1xf32> to vector<8x8xf32>
    %203 = arith.mulf %198, %202 : vector<8x8xf32>
    %204 = arith.truncf %203 : vector<8x8xf32> to vector<8x8xbf16>
    %cst_113 = arith.constant dense<0.000000e+00> : vector<8x8xf32>
    %205 = tpu.matmul %204, %186, %cst_113 {dimension_numbers = #tpu.dot_dimension_numbers<[1], [0], [0], [1], [0, 0, 1, 1], [], []>} : vector<8x8xbf16>, vector<8x8xbf16>, vector<8x8xf32> -> vector<8x8xf32>
    %c0_114 = arith.constant 0 : index
    %c0_115 = arith.constant 0 : index
    %206 = vector.load %arg30[%c0_114, %c0_115] : memref<8x32xf32, #tpu.memory_space<vmem>>, vector<8x8xf32>
    tpu.vector_store %arg30[%c0_114, %c0_115], %205 {strides = array<i32>} : memref<8x32xf32, #tpu.memory_space<vmem>>, vector<8x8xf32>,
    %c0_116 = arith.constant 0 : index
    %c8_117 = arith.constant 8 : index
    %207 = vector.load %arg28[%c0_116, %c8_117] : memref<8x96xf32, #tpu.memory_space<vmem>>, vector<8x8xf32>
    %208 = arith.truncf %207 : vector<8x8xf32> to vector<8x8xbf16>
    %c0_118 = arith.constant 0 : index
    %c8_119 = arith.constant 8 : index
    %209 = vector.load %arg29[%c0_118, %c8_119] : memref<8x64xf32, #tpu.memory_space<vmem>>, vector<8x8xf32>
    %210 = arith.truncf %209 : vector<8x8xf32> to vector<8x8xbf16>
    %c0_120 = arith.constant 0 : index
    %c40_121 = arith.constant 40 : index
    %211 = vector.load %arg29[%c0_120, %c40_121] : memref<8x64xf32, #tpu.memory_space<vmem>>, vector<8x8xf32>
    %212 = arith.truncf %211 : vector<8x8xf32> to vector<8x8xbf16>
    %cst_122 = arith.constant dense<0.000000e+00> : vector<8x8xf32>
    %213 = tpu.matmul %208, %210, %cst_122 {dimension_numbers = #tpu.dot_dimension_numbers<[1], [1], [0], [0], [0, 0, 1, 0], [], []>} : vector<8x8xbf16>, vector<8x8xbf16>, vector<8x8xf32> -> vector<8x8xf32>
    %cst_123 = arith.constant 0.353553385 : f32
    %214 = vector.broadcast %cst_123 : f32 to vector<8x8xf32>
    %215 = arith.mulf %213, %214 : vector<8x8xf32>
    %cst_124 = arith.constant -1.000000e+09 : f32
    %216 = vector.shape_cast %180 : vector<1x8xi1> to vector<1x8xi1>
    %217 = vector.broadcast %216 : vector<1x8xi1> to vector<8x8xi1>
    %218 = vector.broadcast %cst_124 : f32 to vector<8x8xf32>
    %219 = arith.select %217, %215, %218 : vector<8x8xi1>, vector<8x8xf32>
    %cst_125 = arith.constant dense<0xFF800000> : vector<8xf32>
    %220 = vector.multi_reduction <maximumf>, %219, %cst_125 [1] : vector<8x8xf32> to vector<8xf32>
    %221 = vector.shape_cast %220 : vector<8xf32> to vector<8x1xf32>
    %222 = vector.broadcast %221 : vector<8x1xf32> to vector<8x8xf32>
    %223 = arith.subf %219, %222 : vector<8x8xf32>
    %224 = math.exp %223 : vector<8x8xf32>
    %cst_126 = arith.constant dense<0.000000e+00> : vector<8xf32>
    %225 = vector.multi_reduction <add>, %224, %cst_126 [1] : vector<8x8xf32> to vector<8xf32>
    %226 = vector.shape_cast %225 : vector<8xf32> to vector<8x1xf32>
    %227 = tpu.reciprocal %226 {approx = true} : vector<8x1xf32> -> vector<8x1xf32>
    %228 = vector.broadcast %227 : vector<8x1xf32> to vector<8x8xf32>
    %229 = arith.mulf %224, %228 : vector<8x8xf32>
    %230 = arith.truncf %229 : vector<8x8xf32> to vector<8x8xbf16>
    %cst_127 = arith.constant dense<0.000000e+00> : vector<8x8xf32>
    %231 = tpu.matmul %230, %212, %cst_127 {dimension_numbers = #tpu.dot_dimension_numbers<[1], [0], [0], [1], [0, 0, 1, 1], [], []>} : vector<8x8xbf16>, vector<8x8xbf16>, vector<8x8xf32> -> vector<8x8xf32>
    %c0_128 = arith.constant 0 : index
    %c8_129 = arith.constant 8 : index
    %232 = vector.load %arg30[%c0_128, %c8_129] : memref<8x32xf32, #tpu.memory_space<vmem>>, vector<8x8xf32>
    tpu.vector_store %arg30[%c0_128, %c8_129], %231 {strides = array<i32>} : memref<8x32xf32, #tpu.memory_space<vmem>>, vector<8x8xf32>,
    %c0_130 = arith.constant 0 : index
    %c16_131 = arith.constant 16 : index
    %233 = vector.load %arg28[%c0_130, %c16_131] : memref<8x96xf32, #tpu.memory_space<vmem>>, vector<8x8xf32>
    %234 = arith.truncf %233 : vector<8x8xf32> to vector<8x8xbf16>
    %c0_132 = arith.constant 0 : index
    %c16_133 = arith.constant 16 : index
    %235 = vector.load %arg29[%c0_132, %c16_133] : memref<8x64xf32, #tpu.memory_space<vmem>>, vector<8x8xf32>
    %236 = arith.truncf %235 : vector<8x8xf32> to vector<8x8xbf16>
    %c0_134 = arith.constant 0 : index
    %c48_135 = arith.constant 48 : index
    %237 = vector.load %arg29[%c0_134, %c48_135] : memref<8x64xf32, #tpu.memory_space<vmem>>, vector<8x8xf32>
    %238 = arith.truncf %237 : vector<8x8xf32> to vector<8x8xbf16>
    %cst_136 = arith.constant dense<0.000000e+00> : vector<8x8xf32>
    %239 = tpu.matmul %234, %236, %cst_136 {dimension_numbers = #tpu.dot_dimension_numbers<[1], [1], [0], [0], [0, 0, 1, 0], [], []>} : vector<8x8xbf16>, vector<8x8xbf16>, vector<8x8xf32> -> vector<8x8xf32>
    %cst_137 = arith.constant 0.353553385 : f32
    %240 = vector.broadcast %cst_137 : f32 to vector<8x8xf32>
    %241 = arith.mulf %239, %240 : vector<8x8xf32>
    %cst_138 = arith.constant -1.000000e+09 : f32
    %242 = vector.shape_cast %180 : vector<1x8xi1> to vector<1x8xi1>
    %243 = vector.broadcast %242 : vector<1x8xi1> to vector<8x8xi1>
    %244 = vector.broadcast %cst_138 : f32 to vector<8x8xf32>
    %245 = arith.select %243, %241, %244 : vector<8x8xi1>, vector<8x8xf32>
    %cst_139 = arith.constant dense<0xFF800000> : vector<8xf32>
    %246 = vector.multi_reduction <maximumf>, %245, %cst_139 [1] : vector<8x8xf32> to vector<8xf32>
    %247 = vector.shape_cast %246 : vector<8xf32> to vector<8x1xf32>
    %248 = vector.broadcast %247 : vector<8x1xf32> to vector<8x8xf32>
    %249 = arith.subf %245, %248 : vector<8x8xf32>
    %250 = math.exp %249 : vector<8x8xf32>
    %cst_140 = arith.constant dense<0.000000e+00> : vector<8xf32>
    %251 = vector.multi_reduction <add>, %250, %cst_140 [1] : vector<8x8xf32> to vector<8xf32>
    %252 = vector.shape_cast %251 : vector<8xf32> to vector<8x1xf32>
    %253 = tpu.reciprocal %252 {approx = true} : vector<8x1xf32> -> vector<8x1xf32>
    %254 = vector.broadcast %253 : vector<8x1xf32> to vector<8x8xf32>
    %255 = arith.mulf %250, %254 : vector<8x8xf32>
    %256 = arith.truncf %255 : vector<8x8xf32> to vector<8x8xbf16>
    %cst_141 = arith.constant dense<0.000000e+00> : vector<8x8xf32>
    %257 = tpu.matmul %256, %238, %cst_141 {dimension_numbers = #tpu.dot_dimension_numbers<[1], [0], [0], [1], [0, 0, 1, 1], [], []>} : vector<8x8xbf16>, vector<8x8xbf16>, vector<8x8xf32> -> vector<8x8xf32>
    %c0_142 = arith.constant 0 : index
    %c16_143 = arith.constant 16 : index
    %258 = vector.load %arg30[%c0_142, %c16_143] : memref<8x32xf32, #tpu.memory_space<vmem>>, vector<8x8xf32>
    tpu.vector_store %arg30[%c0_142, %c16_143], %257 {strides = array<i32>} : memref<8x32xf32, #tpu.memory_space<vmem>>, vector<8x8xf32>,
    %c0_144 = arith.constant 0 : index
    %c24_145 = arith.constant 24 : index
    %259 = vector.load %arg28[%c0_144, %c24_145] : memref<8x96xf32, #tpu.memory_space<vmem>>, vector<8x8xf32>
    %260 = arith.truncf %259 : vector<8x8xf32> to vector<8x8xbf16>
    %c0_146 = arith.constant 0 : index
    %c24_147 = arith.constant 24 : index
    %261 = vector.load %arg29[%c0_146, %c24_147] : memref<8x64xf32, #tpu.memory_space<vmem>>, vector<8x8xf32>
    %262 = arith.truncf %261 : vector<8x8xf32> to vector<8x8xbf16>
    %c0_148 = arith.constant 0 : index
    %c56_149 = arith.constant 56 : index
    %263 = vector.load %arg29[%c0_148, %c56_149] : memref<8x64xf32, #tpu.memory_space<vmem>>, vector<8x8xf32>
    %264 = arith.truncf %263 : vector<8x8xf32> to vector<8x8xbf16>
    %cst_150 = arith.constant dense<0.000000e+00> : vector<8x8xf32>
    %265 = tpu.matmul %260, %262, %cst_150 {dimension_numbers = #tpu.dot_dimension_numbers<[1], [1], [0], [0], [0, 0, 1, 0], [], []>} : vector<8x8xbf16>, vector<8x8xbf16>, vector<8x8xf32> -> vector<8x8xf32>
    %cst_151 = arith.constant 0.353553385 : f32
    %266 = vector.broadcast %cst_151 : f32 to vector<8x8xf32>
    %267 = arith.mulf %265, %266 : vector<8x8xf32>
    %cst_152 = arith.constant -1.000000e+09 : f32
    %268 = vector.shape_cast %180 : vector<1x8xi1> to vector<1x8xi1>
    %269 = vector.broadcast %268 : vector<1x8xi1> to vector<8x8xi1>
    %270 = vector.broadcast %cst_152 : f32 to vector<8x8xf32>
    %271 = arith.select %269, %267, %270 : vector<8x8xi1>, vector<8x8xf32>
    %cst_153 = arith.constant dense<0xFF800000> : vector<8xf32>
    %272 = vector.multi_reduction <maximumf>, %271, %cst_153 [1] : vector<8x8xf32> to vector<8xf32>
    %273 = vector.shape_cast %272 : vector<8xf32> to vector<8x1xf32>
    %274 = vector.broadcast %273 : vector<8x1xf32> to vector<8x8xf32>
    %275 = arith.subf %271, %274 : vector<8x8xf32>
    %276 = math.exp %275 : vector<8x8xf32>
    %cst_154 = arith.constant dense<0.000000e+00> : vector<8xf32>
    %277 = vector.multi_reduction <add>, %276, %cst_154 [1] : vector<8x8xf32> to vector<8xf32>
    %278 = vector.shape_cast %277 : vector<8xf32> to vector<8x1xf32>
    %279 = tpu.reciprocal %278 {approx = true} : vector<8x1xf32> -> vector<8x1xf32>
    %280 = vector.broadcast %279 : vector<8x1xf32> to vector<8x8xf32>
    %281 = arith.mulf %276, %280 : vector<8x8xf32>
    %282 = arith.truncf %281 : vector<8x8xf32> to vector<8x8xbf16>
    %cst_155 = arith.constant dense<0.000000e+00> : vector<8x8xf32>
    %283 = tpu.matmul %282, %264, %cst_155 {dimension_numbers = #tpu.dot_dimension_numbers<[1], [0], [0], [1], [0, 0, 1, 1], [], []>} : vector<8x8xbf16>, vector<8x8xbf16>, vector<8x8xf32> -> vector<8x8xf32>
    %c0_156 = arith.constant 0 : index
    %c24_157 = arith.constant 24 : index
    %284 = vector.load %arg30[%c0_156, %c24_157] : memref<8x32xf32, #tpu.memory_space<vmem>>, vector<8x8xf32>
    tpu.vector_store %arg30[%c0_156, %c24_157], %283 {strides = array<i32>} : memref<8x32xf32, #tpu.memory_space<vmem>>, vector<8x8xf32>,
    %c0_158 = arith.constant 0 : index
    %c0_159 = arith.constant 0 : index
    %285 = vector.load %arg30[%c0_158, %c0_159] : memref<8x32xf32, #tpu.memory_space<vmem>>, vector<8x32xf32>
    %286 = arith.truncf %285 : vector<8x32xf32> to vector<8x32xbf16>
    %c0_160 = arith.constant 0 : index
    %c0_161 = arith.constant 0 : index
    %287 = vector.load %arg13[%c0_160, %c0_161] : memref<32x32xbf16, #tpu.memory_space<vmem>>, vector<32x32xbf16>
    %cst_162 = arith.constant dense<0.000000e+00> : vector<8x32xf32>
    %288 = tpu.matmul %286, %287, %cst_162 {dimension_numbers = #tpu.dot_dimension_numbers<[1], [0], [0], [1], [0, 0, 1, 1], [], []>} : vector<8x32xbf16>, vector<32x32xbf16>, vector<8x32xf32> -> vector<8x32xf32>
    %289 = arith.addf %140, %288 : vector<8x32xf32>
    %c0_163 = arith.constant 0 : index
    %c0_164 = arith.constant 0 : index
    %290 = vector.load %arg14[%c0_163, %c0_164] : memref<1x32xf32, #tpu.memory_space<vmem>>, vector<1x32xf32>
    %291 = vector.broadcast %290 : vector<1x32xf32> to vector<8x32xf32>
    %292 = arith.addf %289, %291 : vector<8x32xf32>
    %c0_165 = arith.constant 0 : index
    %c0_166 = arith.constant 0 : index
    %293 = vector.load %arg23[%c0_165, %c0_166] : memref<1x32xf32, #tpu.memory_space<vmem>>, vector<1x32xf32>
    %c0_167 = arith.constant 0 : index
    %c0_168 = arith.constant 0 : index
    %294 = vector.load %arg24[%c0_167, %c0_168] : memref<1x32xf32, #tpu.memory_space<vmem>>, vector<1x32xf32>
    %cst_169 = arith.constant dense<0.000000e+00> : vector<8xf32>
    %295 = vector.multi_reduction <add>, %292, %cst_169 [1] : vector<8x32xf32> to vector<8xf32>
    %296 = vector.shape_cast %295 : vector<8xf32> to vector<8x1xf32>
    %cst_170 = arith.constant 3.200000e+01 : f32
    %297 = vector.broadcast %cst_170 : f32 to vector<8x1xf32>
    %298 = arith.divf %296, %297 : vector<8x1xf32>
    %299 = vector.broadcast %298 : vector<8x1xf32> to vector<8x32xf32>
    %300 = arith.subf %292, %299 : vector<8x32xf32>
    %301 = arith.mulf %300, %300 : vector<8x32xf32>
    %cst_171 = arith.constant dense<0.000000e+00> : vector<8xf32>
    %302 = vector.multi_reduction <add>, %301, %cst_171 [1] : vector<8x32xf32> to vector<8xf32>
    %303 = vector.shape_cast %302 : vector<8xf32> to vector<8x1xf32>
    %cst_172 = arith.constant 0.0322580636 : f32
    %304 = vector.broadcast %cst_172 : f32 to vector<8x1xf32>
    %305 = arith.mulf %303, %304 : vector<8x1xf32>
    %306 = math.sqrt %305 : vector<8x1xf32>
    %307 = vector.broadcast %293 : vector<1x32xf32> to vector<8x32xf32>
    %308 = arith.mulf %307, %300 : vector<8x32xf32>
    %cst_173 = arith.constant 9.99999997E-7 : f32
    %309 = vector.broadcast %cst_173 : f32 to vector<8x1xf32>
    %310 = arith.addf %306, %309 : vector<8x1xf32>
    %311 = vector.broadcast %310 : vector<8x1xf32> to vector<8x32xf32>
    %312 = arith.divf %308, %311 : vector<8x32xf32>
    %313 = vector.broadcast %294 : vector<1x32xf32> to vector<8x32xf32>
    %314 = arith.addf %312, %313 : vector<8x32xf32>
    %315 = arith.truncf %314 : vector<8x32xf32> to vector<8x32xbf16>
    %c0_174 = arith.constant 0 : index
    %c0_175 = arith.constant 0 : index
    %316 = vector.load %arg15[%c0_174, %c0_175] : memref<32x64xbf16, #tpu.memory_space<vmem>>, vector<32x64xbf16>
    %cst_176 = arith.constant dense<0.000000e+00> : vector<8x64xf32>
    %317 = tpu.matmul %315, %316, %cst_176 {dimension_numbers = #tpu.dot_dimension_numbers<[1], [0], [0], [1], [0, 0, 1, 1], [], []>} : vector<8x32xbf16>, vector<32x64xbf16>, vector<8x64xf32> -> vector<8x64xf32>
    %c0_177 = arith.constant 0 : index
    %c0_178 = arith.constant 0 : index
    %318 = vector.load %arg16[%c0_177, %c0_178] : memref<1x64xf32, #tpu.memory_space<vmem>>, vector<1x64xf32>
    %319 = vector.broadcast %318 : vector<1x64xf32> to vector<8x64xf32>
    %320 = arith.addf %317, %319 : vector<8x64xf32>
    %cst_179 = arith.constant 0.000000e+00 : f32
    %321 = vector.broadcast %cst_179 : f32 to vector<8x64xf32>
    %322 = arith.maximumf %320, %321 : vector<8x64xf32>
    %323 = arith.truncf %322 : vector<8x64xf32> to vector<8x64xbf16>
    %c0_180 = arith.constant 0 : index
    %c0_181 = arith.constant 0 : index
    %324 = vector.load %arg17[%c0_180, %c0_181] : memref<64x32xbf16, #tpu.memory_space<vmem>>, vector<64x32xbf16>
    %cst_182 = arith.constant dense<0.000000e+00> : vector<8x32xf32>
    %325 = tpu.matmul %323, %324, %cst_182 {dimension_numbers = #tpu.dot_dimension_numbers<[1], [0], [0], [1], [0, 0, 1, 1], [], []>} : vector<8x64xbf16>, vector<64x32xbf16>, vector<8x32xf32> -> vector<8x32xf32>
    %326 = arith.addf %292, %325 : vector<8x32xf32>
    %c0_183 = arith.constant 0 : index
    %c0_184 = arith.constant 0 : index
    %327 = vector.load %arg18[%c0_183, %c0_184] : memref<1x32xf32, #tpu.memory_space<vmem>>, vector<1x32xf32>
    %328 = vector.broadcast %327 : vector<1x32xf32> to vector<8x32xf32>
    %329 = arith.addf %326, %328 : vector<8x32xf32>
    %c0_185 = arith.constant 0 : index
    %c0_186 = arith.constant 0 : index
    %c0_187 = arith.constant 0 : index
    %330 = vector.load %arg27[%c0_185, %c0_186, %c0_187] : memref<1x8x32xf32, #tpu.memory_space<vmem>>, vector<1x8x32xf32>
    %331 = vector.shape_cast %330 : vector<1x8x32xf32> to vector<8x32xf32>
    %332 = vector.shape_cast %329 : vector<8x32xf32> to vector<1x8x32xf32>
    tpu.vector_store %arg27[%c0_185, %c0_186, %c0_187], %332 {strides = array<i32>} : memref<1x8x32xf32, #tpu.memory_space<vmem>>, vector<1x8x32xf32>,
    return
  }
  func.func @transform_0(%arg0: i32) -> (i32, i32, i32) {
    %c0_i32 = arith.constant 0 : i32
    %c0_i32_0 = arith.constant 0 : i32
    %c0_i32_1 = arith.constant 0 : i32
    return %arg0, %c0_i32, %c0_i32_0 : i32, i32, i32
  }
  func.func @transform_1(%arg0: i32) -> (i32, i32, i32) {
    %c0_i32 = arith.constant 0 : i32
    %c0_i32_0 = arith.constant 0 : i32
    %c0_i32_1 = arith.constant 0 : i32
    return %arg0, %c0_i32, %c0_i32_0 : i32, i32, i32
  }
  func.func @transform_2(%arg0: i32) -> (i32, i32, i32) {
    %c0_i32 = arith.constant 0 : i32
    %c0_i32_0 = arith.constant 0 : i32
    %c0_i32_1 = arith.constant 0 : i32
    return %arg0, %c0_i32, %c0_i32_0 : i32, i32, i32
  }
  func.func @transform_3(%arg0: i32) -> (i32, i32, i32) {
    %c0_i32 = arith.constant 0 : i32
    %c0_i32_0 = arith.constant 0 : i32
    %c0_i32_1 = arith.constant 0 : i32
    return %arg0, %c0_i32, %c0_i32_0 : i32, i32, i32
  }
  func.func @transform_4(%arg0: i32) -> (i32, i32) {
    %c0_i32 = arith.constant 0 : i32
    %c0_i32_0 = arith.constant 0 : i32
    %c0_i32_1 = arith.constant 0 : i32
    return %c0_i32, %c0_i32_0 : i32, i32
  }
  func.func @transform_5(%arg0: i32) -> (i32, i32) {
    %c0_i32 = arith.constant 0 : i32
    %c0_i32_0 = arith.constant 0 : i32
    %c0_i32_1 = arith.constant 0 : i32
    return %c0_i32, %c0_i32_0 : i32, i32
  }
  func.func @transform_6(%arg0: i32) -> (i32, i32) {
    %c0_i32 = arith.constant 0 : i32
    %c0_i32_0 = arith.constant 0 : i32
    %c0_i32_1 = arith.constant 0 : i32
    return %c0_i32, %c0_i32_0 : i32, i32
  }
  func.func @transform_7(%arg0: i32) -> (i32, i32) {
    %c0_i32 = arith.constant 0 : i32
    %c0_i32_0 = arith.constant 0 : i32
    %c0_i32_1 = arith.constant 0 : i32
    return %c0_i32, %c0_i32_0 : i32, i32
  }
  func.func @transform_8(%arg0: i32) -> (i32, i32) {
    %c0_i32 = arith.constant 0 : i32
    %c0_i32_0 = arith.constant 0 : i32
    %c0_i32_1 = arith.constant 0 : i32
    return %c0_i32, %c0_i32_0 : i32, i32
  }
  func.func @transform_9(%arg0: i32) -> (i32, i32) {
    %c0_i32 = arith.constant 0 : i32
    %c0_i32_0 = arith.constant 0 : i32
    %c0_i32_1 = arith.constant 0 : i32
    return %c0_i32, %c0_i32_0 : i32, i32
  }
  func.func @transform_10(%arg0: i32) -> (i32, i32) {
    %c0_i32 = arith.constant 0 : i32
    %c0_i32_0 = arith.constant 0 : i32
    %c0_i32_1 = arith.constant 0 : i32
    return %c0_i32, %c0_i32_0 : i32, i32
  }
  func.func @transform_11(%arg0: i32) -> (i32, i32) {
    %c0_i32 = arith.constant 0 : i32
    %c0_i32_0 = arith.constant 0 : i32
    %c0_i32_1 = arith.constant 0 : i32
    return %c0_i32, %c0_i32_0 : i32, i32
  }
  func.func @transform_12(%arg0: i32) -> (i32, i32) {
    %c0_i32 = arith.constant 0 : i32
    %c0_i32_0 = arith.constant 0 : i32
    %c0_i32_1 = arith.constant 0 : i32
    return %c0_i32, %c0_i32_0 : i32, i32
  }
  func.func @transform_13(%arg0: i32) -> (i32, i32) {
    %c0_i32 = arith.constant 0 : i32
    %c0_i32_0 = arith.constant 0 : i32
    %c0_i32_1 = arith.constant 0 : i32
    return %c0_i32, %c0_i32_0 : i32, i32
  }
  func.func @transform_14(%arg0: i32) -> (i32, i32) {
    %c0_i32 = arith.constant 0 : i32
    %c0_i32_0 = arith.constant 0 : i32
    %c0_i32_1 = arith.constant 0 : i32
    return %c0_i32, %c0_i32_0 : i32, i32
  }
  func.func @transform_15(%arg0: i32) -> (i32, i32) {
    %c0_i32 = arith.constant 0 : i32
    %c0_i32_0 = arith.constant 0 : i32
    %c0_i32_1 = arith.constant 0 : i32
    return %c0_i32, %c0_i32_0 : i32, i32
  }
  func.func @transform_16(%arg0: i32) -> (i32, i32) {
    %c0_i32 = arith.constant 0 : i32
    %c0_i32_0 = arith.constant 0 : i32
    %c0_i32_1 = arith.constant 0 : i32
    return %c0_i32, %c0_i32_0 : i32, i32
  }
  func.func @transform_17(%arg0: i32) -> (i32, i32) {
    %c0_i32 = arith.constant 0 : i32
    %c0_i32_0 = arith.constant 0 : i32
    %c0_i32_1 = arith.constant 0 : i32
    return %c0_i32, %c0_i32_0 : i32, i32
  }
  func.func @transform_18(%arg0: i32) -> (i32, i32) {
    %c0_i32 = arith.constant 0 : i32
    %c0_i32_0 = arith.constant 0 : i32
    %c0_i32_1 = arith.constant 0 : i32
    return %c0_i32, %c0_i32_0 : i32, i32
  }
  func.func @transform_19(%arg0: i32) -> (i32, i32) {
    %c0_i32 = arith.constant 0 : i32
    %c0_i32_0 = arith.constant 0 : i32
    %c0_i32_1 = arith.constant 0 : i32
    return %c0_i32, %c0_i32_0 : i32, i32
  }
  func.func @transform_20(%arg0: i32) -> (i32, i32) {
    %c0_i32 = arith.constant 0 : i32
    %c0_i32_0 = arith.constant 0 : i32
    %c0_i32_1 = arith.constant 0 : i32
    return %c0_i32, %c0_i32_0 : i32, i32
  }
  func.func @transform_21(%arg0: i32) -> (i32, i32) {
    %c0_i32 = arith.constant 0 : i32
    %c0_i32_0 = arith.constant 0 : i32
    %c0_i32_1 = arith.constant 0 : i32
    return %c0_i32, %c0_i32_0 : i32, i32
  }
  func.func @transform_22(%arg0: i32) -> (i32, i32) {
    %c0_i32 = arith.constant 0 : i32
    %c0_i32_0 = arith.constant 0 : i32
    %c0_i32_1 = arith.constant 0 : i32
    return %c0_i32, %c0_i32_0 : i32, i32
  }
  func.func @transform_23(%arg0: i32) -> (i32, i32) {
    %c0_i32 = arith.constant 0 : i32
    %c0_i32_0 = arith.constant 0 : i32
    %c0_i32_1 = arith.constant 0 : i32
    return %c0_i32, %c0_i32_0 : i32, i32
  }
  func.func @transform_24(%arg0: i32) -> (i32, i32) {
    %c0_i32 = arith.constant 0 : i32
    %c0_i32_0 = arith.constant 0 : i32
    %c0_i32_1 = arith.constant 0 : i32
    return %c0_i32, %c0_i32_0 : i32, i32
  }
  func.func @transform_25(%arg0: i32) -> (i32, i32) {
    %c0_i32 = arith.constant 0 : i32
    %c0_i32_0 = arith.constant 0 : i32
    %c0_i32_1 = arith.constant 0 : i32
    return %c0_i32, %c0_i32_0 : i32, i32
  }
  func.func @transform_26(%arg0: i32) -> (i32, i32, i32) {
    %c0_i32 = arith.constant 0 : i32
    %c0_i32_0 = arith.constant 0 : i32
    %c0_i32_1 = arith.constant 0 : i32
    return %arg0, %c0_i32, %c0_i32_0 : i32, i32, i32
  }
}

module attributes {stable_mosaic.version = 11 : i64} {
  func.func @decoder_layer_kernel(%arg0: i32, %arg1: memref<1x8x32xf32, #tpu.memory_space<vmem>>, %arg2: memref<1x8x32xf32, #tpu.memory_space<vmem>>, %arg3: memref<1x8x8xi32, #tpu.memory_space<vmem>>, %arg4: memref<1x1x8xi32, #tpu.memory_space<vmem>>, %arg5: memref<32x96xbf16, #tpu.memory_space<vmem>>, %arg6: memref<1x96xf32, #tpu.memory_space<vmem>>, %arg7: memref<32x32xbf16, #tpu.memory_space<vmem>>, %arg8: memref<1x32xf32, #tpu.memory_space<vmem>>, %arg9: memref<32x32xbf16, #tpu.memory_space<vmem>>, %arg10: memref<1x32xf32, #tpu.memory_space<vmem>>, %arg11: memref<32x64xbf16, #tpu.memory_space<vmem>>, %arg12: memref<1x64xf32, #tpu.memory_space<vmem>>, %arg13: memref<32x32xbf16, #tpu.memory_space<vmem>>, %arg14: memref<1x32xf32, #tpu.memory_space<vmem>>, %arg15: memref<32x64xbf16, #tpu.memory_space<vmem>>, %arg16: memref<1x64xf32, #tpu.memory_space<vmem>>, %arg17: memref<64x32xbf16, #tpu.memory_space<vmem>>, %arg18: memref<1x32xf32, #tpu.memory_space<vmem>>, %arg19: memref<1x32xf32, #tpu.memory_space<vmem>>, %arg20: memref<1x32xf32, #tpu.memory_space<vmem>>, %arg21: memref<1x32xf32, #tpu.memory_space<vmem>>, %arg22: memref<1x32xf32, #tpu.memory_space<vmem>>, %arg23: memref<1x32xf32, #tpu.memory_space<vmem>>, %arg24: memref<1x32xf32, #tpu.memory_space<vmem>>, %arg25: memref<1x32xf32, #tpu.memory_space<vmem>>, %arg26: memref<1x32xf32, #tpu.memory_space<vmem>>, %arg27: memref<1x8x32xf32, #tpu.memory_space<vmem>>, %arg28: memref<8x96xf32, #tpu.memory_space<vmem>>, %arg29: memref<8x64xf32, #tpu.memory_space<vmem>>, %arg30: memref<8x32xf32, #tpu.memory_space<vmem>>) attributes {dimension_semantics = [#tpu.dimension_semantics<parallel>], iteration_bounds = array<i64: 2>, scalar_prefetch = 0 : i64, scratch_operands = 3 : i64, tpu.core_type = #tpu.core_type<tc>, window_params = [{transform_indices = @transform_0, window_bounds = array<i64: 1, 8, 32>}, {transform_indices = @transform_1, window_bounds = array<i64: 1, 8, 32>}, {transform_indices = @transform_2, window_bounds = array<i64: 1, 8, 8>}, {transform_indices = @transform_3, window_bounds = array<i64: 1, 1, 8>}, {pipeline_mode = #tpu.pipeline_mode<synchronous>, transform_indices = @transform_4, window_bounds = array<i64: 32, 96>}, {pipeline_mode = #tpu.pipeline_mode<synchronous>, transform_indices = @transform_5, window_bounds = array<i64: 1, 96>}, {pipeline_mode = #tpu.pipeline_mode<synchronous>, transform_indices = @transform_6, window_bounds = array<i64: 32, 32>}, {pipeline_mode = #tpu.pipeline_mode<synchronous>, transform_indices = @transform_7, window_bounds = array<i64: 1, 32>}, {pipeline_mode = #tpu.pipeline_mode<synchronous>, transform_indices = @transform_8, window_bounds = array<i64: 32, 32>}, {pipeline_mode = #tpu.pipeline_mode<synchronous>, transform_indices = @transform_9, window_bounds = array<i64: 1, 32>}, {pipeline_mode = #tpu.pipeline_mode<synchronous>, transform_indices = @transform_10, window_bounds = array<i64: 32, 64>}, {pipeline_mode = #tpu.pipeline_mode<synchronous>, transform_indices = @transform_11, window_bounds = array<i64: 1, 64>}, {pipeline_mode = #tpu.pipeline_mode<synchronous>, transform_indices = @transform_12, window_bounds = array<i64: 32, 32>}, {pipeline_mode = #tpu.pipeline_mode<synchronous>, transform_indices = @transform_13, window_bounds = array<i64: 1, 32>}, {pipeline_mode = #tpu.pipeline_mode<synchronous>, transform_indices = @transform_14, window_bounds = array<i64: 32, 64>}, {pipeline_mode = #tpu.pipeline_mode<synchronous>, transform_indices = @transform_15, window_bounds = array<i64: 1, 64>}, {pipeline_mode = #tpu.pipeline_mode<synchronous>, transform_indices = @transform_16, window_bounds = array<i64: 64, 32>}, {pipeline_mode = #tpu.pipeline_mode<synchronous>, transform_indices = @transform_17, window_bounds = array<i64: 1, 32>}, {pipeline_mode = #tpu.pipeline_mode<synchronous>, transform_indices = @transform_18, window_bounds = array<i64: 1, 32>}, {pipeline_mode = #tpu.pipeline_mode<synchronous>, transform_indices = @transform_19, window_bounds = array<i64: 1, 32>}, {pipeline_mode = #tpu.pipeline_mode<synchronous>, transform_indices = @transform_20, window_bounds = array<i64: 1, 32>}, {pipeline_mode = #tpu.pipeline_mode<synchronous>, transform_indices = @transform_21, window_bounds = array<i64: 1, 32>}, {pipeline_mode = #tpu.pipeline_mode<synchronous>, transform_indices = @transform_22, window_bounds = array<i64: 1, 32>}, {pipeline_mode = #tpu.pipeline_mode<synchronous>, transform_indices = @transform_23, window_bounds = array<i64: 1, 32>}, {pipeline_mode = #tpu.pipeline_mode<synchronous>, transform_indices = @transform_24, window_bounds = array<i64: 1, 32>}, {pipeline_mode = #tpu.pipeline_mode<synchronous>, transform_indices = @transform_25, window_bounds = array<i64: 1, 32>}, {transform_indices = @transform_26, window_bounds = array<i64: 1, 8, 32>}]} {
    %c0 = arith.constant 0 : index
    %c0_0 = arith.constant 0 : index
    %c0_1 = arith.constant 0 : index
    %0 = vector.load %arg1[%c0, %c0_0, %c0_1] : memref<1x8x32xf32, #tpu.memory_space<vmem>>, vector<1x8x32xf32>
    %1 = vector.shape_cast %0 : vector<1x8x32xf32> to vector<8x32xf32>
    %c0_2 = arith.constant 0 : index
    %c0_3 = arith.constant 0 : index
    %c0_4 = arith.constant 0 : index
    %2 = vector.load %arg2[%c0_2, %c0_3, %c0_4] : memref<1x8x32xf32, #tpu.memory_space<vmem>>, vector<1x8x32xf32>
    %3 = vector.shape_cast %2 : vector<1x8x32xf32> to vector<8x32xf32>
    %c0_5 = arith.constant 0 : index
    %c0_6 = arith.constant 0 : index
    %4 = vector.load %arg19[%c0_5, %c0_6] : memref<1x32xf32, #tpu.memory_space<vmem>>, vector<1x32xf32>
    %c0_7 = arith.constant 0 : index
    %c0_8 = arith.constant 0 : index
    %5 = vector.load %arg20[%c0_7, %c0_8] : memref<1x32xf32, #tpu.memory_space<vmem>>, vector<1x32xf32>
    %cst = arith.constant dense<0.000000e+00> : vector<8xf32>
    %6 = vector.multi_reduction <add>, %1, %cst [1] : vector<8x32xf32> to vector<8xf32>
    %7 = vector.shape_cast %6 : vector<8xf32> to vector<8x1xf32>
    %cst_9 = arith.constant 3.200000e+01 : f32
    %8 = vector.broadcast %cst_9 : f32 to vector<8x1xf32>
    %9 = arith.divf %7, %8 : vector<8x1xf32>
    %10 = vector.broadcast %9 : vector<8x1xf32> to vector<8x32xf32>
    %11 = arith.subf %1, %10 : vector<8x32xf32>
    %12 = arith.mulf %11, %11 : vector<8x32xf32>
    %cst_10 = arith.constant dense<0.000000e+00> : vector<8xf32>
    %13 = vector.multi_reduction <add>, %12, %cst_10 [1] : vector<8x32xf32> to vector<8xf32>
    %14 = vector.shape_cast %13 : vector<8xf32> to vector<8x1xf32>
    %cst_11 = arith.constant 0.0322580636 : f32
    %15 = vector.broadcast %cst_11 : f32 to vector<8x1xf32>
    %16 = arith.mulf %14, %15 : vector<8x1xf32>
    %17 = math.sqrt %16 : vector<8x1xf32>
    %18 = vector.broadcast %4 : vector<1x32xf32> to vector<8x32xf32>
    %19 = arith.mulf %18, %11 : vector<8x32xf32>
    %cst_12 = arith.constant 9.99999997E-7 : f32
    %20 = vector.broadcast %cst_12 : f32 to vector<8x1xf32>
    %21 = arith.addf %17, %20 : vector<8x1xf32>
    %22 = vector.broadcast %21 : vector<8x1xf32> to vector<8x32xf32>
    %23 = arith.divf %19, %22 : vector<8x32xf32>
    %24 = vector.broadcast %5 : vector<1x32xf32> to vector<8x32xf32>
    %25 = arith.addf %23, %24 : vector<8x32xf32>
    %26 = arith.truncf %25 : vector<8x32xf32> to vector<8x32xbf16>
    %c0_13 = arith.constant 0 : index
    %c0_14 = arith.constant 0 : index
    %27 = vector.load %arg5[%c0_13, %c0_14] : memref<32x96xbf16, #tpu.memory_space<vmem>>, vector<32x96xbf16>
    %cst_15 = arith.constant dense<0.000000e+00> : vector<8x96xf32>
    %28 = tpu.matmul %26, %27, %cst_15 {dimension_numbers = #tpu.dot_dimension_numbers<[1], [0], [0], [1], [0, 0, 1, 1], [], []>} : vector<8x32xbf16>, vector<32x96xbf16>, vector<8x96xf32> -> vector<8x96xf32>
    %c0_16 = arith.constant 0 : index
    %c0_17 = arith.constant 0 : index
    %29 = vector.load %arg6[%c0_16, %c0_17] : memref<1x96xf32, #tpu.memory_space<vmem>>, vector<1x96xf32>
    %30 = vector.broadcast %29 : vector<1x96xf32> to vector<8x96xf32>
    %31 = arith.addf %28, %30 : vector<8x96xf32>
    %c0_18 = arith.constant 0 : index
    %c0_19 = arith.constant 0 : index
    %32 = vector.load %arg28[%c0_18, %c0_19] : memref<8x96xf32, #tpu.memory_space<vmem>>, vector<8x96xf32>
    tpu.vector_store %arg28[%c0_18, %c0_19], %31 {strides = array<i32>} : memref<8x96xf32, #tpu.memory_space<vmem>>, vector<8x96xf32>,
    %c0_20 = arith.constant 0 : index
    %c0_21 = arith.constant 0 : index
    %c0_22 = arith.constant 0 : index
    %33 = vector.load %arg3[%c0_20, %c0_21, %c0_22] : memref<1x8x8xi32, #tpu.memory_space<vmem>>, vector<1x8x8xi32>
    %34 = vector.shape_cast %33 : vector<1x8x8xi32> to vector<8x8xi32>
    %c0_i32 = arith.constant 0 : i32
    %35 = vector.broadcast %c0_i32 : i32 to vector<8x8xi32>
    %36 = arith.cmpi ne, %34, %35 : vector<8x8xi32>
    %c0_23 = arith.constant 0 : index
    %c0_24 = arith.constant 0 : index
    %37 = vector.load %arg28[%c0_23, %c0_24] : memref<8x96xf32, #tpu.memory_space<vmem>>, vector<8x8xf32>
    %38 = arith.truncf %37 : vector<8x8xf32> to vector<8x8xbf16>
    %c0_25 = arith.constant 0 : index
    %c32 = arith.constant 32 : index
    %39 = vector.load %arg28[%c0_25, %c32] : memref<8x96xf32, #tpu.memory_space<vmem>>, vector<8x8xf32>
    %40 = arith.truncf %39 : vector<8x8xf32> to vector<8x8xbf16>
    %c0_26 = arith.constant 0 : index
    %c64 = arith.constant 64 : index
    %41 = vector.load %arg28[%c0_26, %c64] : memref<8x96xf32, #tpu.memory_space<vmem>>, vector<8x8xf32>
    %42 = arith.truncf %41 : vector<8x8xf32> to vector<8x8xbf16>
    %cst_27 = arith.constant dense<0.000000e+00> : vector<8x8xf32>
    %43 = tpu.matmul %38, %40, %cst_27 {dimension_numbers = #tpu.dot_dimension_numbers<[1], [1], [0], [0], [0, 0, 1, 0], [], []>} : vector<8x8xbf16>, vector<8x8xbf16>, vector<8x8xf32> -> vector<8x8xf32>
    %cst_28 = arith.constant 0.353553385 : f32
    %44 = vector.broadcast %cst_28 : f32 to vector<8x8xf32>
    %45 = arith.mulf %43, %44 : vector<8x8xf32>
    %cst_29 = arith.constant -1.000000e+09 : f32
    %46 = vector.broadcast %cst_29 : f32 to vector<8x8xf32>
    %47 = arith.select %36, %45, %46 : vector<8x8xi1>, vector<8x8xf32>
    %cst_30 = arith.constant dense<0xFF800000> : vector<8xf32>
    %48 = vector.multi_reduction <maximumf>, %47, %cst_30 [1] : vector<8x8xf32> to vector<8xf32>
    %49 = vector.shape_cast %48 : vector<8xf32> to vector<8x1xf32>
    %50 = vector.broadcast %49 : vector<8x1xf32> to vector<8x8xf32>
    %51 = arith.subf %47, %50 : vector<8x8xf32>
    %52 = math.exp %51 : vector<8x8xf32>
    %cst_31 = arith.constant dense<0.000000e+00> : vector<8xf32>
    %53 = vector.multi_reduction <add>, %52, %cst_31 [1] : vector<8x8xf32> to vector<8xf32>
    %54 = vector.shape_cast %53 : vector<8xf32> to vector<8x1xf32>
    %55 = tpu.reciprocal %54 {approx = true} : vector<8x1xf32> -> vector<8x1xf32>
    %56 = vector.broadcast %55 : vector<8x1xf32> to vector<8x8xf32>
    %57 = arith.mulf %52, %56 : vector<8x8xf32>
    %58 = arith.truncf %57 : vector<8x8xf32> to vector<8x8xbf16>
    %cst_32 = arith.constant dense<0.000000e+00> : vector<8x8xf32>
    %59 = tpu.matmul %58, %42, %cst_32 {dimension_numbers = #tpu.dot_dimension_numbers<[1], [0], [0], [1], [0, 0, 1, 1], [], []>} : vector<8x8xbf16>, vector<8x8xbf16>, vector<8x8xf32> -> vector<8x8xf32>
    %c0_33 = arith.constant 0 : index
    %c0_34 = arith.constant 0 : index
    %60 = vector.load %arg30[%c0_33, %c0_34] : memref<8x32xf32, #tpu.memory_space<vmem>>, vector<8x8xf32>
    tpu.vector_store %arg30[%c0_33, %c0_34], %59 {strides = array<i32>} : memref<8x32xf32, #tpu.memory_space<vmem>>, vector<8x8xf32>,
    %c0_35 = arith.constant 0 : index
    %c8 = arith.constant 8 : index
    %61 = vector.load %arg28[%c0_35, %c8] : memref<8x96xf32, #tpu.memory_space<vmem>>, vector<8x8xf32>
    %62 = arith.truncf %61 : vector<8x8xf32> to vector<8x8xbf16>
    %c0_36 = arith.constant 0 : index
    %c40 = arith.constant 40 : index
    %63 = vector.load %arg28[%c0_36, %c40] : memref<8x96xf32, #tpu.memory_space<vmem>>, vector<8x8xf32>
    %64 = arith.truncf %63 : vector<8x8xf32> to vector<8x8xbf16>
    %c0_37 = arith.constant 0 : index
    %c72 = arith.constant 72 : index
    %65 = vector.load %arg28[%c0_37, %c72] : memref<8x96xf32, #tpu.memory_space<vmem>>, vector<8x8xf32>
    %66 = arith.truncf %65 : vector<8x8xf32> to vector<8x8xbf16>
    %cst_38 = arith.constant dense<0.000000e+00> : vector<8x8xf32>
    %67 = tpu.matmul %62, %64, %cst_38 {dimension_numbers = #tpu.dot_dimension_numbers<[1], [1], [0], [0], [0, 0, 1, 0], [], []>} : vector<8x8xbf16>, vector<8x8xbf16>, vector<8x8xf32> -> vector<8x8xf32>
    %cst_39 = arith.constant 0.353553385 : f32
    %68 = vector.broadcast %cst_39 : f32 to vector<8x8xf32>
    %69 = arith.mulf %67, %68 : vector<8x8xf32>
    %cst_40 = arith.constant -1.000000e+09 : f32
    %70 = vector.broadcast %cst_40 : f32 to vector<8x8xf32>
    %71 = arith.select %36, %69, %70 : vector<8x8xi1>, vector<8x8xf32>
    %cst_41 = arith.constant dense<0xFF800000> : vector<8xf32>
    %72 = vector.multi_reduction <maximumf>, %71, %cst_41 [1] : vector<8x8xf32> to vector<8xf32>
    %73 = vector.shape_cast %72 : vector<8xf32> to vector<8x1xf32>
    %74 = vector.broadcast %73 : vector<8x1xf32> to vector<8x8xf32>
    %75 = arith.subf %71, %74 : vector<8x8xf32>
    %76 = math.exp %75 : vector<8x8xf32>
    %cst_42 = arith.constant dense<0.000000e+00> : vector<8xf32>
    %77 = vector.multi_reduction <add>, %76, %cst_42 [1] : vector<8x8xf32> to vector<8xf32>
    %78 = vector.shape_cast %77 : vector<8xf32> to vector<8x1xf32>
    %79 = tpu.reciprocal %78 {approx = true} : vector<8x1xf32> -> vector<8x1xf32>
    %80 = vector.broadcast %79 : vector<8x1xf32> to vector<8x8xf32>
    %81 = arith.mulf %76, %80 : vector<8x8xf32>
    %82 = arith.truncf %81 : vector<8x8xf32> to vector<8x8xbf16>
    %cst_43 = arith.constant dense<0.000000e+00> : vector<8x8xf32>
    %83 = tpu.matmul %82, %66, %cst_43 {dimension_numbers = #tpu.dot_dimension_numbers<[1], [0], [0], [1], [0, 0, 1, 1], [], []>} : vector<8x8xbf16>, vector<8x8xbf16>, vector<8x8xf32> -> vector<8x8xf32>
    %c0_44 = arith.constant 0 : index
    %c8_45 = arith.constant 8 : index
    %84 = vector.load %arg30[%c0_44, %c8_45] : memref<8x32xf32, #tpu.memory_space<vmem>>, vector<8x8xf32>
    tpu.vector_store %arg30[%c0_44, %c8_45], %83 {strides = array<i32>} : memref<8x32xf32, #tpu.memory_space<vmem>>, vector<8x8xf32>,
    %c0_46 = arith.constant 0 : index
    %c16 = arith.constant 16 : index
    %85 = vector.load %arg28[%c0_46, %c16] : memref<8x96xf32, #tpu.memory_space<vmem>>, vector<8x8xf32>
    %86 = arith.truncf %85 : vector<8x8xf32> to vector<8x8xbf16>
    %c0_47 = arith.constant 0 : index
    %c48 = arith.constant 48 : index
    %87 = vector.load %arg28[%c0_47, %c48] : memref<8x96xf32, #tpu.memory_space<vmem>>, vector<8x8xf32>
    %88 = arith.truncf %87 : vector<8x8xf32> to vector<8x8xbf16>
    %c0_48 = arith.constant 0 : index
    %c80 = arith.constant 80 : index
    %89 = vector.load %arg28[%c0_48, %c80] : memref<8x96xf32, #tpu.memory_space<vmem>>, vector<8x8xf32>
    %90 = arith.truncf %89 : vector<8x8xf32> to vector<8x8xbf16>
    %cst_49 = arith.constant dense<0.000000e+00> : vector<8x8xf32>
    %91 = tpu.matmul %86, %88, %cst_49 {dimension_numbers = #tpu.dot_dimension_numbers<[1], [1], [0], [0], [0, 0, 1, 0], [], []>} : vector<8x8xbf16>, vector<8x8xbf16>, vector<8x8xf32> -> vector<8x8xf32>
    %cst_50 = arith.constant 0.353553385 : f32
    %92 = vector.broadcast %cst_50 : f32 to vector<8x8xf32>
    %93 = arith.mulf %91, %92 : vector<8x8xf32>
    %cst_51 = arith.constant -1.000000e+09 : f32
    %94 = vector.broadcast %cst_51 : f32 to vector<8x8xf32>
    %95 = arith.select %36, %93, %94 : vector<8x8xi1>, vector<8x8xf32>
    %cst_52 = arith.constant dense<0xFF800000> : vector<8xf32>
    %96 = vector.multi_reduction <maximumf>, %95, %cst_52 [1] : vector<8x8xf32> to vector<8xf32>
    %97 = vector.shape_cast %96 : vector<8xf32> to vector<8x1xf32>
    %98 = vector.broadcast %97 : vector<8x1xf32> to vector<8x8xf32>
    %99 = arith.subf %95, %98 : vector<8x8xf32>
    %100 = math.exp %99 : vector<8x8xf32>
    %cst_53 = arith.constant dense<0.000000e+00> : vector<8xf32>
    %101 = vector.multi_reduction <add>, %100, %cst_53 [1] : vector<8x8xf32> to vector<8xf32>
    %102 = vector.shape_cast %101 : vector<8xf32> to vector<8x1xf32>
    %103 = tpu.reciprocal %102 {approx = true} : vector<8x1xf32> -> vector<8x1xf32>
    %104 = vector.broadcast %103 : vector<8x1xf32> to vector<8x8xf32>
    %105 = arith.mulf %100, %104 : vector<8x8xf32>
    %106 = arith.truncf %105 : vector<8x8xf32> to vector<8x8xbf16>
    %cst_54 = arith.constant dense<0.000000e+00> : vector<8x8xf32>
    %107 = tpu.matmul %106, %90, %cst_54 {dimension_numbers = #tpu.dot_dimension_numbers<[1], [0], [0], [1], [0, 0, 1, 1], [], []>} : vector<8x8xbf16>, vector<8x8xbf16>, vector<8x8xf32> -> vector<8x8xf32>
    %c0_55 = arith.constant 0 : index
    %c16_56 = arith.constant 16 : index
    %108 = vector.load %arg30[%c0_55, %c16_56] : memref<8x32xf32, #tpu.memory_space<vmem>>, vector<8x8xf32>
    tpu.vector_store %arg30[%c0_55, %c16_56], %107 {strides = array<i32>} : memref<8x32xf32, #tpu.memory_space<vmem>>, vector<8x8xf32>,
    %c0_57 = arith.constant 0 : index
    %c24 = arith.constant 24 : index
    %109 = vector.load %arg28[%c0_57, %c24] : memref<8x96xf32, #tpu.memory_space<vmem>>, vector<8x8xf32>
    %110 = arith.truncf %109 : vector<8x8xf32> to vector<8x8xbf16>
    %c0_58 = arith.constant 0 : index
    %c56 = arith.constant 56 : index
    %111 = vector.load %arg28[%c0_58, %c56] : memref<8x96xf32, #tpu.memory_space<vmem>>, vector<8x8xf32>
    %112 = arith.truncf %111 : vector<8x8xf32> to vector<8x8xbf16>
    %c0_59 = arith.constant 0 : index
    %c88 = arith.constant 88 : index
    %113 = vector.load %arg28[%c0_59, %c88] : memref<8x96xf32, #tpu.memory_space<vmem>>, vector<8x8xf32>
    %114 = arith.truncf %113 : vector<8x8xf32> to vector<8x8xbf16>
    %cst_60 = arith.constant dense<0.000000e+00> : vector<8x8xf32>
    %115 = tpu.matmul %110, %112, %cst_60 {dimension_numbers = #tpu.dot_dimension_numbers<[1], [1], [0], [0], [0, 0, 1, 0], [], []>} : vector<8x8xbf16>, vector<8x8xbf16>, vector<8x8xf32> -> vector<8x8xf32>
    %cst_61 = arith.constant 0.353553385 : f32
    %116 = vector.broadcast %cst_61 : f32 to vector<8x8xf32>
    %117 = arith.mulf %115, %116 : vector<8x8xf32>
    %cst_62 = arith.constant -1.000000e+09 : f32
    %118 = vector.broadcast %cst_62 : f32 to vector<8x8xf32>
    %119 = arith.select %36, %117, %118 : vector<8x8xi1>, vector<8x8xf32>
    %cst_63 = arith.constant dense<0xFF800000> : vector<8xf32>
    %120 = vector.multi_reduction <maximumf>, %119, %cst_63 [1] : vector<8x8xf32> to vector<8xf32>
    %121 = vector.shape_cast %120 : vector<8xf32> to vector<8x1xf32>
    %122 = vector.broadcast %121 : vector<8x1xf32> to vector<8x8xf32>
    %123 = arith.subf %119, %122 : vector<8x8xf32>
    %124 = math.exp %123 : vector<8x8xf32>
    %cst_64 = arith.constant dense<0.000000e+00> : vector<8xf32>
    %125 = vector.multi_reduction <add>, %124, %cst_64 [1] : vector<8x8xf32> to vector<8xf32>
    %126 = vector.shape_cast %125 : vector<8xf32> to vector<8x1xf32>
    %127 = tpu.reciprocal %126 {approx = true} : vector<8x1xf32> -> vector<8x1xf32>
    %128 = vector.broadcast %127 : vector<8x1xf32> to vector<8x8xf32>
    %129 = arith.mulf %124, %128 : vector<8x8xf32>
    %130 = arith.truncf %129 : vector<8x8xf32> to vector<8x8xbf16>
    %cst_65 = arith.constant dense<0.000000e+00> : vector<8x8xf32>
    %131 = tpu.matmul %130, %114, %cst_65 {dimension_numbers = #tpu.dot_dimension_numbers<[1], [0], [0], [1], [0, 0, 1, 1], [], []>} : vector<8x8xbf16>, vector<8x8xbf16>, vector<8x8xf32> -> vector<8x8xf32>
    %c0_66 = arith.constant 0 : index
    %c24_67 = arith.constant 24 : index
    %132 = vector.load %arg30[%c0_66, %c24_67] : memref<8x32xf32, #tpu.memory_space<vmem>>, vector<8x8xf32>
    tpu.vector_store %arg30[%c0_66, %c24_67], %131 {strides = array<i32>} : memref<8x32xf32, #tpu.memory_space<vmem>>, vector<8x8xf32>,
    %c0_68 = arith.constant 0 : index
    %c0_69 = arith.constant 0 : index
    %133 = vector.load %arg30[%c0_68, %c0_69] : memref<8x32xf32, #tpu.memory_space<vmem>>, vector<8x32xf32>
    %134 = arith.truncf %133 : vector<8x32xf32> to vector<8x32xbf16>
    %c0_70 = arith.constant 0 : index
    %c0_71 = arith.constant 0 : index
    %135 = vector.load %arg7[%c0_70, %c0_71] : memref<32x32xbf16, #tpu.memory_space<vmem>>, vector<32x32xbf16>
    %cst_72 = arith.constant dense<0.000000e+00> : vector<8x32xf32>
    %136 = tpu.matmul %134, %135, %cst_72 {dimension_numbers = #tpu.dot_dimension_numbers<[1], [0], [0], [1], [0, 0, 1, 1], [], []>} : vector<8x32xbf16>, vector<32x32xbf16>, vector<8x32xf32> -> vector<8x32xf32>
    %137 = arith.addf %1, %136 : vector<8x32xf32>
    %c0_73 = arith.constant 0 : index
    %c0_74 = arith.constant 0 : index
    %138 = vector.load %arg8[%c0_73, %c0_74] : memref<1x32xf32, #tpu.memory_space<vmem>>, vector<1x32xf32>
    %139 = vector.broadcast %138 : vector<1x32xf32> to vector<8x32xf32>
    %140 = arith.addf %137, %139 : vector<8x32xf32>
    %c0_75 = arith.constant 0 : index
    %c0_76 = arith.constant 0 : index
    %141 = vector.load %arg21[%c0_75, %c0_76] : memref<1x32xf32, #tpu.memory_space<vmem>>, vector<1x32xf32>
    %c0_77 = arith.constant 0 : index
    %c0_78 = arith.constant 0 : index
    %142 = vector.load %arg22[%c0_77, %c0_78] : memref<1x32xf32, #tpu.memory_space<vmem>>, vector<1x32xf32>
    %cst_79 = arith.constant dense<0.000000e+00> : vector<8xf32>
    %143 = vector.multi_reduction <add>, %140, %cst_79 [1] : vector<8x32xf32> to vector<8xf32>
    %144 = vector.shape_cast %143 : vector<8xf32> to vector<8x1xf32>
    %cst_80 = arith.constant 3.200000e+01 : f32
    %145 = vector.broadcast %cst_80 : f32 to vector<8x1xf32>
    %146 = arith.divf %144, %145 : vector<8x1xf32>
    %147 = vector.broadcast %146 : vector<8x1xf32> to vector<8x32xf32>
    %148 = arith.subf %140, %147 : vector<8x32xf32>
    %149 = arith.mulf %148, %148 : vector<8x32xf32>
    %cst_81 = arith.constant dense<0.000000e+00> : vector<8xf32>
    %150 = vector.multi_reduction <add>, %149, %cst_81 [1] : vector<8x32xf32> to vector<8xf32>
    %151 = vector.shape_cast %150 : vector<8xf32> to vector<8x1xf32>
    %cst_82 = arith.constant 0.0322580636 : f32
    %152 = vector.broadcast %cst_82 : f32 to vector<8x1xf32>
    %153 = arith.mulf %151, %152 : vector<8x1xf32>
    %154 = math.sqrt %153 : vector<8x1xf32>
    %155 = vector.broadcast %141 : vector<1x32xf32> to vector<8x32xf32>
    %156 = arith.mulf %155, %148 : vector<8x32xf32>
    %cst_83 = arith.constant 9.99999997E-7 : f32
    %157 = vector.broadcast %cst_83 : f32 to vector<8x1xf32>
    %158 = arith.addf %154, %157 : vector<8x1xf32>
    %159 = vector.broadcast %158 : vector<8x1xf32> to vector<8x32xf32>
    %160 = arith.divf %156, %159 : vector<8x32xf32>
    %161 = vector.broadcast %142 : vector<1x32xf32> to vector<8x32xf32>
    %162 = arith.addf %160, %161 : vector<8x32xf32>
    %163 = arith.truncf %162 : vector<8x32xf32> to vector<8x32xbf16>
    %c0_84 = arith.constant 0 : index
    %c0_85 = arith.constant 0 : index
    %164 = vector.load %arg9[%c0_84, %c0_85] : memref<32x32xbf16, #tpu.memory_space<vmem>>, vector<32x32xbf16>
    %cst_86 = arith.constant dense<0.000000e+00> : vector<8x32xf32>
    %165 = tpu.matmul %163, %164, %cst_86 {dimension_numbers = #tpu.dot_dimension_numbers<[1], [0], [0], [1], [0, 0, 1, 1], [], []>} : vector<8x32xbf16>, vector<32x32xbf16>, vector<8x32xf32> -> vector<8x32xf32>
    %c0_87 = arith.constant 0 : index
    %c0_88 = arith.constant 0 : index
    %166 = vector.load %arg10[%c0_87, %c0_88] : memref<1x32xf32, #tpu.memory_space<vmem>>, vector<1x32xf32>
    %167 = vector.broadcast %166 : vector<1x32xf32> to vector<8x32xf32>
    %168 = arith.addf %165, %167 : vector<8x32xf32>
    %c0_89 = arith.constant 0 : index
    %c0_90 = arith.constant 0 : index
    %169 = vector.load %arg28[%c0_89, %c0_90] : memref<8x96xf32, #tpu.memory_space<vmem>>, vector<8x32xf32>
    tpu.vector_store %arg28[%c0_89, %c0_90], %168 {strides = array<i32>} : memref<8x96xf32, #tpu.memory_space<vmem>>, vector<8x32xf32>,
    %170 = arith.truncf %3 : vector<8x32xf32> to vector<8x32xbf16>
    %c0_91 = arith.constant 0 : index
    %c0_92 = arith.constant 0 : index
    %171 = vector.load %arg11[%c0_91, %c0_92] : memref<32x64xbf16, #tpu.memory_space<vmem>>, vector<32x64xbf16>
    %cst_93 = arith.constant dense<0.000000e+00> : vector<8x64xf32>
    %172 = tpu.matmul %170, %171, %cst_93 {dimension_numbers = #tpu.dot_dimension_numbers<[1], [0], [0], [1], [0, 0, 1, 1], [], []>} : vector<8x32xbf16>, vector<32x64xbf16>, vector<8x64xf32> -> vector<8x64xf32>
    %c0_94 = arith.constant 0 : index
    %c0_95 = arith.constant 0 : index
    %173 = vector.load %arg12[%c0_94, %c0_95] : memref<1x64xf32, #tpu.memory_space<vmem>>, vector<1x64xf32>
    %174 = vector.broadcast %173 : vector<1x64xf32> to vector<8x64xf32>
    %175 = arith.addf %172, %174 : vector<8x64xf32>
    %c0_96 = arith.constant 0 : index
    %c0_97 = arith.constant 0 : index
    %176 = vector.load %arg29[%c0_96, %c0_97] : memref<8x64xf32, #tpu.memory_space<vmem>>, vector<8x64xf32>
    tpu.vector_store %arg29[%c0_96, %c0_97], %175 {strides = array<i32>} : memref<8x64xf32, #tpu.memory_space<vmem>>, vector<8x64xf32>,
    %c0_98 = arith.constant 0 : index
    %c0_99 = arith.constant 0 : index
    %c0_100 = arith.constant 0 : index
    %177 = vector.load %arg4[%c0_98, %c0_99, %c0_100] : memref<1x1x8xi32, #tpu.memory_space<vmem>>, vector<1x1x8xi32>
    %178 = vector.shape_cast %177 : vector<1x1x8xi32> to vector<1x8xi32>
    %c0_i32_101 = arith.constant 0 : i32
    %179 = vector.broadcast %c0_i32_101 : i32 to vector<1x8xi32>
    %180 = arith.cmpi ne, %178, %179 : vector<1x8xi32>
    %c0_102 = arith.constant 0 : index
    %c0_103 = arith.constant 0 : index
    %181 = vector.load %arg28[%c0_102, %c0_103] : memref<8x96xf32, #tpu.memory_space<vmem>>, vector<8x8xf32>
    %182 = arith.truncf %181 : vector<8x8xf32> to vector<8x8xbf16>
    %c0_104 = arith.constant 0 : index
    %c0_105 = arith.constant 0 : index
    %183 = vector.load %arg29[%c0_104, %c0_105] : memref<8x64xf32, #tpu.memory_space<vmem>>, vector<8x8xf32>
    %184 = arith.truncf %183 : vector<8x8xf32> to vector<8x8xbf16>
    %c0_106 = arith.constant 0 : index
    %c32_107 = arith.constant 32 : index
    %185 = vector.load %arg29[%c0_106, %c32_107] : memref<8x64xf32, #tpu.memory_space<vmem>>, vector<8x8xf32>
    %186 = arith.truncf %185 : vector<8x8xf32> to vector<8x8xbf16>
    %cst_108 = arith.constant dense<0.000000e+00> : vector<8x8xf32>
    %187 = tpu.matmul %182, %184, %cst_108 {dimension_numbers = #tpu.dot_dimension_numbers<[1], [1], [0], [0], [0, 0, 1, 0], [], []>} : vector<8x8xbf16>, vector<8x8xbf16>, vector<8x8xf32> -> vector<8x8xf32>
    %cst_109 = arith.constant 0.353553385 : f32
    %188 = vector.broadcast %cst_109 : f32 to vector<8x8xf32>
    %189 = arith.mulf %187, %188 : vector<8x8xf32>
    %cst_110 = arith.constant -1.000000e+09 : f32
    %190 = vector.shape_cast %180 : vector<1x8xi1> to vector<1x8xi1>
    %191 = vector.broadcast %190 : vector<1x8xi1> to vector<8x8xi1>
    %192 = vector.broadcast %cst_110 : f32 to vector<8x8xf32>
    %193 = arith.select %191, %189, %192 : vector<8x8xi1>, vector<8x8xf32>
    %cst_111 = arith.constant dense<0xFF800000> : vector<8xf32>
    %194 = vector.multi_reduction <maximumf>, %193, %cst_111 [1] : vector<8x8xf32> to vector<8xf32>
    %195 = vector.shape_cast %194 : vector<8xf32> to vector<8x1xf32>
    %196 = vector.broadcast %195 : vector<8x1xf32> to vector<8x8xf32>
    %197 = arith.subf %193, %196 : vector<8x8xf32>
    %198 = math.exp %197 : vector<8x8xf32>
    %cst_112 = arith.constant dense<0.000000e+00> : vector<8xf32>
    %199 = vector.multi_reduction <add>, %198, %cst_112 [1] : vector<8x8xf32> to vector<8xf32>
    %200 = vector.shape_cast %199 : vector<8xf32> to vector<8x1xf32>
    %201 = tpu.reciprocal %200 {approx = true} : vector<8x1xf32> -> vector<8x1xf32>
    %202 = vector.broadcast %201 : vector<8x1xf32> to vector<8x8xf32>
    %203 = arith.mulf %198, %202 : vector<8x8xf32>
    %204 = arith.truncf %203 : vector<8x8xf32> to vector<8x8xbf16>
    %cst_113 = arith.constant dense<0.000000e+00> : vector<8x8xf32>
    %205 = tpu.matmul %204, %186, %cst_113 {dimension_numbers = #tpu.dot_dimension_numbers<[1], [0], [0], [1], [0, 0, 1, 1], [], []>} : vector<8x8xbf16>, vector<8x8xbf16>, vector<8x8xf32> -> vector<8x8xf32>
    %c0_114 = arith.constant 0 : index
    %c0_115 = arith.constant 0 : index
    %206 = vector.load %arg30[%c0_114, %c0_115] : memref<8x32xf32, #tpu.memory_space<vmem>>, vector<8x8xf32>
    tpu.vector_store %arg30[%c0_114, %c0_115], %205 {strides = array<i32>} : memref<8x32xf32, #tpu.memory_space<vmem>>, vector<8x8xf32>,
    %c0_116 = arith.constant 0 : index
    %c8_117 = arith.constant 8 : index
    %207 = vector.load %arg28[%c0_116, %c8_117] : memref<8x96xf32, #tpu.memory_space<vmem>>, vector<8x8xf32>
    %208 = arith.truncf %207 : vector<8x8xf32> to vector<8x8xbf16>
    %c0_118 = arith.constant 0 : index
    %c8_119 = arith.constant 8 : index
    %209 = vector.load %arg29[%c0_118, %c8_119] : memref<8x64xf32, #tpu.memory_space<vmem>>, vector<8x8xf32>
    %210 = arith.truncf %209 : vector<8x8xf32> to vector<8x8xbf16>
    %c0_120 = arith.constant 0 : index
    %c40_121 = arith.constant 40 : index
    %211 = vector.load %arg29[%c0_120, %c40_121] : memref<8x64xf32, #tpu.memory_space<vmem>>, vector<8x8xf32>
    %212 = arith.truncf %211 : vector<8x8xf32> to vector<8x8xbf16>
    %cst_122 = arith.constant dense<0.000000e+00> : vector<8x8xf32>
    %213 = tpu.matmul %208, %210, %cst_122 {dimension_numbers = #tpu.dot_dimension_numbers<[1], [1], [0], [0], [0, 0, 1, 0], [], []>} : vector<8x8xbf16>, vector<8x8xbf16>, vector<8x8xf32> -> vector<8x8xf32>
    %cst_123 = arith.constant 0.353553385 : f32
    %214 = vector.broadcast %cst_123 : f32 to vector<8x8xf32>
    %215 = arith.mulf %213, %214 : vector<8x8xf32>
    %cst_124 = arith.constant -1.000000e+09 : f32
    %216 = vector.shape_cast %180 : vector<1x8xi1> to vector<1x8xi1>
    %217 = vector.broadcast %216 : vector<1x8xi1> to vector<8x8xi1>
    %218 = vector.broadcast %cst_124 : f32 to vector<8x8xf32>
    %219 = arith.select %217, %215, %218 : vector<8x8xi1>, vector<8x8xf32>
    %cst_125 = arith.constant dense<0xFF800000> : vector<8xf32>
    %220 = vector.multi_reduction <maximumf>, %219, %cst_125 [1] : vector<8x8xf32> to vector<8xf32>
    %221 = vector.shape_cast %220 : vector<8xf32> to vector<8x1xf32>
    %222 = vector.broadcast %221 : vector<8x1xf32> to vector<8x8xf32>
    %223 = arith.subf %219, %222 : vector<8x8xf32>
    %224 = math.exp %223 : vector<8x8xf32>
    %cst_126 = arith.constant dense<0.000000e+00> : vector<8xf32>
    %225 = vector.multi_reduction <add>, %224, %cst_126 [1] : vector<8x8xf32> to vector<8xf32>
    %226 = vector.shape_cast %225 : vector<8xf32> to vector<8x1xf32>
    %227 = tpu.reciprocal %226 {approx = true} : vector<8x1xf32> -> vector<8x1xf32>
    %228 = vector.broadcast %227 : vector<8x1xf32> to vector<8x8xf32>
    %229 = arith.mulf %224, %228 : vector<8x8xf32>
    %230 = arith.truncf %229 : vector<8x8xf32> to vector<8x8xbf16>
    %cst_127 = arith.constant dense<0.000000e+00> : vector<8x8xf32>
    %231 = tpu.matmul %230, %212, %cst_127 {dimension_numbers = #tpu.dot_dimension_numbers<[1], [0], [0], [1], [0, 0, 1, 1], [], []>} : vector<8x8xbf16>, vector<8x8xbf16>, vector<8x8xf32> -> vector<8x8xf32>
    %c0_128 = arith.constant 0 : index
    %c8_129 = arith.constant 8 : index
    %232 = vector.load %arg30[%c0_128, %c8_129] : memref<8x32xf32, #tpu.memory_space<vmem>>, vector<8x8xf32>
    tpu.vector_store %arg30[%c0_128, %c8_129], %231 {strides = array<i32>} : memref<8x32xf32, #tpu.memory_space<vmem>>, vector<8x8xf32>,
    %c0_130 = arith.constant 0 : index
    %c16_131 = arith.constant 16 : index
    %233 = vector.load %arg28[%c0_130, %c16_131] : memref<8x96xf32, #tpu.memory_space<vmem>>, vector<8x8xf32>
    %234 = arith.truncf %233 : vector<8x8xf32> to vector<8x8xbf16>
    %c0_132 = arith.constant 0 : index
    %c16_133 = arith.constant 16 : index
    %235 = vector.load %arg29[%c0_132, %c16_133] : memref<8x64xf32, #tpu.memory_space<vmem>>, vector<8x8xf32>
    %236 = arith.truncf %235 : vector<8x8xf32> to vector<8x8xbf16>
    %c0_134 = arith.constant 0 : index
    %c48_135 = arith.constant 48 : index
    %237 = vector.load %arg29[%c0_134, %c48_135] : memref<8x64xf32, #tpu.memory_space<vmem>>, vector<8x8xf32>
    %238 = arith.truncf %237 : vector<8x8xf32> to vector<8x8xbf16>
    %cst_136 = arith.constant dense<0.000000e+00> : vector<8x8xf32>
    %239 = tpu.matmul %234, %236, %cst_136 {dimension_numbers = #tpu.dot_dimension_numbers<[1], [1], [0], [0], [0, 0, 1, 0], [], []>} : vector<8x8xbf16>, vector<8x8xbf16>, vector<8x8xf32> -> vector<8x8xf32>
    %cst_137 = arith.constant 0.353553385 : f32
    %240 = vector.broadcast %cst_137 : f32 to vector<8x8xf32>
    %241 = arith.mulf %239, %240 : vector<8x8xf32>
    %cst_138 = arith.constant -1.000000e+09 : f32
    %242 = vector.shape_cast %180 : vector<1x8xi1> to vector<1x8xi1>
    %243 = vector.broadcast %242 : vector<1x8xi1> to vector<8x8xi1>
    %244 = vector.broadcast %cst_138 : f32 to vector<8x8xf32>
    %245 = arith.select %243, %241, %244 : vector<8x8xi1>, vector<8x8xf32>
    %cst_139 = arith.constant dense<0xFF800000> : vector<8xf32>
    %246 = vector.multi_reduction <maximumf>, %245, %cst_139 [1] : vector<8x8xf32> to vector<8xf32>
    %247 = vector.shape_cast %246 : vector<8xf32> to vector<8x1xf32>
    %248 = vector.broadcast %247 : vector<8x1xf32> to vector<8x8xf32>
    %249 = arith.subf %245, %248 : vector<8x8xf32>
    %250 = math.exp %249 : vector<8x8xf32>
    %cst_140 = arith.constant dense<0.000000e+00> : vector<8xf32>
    %251 = vector.multi_reduction <add>, %250, %cst_140 [1] : vector<8x8xf32> to vector<8xf32>
    %252 = vector.shape_cast %251 : vector<8xf32> to vector<8x1xf32>
    %253 = tpu.reciprocal %252 {approx = true} : vector<8x1xf32> -> vector<8x1xf32>
    %254 = vector.broadcast %253 : vector<8x1xf32> to vector<8x8xf32>
    %255 = arith.mulf %250, %254 : vector<8x8xf32>
    %256 = arith.truncf %255 : vector<8x8xf32> to vector<8x8xbf16>
    %cst_141 = arith.constant dense<0.000000e+00> : vector<8x8xf32>
    %257 = tpu.matmul %256, %238, %cst_141 {dimension_numbers = #tpu.dot_dimension_numbers<[1], [0], [0], [1], [0, 0, 1, 1], [], []>} : vector<8x8xbf16>, vector<8x8xbf16>, vector<8x8xf32> -> vector<8x8xf32>
    %c0_142 = arith.constant 0 : index
    %c16_143 = arith.constant 16 : index
    %258 = vector.load %arg30[%c0_142, %c16_143] : memref<8x32xf32, #tpu.memory_space<vmem>>, vector<8x8xf32>
    tpu.vector_store %arg30[%c0_142, %c16_143], %257 {strides = array<i32>} : memref<8x32xf32, #tpu.memory_space<vmem>>, vector<8x8xf32>,
    %c0_144 = arith.constant 0 : index
    %c24_145 = arith.constant 24 : index
    %259 = vector.load %arg28[%c0_144, %c24_145] : memref<8x96xf32, #tpu.memory_space<vmem>>, vector<8x8xf32>
    %260 = arith.truncf %259 : vector<8x8xf32> to vector<8x8xbf16>
    %c0_146 = arith.constant 0 : index
    %c24_147 = arith.constant 24 : index
    %261 = vector.load %arg29[%c0_146, %c24_147] : memref<8x64xf32, #tpu.memory_space<vmem>>, vector<8x8xf32>
    %262 = arith.truncf %261 : vector<8x8xf32> to vector<8x8xbf16>
    %c0_148 = arith.constant 0 : index
    %c56_149 = arith.constant 56 : index
    %263 = vector.load %arg29[%c0_148, %c56_149] : memref<8x64xf32, #tpu.memory_space<vmem>>, vector<8x8xf32>
    %264 = arith.truncf %263 : vector<8x8xf32> to vector<8x8xbf16>
    %cst_150 = arith.constant dense<0.000000e+00> : vector<8x8xf32>
    %265 = tpu.matmul %260, %262, %cst_150 {dimension_numbers = #tpu.dot_dimension_numbers<[1], [1], [0], [0], [0, 0, 1, 0], [], []>} : vector<8x8xbf16>, vector<8x8xbf16>, vector<8x8xf32> -> vector<8x8xf32>
    %cst_151 = arith.constant 0.353553385 : f32
    %266 = vector.broadcast %cst_151 : f32 to vector<8x8xf32>
    %267 = arith.mulf %265, %266 : vector<8x8xf32>
    %cst_152 = arith.constant -1.000000e+09 : f32
    %268 = vector.shape_cast %180 : vector<1x8xi1> to vector<1x8xi1>
    %269 = vector.broadcast %268 : vector<1x8xi1> to vector<8x8xi1>
    %270 = vector.broadcast %cst_152 : f32 to vector<8x8xf32>
    %271 = arith.select %269, %267, %270 : vector<8x8xi1>, vector<8x8xf32>
    %cst_153 = arith.constant dense<0xFF800000> : vector<8xf32>
    %272 = vector.multi_reduction <maximumf>, %271, %cst_153 [1] : vector<8x8xf32> to vector<8xf32>
    %273 = vector.shape_cast %272 : vector<8xf32> to vector<8x1xf32>
    %274 = vector.broadcast %273 : vector<8x1xf32> to vector<8x8xf32>
    %275 = arith.subf %271, %274 : vector<8x8xf32>
    %276 = math.exp %275 : vector<8x8xf32>
    %cst_154 = arith.constant dense<0.000000e+00> : vector<8xf32>
    %277 = vector.multi_reduction <add>, %276, %cst_154 [1] : vector<8x8xf32> to vector<8xf32>
    %278 = vector.shape_cast %277 : vector<8xf32> to vector<8x1xf32>
    %279 = tpu.reciprocal %278 {approx = true} : vector<8x1xf32> -> vector<8x1xf32>
    %280 = vector.broadcast %279 : vector<8x1xf32> to vector<8x8xf32>
    %281 = arith.mulf %276, %280 : vector<8x8xf32>
    %282 = arith.truncf %281 : vector<8x8xf32> to vector<8x8xbf16>
    %cst_155 = arith.constant dense<0.000000e+00> : vector<8x8xf32>
    %283 = tpu.matmul %282, %264, %cst_155 {dimension_numbers = #tpu.dot_dimension_numbers<[1], [0], [0], [1], [0, 0, 1, 1], [], []>} : vector<8x8xbf16>, vector<8x8xbf16>, vector<8x8xf32> -> vector<8x8xf32>
    %c0_156 = arith.constant 0 : index
    %c24_157 = arith.constant 24 : index
    %284 = vector.load %arg30[%c0_156, %c24_157] : memref<8x32xf32, #tpu.memory_space<vmem>>, vector<8x8xf32>
    tpu.vector_store %arg30[%c0_156, %c24_157], %283 {strides = array<i32>} : memref<8x32xf32, #tpu.memory_space<vmem>>, vector<8x8xf32>,
    %c0_158 = arith.constant 0 : index
    %c0_159 = arith.constant 0 : index
    %285 = vector.load %arg30[%c0_158, %c0_159] : memref<8x32xf32, #tpu.memory_space<vmem>>, vector<8x32xf32>
    %286 = arith.truncf %285 : vector<8x32xf32> to vector<8x32xbf16>
    %c0_160 = arith.constant 0 : index
    %c0_161 = arith.constant 0 : index
    %287 = vector.load %arg13[%c0_160, %c0_161] : memref<32x32xbf16, #tpu.memory_space<vmem>>, vector<32x32xbf16>
    %cst_162 = arith.constant dense<0.000000e+00> : vector<8x32xf32>
    %288 = tpu.matmul %286, %287, %cst_162 {dimension_numbers = #tpu.dot_dimension_numbers<[1], [0], [0], [1], [0, 0, 1, 1], [], []>} : vector<8x32xbf16>, vector<32x32xbf16>, vector<8x32xf32> -> vector<8x32xf32>
    %289 = arith.addf %140, %288 : vector<8x32xf32>
    %c0_163 = arith.constant 0 : index
    %c0_164 = arith.constant 0 : index
    %290 = vector.load %arg14[%c0_163, %c0_164] : memref<1x32xf32, #tpu.memory_space<vmem>>, vector<1x32xf32>
    %291 = vector.broadcast %290 : vector<1x32xf32> to vector<8x32xf32>
    %292 = arith.addf %289, %291 : vector<8x32xf32>
    %c0_165 = arith.constant 0 : index
    %c0_166 = arith.constant 0 : index
    %293 = vector.load %arg23[%c0_165, %c0_166] : memref<1x32xf32, #tpu.memory_space<vmem>>, vector<1x32xf32>
    %c0_167 = arith.constant 0 : index
    %c0_168 = arith.constant 0 : index
    %294 = vector.load %arg24[%c0_167, %c0_168] : memref<1x32xf32, #tpu.memory_space<vmem>>, vector<1x32xf32>
    %cst_169 = arith.constant dense<0.000000e+00> : vector<8xf32>
    %295 = vector.multi_reduction <add>, %292, %cst_169 [1] : vector<8x32xf32> to vector<8xf32>
    %296 = vector.shape_cast %295 : vector<8xf32> to vector<8x1xf32>
    %cst_170 = arith.constant 3.200000e+01 : f32
    %297 = vector.broadcast %cst_170 : f32 to vector<8x1xf32>
    %298 = arith.divf %296, %297 : vector<8x1xf32>
    %299 = vector.broadcast %298 : vector<8x1xf32> to vector<8x32xf32>
    %300 = arith.subf %292, %299 : vector<8x32xf32>
    %301 = arith.mulf %300, %300 : vector<8x32xf32>
    %cst_171 = arith.constant dense<0.000000e+00> : vector<8xf32>
    %302 = vector.multi_reduction <add>, %301, %cst_171 [1] : vector<8x32xf32> to vector<8xf32>
    %303 = vector.shape_cast %302 : vector<8xf32> to vector<8x1xf32>
    %cst_172 = arith.constant 0.0322580636 : f32
    %304 = vector.broadcast %cst_172 : f32 to vector<8x1xf32>
    %305 = arith.mulf %303, %304 : vector<8x1xf32>
    %306 = math.sqrt %305 : vector<8x1xf32>
    %307 = vector.broadcast %293 : vector<1x32xf32> to vector<8x32xf32>
    %308 = arith.mulf %307, %300 : vector<8x32xf32>
    %cst_173 = arith.constant 9.99999997E-7 : f32
    %309 = vector.broadcast %cst_173 : f32 to vector<8x1xf32>
    %310 = arith.addf %306, %309 : vector<8x1xf32>
    %311 = vector.broadcast %310 : vector<8x1xf32> to vector<8x32xf32>
    %312 = arith.divf %308, %311 : vector<8x32xf32>
    %313 = vector.broadcast %294 : vector<1x32xf32> to vector<8x32xf32>
    %314 = arith.addf %312, %313 : vector<8x32xf32>
    %315 = arith.truncf %314 : vector<8x32xf32> to vector<8x32xbf16>
    %c0_174 = arith.constant 0 : index
    %c0_175 = arith.constant 0 : index
    %316 = vector.load %arg15[%c0_174, %c0_175] : memref<32x64xbf16, #tpu.memory_space<vmem>>, vector<32x64xbf16>
    %cst_176 = arith.constant dense<0.000000e+00> : vector<8x64xf32>
    %317 = tpu.matmul %315, %316, %cst_176 {dimension_numbers = #tpu.dot_dimension_numbers<[1], [0], [0], [1], [0, 0, 1, 1], [], []>} : vector<8x32xbf16>, vector<32x64xbf16>, vector<8x64xf32> -> vector<8x64xf32>
    %c0_177 = arith.constant 0 : index
    %c0_178 = arith.constant 0 : index
    %318 = vector.load %arg16[%c0_177, %c0_178] : memref<1x64xf32, #tpu.memory_space<vmem>>, vector<1x64xf32>
    %319 = vector.broadcast %318 : vector<1x64xf32> to vector<8x64xf32>
    %320 = arith.addf %317, %319 : vector<8x64xf32>
    %cst_179 = arith.constant 0.000000e+00 : f32
    %321 = vector.broadcast %cst_179 : f32 to vector<8x64xf32>
    %322 = arith.maximumf %320, %321 : vector<8x64xf32>
    %323 = arith.truncf %322 : vector<8x64xf32> to vector<8x64xbf16>
    %c0_180 = arith.constant 0 : index
    %c0_181 = arith.constant 0 : index
    %324 = vector.load %arg17[%c0_180, %c0_181] : memref<64x32xbf16, #tpu.memory_space<vmem>>, vector<64x32xbf16>
    %cst_182 = arith.constant dense<0.000000e+00> : vector<8x32xf32>
    %325 = tpu.matmul %323, %324, %cst_182 {dimension_numbers = #tpu.dot_dimension_numbers<[1], [0], [0], [1], [0, 0, 1, 1], [], []>} : vector<8x64xbf16>, vector<64x32xbf16>, vector<8x32xf32> -> vector<8x32xf32>
    %326 = arith.addf %292, %325 : vector<8x32xf32>
    %c0_183 = arith.constant 0 : index
    %c0_184 = arith.constant 0 : index
    %327 = vector.load %arg18[%c0_183, %c0_184] : memref<1x32xf32, #tpu.memory_space<vmem>>, vector<1x32xf32>
    %328 = vector.broadcast %327 : vector<1x32xf32> to vector<8x32xf32>
    %329 = arith.addf %326, %328 : vector<8x32xf32>
    %c0_185 = arith.constant 0 : index
    %c0_186 = arith.constant 0 : index
    %330 = vector.load %arg25[%c0_185, %c0_186] : memref<1x32xf32, #tpu.memory_space<vmem>>, vector<1x32xf32>
    %c0_187 = arith.constant 0 : index
    %c0_188 = arith.constant 0 : index
    %331 = vector.load %arg26[%c0_187, %c0_188] : memref<1x32xf32, #tpu.memory_space<vmem>>, vector<1x32xf32>
    %cst_189 = arith.constant dense<0.000000e+00> : vector<8xf32>
    %332 = vector.multi_reduction <add>, %329, %cst_189 [1] : vector<8x32xf32> to vector<8xf32>
    %333 = vector.shape_cast %332 : vector<8xf32> to vector<8x1xf32>
    %cst_190 = arith.constant 3.200000e+01 : f32
    %334 = vector.broadcast %cst_190 : f32 to vector<8x1xf32>
    %335 = arith.divf %333, %334 : vector<8x1xf32>
    %336 = vector.broadcast %335 : vector<8x1xf32> to vector<8x32xf32>
    %337 = arith.subf %329, %336 : vector<8x32xf32>
    %338 = arith.mulf %337, %337 : vector<8x32xf32>
    %cst_191 = arith.constant dense<0.000000e+00> : vector<8xf32>
    %339 = vector.multi_reduction <add>, %338, %cst_191 [1] : vector<8x32xf32> to vector<8xf32>
    %340 = vector.shape_cast %339 : vector<8xf32> to vector<8x1xf32>
    %cst_192 = arith.constant 0.0322580636 : f32
    %341 = vector.broadcast %cst_192 : f32 to vector<8x1xf32>
    %342 = arith.mulf %340, %341 : vector<8x1xf32>
    %343 = math.sqrt %342 : vector<8x1xf32>
    %344 = vector.broadcast %330 : vector<1x32xf32> to vector<8x32xf32>
    %345 = arith.mulf %344, %337 : vector<8x32xf32>
    %cst_193 = arith.constant 9.99999997E-7 : f32
    %346 = vector.broadcast %cst_193 : f32 to vector<8x1xf32>
    %347 = arith.addf %343, %346 : vector<8x1xf32>
    %348 = vector.broadcast %347 : vector<8x1xf32> to vector<8x32xf32>
    %349 = arith.divf %345, %348 : vector<8x32xf32>
    %350 = vector.broadcast %331 : vector<1x32xf32> to vector<8x32xf32>
    %351 = arith.addf %349, %350 : vector<8x32xf32>
    %c0_194 = arith.constant 0 : index
    %c0_195 = arith.constant 0 : index
    %c0_196 = arith.constant 0 : index
    %352 = vector.load %arg27[%c0_194, %c0_195, %c0_196] : memref<1x8x32xf32, #tpu.memory_space<vmem>>, vector<1x8x32xf32>
    %353 = vector.shape_cast %352 : vector<1x8x32xf32> to vector<8x32xf32>
    %354 = vector.shape_cast %351 : vector<8x32xf32> to vector<1x8x32xf32>
    tpu.vector_store %arg27[%c0_194, %c0_195, %c0_196], %354 {strides = array<i32>} : memref<1x8x32xf32, #tpu.memory_space<vmem>>, vector<1x8x32xf32>,
    return
  }
  func.func @transform_0(%arg0: i32) -> (i32, i32, i32) {
    %c0_i32 = arith.constant 0 : i32
    %c0_i32_0 = arith.constant 0 : i32
    %c0_i32_1 = arith.constant 0 : i32
    return %arg0, %c0_i32, %c0_i32_0 : i32, i32, i32
  }
  func.func @transform_1(%arg0: i32) -> (i32, i32, i32) {
    %c0_i32 = arith.constant 0 : i32
    %c0_i32_0 = arith.constant 0 : i32
    %c0_i32_1 = arith.constant 0 : i32
    return %arg0, %c0_i32, %c0_i32_0 : i32, i32, i32
  }
  func.func @transform_2(%arg0: i32) -> (i32, i32, i32) {
    %c0_i32 = arith.constant 0 : i32
    %c0_i32_0 = arith.constant 0 : i32
    %c0_i32_1 = arith.constant 0 : i32
    return %arg0, %c0_i32, %c0_i32_0 : i32, i32, i32
  }
  func.func @transform_3(%arg0: i32) -> (i32, i32, i32) {
    %c0_i32 = arith.constant 0 : i32
    %c0_i32_0 = arith.constant 0 : i32
    %c0_i32_1 = arith.constant 0 : i32
    return %arg0, %c0_i32, %c0_i32_0 : i32, i32, i32
  }
  func.func @transform_4(%arg0: i32) -> (i32, i32) {
    %c0_i32 = arith.constant 0 : i32
    %c0_i32_0 = arith.constant 0 : i32
    %c0_i32_1 = arith.constant 0 : i32
    return %c0_i32, %c0_i32_0 : i32, i32
  }
  func.func @transform_5(%arg0: i32) -> (i32, i32) {
    %c0_i32 = arith.constant 0 : i32
    %c0_i32_0 = arith.constant 0 : i32
    %c0_i32_1 = arith.constant 0 : i32
    return %c0_i32, %c0_i32_0 : i32, i32
  }
  func.func @transform_6(%arg0: i32) -> (i32, i32) {
    %c0_i32 = arith.constant 0 : i32
    %c0_i32_0 = arith.constant 0 : i32
    %c0_i32_1 = arith.constant 0 : i32
    return %c0_i32, %c0_i32_0 : i32, i32
  }
  func.func @transform_7(%arg0: i32) -> (i32, i32) {
    %c0_i32 = arith.constant 0 : i32
    %c0_i32_0 = arith.constant 0 : i32
    %c0_i32_1 = arith.constant 0 : i32
    return %c0_i32, %c0_i32_0 : i32, i32
  }
  func.func @transform_8(%arg0: i32) -> (i32, i32) {
    %c0_i32 = arith.constant 0 : i32
    %c0_i32_0 = arith.constant 0 : i32
    %c0_i32_1 = arith.constant 0 : i32
    return %c0_i32, %c0_i32_0 : i32, i32
  }
  func.func @transform_9(%arg0: i32) -> (i32, i32) {
    %c0_i32 = arith.constant 0 : i32
    %c0_i32_0 = arith.constant 0 : i32
    %c0_i32_1 = arith.constant 0 : i32
    return %c0_i32, %c0_i32_0 : i32, i32
  }
  func.func @transform_10(%arg0: i32) -> (i32, i32) {
    %c0_i32 = arith.constant 0 : i32
    %c0_i32_0 = arith.constant 0 : i32
    %c0_i32_1 = arith.constant 0 : i32
    return %c0_i32, %c0_i32_0 : i32, i32
  }
  func.func @transform_11(%arg0: i32) -> (i32, i32) {
    %c0_i32 = arith.constant 0 : i32
    %c0_i32_0 = arith.constant 0 : i32
    %c0_i32_1 = arith.constant 0 : i32
    return %c0_i32, %c0_i32_0 : i32, i32
  }
  func.func @transform_12(%arg0: i32) -> (i32, i32) {
    %c0_i32 = arith.constant 0 : i32
    %c0_i32_0 = arith.constant 0 : i32
    %c0_i32_1 = arith.constant 0 : i32
    return %c0_i32, %c0_i32_0 : i32, i32
  }
  func.func @transform_13(%arg0: i32) -> (i32, i32) {
    %c0_i32 = arith.constant 0 : i32
    %c0_i32_0 = arith.constant 0 : i32
    %c0_i32_1 = arith.constant 0 : i32
    return %c0_i32, %c0_i32_0 : i32, i32
  }
  func.func @transform_14(%arg0: i32) -> (i32, i32) {
    %c0_i32 = arith.constant 0 : i32
    %c0_i32_0 = arith.constant 0 : i32
    %c0_i32_1 = arith.constant 0 : i32
    return %c0_i32, %c0_i32_0 : i32, i32
  }
  func.func @transform_15(%arg0: i32) -> (i32, i32) {
    %c0_i32 = arith.constant 0 : i32
    %c0_i32_0 = arith.constant 0 : i32
    %c0_i32_1 = arith.constant 0 : i32
    return %c0_i32, %c0_i32_0 : i32, i32
  }
  func.func @transform_16(%arg0: i32) -> (i32, i32) {
    %c0_i32 = arith.constant 0 : i32
    %c0_i32_0 = arith.constant 0 : i32
    %c0_i32_1 = arith.constant 0 : i32
    return %c0_i32, %c0_i32_0 : i32, i32
  }
  func.func @transform_17(%arg0: i32) -> (i32, i32) {
    %c0_i32 = arith.constant 0 : i32
    %c0_i32_0 = arith.constant 0 : i32
    %c0_i32_1 = arith.constant 0 : i32
    return %c0_i32, %c0_i32_0 : i32, i32
  }
  func.func @transform_18(%arg0: i32) -> (i32, i32) {
    %c0_i32 = arith.constant 0 : i32
    %c0_i32_0 = arith.constant 0 : i32
    %c0_i32_1 = arith.constant 0 : i32
    return %c0_i32, %c0_i32_0 : i32, i32
  }
  func.func @transform_19(%arg0: i32) -> (i32, i32) {
    %c0_i32 = arith.constant 0 : i32
    %c0_i32_0 = arith.constant 0 : i32
    %c0_i32_1 = arith.constant 0 : i32
    return %c0_i32, %c0_i32_0 : i32, i32
  }
  func.func @transform_20(%arg0: i32) -> (i32, i32) {
    %c0_i32 = arith.constant 0 : i32
    %c0_i32_0 = arith.constant 0 : i32
    %c0_i32_1 = arith.constant 0 : i32
    return %c0_i32, %c0_i32_0 : i32, i32
  }
  func.func @transform_21(%arg0: i32) -> (i32, i32) {
    %c0_i32 = arith.constant 0 : i32
    %c0_i32_0 = arith.constant 0 : i32
    %c0_i32_1 = arith.constant 0 : i32
    return %c0_i32, %c0_i32_0 : i32, i32
  }
  func.func @transform_22(%arg0: i32) -> (i32, i32) {
    %c0_i32 = arith.constant 0 : i32
    %c0_i32_0 = arith.constant 0 : i32
    %c0_i32_1 = arith.constant 0 : i32
    return %c0_i32, %c0_i32_0 : i32, i32
  }
  func.func @transform_23(%arg0: i32) -> (i32, i32) {
    %c0_i32 = arith.constant 0 : i32
    %c0_i32_0 = arith.constant 0 : i32
    %c0_i32_1 = arith.constant 0 : i32
    return %c0_i32, %c0_i32_0 : i32, i32
  }
  func.func @transform_24(%arg0: i32) -> (i32, i32) {
    %c0_i32 = arith.constant 0 : i32
    %c0_i32_0 = arith.constant 0 : i32
    %c0_i32_1 = arith.constant 0 : i32
    return %c0_i32, %c0_i32_0 : i32, i32
  }
  func.func @transform_25(%arg0: i32) -> (i32, i32) {
    %c0_i32 = arith.constant 0 : i32
    %c0_i32_0 = arith.constant 0 : i32
    %c0_i32_1 = arith.constant 0 : i32
    return %c0_i32, %c0_i32_0 : i32, i32
  }
  func.func @transform_26(%arg0: i32) -> (i32, i32, i32) {
    %c0_i32 = arith.constant 0 : i32
    %c0_i32_0 = arith.constant 0 : i32
    %c0_i32_1 = arith.constant 0 : i32
    return %arg0, %c0_i32, %c0_i32_0 : i32, i32, i32
  }
}

</mosaic_0001>

<llo_original>
// kernel: decoder_forward_pallas.3
$region0: #{decoder_forward_pallas.3}
  #allocation0 [shape = 'u32[]', space=smem, size = 0x4, offset = 0x4, fixed_abs, tag = 'smem constant byte address 0x4 - core index']
  #allocation1 [shape = 'u32[144,128]{1,0:T(1,128)}', space=vmem, size = 0x12000, scoped, tag = 'internal scratch']
  #allocation2 [shape = 'f32[8,96]{1,0:T(8,128)}', space=vmem, size = 0x1000, scoped, tag = 'scratch operand']
  #allocation3 [shape = 'f32[8,64]{1,0:T(8,128)}', space=vmem, size = 0x1000, scoped, tag = 'scratch operand']
  #allocation4 [shape = 'f32[8,32]{1,0:T(8,128)}', space=vmem, size = 0x1000, scoped, tag = 'scratch operand']
  %s0 = inlined_call_operand.vmem [shape: f32[2,8,32], index: 0, kind: input, shape index: {}]
  %s1 = inlined_call_operand.vmem [shape: f32[2,8,32], index: 1, kind: input, shape index: {}]
  %s2 = inlined_call_operand.vmem [shape: s32[2,8,8], index: 2, kind: input, shape index: {}]
  %s3 = inlined_call_operand.vmem [shape: s32[2,1,8], index: 3, kind: input, shape index: {}]
  %s4 = inlined_call_operand.vmem [shape: bf16[32,96], index: 4, kind: input, shape index: {}]
  %s5 = inlined_call_operand.vmem [shape: f32[1,96], index: 5, kind: input, shape index: {}]
  %s6 = inlined_call_operand.vmem [shape: bf16[32,32], index: 6, kind: input, shape index: {}]
  %s7 = inlined_call_operand.vmem [shape: f32[1,32], index: 7, kind: input, shape index: {}]
  %s8 = inlined_call_operand.vmem [shape: bf16[32,32], index: 8, kind: input, shape index: {}]
  %s9 = inlined_call_operand.vmem [shape: f32[1,32], index: 9, kind: input, shape index: {}]
  %s10 = inlined_call_operand.vmem [shape: bf16[32,64], index: 10, kind: input, shape index: {}]
  %s11 = inlined_call_operand.vmem [shape: f32[1,64], index: 11, kind: input, shape index: {}]
  %s12 = inlined_call_operand.vmem [shape: bf16[32,32], index: 12, kind: input, shape index: {}]
  %s13 = inlined_call_operand.vmem [shape: f32[1,32], index: 13, kind: input, shape index: {}]
  %s14 = inlined_call_operand.vmem [shape: bf16[32,64], index: 14, kind: input, shape index: {}]
  %s15 = inlined_call_operand.vmem [shape: f32[1,64], index: 15, kind: input, shape index: {}]
  %s16 = inlined_call_operand.vmem [shape: bf16[64,32], index: 16, kind: input, shape index: {}]
  %s17 = inlined_call_operand.vmem [shape: f32[1,32], index: 17, kind: input, shape index: {}]
  %s18 = inlined_call_operand.vmem [shape: f32[1,32], index: 18, kind: input, shape index: {}]
  %s19 = inlined_call_operand.vmem [shape: f32[1,32], index: 19, kind: input, shape index: {}]
  %s20 = inlined_call_operand.vmem [shape: f32[1,32], index: 20, kind: input, shape index: {}]
  %s21 = inlined_call_operand.vmem [shape: f32[1,32], index: 21, kind: input, shape index: {}]
  %s22 = inlined_call_operand.vmem [shape: f32[1,32], index: 22, kind: input, shape index: {}]
  %s23 = inlined_call_operand.vmem [shape: f32[1,32], index: 23, kind: input, shape index: {}]
  %s24 = inlined_call_operand.vmem [shape: f32[1,32], index: 24, kind: input, shape index: {}]
  %s25 = inlined_call_operand.vmem [shape: f32[1,32], index: 25, kind: input, shape index: {}]
  %s26 = inlined_call_operand.hbm [shape: f32[2,8,32], index: 26, kind: output, shape index: {}]
  %s27 = sld [smem:[#allocation0]]
  $region137: #{decoder_forward_pallas.3} parent=0
    _
  %s29 = ssub.s32 1, %s27
  %s30 = scalar_select 0, %s29, %s27
  $region1: #{decoder_forward_pallas.3} parent=0
    #allocation5 [shape = 'u8[8192]{0}', space=vmem, size = 0x2000, scoped, tag = 'output window, operand 0']
    #allocation6 [shape = 's32[2]{0}', space=sflag, size = 0x8, scoped, tag = 'scoped memory for decoder_forward_pallas.3']
    %31 = vsyncpa [#allocation6], 0
    %s32 = scalar_lea.sflag [#allocation6], 1
    %33 = vsyncpa %s32, 0
    loop: start=0, step=1, limit=4
    $region2: #{decoder_forward_pallas.3} parent=1 // loop_pre_header
      _
    $region3: #{decoder_forward_pallas.3} parent=1 // loop_header
      %s35 = sphi 0, %s39
      %p36 = scmp.ge.s32.totalorder %s35, 4
      %s45 = sphi 0, %s47
      %s48 = sphi 0, %s45
      %s49 = sphi 0, %s48
      %s65 = sphi 0, %s49
      %s71 = sphi 0, %s73
      %s74 = sphi 0, %s71
      %s75 = sphi 0, %s74
      %s91 = sphi 0, %s75
      %s97 = sphi 0, %s99
      %s100 = sphi 0, %s97
      %s101 = sphi 0, %s100
      %s117 = sphi 0, %s101
      %s123 = sphi 0, %s125
      %s126 = sphi 0, %s123
      %s127 = sphi 0, %s126
      %s143 = sphi 0, %s127
      %s147 = sphi 0, %s147
      %s149 = sphi 0, %s147
      %s150 = sphi 0, %s149
      %s164 = sphi 0, %s150
      %s168 = sphi 0, %s168
      %s170 = sphi 0, %s168
      %s171 = sphi 0, %s170
      %s185 = sphi 0, %s171
      %s189 = sphi 0, %s189
      %s191 = sphi 0, %s189
      %s192 = sphi 0, %s191
      %s206 = sphi 0, %s192
      %s210 = sphi 0, %s210
      %s212 = sphi 0, %s210
      %s213 = sphi 0, %s212
      %s227 = sphi 0, %s213
      %s231 = sphi 0, %s231
      %s233 = sphi 0, %s231
      %s234 = sphi 0, %s233
      %s248 = sphi 0, %s234
      %s252 = sphi 0, %s252
      %s254 = sphi 0, %s252
      %s255 = sphi 0, %s254
      %s269 = sphi 0, %s255
      %s273 = sphi 0, %s273
      %s275 = sphi 0, %s273
      %s276 = sphi 0, %s275
      %s290 = sphi 0, %s276
      %s294 = sphi 0, %s294
      %s296 = sphi 0, %s294
      %s297 = sphi 0, %s296
      %s311 = sphi 0, %s297
      %s315 = sphi 0, %s315
      %s317 = sphi 0, %s315
      %s318 = sphi 0, %s317
      %s332 = sphi 0, %s318
      %s336 = sphi 0, %s336
      %s338 = sphi 0, %s336
      %s339 = sphi 0, %s338
      %s353 = sphi 0, %s339
      %s357 = sphi 0, %s357
      %s359 = sphi 0, %s357
      %s360 = sphi 0, %s359
      %s374 = sphi 0, %s360
      %s378 = sphi 0, %s378
      %s380 = sphi 0, %s378
      %s381 = sphi 0, %s380
      %s395 = sphi 0, %s381
      %s399 = sphi 0, %s399
      %s401 = sphi 0, %s399
      %s402 = sphi 0, %s401
      %s416 = sphi 0, %s402
      %s420 = sphi 0, %s420
      %s422 = sphi 0, %s420
      %s423 = sphi 0, %s422
      %s437 = sphi 0, %s423
      %s441 = sphi 0, %s441
      %s443 = sphi 0, %s441
      %s444 = sphi 0, %s443
      %s458 = sphi 0, %s444
      %s462 = sphi 0, %s462
      %s464 = sphi 0, %s462
      %s465 = sphi 0, %s464
      %s479 = sphi 0, %s465
      %s483 = sphi 0, %s483
      %s485 = sphi 0, %s483
      %s486 = sphi 0, %s485
      %s500 = sphi 0, %s486
      %s504 = sphi 0, %s504
      %s506 = sphi 0, %s504
      %s507 = sphi 0, %s506
      %s521 = sphi 0, %s507
      %s525 = sphi 0, %s525
      %s527 = sphi 0, %s525
      %s528 = sphi 0, %s527
      %s542 = sphi 0, %s528
      %s546 = sphi 0, %s546
      %s548 = sphi 0, %s546
      %s549 = sphi 0, %s548
      %s563 = sphi 0, %s549
      %s567 = sphi 0, %s567
      %s569 = sphi 0, %s567
      %s570 = sphi 0, %s569
      %s584 = sphi 0, %s570
      %s588 = sphi 0, %s588
      %s590 = sphi 0, %s588
      %s591 = sphi 0, %s590
      %s605 = sphi 0, %s591
      %s611 = sphi 0, %s613
      %s614 = sphi 0, %s611
      %s615 = sphi 0, %s614
      %s631 = sphi 0, %s615
    $region4: #{decoder_forward_pallas.3} parent=1 // loop_header_branch
      %38 = sbr.rel (%p36) target = $region8
    $region5: #{decoder_forward_pallas.3} parent=1 // loop_body
      %s40 = ssub.s32 %s35, 1
      %s41 = ssub.s32 %s35, 2
      %s42 = sadd.s32 %s35, 1
      %s43 = ssub.s32 %s35, %s42
      %p44 = scmp.eq.s32.totalorder %s43, 0
      %s46 = sadd.s32 %s45, 1
      %s47 = scalar_select %p44, %s45, %s46
      %p50 = pneg %p44
      %p51 = scmp.eq.s32.totalorder %s35, 1
      %p52 = por %p50, %p51
      %p53 = scmp.ne.s32.totalorder %s45, %s48
      %p54 = scmp.eq.s32.totalorder %s35, 0
      %p55 = por %p53, %p54
      %p56 = scmp.ne.s32.totalorder %s45, %s48
      %p57 = scmp.eq.s32.totalorder %s40, 1
      %p58 = por %p56, %p57
      %p59 = scmp.ne.s32.totalorder %s48, %s49
      %p60 = scmp.eq.s32.totalorder %s40, 0
      %p61 = por %p59, %p60
      %p62 = scmp.ne.s32.totalorder %s48, %s49
      %p63 = scmp.eq.s32.totalorder %s41, 1
      %p64 = por %p62, %p63
      %p66 = scmp.ne.s32.totalorder %s49, %s65
      %p67 = scmp.eq.s32.totalorder %s41, 0
      %p68 = por %p66, %p67
      %s69 = ssub.s32 %s35, %s42
      %p70 = scmp.eq.s32.totalorder %s69, 0
      %s72 = sadd.s32 %s71, 1
      %s73 = scalar_select %p70, %s71, %s72
      %p76 = pneg %p70
      %p77 = scmp.eq.s32.totalorder %s35, 1
      %p78 = por %p76, %p77
      %p79 = scmp.ne.s32.totalorder %s71, %s74
      %p80 = scmp.eq.s32.totalorder %s35, 0
      %p81 = por %p79, %p80
      %p82 = scmp.ne.s32.totalorder %s71, %s74
      %p83 = scmp.eq.s32.totalorder %s40, 1
      %p84 = por %p82, %p83
      %p85 = scmp.ne.s32.totalorder %s74, %s75
      %p86 = scmp.eq.s32.totalorder %s40, 0
      %p87 = por %p85, %p86
      %p88 = scmp.ne.s32.totalorder %s74, %s75
      %p89 = scmp.eq.s32.totalorder %s41, 1
      %p90 = por %p88, %p89
      %p92 = scmp.ne.s32.totalorder %s75, %s91
      %p93 = scmp.eq.s32.totalorder %s41, 0
      %p94 = por %p92, %p93
      %s95 = ssub.s32 %s35, %s42
      %p96 = scmp.eq.s32.totalorder %s95, 0
      %s98 = sadd.s32 %s97, 1
      %s99 = scalar_select %p96, %s97, %s98
      %p102 = pneg %p96
      %p103 = scmp.eq.s32.totalorder %s35, 1
      %p104 = por %p102, %p103
      %p105 = scmp.ne.s32.totalorder %s97, %s100
      %p106 = scmp.eq.s32.totalorder %s35, 0
      %p107 = por %p105, %p106
      %p108 = scmp.ne.s32.totalorder %s97, %s100
      %p109 = scmp.eq.s32.totalorder %s40, 1
      %p110 = por %p108, %p109
      %p111 = scmp.ne.s32.totalorder %s100, %s101
      %p112 = scmp.eq.s32.totalorder %s40, 0
      %p113 = por %p111, %p112
      %p114 = scmp.ne.s32.totalorder %s100, %s101
      %p115 = scmp.eq.s32.totalorder %s41, 1
      %p116 = por %p114, %p115
      %p118 = scmp.ne.s32.totalorder %s101, %s117
      %p119 = scmp.eq.s32.totalorder %s41, 0
      %p120 = por %p118, %p119
      %s121 = ssub.s32 %s35, %s42
      %p122 = scmp.eq.s32.totalorder %s121, 0
      %s124 = sadd.s32 %s123, 1
      %s125 = scalar_select %p122, %s123, %s124
      %p128 = pneg %p122
      %p129 = scmp.eq.s32.totalorder %s35, 1
      %p130 = por %p128, %p129
      %p131 = scmp.ne.s32.totalorder %s123, %s126
      %p132 = scmp.eq.s32.totalorder %s35, 0
      %p133 = por %p131, %p132
      %p134 = scmp.ne.s32.totalorder %s123, %s126
      %p135 = scmp.eq.s32.totalorder %s40, 1
      %p136 = por %p134, %p135
      %p137 = scmp.ne.s32.totalorder %s126, %s127
      %p138 = scmp.eq.s32.totalorder %s40, 0
      %p139 = por %p137, %p138
      %p140 = scmp.ne.s32.totalorder %s126, %s127
      %p141 = scmp.eq.s32.totalorder %s41, 1
      %p142 = por %p140, %p141
      %p144 = scmp.ne.s32.totalorder %s127, %s143
      %p145 = scmp.eq.s32.totalorder %s41, 0
      %p146 = por %p144, %p145
      %s148 = sadd.s32 %s147, 1
      %p151 = scmp.eq.s32.totalorder %s35, 1
      %p152 = scmp.ne.s32.totalorder %s147, %s149
      %p153 = scmp.eq.s32.totalorder %s35, 0
      %p154 = por %p152, %p153
      %p155 = scmp.ne.s32.totalorder %s147, %s149
      %p156 = scmp.eq.s32.totalorder %s40, 1
      %p157 = por %p155, %p156
      %p158 = scmp.ne.s32.totalorder %s149, %s150
      %p159 = scmp.eq.s32.totalorder %s40, 0
      %p160 = por %p158, %p159
      %p161 = scmp.ne.s32.totalorder %s149, %s150
      %p162 = scmp.eq.s32.totalorder %s41, 1
      %p163 = por %p161, %p162
      %p165 = scmp.ne.s32.totalorder %s150, %s164
      %p166 = scmp.eq.s32.totalorder %s41, 0
      %p167 = por %p165, %p166
      %s169 = sadd.s32 %s168, 1
      %p172 = scmp.eq.s32.totalorder %s35, 1
      %p173 = scmp.ne.s32.totalorder %s168, %s170
      %p174 = scmp.eq.s32.totalorder %s35, 0
      %p175 = por %p173, %p174
      %p176 = scmp.ne.s32.totalorder %s168, %s170
      %p177 = scmp.eq.s32.totalorder %s40, 1
      %p178 = por %p176, %p177
      %p179 = scmp.ne.s32.totalorder %s170, %s171
      %p180 = scmp.eq.s32.totalorder %s40, 0
      %p181 = por %p179, %p180
      %p182 = scmp.ne.s32.totalorder %s170, %s171
      %p183 = scmp.eq.s32.totalorder %s41, 1
      %p184 = por %p182, %p183
      %p186 = scmp.ne.s32.totalorder %s171, %s185
      %p187 = scmp.eq.s32.totalorder %s41, 0
      %p188 = por %p186, %p187
      %s190 = sadd.s32 %s189, 1
      %p193 = scmp.eq.s32.totalorder %s35, 1
      %p194 = scmp.ne.s32.totalorder %s189, %s191
      %p195 = scmp.eq.s32.totalorder %s35, 0
      %p196 = por %p194, %p195
      %p197 = scmp.ne.s32.totalorder %s189, %s191
      %p198 = scmp.eq.s32.totalorder %s40, 1
      %p199 = por %p197, %p198
      %p200 = scmp.ne.s32.totalorder %s191, %s192
      %p201 = scmp.eq.s32.totalorder %s40, 0
      %p202 = por %p200, %p201
      %p203 = scmp.ne.s32.totalorder %s191, %s192
      %p204 = scmp.eq.s32.totalorder %s41, 1
      %p205 = por %p203, %p204
      %p207 = scmp.ne.s32.totalorder %s192, %s206
      %p208 = scmp.eq.s32.totalorder %s41, 0
      %p209 = por %p207, %p208
      %s211 = sadd.s32 %s210, 1
      %p214 = scmp.eq.s32.totalorder %s35, 1
      %p215 = scmp.ne.s32.totalorder %s210, %s212
      %p216 = scmp.eq.s32.totalorder %s35, 0
      %p217 = por %p215, %p216
      %p218 = scmp.ne.s32.totalorder %s210, %s212
      %p219 = scmp.eq.s32.totalorder %s40, 1
      %p220 = por %p218, %p219
      %p221 = scmp.ne.s32.totalorder %s212, %s213
      %p222 = scmp.eq.s32.totalorder %s40, 0
      %p223 = por %p221, %p222
      %p224 = scmp.ne.s32.totalorder %s212, %s213
      %p225 = scmp.eq.s32.totalorder %s41, 1
      %p226 = por %p224, %p225
      %p228 = scmp.ne.s32.totalorder %s213, %s227
      %p229 = scmp.eq.s32.totalorder %s41, 0
      %p230 = por %p228, %p229
      %s232 = sadd.s32 %s231, 1
      %p235 = scmp.eq.s32.totalorder %s35, 1
      %p236 = scmp.ne.s32.totalorder %s231, %s233
      %p237 = scmp.eq.s32.totalorder %s35, 0
      %p238 = por %p236, %p237
      %p239 = scmp.ne.s32.totalorder %s231, %s233
      %p240 = scmp.eq.s32.totalorder %s40, 1
      %p241 = por %p239, %p240
      %p242 = scmp.ne.s32.totalorder %s233, %s234
      %p243 = scmp.eq.s32.totalorder %s40, 0
      %p244 = por %p242, %p243
      %p245 = scmp.ne.s32.totalorder %s233, %s234
      %p246 = scmp.eq.s32.totalorder %s41, 1
      %p247 = por %p245, %p246
      %p249 = scmp.ne.s32.totalorder %s234, %s248
      %p250 = scmp.eq.s32.totalorder %s41, 0
      %p251 = por %p249, %p250
      %s253 = sadd.s32 %s252, 1
      %p256 = scmp.eq.s32.totalorder %s35, 1
      %p257 = scmp.ne.s32.totalorder %s252, %s254
      %p258 = scmp.eq.s32.totalorder %s35, 0
      %p259 = por %p257, %p258
      %p260 = scmp.ne.s32.totalorder %s252, %s254
      %p261 = scmp.eq.s32.totalorder %s40, 1
      %p262 = por %p260, %p261
      %p263 = scmp.ne.s32.totalorder %s254, %s255
      %p264 = scmp.eq.s32.totalorder %s40, 0
      %p265 = por %p263, %p264
      %p266 = scmp.ne.s32.totalorder %s254, %s255
      %p267 = scmp.eq.s32.totalorder %s41, 1
      %p268 = por %p266, %p267
      %p270 = scmp.ne.s32.totalorder %s255, %s269
      %p271 = scmp.eq.s32.totalorder %s41, 0
      %p272 = por %p270, %p271
      %s274 = sadd.s32 %s273, 1
      %p277 = scmp.eq.s32.totalorder %s35, 1
      %p278 = scmp.ne.s32.totalorder %s273, %s275
      %p279 = scmp.eq.s32.totalorder %s35, 0
      %p280 = por %p278, %p279
      %p281 = scmp.ne.s32.totalorder %s273, %s275
      %p282 = scmp.eq.s32.totalorder %s40, 1
      %p283 = por %p281, %p282
      %p284 = scmp.ne.s32.totalorder %s275, %s276
      %p285 = scmp.eq.s32.totalorder %s40, 0
      %p286 = por %p284, %p285
      %p287 = scmp.ne.s32.totalorder %s275, %s276
      %p288 = scmp.eq.s32.totalorder %s41, 1
      %p289 = por %p287, %p288
      %p291 = scmp.ne.s32.totalorder %s276, %s290
      %p292 = scmp.eq.s32.totalorder %s41, 0
      %p293 = por %p291, %p292
      %s295 = sadd.s32 %s294, 1
      %p298 = scmp.eq.s32.totalorder %s35, 1
      %p299 = scmp.ne.s32.totalorder %s294, %s296
      %p300 = scmp.eq.s32.totalorder %s35, 0
      %p301 = por %p299, %p300
      %p302 = scmp.ne.s32.totalorder %s294, %s296
      %p303 = scmp.eq.s32.totalorder %s40, 1
      %p304 = por %p302, %p303
      %p305 = scmp.ne.s32.totalorder %s296, %s297
      %p306 = scmp.eq.s32.totalorder %s40, 0
      %p307 = por %p305, %p306
      %p308 = scmp.ne.s32.totalorder %s296, %s297
      %p309 = scmp.eq.s32.totalorder %s41, 1
      %p310 = por %p308, %p309
      %p312 = scmp.ne.s32.totalorder %s297, %s311
      %p313 = scmp.eq.s32.totalorder %s41, 0
      %p314 = por %p312, %p313
      %s316 = sadd.s32 %s315, 1
      %p319 = scmp.eq.s32.totalorder %s35, 1
      %p320 = scmp.ne.s32.totalorder %s315, %s317
      %p321 = scmp.eq.s32.totalorder %s35, 0
      %p322 = por %p320, %p321
      %p323 = scmp.ne.s32.totalorder %s315, %s317
      %p324 = scmp.eq.s32.totalorder %s40, 1
      %p325 = por %p323, %p324
      %p326 = scmp.ne.s32.totalorder %s317, %s318
      %p327 = scmp.eq.s32.totalorder %s40, 0
      %p328 = por %p326, %p327
      %p329 = scmp.ne.s32.totalorder %s317, %s318
      %p330 = scmp.eq.s32.totalorder %s41, 1
      %p331 = por %p329, %p330
      %p333 = scmp.ne.s32.totalorder %s318, %s332
      %p334 = scmp.eq.s32.totalorder %s41, 0
      %p335 = por %p333, %p334
      %s337 = sadd.s32 %s336, 1
      %p340 = scmp.eq.s32.totalorder %s35, 1
      %p341 = scmp.ne.s32.totalorder %s336, %s338
      %p342 = scmp.eq.s32.totalorder %s35, 0
      %p343 = por %p341, %p342
      %p344 = scmp.ne.s32.totalorder %s336, %s338
      %p345 = scmp.eq.s32.totalorder %s40, 1
      %p346 = por %p344, %p345
      %p347 = scmp.ne.s32.totalorder %s338, %s339
      %p348 = scmp.eq.s32.totalorder %s40, 0
      %p349 = por %p347, %p348
      %p350 = scmp.ne.s32.totalorder %s338, %s339
      %p351 = scmp.eq.s32.totalorder %s41, 1
      %p352 = por %p350, %p351
      %p354 = scmp.ne.s32.totalorder %s339, %s353
      %p355 = scmp.eq.s32.totalorder %s41, 0
      %p356 = por %p354, %p355
      %s358 = sadd.s32 %s357, 1
      %p361 = scmp.eq.s32.totalorder %s35, 1
      %p362 = scmp.ne.s32.totalorder %s357, %s359
      %p363 = scmp.eq.s32.totalorder %s35, 0
      %p364 = por %p362, %p363
      %p365 = scmp.ne.s32.totalorder %s357, %s359
      %p366 = scmp.eq.s32.totalorder %s40, 1
      %p367 = por %p365, %p366
      %p368 = scmp.ne.s32.totalorder %s359, %s360
      %p369 = scmp.eq.s32.totalorder %s40, 0
      %p370 = por %p368, %p369
      %p371 = scmp.ne.s32.totalorder %s359, %s360
      %p372 = scmp.eq.s32.totalorder %s41, 1
      %p373 = por %p371, %p372
      %p375 = scmp.ne.s32.totalorder %s360, %s374
      %p376 = scmp.eq.s32.totalorder %s41, 0
      %p377 = por %p375, %p376
      %s379 = sadd.s32 %s378, 1
      %p382 = scmp.eq.s32.totalorder %s35, 1
      %p383 = scmp.ne.s32.totalorder %s378, %s380
      %p384 = scmp.eq.s32.totalorder %s35, 0
      %p385 = por %p383, %p384
      %p386 = scmp.ne.s32.totalorder %s378, %s380
      %p387 = scmp.eq.s32.totalorder %s40, 1
      %p388 = por %p386, %p387
      %p389 = scmp.ne.s32.totalorder %s380, %s381
      %p390 = scmp.eq.s32.totalorder %s40, 0
      %p391 = por %p389, %p390
      %p392 = scmp.ne.s32.totalorder %s380, %s381
      %p393 = scmp.eq.s32.totalorder %s41, 1
      %p394 = por %p392, %p393
      %p396 = scmp.ne.s32.totalorder %s381, %s395
      %p397 = scmp.eq.s32.totalorder %s41, 0
      %p398 = por %p396, %p397
      %s400 = sadd.s32 %s399, 1
      %p403 = scmp.eq.s32.totalorder %s35, 1
      %p404 = scmp.ne.s32.totalorder %s399, %s401
      %p405 = scmp.eq.s32.totalorder %s35, 0
      %p406 = por %p404, %p405
      %p407 = scmp.ne.s32.totalorder %s399, %s401
      %p408 = scmp.eq.s32.totalorder %s40, 1
      %p409 = por %p407, %p408
      %p410 = scmp.ne.s32.totalorder %s401, %s402
      %p411 = scmp.eq.s32.totalorder %s40, 0
      %p412 = por %p410, %p411
      %p413 = scmp.ne.s32.totalorder %s401, %s402
      %p414 = scmp.eq.s32.totalorder %s41, 1
      %p415 = por %p413, %p414
      %p417 = scmp.ne.s32.totalorder %s402, %s416
      %p418 = scmp.eq.s32.totalorder %s41, 0
      %p419 = por %p417, %p418
      %s421 = sadd.s32 %s420, 1
      %p424 = scmp.eq.s32.totalorder %s35, 1
      %p425 = scmp.ne.s32.totalorder %s420, %s422
      %p426 = scmp.eq.s32.totalorder %s35, 0
      %p427 = por %p425, %p426
      %p428 = scmp.ne.s32.totalorder %s420, %s422
      %p429 = scmp.eq.s32.totalorder %s40, 1
      %p430 = por %p428, %p429
      %p431 = scmp.ne.s32.totalorder %s422, %s423
      %p432 = scmp.eq.s32.totalorder %s40, 0
      %p433 = por %p431, %p432
      %p434 = scmp.ne.s32.totalorder %s422, %s423
      %p435 = scmp.eq.s32.totalorder %s41, 1
      %p436 = por %p434, %p435
      %p438 = scmp.ne.s32.totalorder %s423, %s437
      %p439 = scmp.eq.s32.totalorder %s41, 0
      %p440 = por %p438, %p439
      %s442 = sadd.s32 %s441, 1
      %p445 = scmp.eq.s32.totalorder %s35, 1
      %p446 = scmp.ne.s32.totalorder %s441, %s443
      %p447 = scmp.eq.s32.totalorder %s35, 0
      %p448 = por %p446, %p447
      %p449 = scmp.ne.s32.totalorder %s441, %s443
      %p450 = scmp.eq.s32.totalorder %s40, 1
      %p451 = por %p449, %p450
      %p452 = scmp.ne.s32.totalorder %s443, %s444
      %p453 = scmp.eq.s32.totalorder %s40, 0
      %p454 = por %p452, %p453
      %p455 = scmp.ne.s32.totalorder %s443, %s444
      %p456 = scmp.eq.s32.totalorder %s41, 1
      %p457 = por %p455, %p456
      %p459 = scmp.ne.s32.totalorder %s444, %s458
      %p460 = scmp.eq.s32.totalorder %s41, 0
      %p461 = por %p459, %p460
      %s463 = sadd.s32 %s462, 1
      %p466 = scmp.eq.s32.totalorder %s35, 1
      %p467 = scmp.ne.s32.totalorder %s462, %s464
      %p468 = scmp.eq.s32.totalorder %s35, 0
      %p469 = por %p467, %p468
      %p470 = scmp.ne.s32.totalorder %s462, %s464
      %p471 = scmp.eq.s32.totalorder %s40, 1
      %p472 = por %p470, %p471
      %p473 = scmp.ne.s32.totalorder %s464, %s465
      %p474 = scmp.eq.s32.totalorder %s40, 0
      %p475 = por %p473, %p474
      %p476 = scmp.ne.s32.totalorder %s464, %s465
      %p477 = scmp.eq.s32.totalorder %s41, 1
      %p478 = por %p476, %p477
      %p480 = scmp.ne.s32.totalorder %s465, %s479
      %p481 = scmp.eq.s32.totalorder %s41, 0
      %p482 = por %p480, %p481
      %s484 = sadd.s32 %s483, 1
      %p487 = scmp.eq.s32.totalorder %s35, 1
      %p488 = scmp.ne.s32.totalorder %s483, %s485
      %p489 = scmp.eq.s32.totalorder %s35, 0
      %p490 = por %p488, %p489
      %p491 = scmp.ne.s32.totalorder %s483, %s485
      %p492 = scmp.eq.s32.totalorder %s40, 1
      %p493 = por %p491, %p492
      %p494 = scmp.ne.s32.totalorder %s485, %s486
      %p495 = scmp.eq.s32.totalorder %s40, 0
      %p496 = por %p494, %p495
      %p497 = scmp.ne.s32.totalorder %s485, %s486
      %p498 = scmp.eq.s32.totalorder %s41, 1
      %p499 = por %p497, %p498
      %p501 = scmp.ne.s32.totalorder %s486, %s500
      %p502 = scmp.eq.s32.totalorder %s41, 0
      %p503 = por %p501, %p502
      %s505 = sadd.s32 %s504, 1
      %p508 = scmp.eq.s32.totalorder %s35, 1
      %p509 = scmp.ne.s32.totalorder %s504, %s506
      %p510 = scmp.eq.s32.totalorder %s35, 0
      %p511 = por %p509, %p510
      %p512 = scmp.ne.s32.totalorder %s504, %s506
      %p513 = scmp.eq.s32.totalorder %s40, 1
      %p514 = por %p512, %p513
      %p515 = scmp.ne.s32.totalorder %s506, %s507
      %p516 = scmp.eq.s32.totalorder %s40, 0
      %p517 = por %p515, %p516
      %p518 = scmp.ne.s32.totalorder %s506, %s507
      %p519 = scmp.eq.s32.totalorder %s41, 1
      %p520 = por %p518, %p519
      %p522 = scmp.ne.s32.totalorder %s507, %s521
      %p523 = scmp.eq.s32.totalorder %s41, 0
      %p524 = por %p522, %p523
      %s526 = sadd.s32 %s525, 1
      %p529 = scmp.eq.s32.totalorder %s35, 1
      %p530 = scmp.ne.s32.totalorder %s525, %s527
      %p531 = scmp.eq.s32.totalorder %s35, 0
      %p532 = por %p530, %p531
      %p533 = scmp.ne.s32.totalorder %s525, %s527
      %p534 = scmp.eq.s32.totalorder %s40, 1
      %p535 = por %p533, %p534
      %p536 = scmp.ne.s32.totalorder %s527, %s528
      %p537 = scmp.eq.s32.totalorder %s40, 0
      %p538 = por %p536, %p537
      %p539 = scmp.ne.s32.totalorder %s527, %s528
      %p540 = scmp.eq.s32.totalorder %s41, 1
      %p541 = por %p539, %p540
      %p543 = scmp.ne.s32.totalorder %s528, %s542
      %p544 = scmp.eq.s32.totalorder %s41, 0
      %p545 = por %p543, %p544
      %s547 = sadd.s32 %s546, 1
      %p550 = scmp.eq.s32.totalorder %s35, 1
      %p551 = scmp.ne.s32.totalorder %s546, %s548
      %p552 = scmp.eq.s32.totalorder %s35, 0
      %p553 = por %p551, %p552
      %p554 = scmp.ne.s32.totalorder %s546, %s548
      %p555 = scmp.eq.s32.totalorder %s40, 1
      %p556 = por %p554, %p555
      %p557 = scmp.ne.s32.totalorder %s548, %s549
      %p558 = scmp.eq.s32.totalorder %s40, 0
      %p559 = por %p557, %p558
      %p560 = scmp.ne.s32.totalorder %s548, %s549
      %p561 = scmp.eq.s32.totalorder %s41, 1
      %p562 = por %p560, %p561
      %p564 = scmp.ne.s32.totalorder %s549, %s563
      %p565 = scmp.eq.s32.totalorder %s41, 0
      %p566 = por %p564, %p565
      %s568 = sadd.s32 %s567, 1
      %p571 = scmp.eq.s32.totalorder %s35, 1
      %p572 = scmp.ne.s32.totalorder %s567, %s569
      %p573 = scmp.eq.s32.totalorder %s35, 0
      %p574 = por %p572, %p573
      %p575 = scmp.ne.s32.totalorder %s567, %s569
      %p576 = scmp.eq.s32.totalorder %s40, 1
      %p577 = por %p575, %p576
      %p578 = scmp.ne.s32.totalorder %s569, %s570
      %p579 = scmp.eq.s32.totalorder %s40, 0
      %p580 = por %p578, %p579
      %p581 = scmp.ne.s32.totalorder %s569, %s570
      %p582 = scmp.eq.s32.totalorder %s41, 1
      %p583 = por %p581, %p582
      %p585 = scmp.ne.s32.totalorder %s570, %s584
      %p586 = scmp.eq.s32.totalorder %s41, 0
      %p587 = por %p585, %p586
      %s589 = sadd.s32 %s588, 1
      %p592 = scmp.eq.s32.totalorder %s35, 1
      %p593 = scmp.ne.s32.totalorder %s588, %s590
      %p594 = scmp.eq.s32.totalorder %s35, 0
      %p595 = por %p593, %p594
      %p596 = scmp.ne.s32.totalorder %s588, %s590
      %p597 = scmp.eq.s32.totalorder %s40, 1
      %p598 = por %p596, %p597
      %p599 = scmp.ne.s32.totalorder %s590, %s591
      %p600 = scmp.eq.s32.totalorder %s40, 0
      %p601 = por %p599, %p600
      %p602 = scmp.ne.s32.totalorder %s590, %s591
      %p603 = scmp.eq.s32.totalorder %s41, 1
      %p604 = por %p602, %p603
      %p606 = scmp.ne.s32.totalorder %s591, %s605
      %p607 = scmp.eq.s32.totalorder %s41, 0
      %p608 = por %p606, %p607
      %s609 = ssub.s32 %s35, %s42
      %p610 = scmp.eq.s32.totalorder %s609, 0
      %s612 = sadd.s32 %s611, 1
      %s613 = scalar_select %p610, %s611, %s612
      %p616 = pneg %p610
      %p617 = scmp.eq.s32.totalorder %s35, 1
      %p618 = por %p616, %p617
      %p619 = scmp.ne.s32.totalorder %s611, %s614
      %p620 = scmp.eq.s32.totalorder %s35, 0
      %p621 = por %p619, %p620
      %p622 = scmp.ne.s32.totalorder %s611, %s614
      %p623 = scmp.eq.s32.totalorder %s40, 1
      %p624 = por %p622, %p623
      %p625 = scmp.ne.s32.totalorder %s614, %s615
      %p626 = scmp.eq.s32.totalorder %s40, 0
      %p627 = por %p625, %p626
      %p628 = scmp.ne.s32.totalorder %s614, %s615
      %p629 = scmp.eq.s32.totalorder %s41, 1
      %p630 = por %p628, %p629
      %p632 = scmp.ne.s32.totalorder %s615, %s631
      %p633 = scmp.eq.s32.totalorder %s41, 0
      %p634 = por %p632, %p633
      %p635 = scmp.le.s32.totalorder 1, %s35
      %p636 = scmp.lt.s32.totalorder %s35, 3
      %p637 = pnand %p635, %p636
      %p638 = pneg %p637
      // Predicated region
      $region9: #{decoder_forward_pallas.3} parent=5 // pred_check
        _
      $region10: #{decoder_forward_pallas.3} parent=5 // pred_check_branch
        %640 = sbr.rel (%p637) target = $region12
      $region11: #{decoder_forward_pallas.3} parent=5 // pred_region
        %s641 = ssub.s32 %s35, 1
        // Predicated region
        $region13: #{decoder_forward_pallas.3} parent=11 // pred_check
          %p642 = pneg %p160
        $region14: #{decoder_forward_pallas.3} parent=11 // pred_check_branch
          %644 = sbr.rel (%p642) target = $region16
        $region15: #{decoder_forward_pallas.3} parent=11 // pred_region
          _
        $region16: #{decoder_forward_pallas.3} parent=11 // pred_fallthru
          _
        // Predicated region
        $region17: #{decoder_forward_pallas.3} parent=11 // pred_check
          %p645 = pneg %p181
        $region18: #{decoder_forward_pallas.3} parent=11 // pred_check_branch
          %647 = sbr.rel (%p645) target = $region20
        $region19: #{decoder_forward_pallas.3} parent=11 // pred_region
          _
        $region20: #{decoder_forward_pallas.3} parent=11 // pred_fallthru
          _
        // Predicated region
        $region21: #{decoder_forward_pallas.3} parent=11 // pred_check
          %p648 = pneg %p202
        $region22: #{decoder_forward_pallas.3} parent=11 // pred_check_branch
          %650 = sbr.rel (%p648) target = $region24
        $region23: #{decoder_forward_pallas.3} parent=11 // pred_region
          _
        $region24: #{decoder_forward_pallas.3} parent=11 // pred_fallthru
          _
        // Predicated region
        $region25: #{decoder_forward_pallas.3} parent=11 // pred_check
          %p651 = pneg %p223
        $region26: #{decoder_forward_pallas.3} parent=11 // pred_check_branch
          %653 = sbr.rel (%p651) target = $region28
        $region27: #{decoder_forward_pallas.3} parent=11 // pred_region
          _
        $region28: #{decoder_forward_pallas.3} parent=11 // pred_fallthru
          _
        // Predicated region
        $region29: #{decoder_forward_pallas.3} parent=11 // pred_check
          %p654 = pneg %p244
        $region30: #{decoder_forward_pallas.3} parent=11 // pred_check_branch
          %656 = sbr.rel (%p654) target = $region32
        $region31: #{decoder_forward_pallas.3} parent=11 // pred_region
          _
        $region32: #{decoder_forward_pallas.3} parent=11 // pred_fallthru
          _
        // Predicated region
        $region33: #{decoder_forward_pallas.3} parent=11 // pred_check
          %p657 = pneg %p265
        $region34: #{decoder_forward_pallas.3} parent=11 // pred_check_branch
          %659 = sbr.rel (%p657) target = $region36
        $region35: #{decoder_forward_pallas.3} parent=11 // pred_region
          _
        $region36: #{decoder_forward_pallas.3} parent=11 // pred_fallthru
          _
        // Predicated region
        $region37: #{decoder_forward_pallas.3} parent=11 // pred_check
          %p660 = pneg %p286
        $region38: #{decoder_forward_pallas.3} parent=11 // pred_check_branch
          %662 = sbr.rel (%p660) target = $region40
        $region39: #{decoder_forward_pallas.3} parent=11 // pred_region
          _
        $region40: #{decoder_forward_pallas.3} parent=11 // pred_fallthru
          _
        // Predicated region
        $region41: #{decoder_forward_pallas.3} parent=11 // pred_check
          %p663 = pneg %p307
        $region42: #{decoder_forward_pallas.3} parent=11 // pred_check_branch
          %665 = sbr.rel (%p663) target = $region44
        $region43: #{decoder_forward_pallas.3} parent=11 // pred_region
          _
        $region44: #{decoder_forward_pallas.3} parent=11 // pred_fallthru
          _
        // Predicated region
        $region45: #{decoder_forward_pallas.3} parent=11 // pred_check
          %p666 = pneg %p328
        $region46: #{decoder_forward_pallas.3} parent=11 // pred_check_branch
          %668 = sbr.rel (%p666) target = $region48
        $region47: #{decoder_forward_pallas.3} parent=11 // pred_region
          _
        $region48: #{decoder_forward_pallas.3} parent=11 // pred_fallthru
          _
        // Predicated region
        $region49: #{decoder_forward_pallas.3} parent=11 // pred_check
          %p669 = pneg %p349
        $region50: #{decoder_forward_pallas.3} parent=11 // pred_check_branch
          %671 = sbr.rel (%p669) target = $region52
        $region51: #{decoder_forward_pallas.3} parent=11 // pred_region
          _
        $region52: #{decoder_forward_pallas.3} parent=11 // pred_fallthru
          _
        // Predicated region
        $region53: #{decoder_forward_pallas.3} parent=11 // pred_check
          %p672 = pneg %p370
        $region54: #{decoder_forward_pallas.3} parent=11 // pred_check_branch
          %674 = sbr.rel (%p672) target = $region56
        $region55: #{decoder_forward_pallas.3} parent=11 // pred_region
          _
        $region56: #{decoder_forward_pallas.3} parent=11 // pred_fallthru
          _
        // Predicated region
        $region57: #{decoder_forward_pallas.3} parent=11 // pred_check
          %p675 = pneg %p391
        $region58: #{decoder_forward_pallas.3} parent=11 // pred_check_branch
          %677 = sbr.rel (%p675) target = $region60
        $region59: #{decoder_forward_pallas.3} parent=11 // pred_region
          _
        $region60: #{decoder_forward_pallas.3} parent=11 // pred_fallthru
          _
        // Predicated region
        $region61: #{decoder_forward_pallas.3} parent=11 // pred_check
          %p678 = pneg %p412
        $region62: #{decoder_forward_pallas.3} parent=11 // pred_check_branch
          %680 = sbr.rel (%p678) target = $region64
        $region63: #{decoder_forward_pallas.3} parent=11 // pred_region
          _
        $region64: #{decoder_forward_pallas.3} parent=11 // pred_fallthru
          _
        // Predicated region
        $region65: #{decoder_forward_pallas.3} parent=11 // pred_check
          %p681 = pneg %p433
        $region66: #{decoder_forward_pallas.3} parent=11 // pred_check_branch
          %683 = sbr.rel (%p681) target = $region68
        $region67: #{decoder_forward_pallas.3} parent=11 // pred_region
          _
        $region68: #{decoder_forward_pallas.3} parent=11 // pred_fallthru
          _
        // Predicated region
        $region69: #{decoder_forward_pallas.3} parent=11 // pred_check
          %p684 = pneg %p454
        $region70: #{decoder_forward_pallas.3} parent=11 // pred_check_branch
          %686 = sbr.rel (%p684) target = $region72
        $region71: #{decoder_forward_pallas.3} parent=11 // pred_region
          _
        $region72: #{decoder_forward_pallas.3} parent=11 // pred_fallthru
          _
        // Predicated region
        $region73: #{decoder_forward_pallas.3} parent=11 // pred_check
          %p687 = pneg %p475
        $region74: #{decoder_forward_pallas.3} parent=11 // pred_check_branch
          %689 = sbr.rel (%p687) target = $region76
        $region75: #{decoder_forward_pallas.3} parent=11 // pred_region
          _
        $region76: #{decoder_forward_pallas.3} parent=11 // pred_fallthru
          _
        // Predicated region
        $region77: #{decoder_forward_pallas.3} parent=11 // pred_check
          %p690 = pneg %p496
        $region78: #{decoder_forward_pallas.3} parent=11 // pred_check_branch
          %692 = sbr.rel (%p690) target = $region80
        $region79: #{decoder_forward_pallas.3} parent=11 // pred_region
          _
        $region80: #{decoder_forward_pallas.3} parent=11 // pred_fallthru
          _
        // Predicated region
        $region81: #{decoder_forward_pallas.3} parent=11 // pred_check
          %p693 = pneg %p517
        $region82: #{decoder_forward_pallas.3} parent=11 // pred_check_branch
          %695 = sbr.rel (%p693) target = $region84
        $region83: #{decoder_forward_pallas.3} parent=11 // pred_region
          _
        $region84: #{decoder_forward_pallas.3} parent=11 // pred_fallthru
          _
        // Predicated region
        $region85: #{decoder_forward_pallas.3} parent=11 // pred_check
          %p696 = pneg %p538
        $region86: #{decoder_forward_pallas.3} parent=11 // pred_check_branch
          %698 = sbr.rel (%p696) target = $region88
        $region87: #{decoder_forward_pallas.3} parent=11 // pred_region
          _
        $region88: #{decoder_forward_pallas.3} parent=11 // pred_fallthru
          _
        // Predicated region
        $region89: #{decoder_forward_pallas.3} parent=11 // pred_check
          %p699 = pneg %p559
        $region90: #{decoder_forward_pallas.3} parent=11 // pred_check_branch
          %701 = sbr.rel (%p699) target = $region92
        $region91: #{decoder_forward_pallas.3} parent=11 // pred_region
          _
        $region92: #{decoder_forward_pallas.3} parent=11 // pred_fallthru
          _
        // Predicated region
        $region93: #{decoder_forward_pallas.3} parent=11 // pred_check
          %p702 = pneg %p580
        $region94: #{decoder_forward_pallas.3} parent=11 // pred_check_branch
          %704 = sbr.rel (%p702) target = $region96
        $region95: #{decoder_forward_pallas.3} parent=11 // pred_region
          _
        $region96: #{decoder_forward_pallas.3} parent=11 // pred_fallthru
          _
        // Predicated region
        $region97: #{decoder_forward_pallas.3} parent=11 // pred_check
          %p705 = pneg %p601
        $region98: #{decoder_forward_pallas.3} parent=11 // pred_check_branch
          %707 = sbr.rel (%p705) target = $region100
        $region99: #{decoder_forward_pallas.3} parent=11 // pred_region
          _
        $region100: #{decoder_forward_pallas.3} parent=11 // pred_fallthru
          _
      $region12: #{decoder_forward_pallas.3} parent=5 // pred_fallthru
        _
      %p708 = scmp.lt.s32.totalorder %s35, 2
      // Predicated region
      $region101: #{decoder_forward_pallas.3} parent=5 // pred_check
        %p709 = pneg %p708
      $region102: #{decoder_forward_pallas.3} parent=5 // pred_check_branch
        %711 = sbr.rel (%p709) target = $region104
      $region103: #{decoder_forward_pallas.3} parent=5 // pred_region
        // Predicated region
        $region105: #{decoder_forward_pallas.3} parent=103 // pred_check
          %p712 = pneg %p55
        $region106: #{decoder_forward_pallas.3} parent=103 // pred_check_branch
          %714 = sbr.rel (%p712) target = $region108
        $region107: #{decoder_forward_pallas.3} parent=103 // pred_region
          %p715 = scmp.lt.s32.totalorder %s35, 1
          %s716 = scalar_select %p715, %s35, 1
          %s717 = smul.addr %s716, 8
          %s718 = scalar_lea.vmem %s0, %s717
        $region108: #{decoder_forward_pallas.3} parent=103 // pred_fallthru
          _
        // Predicated region
        $region109: #{decoder_forward_pallas.3} parent=103 // pred_check
          %p719 = pneg %p81
        $region110: #{decoder_forward_pallas.3} parent=103 // pred_check_branch
          %721 = sbr.rel (%p719) target = $region112
        $region111: #{decoder_forward_pallas.3} parent=103 // pred_region
          %p722 = scmp.lt.s32.totalorder %s35, 1
          %s723 = scalar_select %p722, %s35, 1
          %s724 = smul.addr %s723, 8
          %s725 = scalar_lea.vmem %s1, %s724
        $region112: #{decoder_forward_pallas.3} parent=103 // pred_fallthru
          _
        // Predicated region
        $region113: #{decoder_forward_pallas.3} parent=103 // pred_check
          %p726 = pneg %p107
        $region114: #{decoder_forward_pallas.3} parent=103 // pred_check_branch
          %728 = sbr.rel (%p726) target = $region116
        $region115: #{decoder_forward_pallas.3} parent=103 // pred_region
          %p729 = scmp.lt.s32.totalorder %s35, 1
          %s730 = scalar_select %p729, %s35, 1
          %s731 = smul.addr %s730, 8
          %s732 = scalar_lea.vmem %s2, %s731
        $region116: #{decoder_forward_pallas.3} parent=103 // pred_fallthru
          _
        // Predicated region
        $region117: #{decoder_forward_pallas.3} parent=103 // pred_check
          %p733 = pneg %p133
        $region118: #{decoder_forward_pallas.3} parent=103 // pred_check_branch
          %735 = sbr.rel (%p733) target = $region120
        $region119: #{decoder_forward_pallas.3} parent=103 // pred_region
          %p736 = scmp.lt.s32.totalorder %s35, 1
          %s737 = scalar_select %p736, %s35, 1
          %s738 = scalar_lea.vmem %s3, %s737
        $region120: #{decoder_forward_pallas.3} parent=103 // pred_fallthru
          _
      $region104: #{decoder_forward_pallas.3} parent=5 // pred_fallthru
        _
      %p739 = scmp.le.s32.totalorder 1, %s35
      %p740 = scmp.lt.s32.totalorder %s35, 3
      %p741 = pnand %p739, %p740
      %p742 = pneg %p741
      // Predicated region
      $region121: #{decoder_forward_pallas.3} parent=5 // pred_check
        _
      $region122: #{decoder_forward_pallas.3} parent=5 // pred_check_branch
        %744 = sbr.rel (%p741) target = $region124
      $region123: #{decoder_forward_pallas.3} parent=5 // pred_region
        %s745 = ssub.s32 %s35, 1
        %p746 = scmp.lt.s32.totalorder %s40, 1
        %s747 = scalar_select %p746, %s40, 1
        %s748 = smul.addr %s747, 8
        %s749 = scalar_lea.vmem %s0, %s748
        %p750 = pneg %p61
        %p751 = pneg %p58
        %p752 = scmp.lt.s32.totalorder %s40, 1
        %s753 = scalar_select %p752, %s40, 1
        %s754 = smul.addr %s753, 8
        %s755 = scalar_lea.vmem %s1, %s754
        %p756 = pneg %p87
        %p757 = pneg %p84
        %p758 = scmp.lt.s32.totalorder %s40, 1
        %s759 = scalar_select %p758, %s40, 1
        %s760 = smul.addr %s759, 8
        %s761 = scalar_lea.vmem %s2, %s760
        %p762 = pneg %p113
        %p763 = pneg %p110
        %p764 = scmp.lt.s32.totalorder %s40, 1
        %s765 = scalar_select %p764, %s40, 1
        %s766 = scalar_lea.vmem %s3, %s765
        %p767 = pneg %p139
        %p768 = pneg %p136
        %p769 = pneg %p160
        %p770 = pneg %p157
        %p771 = pneg %p181
        %p772 = pneg %p178
        %p773 = pneg %p202
        %p774 = pneg %p199
        %p775 = pneg %p223
        %p776 = pneg %p220
        %p777 = pneg %p244
        %p778 = pneg %p241
        %p779 = pneg %p265
        %p780 = pneg %p262
        %p781 = pneg %p286
        %p782 = pneg %p283
        %p783 = pneg %p307
        %p784 = pneg %p304
        %p785 = pneg %p328
        %p786 = pneg %p325
        %p787 = pneg %p349
        %p788 = pneg %p346
        %p789 = pneg %p370
        %p790 = pneg %p367
        %p791 = pneg %p391
        %p792 = pneg %p388
        %p793 = pneg %p412
        %p794 = pneg %p409
        %p795 = pneg %p433
        %p796 = pneg %p430
        %p797 = pneg %p454
        %p798 = pneg %p451
        %p799 = pneg %p475
        %p800 = pneg %p472
        %p801 = pneg %p496
        %p802 = pneg %p493
        %p803 = pneg %p517
        %p804 = pneg %p514
        %p805 = pneg %p538
        %p806 = pneg %p535
        %p807 = pneg %p559
        %p808 = pneg %p556
        %p809 = pneg %p580
        %p810 = pneg %p577
        %p811 = pneg %p601
        %p812 = pneg %p598
        %p813 = pneg %p627
        %p814 = pneg %p624
        %s815 = sand.u32 %s614, 1
        %s816 = scalar_lea.sflag [#allocation6], %s815
        %s817 = sand.u32 %s614, 1
        %s818 = smul.addr %s817, 8
        %s819 = scalar_lea.vmem [#allocation5], %s818
        %p820 = scmp.lt.s32.totalorder %s40, 1
        %s821 = scalar_select %p820, %s40, 1
        %s822 = smul.addr %s821, 8
        %s823 = scalar_lea.vmem %s0, %s822
        %p824 = scmp.lt.s32.totalorder %s40, 1
        %s825 = scalar_select %p824, %s40, 1
        %s826 = smul.addr %s825, 8
        %s827 = scalar_lea.vmem %s1, %s826
        %p828 = scmp.lt.s32.totalorder %s40, 1
        %s829 = scalar_select %p828, %s40, 1
        %s830 = smul.addr %s829, 8
        %s831 = scalar_lea.vmem %s2, %s830
        %p832 = scmp.lt.s32.totalorder %s40, 1
        %s833 = scalar_select %p832, %s40, 1
        %s834 = scalar_lea.vmem %s3, %s833
        %v836 = vld [vmem:[%s823] sm:$0xff]
        %v837 = vld [vmem:[%s827] sm:$0xff]
        %v838 = vld [vmem:[%s18] sm:$0x1]
        %v839 = vld [vmem:[%s19] sm:$0x1]
        %vm840 = vcmask 261120
        %v841 = vsel %vm840, %v836, 0.0
        %842 = vadd.xlane.f32.xlu0 %v841
        %v843 = vpop.xlane.xlu0 %842
        %v844 = vrcp.pop 32.0
        %v845 = vmul.f32 %v843, %v844
        %v846 = vsub.f32 %v836, %v845
        %v847 = vmul.f32 %v846, %v846
        %v848 = vsel %vm840, %v847, 0.0
        %849 = vadd.xlane.f32.xlu0 %v848
        %v850 = vpop.xlane.xlu0 %849
        %v851 = vmul.f32 %v850, 0.032258064
        %v852 = vrsqrt.pop %v851
        %v853 = vmul.f32 %v851, %v852
        %vm854 = vcmp.eq.f32.partialorder %v851, inf
        %v855 = vsel %vm854, %v851, %v853
        %vm856 = vcmp.eq.f32.partialorder %v851, 0.0
        %v857 = vand.u32 %v851, 2147483648
        %v858 = vsel %vm856, %v857, %v855
        %v860 = vlaneseq
        %v861 = vshrl.u32 %v860, 7
        %v862 = vsub.s32 0, %v861
        %v863 = vrot.slane %v838, %v862
        %v865 = vmul.f32 %v863, %v846
        %v866 = vadd.f32 %v858, 1e-06
        %v867 = vrcp.pop %v866
        %v868 = vmul.f32 %v865, %v867
        %v870 = vlaneseq
        %v871 = vshrl.u32 %v870, 7
        %v872 = vsub.s32 0, %v871
        %v873 = vrot.slane %v839, %v872
        %v875 = vadd.f32 %v868, %v873
        %v876 = vpack.c.bf16 %v875, %v875
        %v877 = vld [vmem:[%s4] sm:$0xf]
        %v878 = vld [vmem:[%s4 + $0x4] sm:$0xf]
        %v879 = vld [vmem:[%s4 + $0x8] sm:$0xf]
        %v880 = vld [vmem:[%s4 + $0xc] sm:$0xf]
        %v881 = vld [vmem:[%s5] sm:$0x1]
        %v883 = vlaneseq
        %v884 = vshrl.u32 %v883, 7
        %v885 = vsub.s32 0, %v884
        %v886 = vrot.slane %v881, %v885
        %v892 = vunpack.c.l.b16 %v877
        %v893 = vunpack.c.l.b16 %v878
        %v894 = vunpack.c.l.b16 %v879
        %v895 = vunpack.c.l.b16 %v880
        %v896 = vpack.c.b16 %v893, %v892
        %v897 = vpack.c.b16 %v895, %v894
        %v901 = vsel %vm840, %v876, 0
        %903 = vmatprep.subr.bf16.mxu0 0
        %904 = vmatpush1.bf16.msra.mxu0 0
        %905 = vmatprep.subr.bf16.mxu0 0
        %906 = vmatpush1.bf16.msra.mxu0 0
        %907 = vmatprep.subr.bf16.mxu0 0
        %908 = vmatpush1.bf16.msra.mxu0 0
        %909 = vmatprep.subr.bf16.mxu0 0
        %910 = vmatpush1.bf16.msra.mxu0 0
        %911 = vmatprep.subr.bf16.mxu0 0
        %912 = vmatpush1.bf16.msra.mxu0 0
        %913 = vmatprep.subr.bf16.mxu0 0
        %914 = vmatpush1.bf16.msra.mxu0 0
        %915 = vmatprep.subr.bf16.mxu0 0
        %916 = vmatpush1.bf16.msra.mxu0 %v897
        %917 = vmatprep.subr.bf16.mxu0 0
        %918 = vmatpush1.bf16.msra.mxu0 %v896
        %919 = vmatprep.subr.bf16.mxu0 0
        %920 = vmatpush2.bf16.msra.mxu0 0
        %921 = vmatprep.subr.bf16.mxu0 0
        %922 = vmatpush2.bf16.msra.mxu0 0
        %923 = vmatprep.subr.bf16.mxu0 0
        %924 = vmatpush2.bf16.msra.mxu0 0
        %925 = vmatprep.subr.bf16.mxu0 0
        %926 = vmatpush2.bf16.msra.mxu0 0
        %927 = vmatprep.subr.bf16.mxu0 0
        %928 = vmatpush2.bf16.msra.mxu0 0
        %929 = vmatprep.subr.bf16.mxu0 0
        %930 = vmatpush2.bf16.msra.mxu0 0
        %931 = vmatprep.subr.bf16.mxu0 0
        %932 = vmatpush2.bf16.msra.mxu0 0
        %933 = vmatprep.subr.bf16.mxu0 0
        %934 = vmatpush2.bf16.msra.mxu0 0
        %935 = vmatprep.mubr.bf16.mxu0 0
        %936 = vmatmul.mubr.bf16.gmra.mxu0 %v901
        %v937 = vpop.f32.mrf.mxu0
        %v938 = vadd.f32 %v886, %v937
        %v939 = vpop.f32.mrf.mxu0
        %v940 = vpop.f32.mrf.mxu0
        %v941 = vpop.f32.mrf.mxu0
        %942 = vdwg.mxu0
        %vm943 = vcmask 785408
        %944 = vst.msk [vmem:[#allocation2] sm:$0xff] %vm943, %v938
        %v945 = vld [vmem:[%s831] sm:$0xff]
        %vm946 = vcmp.ne.s32.totalorder %v945, 0
        %v947 = vld [vmem:[#allocation2] sm:$0xff]
        %v948 = vpack.c.bf16 %v947, %v947
        %950 = vrot.lane.b32.xlu0 %v948, 96
        %v951 = vpop.permute.xlu0 %950
        %vm952 = vcmask 64512
        %v954 = vsel %vm952, %v948, 0
        %v957 = vsel %vm952, %v951, 0
        %959 = vmatprep.subr.bf16.mxu0 0
        %960 = vmatpush1.bf16.xpose.msra.mxu0 0
        %961 = vmatprep.subr.bf16.mxu0 0
        %962 = vmatpush1.bf16.xpose.msra.mxu0 0
        %963 = vmatprep.subr.bf16.mxu0 0
        %964 = vmatpush1.bf16.xpose.msra.mxu0 0
        %965 = vmatprep.subr.bf16.mxu0 0
        %966 = vmatpush1.bf16.xpose.msra.mxu0 0
        %967 = vmatprep.subr.bf16.mxu0 0
        %968 = vmatpush1.bf16.xpose.msra.mxu0 0
        %969 = vmatprep.subr.bf16.mxu0 0
        %970 = vmatpush1.bf16.xpose.msra.mxu0 0
        %971 = vmatprep.subr.bf16.mxu0 0
        %972 = vmatpush1.bf16.xpose.msra.mxu0 0
        %973 = vmatprep.subr.bf16.mxu0 0
        %974 = vmatpush1.bf16.xpose.msra.mxu0 %v957
        %975 = vmatprep.subr.bf16.mxu0 0
        %976 = vmatpush2.bf16.xpose.msra.mxu0 0
        %977 = vmatprep.subr.bf16.mxu0 0
        %978 = vmatpush2.bf16.xpose.msra.mxu0 0
        %979 = vmatprep.subr.bf16.mxu0 0
        %980 = vmatpush2.bf16.xpose.msra.mxu0 0
        %981 = vmatprep.subr.bf16.mxu0 0
        %982 = vmatpush2.bf16.xpose.msra.mxu0 0
        %983 = vmatprep.subr.bf16.mxu0 0
        %984 = vmatpush2.bf16.xpose.msra.mxu0 0
        %985 = vmatprep.subr.bf16.mxu0 0
        %986 = vmatpush2.bf16.xpose.msra.mxu0 0
        %987 = vmatprep.subr.bf16.mxu0 0
        %988 = vmatpush2.bf16.xpose.msra.mxu0 0
        %989 = vmatprep.subr.bf16.mxu0 0
        %990 = vmatpush2.bf16.xpose.msra.mxu0 0
        %991 = vmatprep.mubr.bf16.mxu0 0
        %992 = vmatmul.mubr.bf16.gmra.mxu0 %v954
        %v993 = vpop.f32.mrf.mxu0
        %v994 = vadd.f32 0.0, %v993
        %v995 = vpop.f32.mrf.mxu0
        %v996 = vpop.f32.mrf.mxu0
        %v997 = vpop.f32.mrf.mxu0
        %998 = vdwg.mxu0
        %v999 = vmul.f32 %v994, 0.35355338
        %v1000 = vsel %vm946, %v999, -1e+09
        %v1001 = vsel %vm952, %v1000, -inf
        %1002 = vmax.xlane.f32.xlu0 %v1001
        %v1003 = vpop.xlane.xlu0 %1002
        %v1004 = vsub.f32 %v1000, %v1003
        %v1005 = vmul.f32 %v1004, 1.442695
        %v1006 = vpow.pop %v1005
        %v1007 = vsel %vm952, %v1006, 0.0
        %1008 = vadd.xlane.f32.xlu0 %v1007
        %v1009 = vpop.xlane.xlu0 %1008
        %v1010 = vrcp.pop %v1009
        %v1011 = vmul.f32 %v1006, %v1010
        %v1012 = vpack.c.bf16 %v1011, %v1011
        %1013 = vrot.lane.b32.xlu0 %v948, 64
        %v1014 = vpop.permute.xlu0 %1013
        %v1016 = vsel %vm952, %v1012, 0
        %vm1018 = vcmask 1043456
        %v1020 = vsel %vm1018, %v1014, 0
        %1022 = vmatprep.subr.bf16.mxu0 0
        %1023 = vmatpush1.bf16.msra.mxu0 0
        %1024 = vmatprep.subr.bf16.mxu0 0
        %1025 = vmatpush1.bf16.msra.mxu0 0
        %1026 = vmatprep.subr.bf16.mxu0 0
        %1027 = vmatpush1.bf16.msra.mxu0 0
        %1028 = vmatprep.subr.bf16.mxu0 0
        %1029 = vmatpush1.bf16.msra.mxu0 0
        %1030 = vmatprep.subr.bf16.mxu0 0
        %1031 = vmatpush1.bf16.msra.mxu0 0
        %1032 = vmatprep.subr.bf16.mxu0 0
        %1033 = vmatpush1.bf16.msra.mxu0 0
        %1034 = vmatprep.subr.bf16.mxu0 0
        %1035 = vmatpush1.bf16.msra.mxu0 0
        %1036 = vmatprep.subr.bf16.mxu0 0
        %1037 = vmatpush1.bf16.msra.mxu0 %v1020
        %1038 = vmatprep.subr.bf16.mxu0 0
        %1039 = vmatpush2.bf16.msra.mxu0 0
        %1040 = vmatprep.subr.bf16.mxu0 0
        %1041 = vmatpush2.bf16.msra.mxu0 0
        %1042 = vmatprep.subr.bf16.mxu0 0
        %1043 = vmatpush2.bf16.msra.mxu0 0
        %1044 = vmatprep.subr.bf16.mxu0 0
        %1045 = vmatpush2.bf16.msra.mxu0 0
        %1046 = vmatprep.subr.bf16.mxu0 0
        %1047 = vmatpush2.bf16.msra.mxu0 0
        %1048 = vmatprep.subr.bf16.mxu0 0
        %1049 = vmatpush2.bf16.msra.mxu0 0
        %1050 = vmatprep.subr.bf16.mxu0 0
        %1051 = vmatpush2.bf16.msra.mxu0 0
        %1052 = vmatprep.subr.bf16.mxu0 0
        %1053 = vmatpush2.bf16.msra.mxu0 0
        %1054 = vmatprep.mubr.bf16.mxu0 0
        %1055 = vmatmul.mubr.bf16.gmra.mxu0 %v1016
        %v1056 = vpop.f32.mrf.mxu0
        %v1057 = vadd.f32 0.0, %v1056
        %v1058 = vpop.f32.mrf.mxu0
        %v1059 = vpop.f32.mrf.mxu0
        %v1060 = vpop.f32.mrf.mxu0
        %1061 = vdwg.mxu0
        %1062 = vst.msk [vmem:[#allocation4] sm:$0xff] %vm952, %v1057
        %v1063 = vld [vmem:[#allocation2] sm:$0xff]
        %v1064 = vpack.c.bf16 %v1063, %v1063
        %1066 = vrot.lane.b32.xlu0 %v1064, 120
        %v1067 = vpop.permute.xlu0 %1066
        %1068 = vrot.lane.b32.xlu0 %v1064, 88
        %v1069 = vpop.permute.xlu0 %1068
        %v1071 = vsel %vm952, %v1067, 0
        %v1074 = vsel %vm952, %v1069, 0
        %1076 = vmatprep.subr.bf16.mxu0 0
        %1077 = vmatpush1.bf16.xpose.msra.mxu0 0
        %1078 = vmatprep.subr.bf16.mxu0 0
        %1079 = vmatpush1.bf16.xpose.msra.mxu0 0
        %1080 = vmatprep.subr.bf16.mxu0 0
        %1081 = vmatpush1.bf16.xpose.msra.mxu0 0
        %1082 = vmatprep.subr.bf16.mxu0 0
        %1083 = vmatpush1.bf16.xpose.msra.mxu0 0
        %1084 = vmatprep.subr.bf16.mxu0 0
        %1085 = vmatpush1.bf16.xpose.msra.mxu0 0
        %1086 = vmatprep.subr.bf16.mxu0 0
        %1087 = vmatpush1.bf16.xpose.msra.mxu0 0
        %1088 = vmatprep.subr.bf16.mxu0 0
        %1089 = vmatpush1.bf16.xpose.msra.mxu0 0
        %1090 = vmatprep.subr.bf16.mxu0 0
        %1091 = vmatpush1.bf16.xpose.msra.mxu0 %v1074
        %1092 = vmatprep.subr.bf16.mxu0 0
        %1093 = vmatpush2.bf16.xpose.msra.mxu0 0
        %1094 = vmatprep.subr.bf16.mxu0 0
        %1095 = vmatpush2.bf16.xpose.msra.mxu0 0
        %1096 = vmatprep.subr.bf16.mxu0 0
        %1097 = vmatpush2.bf16.xpose.msra.mxu0 0
        %1098 = vmatprep.subr.bf16.mxu0 0
        %1099 = vmatpush2.bf16.xpose.msra.mxu0 0
        %1100 = vmatprep.subr.bf16.mxu0 0
        %1101 = vmatpush2.bf16.xpose.msra.mxu0 0
        %1102 = vmatprep.subr.bf16.mxu0 0
        %1103 = vmatpush2.bf16.xpose.msra.mxu0 0
        %1104 = vmatprep.subr.bf16.mxu0 0
        %1105 = vmatpush2.bf16.xpose.msra.mxu0 0
        %1106 = vmatprep.subr.bf16.mxu0 0
        %1107 = vmatpush2.bf16.xpose.msra.mxu0 0
        %1108 = vmatprep.mubr.bf16.mxu0 0
        %1109 = vmatmul.mubr.bf16.gmra.mxu0 %v1071
        %v1110 = vpop.f32.mrf.mxu0
        %v1111 = vadd.f32 0.0, %v1110
        %v1112 = vpop.f32.mrf.mxu0
        %v1113 = vpop.f32.mrf.mxu0
        %v1114 = vpop.f32.mrf.mxu0
        %1115 = vdwg.mxu0
        %v1116 = vmul.f32 %v1111, 0.35355338
        %v1117 = vsel %vm946, %v1116, -1e+09
        %v1118 = vsel %vm952, %v1117, -inf
        %1119 = vmax.xlane.f32.xlu0 %v1118
        %v1120 = vpop.xlane.xlu0 %1119
        %v1121 = vsub.f32 %v1117, %v1120
        %v1122 = vmul.f32 %v1121, 1.442695
        %v1123 = vpow.pop %v1122
        %v1124 = vsel %vm952, %v1123, 0.0
        %1125 = vadd.xlane.f32.xlu0 %v1124
        %v1126 = vpop.xlane.xlu0 %1125
        %v1127 = vrcp.pop %v1126
        %v1128 = vmul.f32 %v1123, %v1127
        %v1129 = vpack.c.bf16 %v1128, %v1128
        %1130 = vrot.lane.b32.xlu0 %v1064, 56
        %v1131 = vpop.permute.xlu0 %1130
        %v1133 = vsel %vm952, %v1129, 0
        %v1136 = vsel %vm1018, %v1131, 0
        %1138 = vmatprep.subr.bf16.mxu0 0
        %1139 = vmatpush1.bf16.msra.mxu0 0
        %1140 = vmatprep.subr.bf16.mxu0 0
        %1141 = vmatpush1.bf16.msra.mxu0 0
        %1142 = vmatprep.subr.bf16.mxu0 0
        %1143 = vmatpush1.bf16.msra.mxu0 0
        %1144 = vmatprep.subr.bf16.mxu0 0
        %1145 = vmatpush1.bf16.msra.mxu0 0
        %1146 = vmatprep.subr.bf16.mxu0 0
        %1147 = vmatpush1.bf16.msra.mxu0 0
        %1148 = vmatprep.subr.bf16.mxu0 0
        %1149 = vmatpush1.bf16.msra.mxu0 0
        %1150 = vmatprep.subr.bf16.mxu0 0
        %1151 = vmatpush1.bf16.msra.mxu0 0
        %1152 = vmatprep.subr.bf16.mxu0 0
        %1153 = vmatpush1.bf16.msra.mxu0 %v1136
        %1154 = vmatprep.subr.bf16.mxu0 0
        %1155 = vmatpush2.bf16.msra.mxu0 0
        %1156 = vmatprep.subr.bf16.mxu0 0
        %1157 = vmatpush2.bf16.msra.mxu0 0
        %1158 = vmatprep.subr.bf16.mxu0 0
        %1159 = vmatpush2.bf16.msra.mxu0 0
        %1160 = vmatprep.subr.bf16.mxu0 0
        %1161 = vmatpush2.bf16.msra.mxu0 0
        %1162 = vmatprep.subr.bf16.mxu0 0
        %1163 = vmatpush2.bf16.msra.mxu0 0
        %1164 = vmatprep.subr.bf16.mxu0 0
        %1165 = vmatpush2.bf16.msra.mxu0 0
        %1166 = vmatprep.subr.bf16.mxu0 0
        %1167 = vmatpush2.bf16.msra.mxu0 0
        %1168 = vmatprep.subr.bf16.mxu0 0
        %1169 = vmatpush2.bf16.msra.mxu0 0
        %1170 = vmatprep.mubr.bf16.mxu0 0
        %1171 = vmatmul.mubr.bf16.gmra.mxu0 %v1133
        %v1172 = vpop.f32.mrf.mxu0
        %v1173 = vadd.f32 0.0, %v1172
        %v1174 = vpop.f32.mrf.mxu0
        %v1175 = vpop.f32.mrf.mxu0
        %v1176 = vpop.f32.mrf.mxu0
        %1177 = vdwg.mxu0
        %1179 = vrot.lane.b32.xlu0 %v1173, 8
        %v1180 = vpop.permute.xlu0 %1179
        %vm1182 = vcmask 130112
        %1183 = vst.msk [vmem:[#allocation4] sm:$0xff] %vm1182, %v1180
        %v1184 = vld [vmem:[#allocation2] sm:$0xff]
        %v1185 = vpack.c.bf16 %v1184, %v1184
        %1187 = vrot.lane.b32.xlu0 %v1185, 112
        %v1188 = vpop.permute.xlu0 %1187
        %1189 = vrot.lane.b32.xlu0 %v1185, 80
        %v1190 = vpop.permute.xlu0 %1189
        %v1192 = vsel %vm952, %v1188, 0
        %v1195 = vsel %vm952, %v1190, 0
        %1197 = vmatprep.subr.bf16.mxu0 0
        %1198 = vmatpush1.bf16.xpose.msra.mxu0 0
        %1199 = vmatprep.subr.bf16.mxu0 0
        %1200 = vmatpush1.bf16.xpose.msra.mxu0 0
        %1201 = vmatprep.subr.bf16.mxu0 0
        %1202 = vmatpush1.bf16.xpose.msra.mxu0 0
        %1203 = vmatprep.subr.bf16.mxu0 0
        %1204 = vmatpush1.bf16.xpose.msra.mxu0 0
        %1205 = vmatprep.subr.bf16.mxu0 0
        %1206 = vmatpush1.bf16.xpose.msra.mxu0 0
        %1207 = vmatprep.subr.bf16.mxu0 0
        %1208 = vmatpush1.bf16.xpose.msra.mxu0 0
        %1209 = vmatprep.subr.bf16.mxu0 0
        %1210 = vmatpush1.bf16.xpose.msra.mxu0 0
        %1211 = vmatprep.subr.bf16.mxu0 0
        %1212 = vmatpush1.bf16.xpose.msra.mxu0 %v1195
        %1213 = vmatprep.subr.bf16.mxu0 0
        %1214 = vmatpush2.bf16.xpose.msra.mxu0 0
        %1215 = vmatprep.subr.bf16.mxu0 0
        %1216 = vmatpush2.bf16.xpose.msra.mxu0 0
        %1217 = vmatprep.subr.bf16.mxu0 0
        %1218 = vmatpush2.bf16.xpose.msra.mxu0 0
        %1219 = vmatprep.subr.bf16.mxu0 0
        %1220 = vmatpush2.bf16.xpose.msra.mxu0 0
        %1221 = vmatprep.subr.bf16.mxu0 0
        %1222 = vmatpush2.bf16.xpose.msra.mxu0 0
        %1223 = vmatprep.subr.bf16.mxu0 0
        %1224 = vmatpush2.bf16.xpose.msra.mxu0 0
        %1225 = vmatprep.subr.bf16.mxu0 0
        %1226 = vmatpush2.bf16.xpose.msra.mxu0 0
        %1227 = vmatprep.subr.bf16.mxu0 0
        %1228 = vmatpush2.bf16.xpose.msra.mxu0 0
        %1229 = vmatprep.mubr.bf16.mxu0 0
        %1230 = vmatmul.mubr.bf16.gmra.mxu0 %v1192
        %v1231 = vpop.f32.mrf.mxu0
        %v1232 = vadd.f32 0.0, %v1231
        %v1233 = vpop.f32.mrf.mxu0
        %v1234 = vpop.f32.mrf.mxu0
        %v1235 = vpop.f32.mrf.mxu0
        %1236 = vdwg.mxu0
        %v1237 = vmul.f32 %v1232, 0.35355338
        %v1238 = vsel %vm946, %v1237, -1e+09
        %v1239 = vsel %vm952, %v1238, -inf
        %1240 = vmax.xlane.f32.xlu0 %v1239
        %v1241 = vpop.xlane.xlu0 %1240
        %v1242 = vsub.f32 %v1238, %v1241
        %v1243 = vmul.f32 %v1242, 1.442695
        %v1244 = vpow.pop %v1243
        %v1245 = vsel %vm952, %v1244, 0.0
        %1246 = vadd.xlane.f32.xlu0 %v1245
        %v1247 = vpop.xlane.xlu0 %1246
        %v1248 = vrcp.pop %v1247
        %v1249 = vmul.f32 %v1244, %v1248
        %v1250 = vpack.c.bf16 %v1249, %v1249
        %1251 = vrot.lane.b32.xlu0 %v1185, 48
        %v1252 = vpop.permute.xlu0 %1251
        %v1254 = vsel %vm952, %v1250, 0
        %v1257 = vsel %vm1018, %v1252, 0
        %1259 = vmatprep.subr.bf16.mxu0 0
        %1260 = vmatpush1.bf16.msra.mxu0 0
        %1261 = vmatprep.subr.bf16.mxu0 0
        %1262 = vmatpush1.bf16.msra.mxu0 0
        %1263 = vmatprep.subr.bf16.mxu0 0
        %1264 = vmatpush1.bf16.msra.mxu0 0
        %1265 = vmatprep.subr.bf16.mxu0 0
        %1266 = vmatpush1.bf16.msra.mxu0 0
        %1267 = vmatprep.subr.bf16.mxu0 0
        %1268 = vmatpush1.bf16.msra.mxu0 0
        %1269 = vmatprep.subr.bf16.mxu0 0
        %1270 = vmatpush1.bf16.msra.mxu0 0
        %1271 = vmatprep.subr.bf16.mxu0 0
        %1272 = vmatpush1.bf16.msra.mxu0 0
        %1273 = vmatprep.subr.bf16.mxu0 0
        %1274 = vmatpush1.bf16.msra.mxu0 %v1257
        %1275 = vmatprep.subr.bf16.mxu0 0
        %1276 = vmatpush2.bf16.msra.mxu0 0
        %1277 = vmatprep.subr.bf16.mxu0 0
        %1278 = vmatpush2.bf16.msra.mxu0 0
        %1279 = vmatprep.subr.bf16.mxu0 0
        %1280 = vmatpush2.bf16.msra.mxu0 0
        %1281 = vmatprep.subr.bf16.mxu0 0
        %1282 = vmatpush2.bf16.msra.mxu0 0
        %1283 = vmatprep.subr.bf16.mxu0 0
        %1284 = vmatpush2.bf16.msra.mxu0 0
        %1285 = vmatprep.subr.bf16.mxu0 0
        %1286 = vmatpush2.bf16.msra.mxu0 0
        %1287 = vmatprep.subr.bf16.mxu0 0
        %1288 = vmatpush2.bf16.msra.mxu0 0
        %1289 = vmatprep.subr.bf16.mxu0 0
        %1290 = vmatpush2.bf16.msra.mxu0 0
        %1291 = vmatprep.mubr.bf16.mxu0 0
        %1292 = vmatmul.mubr.bf16.gmra.mxu0 %v1254
        %v1293 = vpop.f32.mrf.mxu0
        %v1294 = vadd.f32 0.0, %v1293
        %v1295 = vpop.f32.mrf.mxu0
        %v1296 = vpop.f32.mrf.mxu0
        %v1297 = vpop.f32.mrf.mxu0
        %1298 = vdwg.mxu0
        %1300 = vrot.lane.b32.xlu0 %v1294, 16
        %v1301 = vpop.permute.xlu0 %1300
        %vm1303 = vcmask 195712
        %1304 = vst.msk [vmem:[#allocation4] sm:$0xff] %vm1303, %v1301
        %v1305 = vld [vmem:[#allocation2] sm:$0xff]
        %v1306 = vpack.c.bf16 %v1305, %v1305
        %1308 = vrot.lane.b32.xlu0 %v1306, 104
        %v1309 = vpop.permute.xlu0 %1308
        %1310 = vrot.lane.b32.xlu0 %v1306, 72
        %v1311 = vpop.permute.xlu0 %1310
        %v1313 = vsel %vm952, %v1309, 0
        %v1316 = vsel %vm952, %v1311, 0
        %1318 = vmatprep.subr.bf16.mxu0 0
        %1319 = vmatpush1.bf16.xpose.msra.mxu0 0
        %1320 = vmatprep.subr.bf16.mxu0 0
        %1321 = vmatpush1.bf16.xpose.msra.mxu0 0
        %1322 = vmatprep.subr.bf16.mxu0 0
        %1323 = vmatpush1.bf16.xpose.msra.mxu0 0
        %1324 = vmatprep.subr.bf16.mxu0 0
        %1325 = vmatpush1.bf16.xpose.msra.mxu0 0
        %1326 = vmatprep.subr.bf16.mxu0 0
        %1327 = vmatpush1.bf16.xpose.msra.mxu0 0
        %1328 = vmatprep.subr.bf16.mxu0 0
        %1329 = vmatpush1.bf16.xpose.msra.mxu0 0
        %1330 = vmatprep.subr.bf16.mxu0 0
        %1331 = vmatpush1.bf16.xpose.msra.mxu0 0
        %1332 = vmatprep.subr.bf16.mxu0 0
        %1333 = vmatpush1.bf16.xpose.msra.mxu0 %v1316
        %1334 = vmatprep.subr.bf16.mxu0 0
        %1335 = vmatpush2.bf16.xpose.msra.mxu0 0
        %1336 = vmatprep.subr.bf16.mxu0 0
        %1337 = vmatpush2.bf16.xpose.msra.mxu0 0
        %1338 = vmatprep.subr.bf16.mxu0 0
        %1339 = vmatpush2.bf16.xpose.msra.mxu0 0
        %1340 = vmatprep.subr.bf16.mxu0 0
        %1341 = vmatpush2.bf16.xpose.msra.mxu0 0
        %1342 = vmatprep.subr.bf16.mxu0 0
        %1343 = vmatpush2.bf16.xpose.msra.mxu0 0
        %1344 = vmatprep.subr.bf16.mxu0 0
        %1345 = vmatpush2.bf16.xpose.msra.mxu0 0
        %1346 = vmatprep.subr.bf16.mxu0 0
        %1347 = vmatpush2.bf16.xpose.msra.mxu0 0
        %1348 = vmatprep.subr.bf16.mxu0 0
        %1349 = vmatpush2.bf16.xpose.msra.mxu0 0
        %1350 = vmatprep.mubr.bf16.mxu0 0
        %1351 = vmatmul.mubr.bf16.gmra.mxu0 %v1313
        %v1352 = vpop.f32.mrf.mxu0
        %v1353 = vadd.f32 0.0, %v1352
        %v1354 = vpop.f32.mrf.mxu0
        %v1355 = vpop.f32.mrf.mxu0
        %v1356 = vpop.f32.mrf.mxu0
        %1357 = vdwg.mxu0
        %v1358 = vmul.f32 %v1353, 0.35355338
        %v1359 = vsel %vm946, %v1358, -1e+09
        %v1360 = vsel %vm952, %v1359, -inf
        %1361 = vmax.xlane.f32.xlu0 %v1360
        %v1362 = vpop.xlane.xlu0 %1361
        %v1363 = vsub.f32 %v1359, %v1362
        %v1364 = vmul.f32 %v1363, 1.442695
        %v1365 = vpow.pop %v1364
        %v1366 = vsel %vm952, %v1365, 0.0
        %1367 = vadd.xlane.f32.xlu0 %v1366
        %v1368 = vpop.xlane.xlu0 %1367
        %v1369 = vrcp.pop %v1368
        %v1370 = vmul.f32 %v1365, %v1369
        %v1371 = vpack.c.bf16 %v1370, %v1370
        %1372 = vrot.lane.b32.xlu0 %v1306, 40
        %v1373 = vpop.permute.xlu0 %1372
        %v1375 = vsel %vm952, %v1371, 0
        %v1378 = vsel %vm1018, %v1373, 0
        %1380 = vmatprep.subr.bf16.mxu0 0
        %1381 = vmatpush1.bf16.msra.mxu0 0
        %1382 = vmatprep.subr.bf16.mxu0 0
        %1383 = vmatpush1.bf16.msra.mxu0 0
        %1384 = vmatprep.subr.bf16.mxu0 0
        %1385 = vmatpush1.bf16.msra.mxu0 0
        %1386 = vmatprep.subr.bf16.mxu0 0
        %1387 = vmatpush1.bf16.msra.mxu0 0
        %1388 = vmatprep.subr.bf16.mxu0 0
        %1389 = vmatpush1.bf16.msra.mxu0 0
        %1390 = vmatprep.subr.bf16.mxu0 0
        %1391 = vmatpush1.bf16.msra.mxu0 0
        %1392 = vmatprep.subr.bf16.mxu0 0
        %1393 = vmatpush1.bf16.msra.mxu0 0
        %1394 = vmatprep.subr.bf16.mxu0 0
        %1395 = vmatpush1.bf16.msra.mxu0 %v1378
        %1396 = vmatprep.subr.bf16.mxu0 0
        %1397 = vmatpush2.bf16.msra.mxu0 0
        %1398 = vmatprep.subr.bf16.mxu0 0
        %1399 = vmatpush2.bf16.msra.mxu0 0
        %1400 = vmatprep.subr.bf16.mxu0 0
        %1401 = vmatpush2.bf16.msra.mxu0 0
        %1402 = vmatprep.subr.bf16.mxu0 0
        %1403 = vmatpush2.bf16.msra.mxu0 0
        %1404 = vmatprep.subr.bf16.mxu0 0
        %1405 = vmatpush2.bf16.msra.mxu0 0
        %1406 = vmatprep.subr.bf16.mxu0 0
        %1407 = vmatpush2.bf16.msra.mxu0 0
        %1408 = vmatprep.subr.bf16.mxu0 0
        %1409 = vmatpush2.bf16.msra.mxu0 0
        %1410 = vmatprep.subr.bf16.mxu0 0
        %1411 = vmatpush2.bf16.msra.mxu0 0
        %1412 = vmatprep.mubr.bf16.mxu0 0
        %1413 = vmatmul.mubr.bf16.gmra.mxu0 %v1375
        %v1414 = vpop.f32.mrf.mxu0
        %v1415 = vadd.f32 0.0, %v1414
        %v1416 = vpop.f32.mrf.mxu0
        %v1417 = vpop.f32.mrf.mxu0
        %v1418 = vpop.f32.mrf.mxu0
        %1419 = vdwg.mxu0
        %1421 = vrot.lane.b32.xlu0 %v1415, 24
        %v1422 = vpop.permute.xlu0 %1421
        %vm1424 = vcmask 261312
        %1425 = vst.msk [vmem:[#allocation4] sm:$0xff] %vm1424, %v1422
        %v1426 = vld [vmem:[#allocation4] sm:$0xff]
        %v1427 = vpack.c.bf16 %v1426, %v1426
        %v1428 = vld [vmem:[%s6] sm:$0xf]
        %v1429 = vld [vmem:[%s6 + $0x4] sm:$0xf]
        %v1430 = vld [vmem:[%s6 + $0x8] sm:$0xf]
        %v1431 = vld [vmem:[%s6 + $0xc] sm:$0xf]
        %v1436 = vunpack.c.l.b16 %v1428
        %v1437 = vunpack.c.l.b16 %v1429
        %v1438 = vunpack.c.l.b16 %v1430
        %v1439 = vunpack.c.l.b16 %v1431
        %v1440 = vpack.c.b16 %v1437, %v1436
        %v1441 = vpack.c.b16 %v1439, %v1438
        %v1445 = vsel %vm840, %v1427, 0
        %1447 = vmatprep.subr.bf16.mxu0 0
        %1448 = vmatpush1.bf16.msra.mxu0 0
        %1449 = vmatprep.subr.bf16.mxu0 0
        %1450 = vmatpush1.bf16.msra.mxu0 0
        %1451 = vmatprep.subr.bf16.mxu0 0
        %1452 = vmatpush1.bf16.msra.mxu0 0
        %1453 = vmatprep.subr.bf16.mxu0 0
        %1454 = vmatpush1.bf16.msra.mxu0 0
        %1455 = vmatprep.subr.bf16.mxu0 0
        %1456 = vmatpush1.bf16.msra.mxu0 0
        %1457 = vmatprep.subr.bf16.mxu0 0
        %1458 = vmatpush1.bf16.msra.mxu0 0
        %1459 = vmatprep.subr.bf16.mxu0 0
        %1460 = vmatpush1.bf16.msra.mxu0 %v1441
        %1461 = vmatprep.subr.bf16.mxu0 0
        %1462 = vmatpush1.bf16.msra.mxu0 %v1440
        %1463 = vmatprep.subr.bf16.mxu0 0
        %1464 = vmatpush2.bf16.msra.mxu0 0
        %1465 = vmatprep.subr.bf16.mxu0 0
        %1466 = vmatpush2.bf16.msra.mxu0 0
        %1467 = vmatprep.subr.bf16.mxu0 0
        %1468 = vmatpush2.bf16.msra.mxu0 0
        %1469 = vmatprep.subr.bf16.mxu0 0
        %1470 = vmatpush2.bf16.msra.mxu0 0
        %1471 = vmatprep.subr.bf16.mxu0 0
        %1472 = vmatpush2.bf16.msra.mxu0 0
        %1473 = vmatprep.subr.bf16.mxu0 0
        %1474 = vmatpush2.bf16.msra.mxu0 0
        %1475 = vmatprep.subr.bf16.mxu0 0
        %1476 = vmatpush2.bf16.msra.mxu0 0
        %1477 = vmatprep.subr.bf16.mxu0 0
        %1478 = vmatpush2.bf16.msra.mxu0 0
        %1479 = vmatprep.mubr.bf16.mxu0 0
        %1480 = vmatmul.mubr.bf16.gmra.mxu0 %v1445
        %v1481 = vpop.f32.mrf.mxu0
        %v1482 = vadd.f32 0.0, %v1481
        %v1483 = vpop.f32.mrf.mxu0
        %v1484 = vpop.f32.mrf.mxu0
        %v1485 = vpop.f32.mrf.mxu0
        %1486 = vdwg.mxu0
        %v1487 = vadd.f32 %v836, %v1482
        %v1488 = vld [vmem:[%s7] sm:$0x1]
        %v1490 = vlaneseq
        %v1491 = vshrl.u32 %v1490, 7
        %v1492 = vsub.s32 0, %v1491
        %v1493 = vrot.slane %v1488, %v1492
        %v1495 = vadd.f32 %v1487, %v1493
        %v1496 = vld [vmem:[%s20] sm:$0x1]
        %v1497 = vld [vmem:[%s21] sm:$0x1]
        %v1498 = vsel %vm840, %v1495, 0.0
        %1499 = vadd.xlane.f32.xlu0 %v1498
        %v1500 = vpop.xlane.xlu0 %1499
        %v1501 = vmul.f32 %v1500, %v844
        %v1502 = vsub.f32 %v1495, %v1501
        %v1503 = vmul.f32 %v1502, %v1502
        %v1504 = vsel %vm840, %v1503, 0.0
        %1505 = vadd.xlane.f32.xlu0 %v1504
        %v1506 = vpop.xlane.xlu0 %1505
        %v1507 = vmul.f32 %v1506, 0.032258064
        %v1508 = vrsqrt.pop %v1507
        %v1509 = vmul.f32 %v1507, %v1508
        %vm1510 = vcmp.eq.f32.partialorder %v1507, inf
        %v1511 = vsel %vm1510, %v1507, %v1509
        %vm1512 = vcmp.eq.f32.partialorder %v1507, 0.0
        %v1513 = vand.u32 %v1507, 2147483648
        %v1514 = vsel %vm1512, %v1513, %v1511
        %v1516 = vlaneseq
        %v1517 = vshrl.u32 %v1516, 7
        %v1518 = vsub.s32 0, %v1517
        %v1519 = vrot.slane %v1496, %v1518
        %v1521 = vmul.f32 %v1519, %v1502
        %v1522 = vadd.f32 %v1514, 1e-06
        %v1523 = vrcp.pop %v1522
        %v1524 = vmul.f32 %v1521, %v1523
        %v1526 = vlaneseq
        %v1527 = vshrl.u32 %v1526, 7
        %v1528 = vsub.s32 0, %v1527
        %v1529 = vrot.slane %v1497, %v1528
        %v1531 = vadd.f32 %v1524, %v1529
        %v1532 = vpack.c.bf16 %v1531, %v1531
        %v1533 = vld [vmem:[%s8] sm:$0xf]
        %v1534 = vld [vmem:[%s8 + $0x4] sm:$0xf]
        %v1535 = vld [vmem:[%s8 + $0x8] sm:$0xf]
        %v1536 = vld [vmem:[%s8 + $0xc] sm:$0xf]
        %v1537 = vld [vmem:[%s9] sm:$0x1]
        %v1539 = vlaneseq
        %v1540 = vshrl.u32 %v1539, 7
        %v1541 = vsub.s32 0, %v1540
        %v1542 = vrot.slane %v1537, %v1541
        %v1548 = vunpack.c.l.b16 %v1533
        %v1549 = vunpack.c.l.b16 %v1534
        %v1550 = vunpack.c.l.b16 %v1535
        %v1551 = vunpack.c.l.b16 %v1536
        %v1552 = vpack.c.b16 %v1549, %v1548
        %v1553 = vpack.c.b16 %v1551, %v1550
        %v1557 = vsel %vm840, %v1532, 0
        %1559 = vmatprep.subr.bf16.mxu0 0
        %1560 = vmatpush1.bf16.msra.mxu0 0
        %1561 = vmatprep.subr.bf16.mxu0 0
        %1562 = vmatpush1.bf16.msra.mxu0 0
        %1563 = vmatprep.subr.bf16.mxu0 0
        %1564 = vmatpush1.bf16.msra.mxu0 0
        %1565 = vmatprep.subr.bf16.mxu0 0
        %1566 = vmatpush1.bf16.msra.mxu0 0
        %1567 = vmatprep.subr.bf16.mxu0 0
        %1568 = vmatpush1.bf16.msra.mxu0 0
        %1569 = vmatprep.subr.bf16.mxu0 0
        %1570 = vmatpush1.bf16.msra.mxu0 0
        %1571 = vmatprep.subr.bf16.mxu0 0
        %1572 = vmatpush1.bf16.msra.mxu0 %v1553
        %1573 = vmatprep.subr.bf16.mxu0 0
        %1574 = vmatpush1.bf16.msra.mxu0 %v1552
        %1575 = vmatprep.subr.bf16.mxu0 0
        %1576 = vmatpush2.bf16.msra.mxu0 0
        %1577 = vmatprep.subr.bf16.mxu0 0
        %1578 = vmatpush2.bf16.msra.mxu0 0
        %1579 = vmatprep.subr.bf16.mxu0 0
        %1580 = vmatpush2.bf16.msra.mxu0 0
        %1581 = vmatprep.subr.bf16.mxu0 0
        %1582 = vmatpush2.bf16.msra.mxu0 0
        %1583 = vmatprep.subr.bf16.mxu0 0
        %1584 = vmatpush2.bf16.msra.mxu0 0
        %1585 = vmatprep.subr.bf16.mxu0 0
        %1586 = vmatpush2.bf16.msra.mxu0 0
        %1587 = vmatprep.subr.bf16.mxu0 0
        %1588 = vmatpush2.bf16.msra.mxu0 0
        %1589 = vmatprep.subr.bf16.mxu0 0
        %1590 = vmatpush2.bf16.msra.mxu0 0
        %1591 = vmatprep.mubr.bf16.mxu0 0
        %1592 = vmatmul.mubr.bf16.gmra.mxu0 %v1557
        %v1593 = vpop.f32.mrf.mxu0
        %v1594 = vadd.f32 %v1542, %v1593
        %v1595 = vpop.f32.mrf.mxu0
        %v1596 = vpop.f32.mrf.mxu0
        %v1597 = vpop.f32.mrf.mxu0
        %1598 = vdwg.mxu0
        %1599 = vst.msk [vmem:[#allocation2] sm:$0xff] %vm840, %v1594
        %v1600 = vpack.c.bf16 %v837, %v837
        %v1601 = vld [vmem:[%s10] sm:$0xf]
        %v1602 = vld [vmem:[%s10 + $0x4] sm:$0xf]
        %v1603 = vld [vmem:[%s10 + $0x8] sm:$0xf]
        %v1604 = vld [vmem:[%s10 + $0xc] sm:$0xf]
        %v1605 = vld [vmem:[%s11] sm:$0x1]
        %v1607 = vlaneseq
        %v1608 = vshrl.u32 %v1607, 7
        %v1609 = vsub.s32 0, %v1608
        %v1610 = vrot.slane %v1605, %v1609
        %v1616 = vunpack.c.l.b16 %v1601
        %v1617 = vunpack.c.l.b16 %v1602
        %v1618 = vunpack.c.l.b16 %v1603
        %v1619 = vunpack.c.l.b16 %v1604
        %v1620 = vpack.c.b16 %v1617, %v1616
        %v1621 = vpack.c.b16 %v1619, %v1618
        %v1625 = vsel %vm840, %v1600, 0
        %1627 = vmatprep.subr.bf16.mxu0 0
        %1628 = vmatpush1.bf16.msra.mxu0 0
        %1629 = vmatprep.subr.bf16.mxu0 0
        %1630 = vmatpush1.bf16.msra.mxu0 0
        %1631 = vmatprep.subr.bf16.mxu0 0
        %1632 = vmatpush1.bf16.msra.mxu0 0
        %1633 = vmatprep.subr.bf16.mxu0 0
        %1634 = vmatpush1.bf16.msra.mxu0 0
        %1635 = vmatprep.subr.bf16.mxu0 0
        %1636 = vmatpush1.bf16.msra.mxu0 0
        %1637 = vmatprep.subr.bf16.mxu0 0
        %1638 = vmatpush1.bf16.msra.mxu0 0
        %1639 = vmatprep.subr.bf16.mxu0 0
        %1640 = vmatpush1.bf16.msra.mxu0 %v1621
        %1641 = vmatprep.subr.bf16.mxu0 0
        %1642 = vmatpush1.bf16.msra.mxu0 %v1620
        %1643 = vmatprep.subr.bf16.mxu0 0
        %1644 = vmatpush2.bf16.msra.mxu0 0
        %1645 = vmatprep.subr.bf16.mxu0 0
        %1646 = vmatpush2.bf16.msra.mxu0 0
        %1647 = vmatprep.subr.bf16.mxu0 0
        %1648 = vmatpush2.bf16.msra.mxu0 0
        %1649 = vmatprep.subr.bf16.mxu0 0
        %1650 = vmatpush2.bf16.msra.mxu0 0
        %1651 = vmatprep.subr.bf16.mxu0 0
        %1652 = vmatpush2.bf16.msra.mxu0 0
        %1653 = vmatprep.subr.bf16.mxu0 0
        %1654 = vmatpush2.bf16.msra.mxu0 0
        %1655 = vmatprep.subr.bf16.mxu0 0
        %1656 = vmatpush2.bf16.msra.mxu0 0
        %1657 = vmatprep.subr.bf16.mxu0 0
        %1658 = vmatpush2.bf16.msra.mxu0 0
        %1659 = vmatprep.mubr.bf16.mxu0 0
        %1660 = vmatmul.mubr.bf16.gmra.mxu0 %v1625
        %v1661 = vpop.f32.mrf.mxu0
        %v1662 = vadd.f32 %v1610, %v1661
        %v1663 = vpop.f32.mrf.mxu0
        %v1664 = vpop.f32.mrf.mxu0
        %v1665 = vpop.f32.mrf.mxu0
        %1666 = vdwg.mxu0
        %vm1667 = vcmask 523264
        %1668 = vst.msk [vmem:[#allocation3] sm:$0xff] %vm1667, %v1662
        %v1669 = vld [vmem:[%s834] sm:$0x1]
        %vm1670 = vcmp.ne.s32.totalorder %v1669, 0
        %v1671 = vld [vmem:[#allocation2] sm:$0xff]
        %v1672 = vpack.c.bf16 %v1671, %v1671
        %v1673 = vld [vmem:[#allocation3] sm:$0xff]
        %v1674 = vpack.c.bf16 %v1673, %v1673
        %v1676 = vsel %vm952, %v1672, 0
        %v1679 = vsel %vm952, %v1674, 0
        %1681 = vmatprep.subr.bf16.mxu0 0
        %1682 = vmatpush1.bf16.xpose.msra.mxu0 0
        %1683 = vmatprep.subr.bf16.mxu0 0
        %1684 = vmatpush1.bf16.xpose.msra.mxu0 0
        %1685 = vmatprep.subr.bf16.mxu0 0
        %1686 = vmatpush1.bf16.xpose.msra.mxu0 0
        %1687 = vmatprep.subr.bf16.mxu0 0
        %1688 = vmatpush1.bf16.xpose.msra.mxu0 0
        %1689 = vmatprep.subr.bf16.mxu0 0
        %1690 = vmatpush1.bf16.xpose.msra.mxu0 0
        %1691 = vmatprep.subr.bf16.mxu0 0
        %1692 = vmatpush1.bf16.xpose.msra.mxu0 0
        %1693 = vmatprep.subr.bf16.mxu0 0
        %1694 = vmatpush1.bf16.xpose.msra.mxu0 0
        %1695 = vmatprep.subr.bf16.mxu0 0
        %1696 = vmatpush1.bf16.xpose.msra.mxu0 %v1679
        %1697 = vmatprep.subr.bf16.mxu0 0
        %1698 = vmatpush2.bf16.xpose.msra.mxu0 0
        %1699 = vmatprep.subr.bf16.mxu0 0
        %1700 = vmatpush2.bf16.xpose.msra.mxu0 0
        %1701 = vmatprep.subr.bf16.mxu0 0
        %1702 = vmatpush2.bf16.xpose.msra.mxu0 0
        %1703 = vmatprep.subr.bf16.mxu0 0
        %1704 = vmatpush2.bf16.xpose.msra.mxu0 0
        %1705 = vmatprep.subr.bf16.mxu0 0
        %1706 = vmatpush2.bf16.xpose.msra.mxu0 0
        %1707 = vmatprep.subr.bf16.mxu0 0
        %1708 = vmatpush2.bf16.xpose.msra.mxu0 0
        %1709 = vmatprep.subr.bf16.mxu0 0
        %1710 = vmatpush2.bf16.xpose.msra.mxu0 0
        %1711 = vmatprep.subr.bf16.mxu0 0
        %1712 = vmatpush2.bf16.xpose.msra.mxu0 0
        %1713 = vmatprep.mubr.bf16.mxu0 0
        %1714 = vmatmul.mubr.bf16.gmra.mxu0 %v1676
        %v1715 = vpop.f32.mrf.mxu0
        %v1716 = vadd.f32 0.0, %v1715
        %v1717 = vpop.f32.mrf.mxu0
        %v1718 = vpop.f32.mrf.mxu0
        %v1719 = vpop.f32.mrf.mxu0
        %1720 = vdwg.mxu0
        %v1721 = vmul.f32 %v1716, 0.35355338
        %v1722 = vsel %vm1670, 1, 0
        %v1723 = vlaneseq
        %v1724 = vshrl.u32 %v1723, 7
        %v1725 = vsub.s32 0, %v1724
        %v1726 = vrot.slane %v1722, %v1725
        %vm1727 = vcmp.eq.s32.totalorder %v1726, 1
        %v1728 = vsel %vm1727, %v1721, -1e+09
        %v1729 = vsel %vm952, %v1728, -inf
        %1730 = vmax.xlane.f32.xlu0 %v1729
        %v1731 = vpop.xlane.xlu0 %1730
        %v1732 = vsub.f32 %v1728, %v1731
        %v1733 = vmul.f32 %v1732, 1.442695
        %v1734 = vpow.pop %v1733
        %v1735 = vsel %vm952, %v1734, 0.0
        %1736 = vadd.xlane.f32.xlu0 %v1735
        %v1737 = vpop.xlane.xlu0 %1736
        %v1738 = vrcp.pop %v1737
        %v1739 = vmul.f32 %v1734, %v1738
        %v1740 = vpack.c.bf16 %v1739, %v1739
        %1742 = vrot.lane.b32.xlu0 %v1674, 96
        %v1743 = vpop.permute.xlu0 %1742
        %v1745 = vsel %vm952, %v1740, 0
        %v1748 = vsel %vm1018, %v1743, 0
        %1750 = vmatprep.subr.bf16.mxu0 0
        %1751 = vmatpush1.bf16.msra.mxu0 0
        %1752 = vmatprep.subr.bf16.mxu0 0
        %1753 = vmatpush1.bf16.msra.mxu0 0
        %1754 = vmatprep.subr.bf16.mxu0 0
        %1755 = vmatpush1.bf16.msra.mxu0 0
        %1756 = vmatprep.subr.bf16.mxu0 0
        %1757 = vmatpush1.bf16.msra.mxu0 0
        %1758 = vmatprep.subr.bf16.mxu0 0
        %1759 = vmatpush1.bf16.msra.mxu0 0
        %1760 = vmatprep.subr.bf16.mxu0 0
        %1761 = vmatpush1.bf16.msra.mxu0 0
        %1762 = vmatprep.subr.bf16.mxu0 0
        %1763 = vmatpush1.bf16.msra.mxu0 0
        %1764 = vmatprep.subr.bf16.mxu0 0
        %1765 = vmatpush1.bf16.msra.mxu0 %v1748
        %1766 = vmatprep.subr.bf16.mxu0 0
        %1767 = vmatpush2.bf16.msra.mxu0 0
        %1768 = vmatprep.subr.bf16.mxu0 0
        %1769 = vmatpush2.bf16.msra.mxu0 0
        %1770 = vmatprep.subr.bf16.mxu0 0
        %1771 = vmatpush2.bf16.msra.mxu0 0
        %1772 = vmatprep.subr.bf16.mxu0 0
        %1773 = vmatpush2.bf16.msra.mxu0 0
        %1774 = vmatprep.subr.bf16.mxu0 0
        %1775 = vmatpush2.bf16.msra.mxu0 0
        %1776 = vmatprep.subr.bf16.mxu0 0
        %1777 = vmatpush2.bf16.msra.mxu0 0
        %1778 = vmatprep.subr.bf16.mxu0 0
        %1779 = vmatpush2.bf16.msra.mxu0 0
        %1780 = vmatprep.subr.bf16.mxu0 0
        %1781 = vmatpush2.bf16.msra.mxu0 0
        %1782 = vmatprep.mubr.bf16.mxu0 0
        %1783 = vmatmul.mubr.bf16.gmra.mxu0 %v1745
        %v1784 = vpop.f32.mrf.mxu0
        %v1785 = vadd.f32 0.0, %v1784
        %v1786 = vpop.f32.mrf.mxu0
        %v1787 = vpop.f32.mrf.mxu0
        %v1788 = vpop.f32.mrf.mxu0
        %1789 = vdwg.mxu0
        %1790 = vst.msk [vmem:[#allocation4] sm:$0xff] %vm952, %v1785
        %v1791 = vld [vmem:[#allocation2] sm:$0xff]
        %v1792 = vpack.c.bf16 %v1791, %v1791
        %v1793 = vld [vmem:[#allocation3] sm:$0xff]
        %v1794 = vpack.c.bf16 %v1793, %v1793
        %1796 = vrot.lane.b32.xlu0 %v1792, 120
        %v1797 = vpop.permute.xlu0 %1796
        %1799 = vrot.lane.b32.xlu0 %v1794, 120
        %v1800 = vpop.permute.xlu0 %1799
        %v1802 = vsel %vm952, %v1797, 0
        %v1805 = vsel %vm952, %v1800, 0
        %1807 = vmatprep.subr.bf16.mxu0 0
        %1808 = vmatpush1.bf16.xpose.msra.mxu0 0
        %1809 = vmatprep.subr.bf16.mxu0 0
        %1810 = vmatpush1.bf16.xpose.msra.mxu0 0
        %1811 = vmatprep.subr.bf16.mxu0 0
        %1812 = vmatpush1.bf16.xpose.msra.mxu0 0
        %1813 = vmatprep.subr.bf16.mxu0 0
        %1814 = vmatpush1.bf16.xpose.msra.mxu0 0
        %1815 = vmatprep.subr.bf16.mxu0 0
        %1816 = vmatpush1.bf16.xpose.msra.mxu0 0
        %1817 = vmatprep.subr.bf16.mxu0 0
        %1818 = vmatpush1.bf16.xpose.msra.mxu0 0
        %1819 = vmatprep.subr.bf16.mxu0 0
        %1820 = vmatpush1.bf16.xpose.msra.mxu0 0
        %1821 = vmatprep.subr.bf16.mxu0 0
        %1822 = vmatpush1.bf16.xpose.msra.mxu0 %v1805
        %1823 = vmatprep.subr.bf16.mxu0 0
        %1824 = vmatpush2.bf16.xpose.msra.mxu0 0
        %1825 = vmatprep.subr.bf16.mxu0 0
        %1826 = vmatpush2.bf16.xpose.msra.mxu0 0
        %1827 = vmatprep.subr.bf16.mxu0 0
        %1828 = vmatpush2.bf16.xpose.msra.mxu0 0
        %1829 = vmatprep.subr.bf16.mxu0 0
        %1830 = vmatpush2.bf16.xpose.msra.mxu0 0
        %1831 = vmatprep.subr.bf16.mxu0 0
        %1832 = vmatpush2.bf16.xpose.msra.mxu0 0
        %1833 = vmatprep.subr.bf16.mxu0 0
        %1834 = vmatpush2.bf16.xpose.msra.mxu0 0
        %1835 = vmatprep.subr.bf16.mxu0 0
        %1836 = vmatpush2.bf16.xpose.msra.mxu0 0
        %1837 = vmatprep.subr.bf16.mxu0 0
        %1838 = vmatpush2.bf16.xpose.msra.mxu0 0
        %1839 = vmatprep.mubr.bf16.mxu0 0
        %1840 = vmatmul.mubr.bf16.gmra.mxu0 %v1802
        %v1841 = vpop.f32.mrf.mxu0
        %v1842 = vadd.f32 0.0, %v1841
        %v1843 = vpop.f32.mrf.mxu0
        %v1844 = vpop.f32.mrf.mxu0
        %v1845 = vpop.f32.mrf.mxu0
        %1846 = vdwg.mxu0
        %v1847 = vmul.f32 %v1842, 0.35355338
        %v1848 = vsel %vm1727, %v1847, -1e+09
        %v1849 = vsel %vm952, %v1848, -inf
        %1850 = vmax.xlane.f32.xlu0 %v1849
        %v1851 = vpop.xlane.xlu0 %1850
        %v1852 = vsub.f32 %v1848, %v1851
        %v1853 = vmul.f32 %v1852, 1.442695
        %v1854 = vpow.pop %v1853
        %v1855 = vsel %vm952, %v1854, 0.0
        %1856 = vadd.xlane.f32.xlu0 %v1855
        %v1857 = vpop.xlane.xlu0 %1856
        %v1858 = vrcp.pop %v1857
        %v1859 = vmul.f32 %v1854, %v1858
        %v1860 = vpack.c.bf16 %v1859, %v1859
        %1861 = vrot.lane.b32.xlu0 %v1794, 88
        %v1862 = vpop.permute.xlu0 %1861
        %v1864 = vsel %vm952, %v1860, 0
        %v1867 = vsel %vm1018, %v1862, 0
        %1869 = vmatprep.subr.bf16.mxu0 0
        %1870 = vmatpush1.bf16.msra.mxu0 0
        %1871 = vmatprep.subr.bf16.mxu0 0
        %1872 = vmatpush1.bf16.msra.mxu0 0
        %1873 = vmatprep.subr.bf16.mxu0 0
        %1874 = vmatpush1.bf16.msra.mxu0 0
        %1875 = vmatprep.subr.bf16.mxu0 0
        %1876 = vmatpush1.bf16.msra.mxu0 0
        %1877 = vmatprep.subr.bf16.mxu0 0
        %1878 = vmatpush1.bf16.msra.mxu0 0
        %1879 = vmatprep.subr.bf16.mxu0 0
        %1880 = vmatpush1.bf16.msra.mxu0 0
        %1881 = vmatprep.subr.bf16.mxu0 0
        %1882 = vmatpush1.bf16.msra.mxu0 0
        %1883 = vmatprep.subr.bf16.mxu0 0
        %1884 = vmatpush1.bf16.msra.mxu0 %v1867
        %1885 = vmatprep.subr.bf16.mxu0 0
        %1886 = vmatpush2.bf16.msra.mxu0 0
        %1887 = vmatprep.subr.bf16.mxu0 0
        %1888 = vmatpush2.bf16.msra.mxu0 0
        %1889 = vmatprep.subr.bf16.mxu0 0
        %1890 = vmatpush2.bf16.msra.mxu0 0
        %1891 = vmatprep.subr.bf16.mxu0 0
        %1892 = vmatpush2.bf16.msra.mxu0 0
        %1893 = vmatprep.subr.bf16.mxu0 0
        %1894 = vmatpush2.bf16.msra.mxu0 0
        %1895 = vmatprep.subr.bf16.mxu0 0
        %1896 = vmatpush2.bf16.msra.mxu0 0
        %1897 = vmatprep.subr.bf16.mxu0 0
        %1898 = vmatpush2.bf16.msra.mxu0 0
        %1899 = vmatprep.subr.bf16.mxu0 0
        %1900 = vmatpush2.bf16.msra.mxu0 0
        %1901 = vmatprep.mubr.bf16.mxu0 0
        %1902 = vmatmul.mubr.bf16.gmra.mxu0 %v1864
        %v1903 = vpop.f32.mrf.mxu0
        %v1904 = vadd.f32 0.0, %v1903
        %v1905 = vpop.f32.mrf.mxu0
        %v1906 = vpop.f32.mrf.mxu0
        %v1907 = vpop.f32.mrf.mxu0
        %1908 = vdwg.mxu0
        %1910 = vrot.lane.b32.xlu0 %v1904, 8
        %v1911 = vpop.permute.xlu0 %1910
        %1913 = vst.msk [vmem:[#allocation4] sm:$0xff] %vm1182, %v1911
        %v1914 = vld [vmem:[#allocation2] sm:$0xff]
        %v1915 = vpack.c.bf16 %v1914, %v1914
        %v1916 = vld [vmem:[#allocation3] sm:$0xff]
        %v1917 = vpack.c.bf16 %v1916, %v1916
        %1919 = vrot.lane.b32.xlu0 %v1915, 112
        %v1920 = vpop.permute.xlu0 %1919
        %1922 = vrot.lane.b32.xlu0 %v1917, 112
        %v1923 = vpop.permute.xlu0 %1922
        %v1925 = vsel %vm952, %v1920, 0
        %v1928 = vsel %vm952, %v1923, 0
        %1930 = vmatprep.subr.bf16.mxu0 0
        %1931 = vmatpush1.bf16.xpose.msra.mxu0 0
        %1932 = vmatprep.subr.bf16.mxu0 0
        %1933 = vmatpush1.bf16.xpose.msra.mxu0 0
        %1934 = vmatprep.subr.bf16.mxu0 0
        %1935 = vmatpush1.bf16.xpose.msra.mxu0 0
        %1936 = vmatprep.subr.bf16.mxu0 0
        %1937 = vmatpush1.bf16.xpose.msra.mxu0 0
        %1938 = vmatprep.subr.bf16.mxu0 0
        %1939 = vmatpush1.bf16.xpose.msra.mxu0 0
        %1940 = vmatprep.subr.bf16.mxu0 0
        %1941 = vmatpush1.bf16.xpose.msra.mxu0 0
        %1942 = vmatprep.subr.bf16.mxu0 0
        %1943 = vmatpush1.bf16.xpose.msra.mxu0 0
        %1944 = vmatprep.subr.bf16.mxu0 0
        %1945 = vmatpush1.bf16.xpose.msra.mxu0 %v1928
        %1946 = vmatprep.subr.bf16.mxu0 0
        %1947 = vmatpush2.bf16.xpose.msra.mxu0 0
        %1948 = vmatprep.subr.bf16.mxu0 0
        %1949 = vmatpush2.bf16.xpose.msra.mxu0 0
        %1950 = vmatprep.subr.bf16.mxu0 0
        %1951 = vmatpush2.bf16.xpose.msra.mxu0 0
        %1952 = vmatprep.subr.bf16.mxu0 0
        %1953 = vmatpush2.bf16.xpose.msra.mxu0 0
        %1954 = vmatprep.subr.bf16.mxu0 0
        %1955 = vmatpush2.bf16.xpose.msra.mxu0 0
        %1956 = vmatprep.subr.bf16.mxu0 0
        %1957 = vmatpush2.bf16.xpose.msra.mxu0 0
        %1958 = vmatprep.subr.bf16.mxu0 0
        %1959 = vmatpush2.bf16.xpose.msra.mxu0 0
        %1960 = vmatprep.subr.bf16.mxu0 0
        %1961 = vmatpush2.bf16.xpose.msra.mxu0 0
        %1962 = vmatprep.mubr.bf16.mxu0 0
        %1963 = vmatmul.mubr.bf16.gmra.mxu0 %v1925
        %v1964 = vpop.f32.mrf.mxu0
        %v1965 = vadd.f32 0.0, %v1964
        %v1966 = vpop.f32.mrf.mxu0
        %v1967 = vpop.f32.mrf.mxu0
        %v1968 = vpop.f32.mrf.mxu0
        %1969 = vdwg.mxu0
        %v1970 = vmul.f32 %v1965, 0.35355338
        %v1971 = vsel %vm1727, %v1970, -1e+09
        %v1972 = vsel %vm952, %v1971, -inf
        %1973 = vmax.xlane.f32.xlu0 %v1972
        %v1974 = vpop.xlane.xlu0 %1973
        %v1975 = vsub.f32 %v1971, %v1974
        %v1976 = vmul.f32 %v1975, 1.442695
        %v1977 = vpow.pop %v1976
        %v1978 = vsel %vm952, %v1977, 0.0
        %1979 = vadd.xlane.f32.xlu0 %v1978
        %v1980 = vpop.xlane.xlu0 %1979
        %v1981 = vrcp.pop %v1980
        %v1982 = vmul.f32 %v1977, %v1981
        %v1983 = vpack.c.bf16 %v1982, %v1982
        %1984 = vrot.lane.b32.xlu0 %v1917, 80
        %v1985 = vpop.permute.xlu0 %1984
        %v1987 = vsel %vm952, %v1983, 0
        %v1990 = vsel %vm1018, %v1985, 0
        %1992 = vmatprep.subr.bf16.mxu0 0
        %1993 = vmatpush1.bf16.msra.mxu0 0
        %1994 = vmatprep.subr.bf16.mxu0 0
        %1995 = vmatpush1.bf16.msra.mxu0 0
        %1996 = vmatprep.subr.bf16.mxu0 0
        %1997 = vmatpush1.bf16.msra.mxu0 0
        %1998 = vmatprep.subr.bf16.mxu0 0
        %1999 = vmatpush1.bf16.msra.mxu0 0
        %2000 = vmatprep.subr.bf16.mxu0 0
        %2001 = vmatpush1.bf16.msra.mxu0 0
        %2002 = vmatprep.subr.bf16.mxu0 0
        %2003 = vmatpush1.bf16.msra.mxu0 0
        %2004 = vmatprep.subr.bf16.mxu0 0
        %2005 = vmatpush1.bf16.msra.mxu0 0
        %2006 = vmatprep.subr.bf16.mxu0 0
        %2007 = vmatpush1.bf16.msra.mxu0 %v1990
        %2008 = vmatprep.subr.bf16.mxu0 0
        %2009 = vmatpush2.bf16.msra.mxu0 0
        %2010 = vmatprep.subr.bf16.mxu0 0
        %2011 = vmatpush2.bf16.msra.mxu0 0
        %2012 = vmatprep.subr.bf16.mxu0 0
        %2013 = vmatpush2.bf16.msra.mxu0 0
        %2014 = vmatprep.subr.bf16.mxu0 0
        %2015 = vmatpush2.bf16.msra.mxu0 0
        %2016 = vmatprep.subr.bf16.mxu0 0
        %2017 = vmatpush2.bf16.msra.mxu0 0
        %2018 = vmatprep.subr.bf16.mxu0 0
        %2019 = vmatpush2.bf16.msra.mxu0 0
        %2020 = vmatprep.subr.bf16.mxu0 0
        %2021 = vmatpush2.bf16.msra.mxu0 0
        %2022 = vmatprep.subr.bf16.mxu0 0
        %2023 = vmatpush2.bf16.msra.mxu0 0
        %2024 = vmatprep.mubr.bf16.mxu0 0
        %2025 = vmatmul.mubr.bf16.gmra.mxu0 %v1987
        %v2026 = vpop.f32.mrf.mxu0
        %v2027 = vadd.f32 0.0, %v2026
        %v2028 = vpop.f32.mrf.mxu0
        %v2029 = vpop.f32.mrf.mxu0
        %v2030 = vpop.f32.mrf.mxu0
        %2031 = vdwg.mxu0
        %2033 = vrot.lane.b32.xlu0 %v2027, 16
        %v2034 = vpop.permute.xlu0 %2033
        %2036 = vst.msk [vmem:[#allocation4] sm:$0xff] %vm1303, %v2034
        %v2037 = vld [vmem:[#allocation2] sm:$0xff]
        %v2038 = vpack.c.bf16 %v2037, %v2037
        %v2039 = vld [vmem:[#allocation3] sm:$0xff]
        %v2040 = vpack.c.bf16 %v2039, %v2039
        %2042 = vrot.lane.b32.xlu0 %v2038, 104
        %v2043 = vpop.permute.xlu0 %2042
        %2045 = vrot.lane.b32.xlu0 %v2040, 104
        %v2046 = vpop.permute.xlu0 %2045
        %v2048 = vsel %vm952, %v2043, 0
        %v2051 = vsel %vm952, %v2046, 0
        %2053 = vmatprep.subr.bf16.mxu0 0
        %2054 = vmatpush1.bf16.xpose.msra.mxu0 0
        %2055 = vmatprep.subr.bf16.mxu0 0
        %2056 = vmatpush1.bf16.xpose.msra.mxu0 0
        %2057 = vmatprep.subr.bf16.mxu0 0
        %2058 = vmatpush1.bf16.xpose.msra.mxu0 0
        %2059 = vmatprep.subr.bf16.mxu0 0
        %2060 = vmatpush1.bf16.xpose.msra.mxu0 0
        %2061 = vmatprep.subr.bf16.mxu0 0
        %2062 = vmatpush1.bf16.xpose.msra.mxu0 0
        %2063 = vmatprep.subr.bf16.mxu0 0
        %2064 = vmatpush1.bf16.xpose.msra.mxu0 0
        %2065 = vmatprep.subr.bf16.mxu0 0
        %2066 = vmatpush1.bf16.xpose.msra.mxu0 0
        %2067 = vmatprep.subr.bf16.mxu0 0
        %2068 = vmatpush1.bf16.xpose.msra.mxu0 %v2051
        %2069 = vmatprep.subr.bf16.mxu0 0
        %2070 = vmatpush2.bf16.xpose.msra.mxu0 0
        %2071 = vmatprep.subr.bf16.mxu0 0
        %2072 = vmatpush2.bf16.xpose.msra.mxu0 0
        %2073 = vmatprep.subr.bf16.mxu0 0
        %2074 = vmatpush2.bf16.xpose.msra.mxu0 0
        %2075 = vmatprep.subr.bf16.mxu0 0
        %2076 = vmatpush2.bf16.xpose.msra.mxu0 0
        %2077 = vmatprep.subr.bf16.mxu0 0
        %2078 = vmatpush2.bf16.xpose.msra.mxu0 0
        %2079 = vmatprep.subr.bf16.mxu0 0
        %2080 = vmatpush2.bf16.xpose.msra.mxu0 0
        %2081 = vmatprep.subr.bf16.mxu0 0
        %2082 = vmatpush2.bf16.xpose.msra.mxu0 0
        %2083 = vmatprep.subr.bf16.mxu0 0
        %2084 = vmatpush2.bf16.xpose.msra.mxu0 0
        %2085 = vmatprep.mubr.bf16.mxu0 0
        %2086 = vmatmul.mubr.bf16.gmra.mxu0 %v2048
        %v2087 = vpop.f32.mrf.mxu0
        %v2088 = vadd.f32 0.0, %v2087
        %v2089 = vpop.f32.mrf.mxu0
        %v2090 = vpop.f32.mrf.mxu0
        %v2091 = vpop.f32.mrf.mxu0
        %2092 = vdwg.mxu0
        %v2093 = vmul.f32 %v2088, 0.35355338
        %v2094 = vsel %vm1727, %v2093, -1e+09
        %v2095 = vsel %vm952, %v2094, -inf
        %2096 = vmax.xlane.f32.xlu0 %v2095
        %v2097 = vpop.xlane.xlu0 %2096
        %v2098 = vsub.f32 %v2094, %v2097
        %v2099 = vmul.f32 %v2098, 1.442695
        %v2100 = vpow.pop %v2099
        %v2101 = vsel %vm952, %v2100, 0.0
        %2102 = vadd.xlane.f32.xlu0 %v2101
        %v2103 = vpop.xlane.xlu0 %2102
        %v2104 = vrcp.pop %v2103
        %v2105 = vmul.f32 %v2100, %v2104
        %v2106 = vpack.c.bf16 %v2105, %v2105
        %2107 = vrot.lane.b32.xlu0 %v2040, 72
        %v2108 = vpop.permute.xlu0 %2107
        %v2110 = vsel %vm952, %v2106, 0
        %v2113 = vsel %vm1018, %v2108, 0
        %2115 = vmatprep.subr.bf16.mxu0 0
        %2116 = vmatpush1.bf16.msra.mxu0 0
        %2117 = vmatprep.subr.bf16.mxu0 0
        %2118 = vmatpush1.bf16.msra.mxu0 0
        %2119 = vmatprep.subr.bf16.mxu0 0
        %2120 = vmatpush1.bf16.msra.mxu0 0
        %2121 = vmatprep.subr.bf16.mxu0 0
        %2122 = vmatpush1.bf16.msra.mxu0 0
        %2123 = vmatprep.subr.bf16.mxu0 0
        %2124 = vmatpush1.bf16.msra.mxu0 0
        %2125 = vmatprep.subr.bf16.mxu0 0
        %2126 = vmatpush1.bf16.msra.mxu0 0
        %2127 = vmatprep.subr.bf16.mxu0 0
        %2128 = vmatpush1.bf16.msra.mxu0 0
        %2129 = vmatprep.subr.bf16.mxu0 0
        %2130 = vmatpush1.bf16.msra.mxu0 %v2113
        %2131 = vmatprep.subr.bf16.mxu0 0
        %2132 = vmatpush2.bf16.msra.mxu0 0
        %2133 = vmatprep.subr.bf16.mxu0 0
        %2134 = vmatpush2.bf16.msra.mxu0 0
        %2135 = vmatprep.subr.bf16.mxu0 0
        %2136 = vmatpush2.bf16.msra.mxu0 0
        %2137 = vmatprep.subr.bf16.mxu0 0
        %2138 = vmatpush2.bf16.msra.mxu0 0
        %2139 = vmatprep.subr.bf16.mxu0 0
        %2140 = vmatpush2.bf16.msra.mxu0 0
        %2141 = vmatprep.subr.bf16.mxu0 0
        %2142 = vmatpush2.bf16.msra.mxu0 0
        %2143 = vmatprep.subr.bf16.mxu0 0
        %2144 = vmatpush2.bf16.msra.mxu0 0
        %2145 = vmatprep.subr.bf16.mxu0 0
        %2146 = vmatpush2.bf16.msra.mxu0 0
        %2147 = vmatprep.mubr.bf16.mxu0 0
        %2148 = vmatmul.mubr.bf16.gmra.mxu0 %v2110
        %v2149 = vpop.f32.mrf.mxu0
        %v2150 = vadd.f32 0.0, %v2149
        %v2151 = vpop.f32.mrf.mxu0
        %v2152 = vpop.f32.mrf.mxu0
        %v2153 = vpop.f32.mrf.mxu0
        %2154 = vdwg.mxu0
        %2156 = vrot.lane.b32.xlu0 %v2150, 24
        %v2157 = vpop.permute.xlu0 %2156
        %2159 = vst.msk [vmem:[#allocation4] sm:$0xff] %vm1424, %v2157
        %v2160 = vld [vmem:[#allocation4] sm:$0xff]
        %v2161 = vpack.c.bf16 %v2160, %v2160
        %v2162 = vld [vmem:[%s12] sm:$0xf]
        %v2163 = vld [vmem:[%s12 + $0x4] sm:$0xf]
        %v2164 = vld [vmem:[%s12 + $0x8] sm:$0xf]
        %v2165 = vld [vmem:[%s12 + $0xc] sm:$0xf]
        %v2170 = vunpack.c.l.b16 %v2162
        %v2171 = vunpack.c.l.b16 %v2163
        %v2172 = vunpack.c.l.b16 %v2164
        %v2173 = vunpack.c.l.b16 %v2165
        %v2174 = vpack.c.b16 %v2171, %v2170
        %v2175 = vpack.c.b16 %v2173, %v2172
        %v2179 = vsel %vm840, %v2161, 0
        %2181 = vmatprep.subr.bf16.mxu0 0
        %2182 = vmatpush1.bf16.msra.mxu0 0
        %2183 = vmatprep.subr.bf16.mxu0 0
        %2184 = vmatpush1.bf16.msra.mxu0 0
        %2185 = vmatprep.subr.bf16.mxu0 0
        %2186 = vmatpush1.bf16.msra.mxu0 0
        %2187 = vmatprep.subr.bf16.mxu0 0
        %2188 = vmatpush1.bf16.msra.mxu0 0
        %2189 = vmatprep.subr.bf16.mxu0 0
        %2190 = vmatpush1.bf16.msra.mxu0 0
        %2191 = vmatprep.subr.bf16.mxu0 0
        %2192 = vmatpush1.bf16.msra.mxu0 0
        %2193 = vmatprep.subr.bf16.mxu0 0
        %2194 = vmatpush1.bf16.msra.mxu0 %v2175
        %2195 = vmatprep.subr.bf16.mxu0 0
        %2196 = vmatpush1.bf16.msra.mxu0 %v2174
        %2197 = vmatprep.subr.bf16.mxu0 0
        %2198 = vmatpush2.bf16.msra.mxu0 0
        %2199 = vmatprep.subr.bf16.mxu0 0
        %2200 = vmatpush2.bf16.msra.mxu0 0
        %2201 = vmatprep.subr.bf16.mxu0 0
        %2202 = vmatpush2.bf16.msra.mxu0 0
        %2203 = vmatprep.subr.bf16.mxu0 0
        %2204 = vmatpush2.bf16.msra.mxu0 0
        %2205 = vmatprep.subr.bf16.mxu0 0
        %2206 = vmatpush2.bf16.msra.mxu0 0
        %2207 = vmatprep.subr.bf16.mxu0 0
        %2208 = vmatpush2.bf16.msra.mxu0 0
        %2209 = vmatprep.subr.bf16.mxu0 0
        %2210 = vmatpush2.bf16.msra.mxu0 0
        %2211 = vmatprep.subr.bf16.mxu0 0
        %2212 = vmatpush2.bf16.msra.mxu0 0
        %2213 = vmatprep.mubr.bf16.mxu0 0
        %2214 = vmatmul.mubr.bf16.gmra.mxu0 %v2179
        %v2215 = vpop.f32.mrf.mxu0
        %v2216 = vadd.f32 0.0, %v2215
        %v2217 = vpop.f32.mrf.mxu0
        %v2218 = vpop.f32.mrf.mxu0
        %v2219 = vpop.f32.mrf.mxu0
        %2220 = vdwg.mxu0
        %v2221 = vadd.f32 %v1495, %v2216
        %v2222 = vld [vmem:[%s13] sm:$0x1]
        %v2224 = vlaneseq
        %v2225 = vshrl.u32 %v2224, 7
        %v2226 = vsub.s32 0, %v2225
        %v2227 = vrot.slane %v2222, %v2226
        %v2229 = vadd.f32 %v2221, %v2227
        %v2230 = vld [vmem:[%s22] sm:$0x1]
        %v2231 = vld [vmem:[%s23] sm:$0x1]
        %v2232 = vsel %vm840, %v2229, 0.0
        %2233 = vadd.xlane.f32.xlu0 %v2232
        %v2234 = vpop.xlane.xlu0 %2233
        %v2235 = vmul.f32 %v2234, %v844
        %v2236 = vsub.f32 %v2229, %v2235
        %v2237 = vmul.f32 %v2236, %v2236
        %v2238 = vsel %vm840, %v2237, 0.0
        %2239 = vadd.xlane.f32.xlu0 %v2238
        %v2240 = vpop.xlane.xlu0 %2239
        %v2241 = vmul.f32 %v2240, 0.032258064
        %v2242 = vrsqrt.pop %v2241
        %v2243 = vmul.f32 %v2241, %v2242
        %vm2244 = vcmp.eq.f32.partialorder %v2241, inf
        %v2245 = vsel %vm2244, %v2241, %v2243
        %vm2246 = vcmp.eq.f32.partialorder %v2241, 0.0
        %v2247 = vand.u32 %v2241, 2147483648
        %v2248 = vsel %vm2246, %v2247, %v2245
        %v2250 = vlaneseq
        %v2251 = vshrl.u32 %v2250, 7
        %v2252 = vsub.s32 0, %v2251
        %v2253 = vrot.slane %v2230, %v2252
        %v2255 = vmul.f32 %v2253, %v2236
        %v2256 = vadd.f32 %v2248, 1e-06
        %v2257 = vrcp.pop %v2256
        %v2258 = vmul.f32 %v2255, %v2257
        %v2260 = vlaneseq
        %v2261 = vshrl.u32 %v2260, 7
        %v2262 = vsub.s32 0, %v2261
        %v2263 = vrot.slane %v2231, %v2262
        %v2265 = vadd.f32 %v2258, %v2263
        %v2266 = vpack.c.bf16 %v2265, %v2265
        %v2267 = vld [vmem:[%s14] sm:$0xf]
        %v2268 = vld [vmem:[%s14 + $0x4] sm:$0xf]
        %v2269 = vld [vmem:[%s14 + $0x8] sm:$0xf]
        %v2270 = vld [vmem:[%s14 + $0xc] sm:$0xf]
        %v2271 = vld [vmem:[%s15] sm:$0x1]
        %v2273 = vlaneseq
        %v2274 = vshrl.u32 %v2273, 7
        %v2275 = vsub.s32 0, %v2274
        %v2276 = vrot.slane %v2271, %v2275
        %v2282 = vunpack.c.l.b16 %v2267
        %v2283 = vunpack.c.l.b16 %v2268
        %v2284 = vunpack.c.l.b16 %v2269
        %v2285 = vunpack.c.l.b16 %v2270
        %v2286 = vpack.c.b16 %v2283, %v2282
        %v2287 = vpack.c.b16 %v2285, %v2284
        %v2291 = vsel %vm840, %v2266, 0
        %2293 = vmatprep.subr.bf16.mxu0 0
        %2294 = vmatpush1.bf16.msra.mxu0 0
        %2295 = vmatprep.subr.bf16.mxu0 0
        %2296 = vmatpush1.bf16.msra.mxu0 0
        %2297 = vmatprep.subr.bf16.mxu0 0
        %2298 = vmatpush1.bf16.msra.mxu0 0
        %2299 = vmatprep.subr.bf16.mxu0 0
        %2300 = vmatpush1.bf16.msra.mxu0 0
        %2301 = vmatprep.subr.bf16.mxu0 0
        %2302 = vmatpush1.bf16.msra.mxu0 0
        %2303 = vmatprep.subr.bf16.mxu0 0
        %2304 = vmatpush1.bf16.msra.mxu0 0
        %2305 = vmatprep.subr.bf16.mxu0 0
        %2306 = vmatpush1.bf16.msra.mxu0 %v2287
        %2307 = vmatprep.subr.bf16.mxu0 0
        %2308 = vmatpush1.bf16.msra.mxu0 %v2286
        %2309 = vmatprep.subr.bf16.mxu0 0
        %2310 = vmatpush2.bf16.msra.mxu0 0
        %2311 = vmatprep.subr.bf16.mxu0 0
        %2312 = vmatpush2.bf16.msra.mxu0 0
        %2313 = vmatprep.subr.bf16.mxu0 0
        %2314 = vmatpush2.bf16.msra.mxu0 0
        %2315 = vmatprep.subr.bf16.mxu0 0
        %2316 = vmatpush2.bf16.msra.mxu0 0
        %2317 = vmatprep.subr.bf16.mxu0 0
        %2318 = vmatpush2.bf16.msra.mxu0 0
        %2319 = vmatprep.subr.bf16.mxu0 0
        %2320 = vmatpush2.bf16.msra.mxu0 0
        %2321 = vmatprep.subr.bf16.mxu0 0
        %2322 = vmatpush2.bf16.msra.mxu0 0
        %2323 = vmatprep.subr.bf16.mxu0 0
        %2324 = vmatpush2.bf16.msra.mxu0 0
        %2325 = vmatprep.mubr.bf16.mxu0 0
        %2326 = vmatmul.mubr.bf16.gmra.mxu0 %v2291
        %v2327 = vpop.f32.mrf.mxu0
        %v2328 = vadd.f32 %v2276, %v2327
        %v2329 = vpop.f32.mrf.mxu0
        %v2330 = vpop.f32.mrf.mxu0
        %v2331 = vpop.f32.mrf.mxu0
        %2332 = vdwg.mxu0
        %v2333 = vmax.f32 %v2328, 0.0
        %v2334 = vpack.c.bf16 %v2333, %v2333
        %v2335 = vld [vmem:[%s16] sm:$0xf]
        %v2336 = vld [vmem:[%s16 + $0x4] sm:$0xf]
        %v2337 = vld [vmem:[%s16 + $0x8] sm:$0xf]
        %v2338 = vld [vmem:[%s16 + $0xc] sm:$0xf]
        %v2339 = vld [vmem:[%s16 + $0x10] sm:$0xf]
        %v2340 = vld [vmem:[%s16 + $0x14] sm:$0xf]
        %v2341 = vld [vmem:[%s16 + $0x18] sm:$0xf]
        %v2342 = vld [vmem:[%s16 + $0x1c] sm:$0xf]
        %v2351 = vunpack.c.l.b16 %v2335
        %v2352 = vunpack.c.l.b16 %v2336
        %v2353 = vunpack.c.l.b16 %v2337
        %v2354 = vunpack.c.l.b16 %v2338
        %v2355 = vunpack.c.l.b16 %v2339
        %v2356 = vunpack.c.l.b16 %v2340
        %v2357 = vunpack.c.l.b16 %v2341
        %v2358 = vunpack.c.l.b16 %v2342
        %v2359 = vpack.c.b16 %v2352, %v2351
        %v2360 = vpack.c.b16 %v2354, %v2353
        %v2361 = vpack.c.b16 %v2356, %v2355
        %v2362 = vpack.c.b16 %v2358, %v2357
        %v2368 = vsel %vm1667, %v2334, 0
        %2370 = vmatprep.subr.bf16.mxu0 0
        %2371 = vmatpush1.bf16.msra.mxu0 0
        %2372 = vmatprep.subr.bf16.mxu0 0
        %2373 = vmatpush1.bf16.msra.mxu0 0
        %2374 = vmatprep.subr.bf16.mxu0 0
        %2375 = vmatpush1.bf16.msra.mxu0 0
        %2376 = vmatprep.subr.bf16.mxu0 0
        %2377 = vmatpush1.bf16.msra.mxu0 0
        %2378 = vmatprep.subr.bf16.mxu0 0
        %2379 = vmatpush1.bf16.msra.mxu0 %v2362
        %2380 = vmatprep.subr.bf16.mxu0 0
        %2381 = vmatpush1.bf16.msra.mxu0 %v2361
        %2382 = vmatprep.subr.bf16.mxu0 0
        %2383 = vmatpush1.bf16.msra.mxu0 %v2360
        %2384 = vmatprep.subr.bf16.mxu0 0
        %2385 = vmatpush1.bf16.msra.mxu0 %v2359
        %2386 = vmatprep.subr.bf16.mxu0 0
        %2387 = vmatpush2.bf16.msra.mxu0 0
        %2388 = vmatprep.subr.bf16.mxu0 0
        %2389 = vmatpush2.bf16.msra.mxu0 0
        %2390 = vmatprep.subr.bf16.mxu0 0
        %2391 = vmatpush2.bf16.msra.mxu0 0
        %2392 = vmatprep.subr.bf16.mxu0 0
        %2393 = vmatpush2.bf16.msra.mxu0 0
        %2394 = vmatprep.subr.bf16.mxu0 0
        %2395 = vmatpush2.bf16.msra.mxu0 0
        %2396 = vmatprep.subr.bf16.mxu0 0
        %2397 = vmatpush2.bf16.msra.mxu0 0
        %2398 = vmatprep.subr.bf16.mxu0 0
        %2399 = vmatpush2.bf16.msra.mxu0 0
        %2400 = vmatprep.subr.bf16.mxu0 0
        %2401 = vmatpush2.bf16.msra.mxu0 0
        %2402 = vmatprep.mubr.bf16.mxu0 0
        %2403 = vmatmul.mubr.bf16.gmra.mxu0 %v2368
        %v2404 = vpop.f32.mrf.mxu0
        %v2405 = vadd.f32 0.0, %v2404
        %v2406 = vpop.f32.mrf.mxu0
        %v2407 = vpop.f32.mrf.mxu0
        %v2408 = vpop.f32.mrf.mxu0
        %2409 = vdwg.mxu0
        %v2410 = vadd.f32 %v2229, %v2405
        %v2411 = vld [vmem:[%s17] sm:$0x1]
        %v2413 = vlaneseq
        %v2414 = vshrl.u32 %v2413, 7
        %v2415 = vsub.s32 0, %v2414
        %v2416 = vrot.slane %v2411, %v2415
        %v2418 = vadd.f32 %v2410, %v2416
        %v2419 = vld [vmem:[%s24] sm:$0x1]
        %v2420 = vld [vmem:[%s25] sm:$0x1]
        %v2421 = vsel %vm840, %v2418, 0.0
        %2422 = vadd.xlane.f32.xlu0 %v2421
        %v2423 = vpop.xlane.xlu0 %2422
        %v2424 = vmul.f32 %v2423, %v844
        %v2425 = vsub.f32 %v2418, %v2424
        %v2426 = vmul.f32 %v2425, %v2425
        %v2427 = vsel %vm840, %v2426, 0.0
        %2428 = vadd.xlane.f32.xlu0 %v2427
        %v2429 = vpop.xlane.xlu0 %2428
        %v2430 = vmul.f32 %v2429, 0.032258064
        %v2431 = vrsqrt.pop %v2430
        %v2432 = vmul.f32 %v2430, %v2431
        %vm2433 = vcmp.eq.f32.partialorder %v2430, inf
        %v2434 = vsel %vm2433, %v2430, %v2432
        %vm2435 = vcmp.eq.f32.partialorder %v2430, 0.0
        %v2436 = vand.u32 %v2430, 2147483648
        %v2437 = vsel %vm2435, %v2436, %v2434
        %v2439 = vlaneseq
        %v2440 = vshrl.u32 %v2439, 7
        %v2441 = vsub.s32 0, %v2440
        %v2442 = vrot.slane %v2419, %v2441
        %v2444 = vmul.f32 %v2442, %v2425
        %v2445 = vadd.f32 %v2437, 1e-06
        %v2446 = vrcp.pop %v2445
        %v2447 = vmul.f32 %v2444, %v2446
        %v2449 = vlaneseq
        %v2450 = vshrl.u32 %v2449, 7
        %v2451 = vsub.s32 0, %v2450
        %v2452 = vrot.slane %v2420, %v2451
        %v2454 = vadd.f32 %v2447, %v2452
        %2455 = vst.msk [vmem:[%s819] sm:$0xff] %vm840, %v2454
        %s2456 = sand.u32 %s614, 1
        %s2457 = scalar_lea.sflag [#allocation6], %s2456
        %s2458 = sand.u32 %s614, 1
        %s2459 = smul.addr %s2458, 8
        %s2460 = scalar_lea.vmem [#allocation5], %s2459
        // Predicated region
        $region125: #{decoder_forward_pallas.3} parent=123 // pred_check
          %p2461 = pneg %p624
        $region126: #{decoder_forward_pallas.3} parent=123 // pred_check_branch
          %2463 = sbr.rel (%p2461) target = $region128
        $region127: #{decoder_forward_pallas.3} parent=123 // pred_region
          %s2465 = ssub.s32 128, 128
          %2466 = vsyncadd %s2457, %s2465
          %s2467 = smul.addr %s40, 128
          %s2468 = scalar_lea.hbm %s26, %s2467
          %s2470 = sshll.u32 %s2460, 4
          %s2471 = int_to_ptr.vmem [resolvable:$true] %s2470
          %2473 = dma.vmem_to_hbm [thread:$0]  %s2471, 128, %s2468, %s2457
        $region128: #{decoder_forward_pallas.3} parent=123 // pred_fallthru
          _
      $region124: #{decoder_forward_pallas.3} parent=5 // pred_fallthru
        _
      %p2474 = scmp.le.s32.totalorder 2, %s35
      // Predicated region
      $region129: #{decoder_forward_pallas.3} parent=5 // pred_check
        %p2475 = pneg %p2474
      $region130: #{decoder_forward_pallas.3} parent=5 // pred_check_branch
        %2477 = sbr.rel (%p2475) target = $region132
      $region131: #{decoder_forward_pallas.3} parent=5 // pred_region
        %s2478 = ssub.s32 %s35, 2
        // Predicated region
        $region133: #{decoder_forward_pallas.3} parent=131 // pred_check
          %p2479 = pneg %p630
        $region134: #{decoder_forward_pallas.3} parent=131 // pred_check_branch
          %2481 = sbr.rel (%p2479) target = $region136
        $region135: #{decoder_forward_pallas.3} parent=131 // pred_region
          %s2482 = sand.u32 %s615, 1
          %s2483 = scalar_lea.sflag [#allocation6], %s2482
          %s2484 = sand.u32 %s615, 1
          %s2485 = smul.addr %s2484, 8
          %s2486 = scalar_lea.vmem [#allocation5], %s2485
          %2487 = dma.done %s2483, 128
        $region136: #{decoder_forward_pallas.3} parent=131 // pred_fallthru
          _
      $region132: #{decoder_forward_pallas.3} parent=5 // pred_fallthru
        _
    $region6: #{decoder_forward_pallas.3} parent=1 // loop_footer
      %s39 = sadd.s32 1, %s35
    $region7: #{decoder_forward_pallas.3} parent=1 // loop_footer_branch
      %34 = sbr.rel target = $region3
    $region8: #{decoder_forward_pallas.3} parent=1 // loop_exit
      _
    %2488 = vsyncpa [#allocation6], 1
    %s2489 = scalar_lea.sflag [#allocation6], 1
    %2490 = vsyncpa %s2489, 1

// kernel: decoder_forward_pallas.2
$region0: #{decoder_forward_pallas.2}
  #allocation0 [shape = 'u32[]', space=smem, size = 0x4, offset = 0x4, fixed_abs, tag = 'smem constant byte address 0x4 - core index']
  #allocation1 [shape = 'u32[144,128]{1,0:T(1,128)}', space=vmem, size = 0x12000, scoped, tag = 'internal scratch']
  #allocation2 [shape = 'f32[8,96]{1,0:T(8,128)}', space=vmem, size = 0x1000, scoped, tag = 'scratch operand']
  #allocation3 [shape = 'f32[8,64]{1,0:T(8,128)}', space=vmem, size = 0x1000, scoped, tag = 'scratch operand']
  #allocation4 [shape = 'f32[8,32]{1,0:T(8,128)}', space=vmem, size = 0x1000, scoped, tag = 'scratch operand']
  %s0 = inlined_call_operand.vmem [shape: f32[2,8,32], index: 0, kind: input, shape index: {}]
  %s1 = inlined_call_operand.vmem [shape: f32[2,8,32], index: 1, kind: input, shape index: {}]
  %s2 = inlined_call_operand.vmem [shape: s32[2,8,8], index: 2, kind: input, shape index: {}]
  %s3 = inlined_call_operand.hbm [shape: s32[2,1,8], index: 3, kind: input, shape index: {}]
  %s4 = inlined_call_operand.vmem [shape: bf16[32,96], index: 4, kind: input, shape index: {}]
  %s5 = inlined_call_operand.hbm [shape: f32[1,96], index: 5, kind: input, shape index: {}]
  %s6 = inlined_call_operand.vmem [shape: bf16[32,32], index: 6, kind: input, shape index: {}]
  %s7 = inlined_call_operand.hbm [shape: f32[1,32], index: 7, kind: input, shape index: {}]
  %s8 = inlined_call_operand.vmem [shape: bf16[32,32], index: 8, kind: input, shape index: {}]
  %s9 = inlined_call_operand.hbm [shape: f32[1,32], index: 9, kind: input, shape index: {}]
  %s10 = inlined_call_operand.vmem [shape: bf16[32,64], index: 10, kind: input, shape index: {}]
  %s11 = inlined_call_operand.hbm [shape: f32[1,64], index: 11, kind: input, shape index: {}]
  %s12 = inlined_call_operand.hbm [shape: bf16[32,32], index: 12, kind: input, shape index: {}]
  %s13 = inlined_call_operand.hbm [shape: f32[1,32], index: 13, kind: input, shape index: {}]
  %s14 = inlined_call_operand.hbm [shape: bf16[32,64], index: 14, kind: input, shape index: {}]
  %s15 = inlined_call_operand.hbm [shape: f32[1,64], index: 15, kind: input, shape index: {}]
  %s16 = inlined_call_operand.vmem [shape: bf16[64,32], index: 16, kind: input, shape index: {}]
  %s17 = inlined_call_operand.hbm [shape: f32[1,32], index: 17, kind: input, shape index: {}]
  %s18 = inlined_call_operand.hbm [shape: f32[1,32], index: 18, kind: input, shape index: {}]
  %s19 = inlined_call_operand.hbm [shape: f32[1,32], index: 19, kind: input, shape index: {}]
  %s20 = inlined_call_operand.hbm [shape: f32[1,32], index: 20, kind: input, shape index: {}]
  %s21 = inlined_call_operand.hbm [shape: f32[1,32], index: 21, kind: input, shape index: {}]
  %s22 = inlined_call_operand.hbm [shape: f32[1,32], index: 22, kind: input, shape index: {}]
  %s23 = inlined_call_operand.hbm [shape: f32[1,32], index: 23, kind: input, shape index: {}]
  %s24 = inlined_call_operand.vmem [shape: f32[1,32], index: 24, kind: input, shape index: {}]
  %s25 = inlined_call_operand.vmem [shape: f32[1,32], index: 25, kind: input, shape index: {}]
  %s26 = inlined_call_operand.vmem [shape: f32[2,8,32], index: 26, kind: output, shape index: {}]
  %s27 = sld [smem:[#allocation0]]
  $region201: #{decoder_forward_pallas.2} parent=0
    _
  %s29 = ssub.s32 1, %s27
  %s30 = scalar_select 0, %s29, %s27
  $region1: #{decoder_forward_pallas.2} parent=0
    #allocation5 [shape = 'u8[1024]{0}', space=vmem, size = 0x400, scoped, tag = 'input window, operand 3']
    #allocation6 [shape = 's32[2]{0}', space=sflag, size = 0x8, scoped, tag = 'scoped memory for decoder_forward_pallas.2']
    #allocation7 [shape = 'u8[512]{0}', space=vmem, size = 0x400, scoped, tag = 'input window, operand 5, single buffered']
    #allocation8 [shape = 's32[1]{0}', space=sflag, size = 0x4, scoped, tag = 'scoped memory for decoder_forward_pallas.2']
    #allocation9 [shape = 'u8[512]{0}', space=vmem, size = 0x400, scoped, tag = 'input window, operand 7, single buffered']
    #allocation10 [shape = 'u8[512]{0}', space=vmem, size = 0x400, scoped, tag = 'input window, operand 9, single buffered']
    #allocation11 [shape = 's32[1]{0}', space=sflag, size = 0x4, scoped, tag = 'scoped memory for decoder_forward_pallas.2']
    #allocation12 [shape = 'u8[512]{0}', space=vmem, size = 0x400, scoped, tag = 'input window, operand 11, single buffered']
    #allocation13 [shape = 'u8[8192]{0}', space=vmem, size = 0x2000, scoped, tag = 'input window, operand 12, single buffered']
    #allocation14 [shape = 's32[1]{0}', space=sflag, size = 0x4, scoped, tag = 'scoped memory for decoder_forward_pallas.2']
    #allocation15 [shape = 'u8[512]{0}', space=vmem, size = 0x400, scoped, tag = 'input window, operand 13, single buffered']
    #allocation16 [shape = 'u8[8192]{0}', space=vmem, size = 0x2000, scoped, tag = 'input window, operand 14, single buffered']
    #allocation17 [shape = 's32[1]{0}', space=sflag, size = 0x4, scoped, tag = 'scoped memory for decoder_forward_pallas.2']
    #allocation18 [shape = 'u8[512]{0}', space=vmem, size = 0x400, scoped, tag = 'input window, operand 15, single buffered']
    #allocation19 [shape = 'u8[512]{0}', space=vmem, size = 0x400, scoped, tag = 'input window, operand 17, single buffered']
    #allocation20 [shape = 's32[1]{0}', space=sflag, size = 0x4, scoped, tag = 'scoped memory for decoder_forward_pallas.2']
    #allocation21 [shape = 'u8[512]{0}', space=vmem, size = 0x400, scoped, tag = 'input window, operand 18, single buffered']
    #allocation22 [shape = 'u8[512]{0}', space=vmem, size = 0x400, scoped, tag = 'input window, operand 19, single buffered']
    #allocation23 [shape = 's32[1]{0}', space=sflag, size = 0x4, scoped, tag = 'scoped memory for decoder_forward_pallas.2']
    #allocation24 [shape = 'u8[512]{0}', space=vmem, size = 0x400, scoped, tag = 'input window, operand 20, single buffered']
    #allocation25 [shape = 'u8[512]{0}', space=vmem, size = 0x400, scoped, tag = 'input window, operand 21, single buffered']
    #allocation26 [shape = 's32[1]{0}', space=sflag, size = 0x4, scoped, tag = 'scoped memory for decoder_forward_pallas.2']
    #allocation27 [shape = 'u8[512]{0}', space=vmem, size = 0x400, scoped, tag = 'input window, operand 22, single buffered']
    #allocation28 [shape = 'u8[512]{0}', space=vmem, size = 0x400, scoped, tag = 'input window, operand 23, single buffered']
    #allocation29 [shape = 's32[1]{0}', space=sflag, size = 0x4, scoped, tag = 'scoped memory for decoder_forward_pallas.2']
    %31 = vsyncpa [#allocation6], 0
    %s32 = scalar_lea.sflag [#allocation6], 1
    %33 = vsyncpa %s32, 0
    %34 = vsyncpa [#allocation8], 0
    %35 = vsyncpa [#allocation11], 0
    %36 = vsyncpa [#allocation14], 0
    %37 = vsyncpa [#allocation17], 0
    %38 = vsyncpa [#allocation20], 0
    %39 = vsyncpa [#allocation23], 0
    %40 = vsyncpa [#allocation26], 0
    %41 = vsyncpa [#allocation29], 0
    loop: start=0, step=1, limit=4
    $region2: #{decoder_forward_pallas.2} parent=1 // loop_pre_header
      _
    $region3: #{decoder_forward_pallas.2} parent=1 // loop_header
      %s43 = sphi 0, %s47
      %p44 = scmp.ge.s32.totalorder %s43, 4
      %s53 = sphi 0, %s55
      %s56 = sphi 0, %s53
      %s57 = sphi 0, %s56
      %s73 = sphi 0, %s57
      %s79 = sphi 0, %s81
      %s82 = sphi 0, %s79
      %s83 = sphi 0, %s82
      %s99 = sphi 0, %s83
      %s105 = sphi 0, %s107
      %s108 = sphi 0, %s105
      %s109 = sphi 0, %s108
      %s125 = sphi 0, %s109
      %s131 = sphi 0, %s133
      %s134 = sphi 0, %s131
      %s135 = sphi 0, %s134
      %s151 = sphi 0, %s135
      %s155 = sphi 0, %s155
      %s157 = sphi 0, %s155
      %s158 = sphi 0, %s157
      %s172 = sphi 0, %s158
      %s176 = sphi 0, %s176
      %s178 = sphi 0, %s176
      %s179 = sphi 0, %s178
      %s193 = sphi 0, %s179
      %s197 = sphi 0, %s197
      %s199 = sphi 0, %s197
      %s200 = sphi 0, %s199
      %s214 = sphi 0, %s200
      %s218 = sphi 0, %s218
      %s220 = sphi 0, %s218
      %s221 = sphi 0, %s220
      %s235 = sphi 0, %s221
      %s239 = sphi 0, %s239
      %s241 = sphi 0, %s239
      %s242 = sphi 0, %s241
      %s256 = sphi 0, %s242
      %s260 = sphi 0, %s260
      %s262 = sphi 0, %s260
      %s263 = sphi 0, %s262
      %s277 = sphi 0, %s263
      %s281 = sphi 0, %s281
      %s283 = sphi 0, %s281
      %s284 = sphi 0, %s283
      %s298 = sphi 0, %s284
      %s302 = sphi 0, %s302
      %s304 = sphi 0, %s302
      %s305 = sphi 0, %s304
      %s319 = sphi 0, %s305
      %s323 = sphi 0, %s323
      %s325 = sphi 0, %s323
      %s326 = sphi 0, %s325
      %s340 = sphi 0, %s326
      %s344 = sphi 0, %s344
      %s346 = sphi 0, %s344
      %s347 = sphi 0, %s346
      %s361 = sphi 0, %s347
      %s365 = sphi 0, %s365
      %s367 = sphi 0, %s365
      %s368 = sphi 0, %s367
      %s382 = sphi 0, %s368
      %s386 = sphi 0, %s386
      %s388 = sphi 0, %s386
      %s389 = sphi 0, %s388
      %s403 = sphi 0, %s389
      %s407 = sphi 0, %s407
      %s409 = sphi 0, %s407
      %s410 = sphi 0, %s409
      %s424 = sphi 0, %s410
      %s428 = sphi 0, %s428
      %s430 = sphi 0, %s428
      %s431 = sphi 0, %s430
      %s445 = sphi 0, %s431
      %s449 = sphi 0, %s449
      %s451 = sphi 0, %s449
      %s452 = sphi 0, %s451
      %s466 = sphi 0, %s452
      %s470 = sphi 0, %s470
      %s472 = sphi 0, %s470
      %s473 = sphi 0, %s472
      %s487 = sphi 0, %s473
      %s491 = sphi 0, %s491
      %s493 = sphi 0, %s491
      %s494 = sphi 0, %s493
      %s508 = sphi 0, %s494
      %s512 = sphi 0, %s512
      %s514 = sphi 0, %s512
      %s515 = sphi 0, %s514
      %s529 = sphi 0, %s515
      %s533 = sphi 0, %s533
      %s535 = sphi 0, %s533
      %s536 = sphi 0, %s535
      %s550 = sphi 0, %s536
      %s554 = sphi 0, %s554
      %s556 = sphi 0, %s554
      %s557 = sphi 0, %s556
      %s571 = sphi 0, %s557
      %s575 = sphi 0, %s575
      %s577 = sphi 0, %s575
      %s578 = sphi 0, %s577
      %s592 = sphi 0, %s578
      %s596 = sphi 0, %s596
      %s598 = sphi 0, %s596
      %s599 = sphi 0, %s598
      %s613 = sphi 0, %s599
      %s619 = sphi 0, %s621
      %s622 = sphi 0, %s619
      %s623 = sphi 0, %s622
      %s639 = sphi 0, %s623
    $region4: #{decoder_forward_pallas.2} parent=1 // loop_header_branch
      %46 = sbr.rel (%p44) target = $region8
    $region5: #{decoder_forward_pallas.2} parent=1 // loop_body
      %s48 = ssub.s32 %s43, 1
      %s49 = ssub.s32 %s43, 2
      %s50 = sadd.s32 %s43, 1
      %s51 = ssub.s32 %s43, %s50
      %p52 = scmp.eq.s32.totalorder %s51, 0
      %s54 = sadd.s32 %s53, 1
      %s55 = scalar_select %p52, %s53, %s54
      %p58 = pneg %p52
      %p59 = scmp.eq.s32.totalorder %s43, 1
      %p60 = por %p58, %p59
      %p61 = scmp.ne.s32.totalorder %s53, %s56
      %p62 = scmp.eq.s32.totalorder %s43, 0
      %p63 = por %p61, %p62
      %p64 = scmp.ne.s32.totalorder %s53, %s56
      %p65 = scmp.eq.s32.totalorder %s48, 1
      %p66 = por %p64, %p65
      %p67 = scmp.ne.s32.totalorder %s56, %s57
      %p68 = scmp.eq.s32.totalorder %s48, 0
      %p69 = por %p67, %p68
      %p70 = scmp.ne.s32.totalorder %s56, %s57
      %p71 = scmp.eq.s32.totalorder %s49, 1
      %p72 = por %p70, %p71
      %p74 = scmp.ne.s32.totalorder %s57, %s73
      %p75 = scmp.eq.s32.totalorder %s49, 0
      %p76 = por %p74, %p75
      %s77 = ssub.s32 %s43, %s50
      %p78 = scmp.eq.s32.totalorder %s77, 0
      %s80 = sadd.s32 %s79, 1
      %s81 = scalar_select %p78, %s79, %s80
      %p84 = pneg %p78
      %p85 = scmp.eq.s32.totalorder %s43, 1
      %p86 = por %p84, %p85
      %p87 = scmp.ne.s32.totalorder %s79, %s82
      %p88 = scmp.eq.s32.totalorder %s43, 0
      %p89 = por %p87, %p88
      %p90 = scmp.ne.s32.totalorder %s79, %s82
      %p91 = scmp.eq.s32.totalorder %s48, 1
      %p92 = por %p90, %p91
      %p93 = scmp.ne.s32.totalorder %s82, %s83
      %p94 = scmp.eq.s32.totalorder %s48, 0
      %p95 = por %p93, %p94
      %p96 = scmp.ne.s32.totalorder %s82, %s83
      %p97 = scmp.eq.s32.totalorder %s49, 1
      %p98 = por %p96, %p97
      %p100 = scmp.ne.s32.totalorder %s83, %s99
      %p101 = scmp.eq.s32.totalorder %s49, 0
      %p102 = por %p100, %p101
      %s103 = ssub.s32 %s43, %s50
      %p104 = scmp.eq.s32.totalorder %s103, 0
      %s106 = sadd.s32 %s105, 1
      %s107 = scalar_select %p104, %s105, %s106
      %p110 = pneg %p104
      %p111 = scmp.eq.s32.totalorder %s43, 1
      %p112 = por %p110, %p111
      %p113 = scmp.ne.s32.totalorder %s105, %s108
      %p114 = scmp.eq.s32.totalorder %s43, 0
      %p115 = por %p113, %p114
      %p116 = scmp.ne.s32.totalorder %s105, %s108
      %p117 = scmp.eq.s32.totalorder %s48, 1
      %p118 = por %p116, %p117
      %p119 = scmp.ne.s32.totalorder %s108, %s109
      %p120 = scmp.eq.s32.totalorder %s48, 0
      %p121 = por %p119, %p120
      %p122 = scmp.ne.s32.totalorder %s108, %s109
      %p123 = scmp.eq.s32.totalorder %s49, 1
      %p124 = por %p122, %p123
      %p126 = scmp.ne.s32.totalorder %s109, %s125
      %p127 = scmp.eq.s32.totalorder %s49, 0
      %p128 = por %p126, %p127
      %s129 = ssub.s32 %s43, %s50
      %p130 = scmp.eq.s32.totalorder %s129, 0
      %s132 = sadd.s32 %s131, 1
      %s133 = scalar_select %p130, %s131, %s132
      %p136 = pneg %p130
      %p137 = scmp.eq.s32.totalorder %s43, 1
      %p138 = por %p136, %p137
      %p139 = scmp.ne.s32.totalorder %s131, %s134
      %p140 = scmp.eq.s32.totalorder %s43, 0
      %p141 = por %p139, %p140
      %p142 = scmp.ne.s32.totalorder %s131, %s134
      %p143 = scmp.eq.s32.totalorder %s48, 1
      %p144 = por %p142, %p143
      %p145 = scmp.ne.s32.totalorder %s134, %s135
      %p146 = scmp.eq.s32.totalorder %s48, 0
      %p147 = por %p145, %p146
      %p148 = scmp.ne.s32.totalorder %s134, %s135
      %p149 = scmp.eq.s32.totalorder %s49, 1
      %p150 = por %p148, %p149
      %p152 = scmp.ne.s32.totalorder %s135, %s151
      %p153 = scmp.eq.s32.totalorder %s49, 0
      %p154 = por %p152, %p153
      %s156 = sadd.s32 %s155, 1
      %p159 = scmp.eq.s32.totalorder %s43, 1
      %p160 = scmp.ne.s32.totalorder %s155, %s157
      %p161 = scmp.eq.s32.totalorder %s43, 0
      %p162 = por %p160, %p161
      %p163 = scmp.ne.s32.totalorder %s155, %s157
      %p164 = scmp.eq.s32.totalorder %s48, 1
      %p165 = por %p163, %p164
      %p166 = scmp.ne.s32.totalorder %s157, %s158
      %p167 = scmp.eq.s32.totalorder %s48, 0
      %p168 = por %p166, %p167
      %p169 = scmp.ne.s32.totalorder %s157, %s158
      %p170 = scmp.eq.s32.totalorder %s49, 1
      %p171 = por %p169, %p170
      %p173 = scmp.ne.s32.totalorder %s158, %s172
      %p174 = scmp.eq.s32.totalorder %s49, 0
      %p175 = por %p173, %p174
      %s177 = sadd.s32 %s176, 1
      %p180 = scmp.eq.s32.totalorder %s43, 1
      %p181 = scmp.ne.s32.totalorder %s176, %s178
      %p182 = scmp.eq.s32.totalorder %s43, 0
      %p183 = por %p181, %p182
      %p184 = scmp.ne.s32.totalorder %s176, %s178
      %p185 = scmp.eq.s32.totalorder %s48, 1
      %p186 = por %p184, %p185
      %p187 = scmp.ne.s32.totalorder %s178, %s179
      %p188 = scmp.eq.s32.totalorder %s48, 0
      %p189 = por %p187, %p188
      %p190 = scmp.ne.s32.totalorder %s178, %s179
      %p191 = scmp.eq.s32.totalorder %s49, 1
      %p192 = por %p190, %p191
      %p194 = scmp.ne.s32.totalorder %s179, %s193
      %p195 = scmp.eq.s32.totalorder %s49, 0
      %p196 = por %p194, %p195
      %s198 = sadd.s32 %s197, 1
      %p201 = scmp.eq.s32.totalorder %s43, 1
      %p202 = scmp.ne.s32.totalorder %s197, %s199
      %p203 = scmp.eq.s32.totalorder %s43, 0
      %p204 = por %p202, %p203
      %p205 = scmp.ne.s32.totalorder %s197, %s199
      %p206 = scmp.eq.s32.totalorder %s48, 1
      %p207 = por %p205, %p206
      %p208 = scmp.ne.s32.totalorder %s199, %s200
      %p209 = scmp.eq.s32.totalorder %s48, 0
      %p210 = por %p208, %p209
      %p211 = scmp.ne.s32.totalorder %s199, %s200
      %p212 = scmp.eq.s32.totalorder %s49, 1
      %p213 = por %p211, %p212
      %p215 = scmp.ne.s32.totalorder %s200, %s214
      %p216 = scmp.eq.s32.totalorder %s49, 0
      %p217 = por %p215, %p216
      %s219 = sadd.s32 %s218, 1
      %p222 = scmp.eq.s32.totalorder %s43, 1
      %p223 = scmp.ne.s32.totalorder %s218, %s220
      %p224 = scmp.eq.s32.totalorder %s43, 0
      %p225 = por %p223, %p224
      %p226 = scmp.ne.s32.totalorder %s218, %s220
      %p227 = scmp.eq.s32.totalorder %s48, 1
      %p228 = por %p226, %p227
      %p229 = scmp.ne.s32.totalorder %s220, %s221
      %p230 = scmp.eq.s32.totalorder %s48, 0
      %p231 = por %p229, %p230
      %p232 = scmp.ne.s32.totalorder %s220, %s221
      %p233 = scmp.eq.s32.totalorder %s49, 1
      %p234 = por %p232, %p233
      %p236 = scmp.ne.s32.totalorder %s221, %s235
      %p237 = scmp.eq.s32.totalorder %s49, 0
      %p238 = por %p236, %p237
      %s240 = sadd.s32 %s239, 1
      %p243 = scmp.eq.s32.totalorder %s43, 1
      %p244 = scmp.ne.s32.totalorder %s239, %s241
      %p245 = scmp.eq.s32.totalorder %s43, 0
      %p246 = por %p244, %p245
      %p247 = scmp.ne.s32.totalorder %s239, %s241
      %p248 = scmp.eq.s32.totalorder %s48, 1
      %p249 = por %p247, %p248
      %p250 = scmp.ne.s32.totalorder %s241, %s242
      %p251 = scmp.eq.s32.totalorder %s48, 0
      %p252 = por %p250, %p251
      %p253 = scmp.ne.s32.totalorder %s241, %s242
      %p254 = scmp.eq.s32.totalorder %s49, 1
      %p255 = por %p253, %p254
      %p257 = scmp.ne.s32.totalorder %s242, %s256
      %p258 = scmp.eq.s32.totalorder %s49, 0
      %p259 = por %p257, %p258
      %s261 = sadd.s32 %s260, 1
      %p264 = scmp.eq.s32.totalorder %s43, 1
      %p265 = scmp.ne.s32.totalorder %s260, %s262
      %p266 = scmp.eq.s32.totalorder %s43, 0
      %p267 = por %p265, %p266
      %p268 = scmp.ne.s32.totalorder %s260, %s262
      %p269 = scmp.eq.s32.totalorder %s48, 1
      %p270 = por %p268, %p269
      %p271 = scmp.ne.s32.totalorder %s262, %s263
      %p272 = scmp.eq.s32.totalorder %s48, 0
      %p273 = por %p271, %p272
      %p274 = scmp.ne.s32.totalorder %s262, %s263
      %p275 = scmp.eq.s32.totalorder %s49, 1
      %p276 = por %p274, %p275
      %p278 = scmp.ne.s32.totalorder %s263, %s277
      %p279 = scmp.eq.s32.totalorder %s49, 0
      %p280 = por %p278, %p279
      %s282 = sadd.s32 %s281, 1
      %p285 = scmp.eq.s32.totalorder %s43, 1
      %p286 = scmp.ne.s32.totalorder %s281, %s283
      %p287 = scmp.eq.s32.totalorder %s43, 0
      %p288 = por %p286, %p287
      %p289 = scmp.ne.s32.totalorder %s281, %s283
      %p290 = scmp.eq.s32.totalorder %s48, 1
      %p291 = por %p289, %p290
      %p292 = scmp.ne.s32.totalorder %s283, %s284
      %p293 = scmp.eq.s32.totalorder %s48, 0
      %p294 = por %p292, %p293
      %p295 = scmp.ne.s32.totalorder %s283, %s284
      %p296 = scmp.eq.s32.totalorder %s49, 1
      %p297 = por %p295, %p296
      %p299 = scmp.ne.s32.totalorder %s284, %s298
      %p300 = scmp.eq.s32.totalorder %s49, 0
      %p301 = por %p299, %p300
      %s303 = sadd.s32 %s302, 1
      %p306 = scmp.eq.s32.totalorder %s43, 1
      %p307 = scmp.ne.s32.totalorder %s302, %s304
      %p308 = scmp.eq.s32.totalorder %s43, 0
      %p309 = por %p307, %p308
      %p310 = scmp.ne.s32.totalorder %s302, %s304
      %p311 = scmp.eq.s32.totalorder %s48, 1
      %p312 = por %p310, %p311
      %p313 = scmp.ne.s32.totalorder %s304, %s305
      %p314 = scmp.eq.s32.totalorder %s48, 0
      %p315 = por %p313, %p314
      %p316 = scmp.ne.s32.totalorder %s304, %s305
      %p317 = scmp.eq.s32.totalorder %s49, 1
      %p318 = por %p316, %p317
      %p320 = scmp.ne.s32.totalorder %s305, %s319
      %p321 = scmp.eq.s32.totalorder %s49, 0
      %p322 = por %p320, %p321
      %s324 = sadd.s32 %s323, 1
      %p327 = scmp.eq.s32.totalorder %s43, 1
      %p328 = scmp.ne.s32.totalorder %s323, %s325
      %p329 = scmp.eq.s32.totalorder %s43, 0
      %p330 = por %p328, %p329
      %p331 = scmp.ne.s32.totalorder %s323, %s325
      %p332 = scmp.eq.s32.totalorder %s48, 1
      %p333 = por %p331, %p332
      %p334 = scmp.ne.s32.totalorder %s325, %s326
      %p335 = scmp.eq.s32.totalorder %s48, 0
      %p336 = por %p334, %p335
      %p337 = scmp.ne.s32.totalorder %s325, %s326
      %p338 = scmp.eq.s32.totalorder %s49, 1
      %p339 = por %p337, %p338
      %p341 = scmp.ne.s32.totalorder %s326, %s340
      %p342 = scmp.eq.s32.totalorder %s49, 0
      %p343 = por %p341, %p342
      %s345 = sadd.s32 %s344, 1
      %p348 = scmp.eq.s32.totalorder %s43, 1
      %p349 = scmp.ne.s32.totalorder %s344, %s346
      %p350 = scmp.eq.s32.totalorder %s43, 0
      %p351 = por %p349, %p350
      %p352 = scmp.ne.s32.totalorder %s344, %s346
      %p353 = scmp.eq.s32.totalorder %s48, 1
      %p354 = por %p352, %p353
      %p355 = scmp.ne.s32.totalorder %s346, %s347
      %p356 = scmp.eq.s32.totalorder %s48, 0
      %p357 = por %p355, %p356
      %p358 = scmp.ne.s32.totalorder %s346, %s347
      %p359 = scmp.eq.s32.totalorder %s49, 1
      %p360 = por %p358, %p359
      %p362 = scmp.ne.s32.totalorder %s347, %s361
      %p363 = scmp.eq.s32.totalorder %s49, 0
      %p364 = por %p362, %p363
      %s366 = sadd.s32 %s365, 1
      %p369 = scmp.eq.s32.totalorder %s43, 1
      %p370 = scmp.ne.s32.totalorder %s365, %s367
      %p371 = scmp.eq.s32.totalorder %s43, 0
      %p372 = por %p370, %p371
      %p373 = scmp.ne.s32.totalorder %s365, %s367
      %p374 = scmp.eq.s32.totalorder %s48, 1
      %p375 = por %p373, %p374
      %p376 = scmp.ne.s32.totalorder %s367, %s368
      %p377 = scmp.eq.s32.totalorder %s48, 0
      %p378 = por %p376, %p377
      %p379 = scmp.ne.s32.totalorder %s367, %s368
      %p380 = scmp.eq.s32.totalorder %s49, 1
      %p381 = por %p379, %p380
      %p383 = scmp.ne.s32.totalorder %s368, %s382
      %p384 = scmp.eq.s32.totalorder %s49, 0
      %p385 = por %p383, %p384
      %s387 = sadd.s32 %s386, 1
      %p390 = scmp.eq.s32.totalorder %s43, 1
      %p391 = scmp.ne.s32.totalorder %s386, %s388
      %p392 = scmp.eq.s32.totalorder %s43, 0
      %p393 = por %p391, %p392
      %p394 = scmp.ne.s32.totalorder %s386, %s388
      %p395 = scmp.eq.s32.totalorder %s48, 1
      %p396 = por %p394, %p395
      %p397 = scmp.ne.s32.totalorder %s388, %s389
      %p398 = scmp.eq.s32.totalorder %s48, 0
      %p399 = por %p397, %p398
      %p400 = scmp.ne.s32.totalorder %s388, %s389
      %p401 = scmp.eq.s32.totalorder %s49, 1
      %p402 = por %p400, %p401
      %p404 = scmp.ne.s32.totalorder %s389, %s403
      %p405 = scmp.eq.s32.totalorder %s49, 0
      %p406 = por %p404, %p405
      %s408 = sadd.s32 %s407, 1
      %p411 = scmp.eq.s32.totalorder %s43, 1
      %p412 = scmp.ne.s32.totalorder %s407, %s409
      %p413 = scmp.eq.s32.totalorder %s43, 0
      %p414 = por %p412, %p413
      %p415 = scmp.ne.s32.totalorder %s407, %s409
      %p416 = scmp.eq.s32.totalorder %s48, 1
      %p417 = por %p415, %p416
      %p418 = scmp.ne.s32.totalorder %s409, %s410
      %p419 = scmp.eq.s32.totalorder %s48, 0
      %p420 = por %p418, %p419
      %p421 = scmp.ne.s32.totalorder %s409, %s410
      %p422 = scmp.eq.s32.totalorder %s49, 1
      %p423 = por %p421, %p422
      %p425 = scmp.ne.s32.totalorder %s410, %s424
      %p426 = scmp.eq.s32.totalorder %s49, 0
      %p427 = por %p425, %p426
      %s429 = sadd.s32 %s428, 1
      %p432 = scmp.eq.s32.totalorder %s43, 1
      %p433 = scmp.ne.s32.totalorder %s428, %s430
      %p434 = scmp.eq.s32.totalorder %s43, 0
      %p435 = por %p433, %p434
      %p436 = scmp.ne.s32.totalorder %s428, %s430
      %p437 = scmp.eq.s32.totalorder %s48, 1
      %p438 = por %p436, %p437
      %p439 = scmp.ne.s32.totalorder %s430, %s431
      %p440 = scmp.eq.s32.totalorder %s48, 0
      %p441 = por %p439, %p440
      %p442 = scmp.ne.s32.totalorder %s430, %s431
      %p443 = scmp.eq.s32.totalorder %s49, 1
      %p444 = por %p442, %p443
      %p446 = scmp.ne.s32.totalorder %s431, %s445
      %p447 = scmp.eq.s32.totalorder %s49, 0
      %p448 = por %p446, %p447
      %s450 = sadd.s32 %s449, 1
      %p453 = scmp.eq.s32.totalorder %s43, 1
      %p454 = scmp.ne.s32.totalorder %s449, %s451
      %p455 = scmp.eq.s32.totalorder %s43, 0
      %p456 = por %p454, %p455
      %p457 = scmp.ne.s32.totalorder %s449, %s451
      %p458 = scmp.eq.s32.totalorder %s48, 1
      %p459 = por %p457, %p458
      %p460 = scmp.ne.s32.totalorder %s451, %s452
      %p461 = scmp.eq.s32.totalorder %s48, 0
      %p462 = por %p460, %p461
      %p463 = scmp.ne.s32.totalorder %s451, %s452
      %p464 = scmp.eq.s32.totalorder %s49, 1
      %p465 = por %p463, %p464
      %p467 = scmp.ne.s32.totalorder %s452, %s466
      %p468 = scmp.eq.s32.totalorder %s49, 0
      %p469 = por %p467, %p468
      %s471 = sadd.s32 %s470, 1
      %p474 = scmp.eq.s32.totalorder %s43, 1
      %p475 = scmp.ne.s32.totalorder %s470, %s472
      %p476 = scmp.eq.s32.totalorder %s43, 0
      %p477 = por %p475, %p476
      %p478 = scmp.ne.s32.totalorder %s470, %s472
      %p479 = scmp.eq.s32.totalorder %s48, 1
      %p480 = por %p478, %p479
      %p481 = scmp.ne.s32.totalorder %s472, %s473
      %p482 = scmp.eq.s32.totalorder %s48, 0
      %p483 = por %p481, %p482
      %p484 = scmp.ne.s32.totalorder %s472, %s473
      %p485 = scmp.eq.s32.totalorder %s49, 1
      %p486 = por %p484, %p485
      %p488 = scmp.ne.s32.totalorder %s473, %s487
      %p489 = scmp.eq.s32.totalorder %s49, 0
      %p490 = por %p488, %p489
      %s492 = sadd.s32 %s491, 1
      %p495 = scmp.eq.s32.totalorder %s43, 1
      %p496 = scmp.ne.s32.totalorder %s491, %s493
      %p497 = scmp.eq.s32.totalorder %s43, 0
      %p498 = por %p496, %p497
      %p499 = scmp.ne.s32.totalorder %s491, %s493
      %p500 = scmp.eq.s32.totalorder %s48, 1
      %p501 = por %p499, %p500
      %p502 = scmp.ne.s32.totalorder %s493, %s494
      %p503 = scmp.eq.s32.totalorder %s48, 0
      %p504 = por %p502, %p503
      %p505 = scmp.ne.s32.totalorder %s493, %s494
      %p506 = scmp.eq.s32.totalorder %s49, 1
      %p507 = por %p505, %p506
      %p509 = scmp.ne.s32.totalorder %s494, %s508
      %p510 = scmp.eq.s32.totalorder %s49, 0
      %p511 = por %p509, %p510
      %s513 = sadd.s32 %s512, 1
      %p516 = scmp.eq.s32.totalorder %s43, 1
      %p517 = scmp.ne.s32.totalorder %s512, %s514
      %p518 = scmp.eq.s32.totalorder %s43, 0
      %p519 = por %p517, %p518
      %p520 = scmp.ne.s32.totalorder %s512, %s514
      %p521 = scmp.eq.s32.totalorder %s48, 1
      %p522 = por %p520, %p521
      %p523 = scmp.ne.s32.totalorder %s514, %s515
      %p524 = scmp.eq.s32.totalorder %s48, 0
      %p525 = por %p523, %p524
      %p526 = scmp.ne.s32.totalorder %s514, %s515
      %p527 = scmp.eq.s32.totalorder %s49, 1
      %p528 = por %p526, %p527
      %p530 = scmp.ne.s32.totalorder %s515, %s529
      %p531 = scmp.eq.s32.totalorder %s49, 0
      %p532 = por %p530, %p531
      %s534 = sadd.s32 %s533, 1
      %p537 = scmp.eq.s32.totalorder %s43, 1
      %p538 = scmp.ne.s32.totalorder %s533, %s535
      %p539 = scmp.eq.s32.totalorder %s43, 0
      %p540 = por %p538, %p539
      %p541 = scmp.ne.s32.totalorder %s533, %s535
      %p542 = scmp.eq.s32.totalorder %s48, 1
      %p543 = por %p541, %p542
      %p544 = scmp.ne.s32.totalorder %s535, %s536
      %p545 = scmp.eq.s32.totalorder %s48, 0
      %p546 = por %p544, %p545
      %p547 = scmp.ne.s32.totalorder %s535, %s536
      %p548 = scmp.eq.s32.totalorder %s49, 1
      %p549 = por %p547, %p548
      %p551 = scmp.ne.s32.totalorder %s536, %s550
      %p552 = scmp.eq.s32.totalorder %s49, 0
      %p553 = por %p551, %p552
      %s555 = sadd.s32 %s554, 1
      %p558 = scmp.eq.s32.totalorder %s43, 1
      %p559 = scmp.ne.s32.totalorder %s554, %s556
      %p560 = scmp.eq.s32.totalorder %s43, 0
      %p561 = por %p559, %p560
      %p562 = scmp.ne.s32.totalorder %s554, %s556
      %p563 = scmp.eq.s32.totalorder %s48, 1
      %p564 = por %p562, %p563
      %p565 = scmp.ne.s32.totalorder %s556, %s557
      %p566 = scmp.eq.s32.totalorder %s48, 0
      %p567 = por %p565, %p566
      %p568 = scmp.ne.s32.totalorder %s556, %s557
      %p569 = scmp.eq.s32.totalorder %s49, 1
      %p570 = por %p568, %p569
      %p572 = scmp.ne.s32.totalorder %s557, %s571
      %p573 = scmp.eq.s32.totalorder %s49, 0
      %p574 = por %p572, %p573
      %s576 = sadd.s32 %s575, 1
      %p579 = scmp.eq.s32.totalorder %s43, 1
      %p580 = scmp.ne.s32.totalorder %s575, %s577
      %p581 = scmp.eq.s32.totalorder %s43, 0
      %p582 = por %p580, %p581
      %p583 = scmp.ne.s32.totalorder %s575, %s577
      %p584 = scmp.eq.s32.totalorder %s48, 1
      %p585 = por %p583, %p584
      %p586 = scmp.ne.s32.totalorder %s577, %s578
      %p587 = scmp.eq.s32.totalorder %s48, 0
      %p588 = por %p586, %p587
      %p589 = scmp.ne.s32.totalorder %s577, %s578
      %p590 = scmp.eq.s32.totalorder %s49, 1
      %p591 = por %p589, %p590
      %p593 = scmp.ne.s32.totalorder %s578, %s592
      %p594 = scmp.eq.s32.totalorder %s49, 0
      %p595 = por %p593, %p594
      %s597 = sadd.s32 %s596, 1
      %p600 = scmp.eq.s32.totalorder %s43, 1
      %p601 = scmp.ne.s32.totalorder %s596, %s598
      %p602 = scmp.eq.s32.totalorder %s43, 0
      %p603 = por %p601, %p602
      %p604 = scmp.ne.s32.totalorder %s596, %s598
      %p605 = scmp.eq.s32.totalorder %s48, 1
      %p606 = por %p604, %p605
      %p607 = scmp.ne.s32.totalorder %s598, %s599
      %p608 = scmp.eq.s32.totalorder %s48, 0
      %p609 = por %p607, %p608
      %p610 = scmp.ne.s32.totalorder %s598, %s599
      %p611 = scmp.eq.s32.totalorder %s49, 1
      %p612 = por %p610, %p611
      %p614 = scmp.ne.s32.totalorder %s599, %s613
      %p615 = scmp.eq.s32.totalorder %s49, 0
      %p616 = por %p614, %p615
      %s617 = ssub.s32 %s43, %s50
      %p618 = scmp.eq.s32.totalorder %s617, 0
      %s620 = sadd.s32 %s619, 1
      %s621 = scalar_select %p618, %s619, %s620
      %p624 = pneg %p618
      %p625 = scmp.eq.s32.totalorder %s43, 1
      %p626 = por %p624, %p625
      %p627 = scmp.ne.s32.totalorder %s619, %s622
      %p628 = scmp.eq.s32.totalorder %s43, 0
      %p629 = por %p627, %p628
      %p630 = scmp.ne.s32.totalorder %s619, %s622
      %p631 = scmp.eq.s32.totalorder %s48, 1
      %p632 = por %p630, %p631
      %p633 = scmp.ne.s32.totalorder %s622, %s623
      %p634 = scmp.eq.s32.totalorder %s48, 0
      %p635 = por %p633, %p634
      %p636 = scmp.ne.s32.totalorder %s622, %s623
      %p637 = scmp.eq.s32.totalorder %s49, 1
      %p638 = por %p636, %p637
      %p640 = scmp.ne.s32.totalorder %s623, %s639
      %p641 = scmp.eq.s32.totalorder %s49, 0
      %p642 = por %p640, %p641
      %p643 = scmp.le.s32.totalorder 1, %s43
      %p644 = scmp.lt.s32.totalorder %s43, 3
      %p645 = pnand %p643, %p644
      %p646 = pneg %p645
      // Predicated region
      $region9: #{decoder_forward_pallas.2} parent=5 // pred_check
        _
      $region10: #{decoder_forward_pallas.2} parent=5 // pred_check_branch
        %648 = sbr.rel (%p645) target = $region12
      $region11: #{decoder_forward_pallas.2} parent=5 // pred_region
        %s649 = ssub.s32 %s43, 1
        // Predicated region
        $region13: #{decoder_forward_pallas.2} parent=11 // pred_check
          %p650 = pneg %p168
        $region14: #{decoder_forward_pallas.2} parent=11 // pred_check_branch
          %652 = sbr.rel (%p650) target = $region16
        $region15: #{decoder_forward_pallas.2} parent=11 // pred_region
          _
        $region16: #{decoder_forward_pallas.2} parent=11 // pred_fallthru
          _
        // Predicated region
        $region17: #{decoder_forward_pallas.2} parent=11 // pred_check
          %p653 = pneg %p189
        $region18: #{decoder_forward_pallas.2} parent=11 // pred_check_branch
          %655 = sbr.rel (%p653) target = $region20
        $region19: #{decoder_forward_pallas.2} parent=11 // pred_region
          %s657 = ssub.s32 16, 16
          %658 = vsyncadd [#allocation8], %s657
          %s660 = sshll.u32 [#allocation7], 4
          %s661 = int_to_ptr.vmem [resolvable:$true] %s660
          %663 = dma.hbm_to_vmem [thread:$0]  %s5, 16, %s661, [#allocation8]
        $region20: #{decoder_forward_pallas.2} parent=11 // pred_fallthru
          _
        // Predicated region
        $region21: #{decoder_forward_pallas.2} parent=11 // pred_check
          %p664 = pneg %p210
        $region22: #{decoder_forward_pallas.2} parent=11 // pred_check_branch
          %666 = sbr.rel (%p664) target = $region24
        $region23: #{decoder_forward_pallas.2} parent=11 // pred_region
          _
        $region24: #{decoder_forward_pallas.2} parent=11 // pred_fallthru
          _
        // Predicated region
        $region25: #{decoder_forward_pallas.2} parent=11 // pred_check
          %p667 = pneg %p231
        $region26: #{decoder_forward_pallas.2} parent=11 // pred_check_branch
          %669 = sbr.rel (%p667) target = $region28
        $region27: #{decoder_forward_pallas.2} parent=11 // pred_region
          %s671 = ssub.s32 16, 16
          %672 = vsyncadd [#allocation8], %s671
          %s674 = sshll.u32 [#allocation9], 4
          %s675 = int_to_ptr.vmem [resolvable:$true] %s674
          %677 = dma.hbm_to_vmem [thread:$0]  %s7, 16, %s675, [#allocation8]
        $region28: #{decoder_forward_pallas.2} parent=11 // pred_fallthru
          _
        // Predicated region
        $region29: #{decoder_forward_pallas.2} parent=11 // pred_check
          %p678 = pneg %p252
        $region30: #{decoder_forward_pallas.2} parent=11 // pred_check_branch
          %680 = sbr.rel (%p678) target = $region32
        $region31: #{decoder_forward_pallas.2} parent=11 // pred_region
          _
        $region32: #{decoder_forward_pallas.2} parent=11 // pred_fallthru
          _
        // Predicated region
        $region33: #{decoder_forward_pallas.2} parent=11 // pred_check
          %p681 = pneg %p273
        $region34: #{decoder_forward_pallas.2} parent=11 // pred_check_branch
          %683 = sbr.rel (%p681) target = $region36
        $region35: #{decoder_forward_pallas.2} parent=11 // pred_region
          %s685 = ssub.s32 16, 16
          %686 = vsyncadd [#allocation11], %s685
          %s688 = sshll.u32 [#allocation10], 4
          %s689 = int_to_ptr.vmem [resolvable:$true] %s688
          %691 = dma.hbm_to_vmem [thread:$0]  %s9, 16, %s689, [#allocation11]
        $region36: #{decoder_forward_pallas.2} parent=11 // pred_fallthru
          _
        // Predicated region
        $region37: #{decoder_forward_pallas.2} parent=11 // pred_check
          %p692 = pneg %p294
        $region38: #{decoder_forward_pallas.2} parent=11 // pred_check_branch
          %694 = sbr.rel (%p692) target = $region40
        $region39: #{decoder_forward_pallas.2} parent=11 // pred_region
          _
        $region40: #{decoder_forward_pallas.2} parent=11 // pred_fallthru
          _
        // Predicated region
        $region41: #{decoder_forward_pallas.2} parent=11 // pred_check
          %p695 = pneg %p315
        $region42: #{decoder_forward_pallas.2} parent=11 // pred_check_branch
          %697 = sbr.rel (%p695) target = $region44
        $region43: #{decoder_forward_pallas.2} parent=11 // pred_region
          %s699 = ssub.s32 16, 16
          %700 = vsyncadd [#allocation11], %s699
          %s702 = sshll.u32 [#allocation12], 4
          %s703 = int_to_ptr.vmem [resolvable:$true] %s702
          %705 = dma.hbm_to_vmem [thread:$0]  %s11, 16, %s703, [#allocation11]
        $region44: #{decoder_forward_pallas.2} parent=11 // pred_fallthru
          _
        // Predicated region
        $region45: #{decoder_forward_pallas.2} parent=11 // pred_check
          %p706 = pneg %p336
        $region46: #{decoder_forward_pallas.2} parent=11 // pred_check_branch
          %708 = sbr.rel (%p706) target = $region48
        $region47: #{decoder_forward_pallas.2} parent=11 // pred_region
          %s710 = ssub.s32 256, 256
          %711 = vsyncadd [#allocation14], %s710
          %s712 = sshll.u32 [#allocation13], 4
          %s713 = int_to_ptr.vmem [resolvable:$true] %s712
          %718 = dma.hbm_to_vmem [thread:$0]  %s12, 256, %s713, [#allocation14], 64, 64, 4
        $region48: #{decoder_forward_pallas.2} parent=11 // pred_fallthru
          _
        // Predicated region
        $region49: #{decoder_forward_pallas.2} parent=11 // pred_check
          %p719 = pneg %p357
        $region50: #{decoder_forward_pallas.2} parent=11 // pred_check_branch
          %721 = sbr.rel (%p719) target = $region52
        $region51: #{decoder_forward_pallas.2} parent=11 // pred_region
          %s723 = ssub.s32 16, 16
          %724 = vsyncadd [#allocation14], %s723
          %s726 = sshll.u32 [#allocation15], 4
          %s727 = int_to_ptr.vmem [resolvable:$true] %s726
          %729 = dma.hbm_to_vmem [thread:$0]  %s13, 16, %s727, [#allocation14]
        $region52: #{decoder_forward_pallas.2} parent=11 // pred_fallthru
          _
        // Predicated region
        $region53: #{decoder_forward_pallas.2} parent=11 // pred_check
          %p730 = pneg %p378
        $region54: #{decoder_forward_pallas.2} parent=11 // pred_check_branch
          %732 = sbr.rel (%p730) target = $region56
        $region55: #{decoder_forward_pallas.2} parent=11 // pred_region
          %s734 = ssub.s32 256, 256
          %735 = vsyncadd [#allocation17], %s734
          %s736 = sshll.u32 [#allocation16], 4
          %s737 = int_to_ptr.vmem [resolvable:$true] %s736
          %742 = dma.hbm_to_vmem [thread:$0]  %s14, 256, %s737, [#allocation17], 64, 64, 4
        $region56: #{decoder_forward_pallas.2} parent=11 // pred_fallthru
          _
        // Predicated region
        $region57: #{decoder_forward_pallas.2} parent=11 // pred_check
          %p743 = pneg %p399
        $region58: #{decoder_forward_pallas.2} parent=11 // pred_check_branch
          %745 = sbr.rel (%p743) target = $region60
        $region59: #{decoder_forward_pallas.2} parent=11 // pred_region
          %s747 = ssub.s32 16, 16
          %748 = vsyncadd [#allocation17], %s747
          %s750 = sshll.u32 [#allocation18], 4
          %s751 = int_to_ptr.vmem [resolvable:$true] %s750
          %753 = dma.hbm_to_vmem [thread:$0]  %s15, 16, %s751, [#allocation17]
        $region60: #{decoder_forward_pallas.2} parent=11 // pred_fallthru
          _
        // Predicated region
        $region61: #{decoder_forward_pallas.2} parent=11 // pred_check
          %p754 = pneg %p420
        $region62: #{decoder_forward_pallas.2} parent=11 // pred_check_branch
          %756 = sbr.rel (%p754) target = $region64
        $region63: #{decoder_forward_pallas.2} parent=11 // pred_region
          _
        $region64: #{decoder_forward_pallas.2} parent=11 // pred_fallthru
          _
        // Predicated region
        $region65: #{decoder_forward_pallas.2} parent=11 // pred_check
          %p757 = pneg %p441
        $region66: #{decoder_forward_pallas.2} parent=11 // pred_check_branch
          %759 = sbr.rel (%p757) target = $region68
        $region67: #{decoder_forward_pallas.2} parent=11 // pred_region
          %s761 = ssub.s32 16, 16
          %762 = vsyncadd [#allocation20], %s761
          %s764 = sshll.u32 [#allocation19], 4
          %s765 = int_to_ptr.vmem [resolvable:$true] %s764
          %767 = dma.hbm_to_vmem [thread:$0]  %s17, 16, %s765, [#allocation20]
        $region68: #{decoder_forward_pallas.2} parent=11 // pred_fallthru
          _
        // Predicated region
        $region69: #{decoder_forward_pallas.2} parent=11 // pred_check
          %p768 = pneg %p462
        $region70: #{decoder_forward_pallas.2} parent=11 // pred_check_branch
          %770 = sbr.rel (%p768) target = $region72
        $region71: #{decoder_forward_pallas.2} parent=11 // pred_region
          %s772 = ssub.s32 16, 16
          %773 = vsyncadd [#allocation20], %s772
          %s775 = sshll.u32 [#allocation21], 4
          %s776 = int_to_ptr.vmem [resolvable:$true] %s775
          %778 = dma.hbm_to_vmem [thread:$0]  %s18, 16, %s776, [#allocation20]
        $region72: #{decoder_forward_pallas.2} parent=11 // pred_fallthru
          _
        // Predicated region
        $region73: #{decoder_forward_pallas.2} parent=11 // pred_check
          %p779 = pneg %p483
        $region74: #{decoder_forward_pallas.2} parent=11 // pred_check_branch
          %781 = sbr.rel (%p779) target = $region76
        $region75: #{decoder_forward_pallas.2} parent=11 // pred_region
          %s783 = ssub.s32 16, 16
          %784 = vsyncadd [#allocation23], %s783
          %s786 = sshll.u32 [#allocation22], 4
          %s787 = int_to_ptr.vmem [resolvable:$true] %s786
          %789 = dma.hbm_to_vmem [thread:$0]  %s19, 16, %s787, [#allocation23]
        $region76: #{decoder_forward_pallas.2} parent=11 // pred_fallthru
          _
        // Predicated region
        $region77: #{decoder_forward_pallas.2} parent=11 // pred_check
          %p790 = pneg %p504
        $region78: #{decoder_forward_pallas.2} parent=11 // pred_check_branch
          %792 = sbr.rel (%p790) target = $region80
        $region79: #{decoder_forward_pallas.2} parent=11 // pred_region
          %s794 = ssub.s32 16, 16
          %795 = vsyncadd [#allocation23], %s794
          %s797 = sshll.u32 [#allocation24], 4
          %s798 = int_to_ptr.vmem [resolvable:$true] %s797
          %800 = dma.hbm_to_vmem [thread:$0]  %s20, 16, %s798, [#allocation23]
        $region80: #{decoder_forward_pallas.2} parent=11 // pred_fallthru
          _
        // Predicated region
        $region81: #{decoder_forward_pallas.2} parent=11 // pred_check
          %p801 = pneg %p525
        $region82: #{decoder_forward_pallas.2} parent=11 // pred_check_branch
          %803 = sbr.rel (%p801) target = $region84
        $region83: #{decoder_forward_pallas.2} parent=11 // pred_region
          %s805 = ssub.s32 16, 16
          %806 = vsyncadd [#allocation26], %s805
          %s808 = sshll.u32 [#allocation25], 4
          %s809 = int_to_ptr.vmem [resolvable:$true] %s808
          %811 = dma.hbm_to_vmem [thread:$0]  %s21, 16, %s809, [#allocation26]
        $region84: #{decoder_forward_pallas.2} parent=11 // pred_fallthru
          _
        // Predicated region
        $region85: #{decoder_forward_pallas.2} parent=11 // pred_check
          %p812 = pneg %p546
        $region86: #{decoder_forward_pallas.2} parent=11 // pred_check_branch
          %814 = sbr.rel (%p812) target = $region88
        $region87: #{decoder_forward_pallas.2} parent=11 // pred_region
          %s816 = ssub.s32 16, 16
          %817 = vsyncadd [#allocation26], %s816
          %s819 = sshll.u32 [#allocation27], 4
          %s820 = int_to_ptr.vmem [resolvable:$true] %s819
          %822 = dma.hbm_to_vmem [thread:$0]  %s22, 16, %s820, [#allocation26]
        $region88: #{decoder_forward_pallas.2} parent=11 // pred_fallthru
          _
        // Predicated region
        $region89: #{decoder_forward_pallas.2} parent=11 // pred_check
          %p823 = pneg %p567
        $region90: #{decoder_forward_pallas.2} parent=11 // pred_check_branch
          %825 = sbr.rel (%p823) target = $region92
        $region91: #{decoder_forward_pallas.2} parent=11 // pred_region
          %s827 = ssub.s32 16, 16
          %828 = vsyncadd [#allocation29], %s827
          %s830 = sshll.u32 [#allocation28], 4
          %s831 = int_to_ptr.vmem [resolvable:$true] %s830
          %833 = dma.hbm_to_vmem [thread:$0]  %s23, 16, %s831, [#allocation29]
        $region92: #{decoder_forward_pallas.2} parent=11 // pred_fallthru
          _
        // Predicated region
        $region93: #{decoder_forward_pallas.2} parent=11 // pred_check
          %p834 = pneg %p588
        $region94: #{decoder_forward_pallas.2} parent=11 // pred_check_branch
          %836 = sbr.rel (%p834) target = $region96
        $region95: #{decoder_forward_pallas.2} parent=11 // pred_region
          _
        $region96: #{decoder_forward_pallas.2} parent=11 // pred_fallthru
          _
        // Predicated region
        $region97: #{decoder_forward_pallas.2} parent=11 // pred_check
          %p837 = pneg %p609
        $region98: #{decoder_forward_pallas.2} parent=11 // pred_check_branch
          %839 = sbr.rel (%p837) target = $region100
        $region99: #{decoder_forward_pallas.2} parent=11 // pred_region
          _
        $region100: #{decoder_forward_pallas.2} parent=11 // pred_fallthru
          _
      $region12: #{decoder_forward_pallas.2} parent=5 // pred_fallthru
        _
      %p840 = scmp.lt.s32.totalorder %s43, 2
      // Predicated region
      $region101: #{decoder_forward_pallas.2} parent=5 // pred_check
        %p841 = pneg %p840
      $region102: #{decoder_forward_pallas.2} parent=5 // pred_check_branch
        %843 = sbr.rel (%p841) target = $region104
      $region103: #{decoder_forward_pallas.2} parent=5 // pred_region
        // Predicated region
        $region105: #{decoder_forward_pallas.2} parent=103 // pred_check
          %p844 = pneg %p63
        $region106: #{decoder_forward_pallas.2} parent=103 // pred_check_branch
          %846 = sbr.rel (%p844) target = $region108
        $region107: #{decoder_forward_pallas.2} parent=103 // pred_region
          %p847 = scmp.lt.s32.totalorder %s43, 1
          %s848 = scalar_select %p847, %s43, 1
          %s849 = smul.addr %s848, 8
          %s850 = scalar_lea.vmem %s0, %s849
        $region108: #{decoder_forward_pallas.2} parent=103 // pred_fallthru
          _
        // Predicated region
        $region109: #{decoder_forward_pallas.2} parent=103 // pred_check
          %p851 = pneg %p89
        $region110: #{decoder_forward_pallas.2} parent=103 // pred_check_branch
          %853 = sbr.rel (%p851) target = $region112
        $region111: #{decoder_forward_pallas.2} parent=103 // pred_region
          %p854 = scmp.lt.s32.totalorder %s43, 1
          %s855 = scalar_select %p854, %s43, 1
          %s856 = smul.addr %s855, 8
          %s857 = scalar_lea.vmem %s1, %s856
        $region112: #{decoder_forward_pallas.2} parent=103 // pred_fallthru
          _
        // Predicated region
        $region113: #{decoder_forward_pallas.2} parent=103 // pred_check
          %p858 = pneg %p115
        $region114: #{decoder_forward_pallas.2} parent=103 // pred_check_branch
          %860 = sbr.rel (%p858) target = $region116
        $region115: #{decoder_forward_pallas.2} parent=103 // pred_region
          %p861 = scmp.lt.s32.totalorder %s43, 1
          %s862 = scalar_select %p861, %s43, 1
          %s863 = smul.addr %s862, 8
          %s864 = scalar_lea.vmem %s2, %s863
        $region116: #{decoder_forward_pallas.2} parent=103 // pred_fallthru
          _
        // Predicated region
        $region117: #{decoder_forward_pallas.2} parent=103 // pred_check
          %p865 = pneg %p141
        $region118: #{decoder_forward_pallas.2} parent=103 // pred_check_branch
          %867 = sbr.rel (%p865) target = $region120
        $region119: #{decoder_forward_pallas.2} parent=103 // pred_region
          %s868 = sand.u32 %s131, 1
          %s869 = scalar_lea.sflag [#allocation6], %s868
          %s870 = sand.u32 %s131, 1
          %s871 = scalar_lea.vmem [#allocation5], %s870
          %s873 = ssub.s32 16, 16
          %874 = vsyncadd %s869, %s873
          %s875 = smul.addr %s43, 16
          %s876 = scalar_lea.hbm %s3, %s875
          %s878 = sshll.u32 %s871, 4
          %s879 = int_to_ptr.vmem [resolvable:$true] %s878
          %881 = dma.hbm_to_vmem [thread:$0]  %s876, 16, %s879, %s869
        $region120: #{decoder_forward_pallas.2} parent=103 // pred_fallthru
          _
      $region104: #{decoder_forward_pallas.2} parent=5 // pred_fallthru
        _
      %p882 = scmp.le.s32.totalorder 1, %s43
      %p883 = scmp.lt.s32.totalorder %s43, 3
      %p884 = pnand %p882, %p883
      %p885 = pneg %p884
      // Predicated region
      $region121: #{decoder_forward_pallas.2} parent=5 // pred_check
        _
      $region122: #{decoder_forward_pallas.2} parent=5 // pred_check_branch
        %887 = sbr.rel (%p884) target = $region124
      $region123: #{decoder_forward_pallas.2} parent=5 // pred_region
        %s888 = ssub.s32 %s43, 1
        %s889 = sand.u32 %s134, 1
        %s890 = scalar_lea.sflag [#allocation6], %s889
        %s891 = sand.u32 %s134, 1
        %s892 = scalar_lea.vmem [#allocation5], %s891
        // Predicated region
        $region125: #{decoder_forward_pallas.2} parent=123 // pred_check
          %p893 = pneg %p147
        $region126: #{decoder_forward_pallas.2} parent=123 // pred_check_branch
          %895 = sbr.rel (%p893) target = $region128
        $region127: #{decoder_forward_pallas.2} parent=123 // pred_region
          %896 = dma.done %s890, 16
        $region128: #{decoder_forward_pallas.2} parent=123 // pred_fallthru
          _
        // Predicated region
        $region129: #{decoder_forward_pallas.2} parent=123 // pred_check
          %p897 = pneg %p189
        $region130: #{decoder_forward_pallas.2} parent=123 // pred_check_branch
          %899 = sbr.rel (%p897) target = $region132
        $region131: #{decoder_forward_pallas.2} parent=123 // pred_region
          %900 = dma.done [#allocation8], 16
        $region132: #{decoder_forward_pallas.2} parent=123 // pred_fallthru
          _
        // Predicated region
        $region133: #{decoder_forward_pallas.2} parent=123 // pred_check
          %p901 = pneg %p231
        $region134: #{decoder_forward_pallas.2} parent=123 // pred_check_branch
          %903 = sbr.rel (%p901) target = $region136
        $region135: #{decoder_forward_pallas.2} parent=123 // pred_region
          %904 = dma.done [#allocation8], 16
        $region136: #{decoder_forward_pallas.2} parent=123 // pred_fallthru
          _
        // Predicated region
        $region137: #{decoder_forward_pallas.2} parent=123 // pred_check
          %p905 = pneg %p273
        $region138: #{decoder_forward_pallas.2} parent=123 // pred_check_branch
          %907 = sbr.rel (%p905) target = $region140
        $region139: #{decoder_forward_pallas.2} parent=123 // pred_region
          %908 = dma.done [#allocation11], 16
        $region140: #{decoder_forward_pallas.2} parent=123 // pred_fallthru
          _
        // Predicated region
        $region141: #{decoder_forward_pallas.2} parent=123 // pred_check
          %p909 = pneg %p315
        $region142: #{decoder_forward_pallas.2} parent=123 // pred_check_branch
          %911 = sbr.rel (%p909) target = $region144
        $region143: #{decoder_forward_pallas.2} parent=123 // pred_region
          %912 = dma.done [#allocation11], 16
        $region144: #{decoder_forward_pallas.2} parent=123 // pred_fallthru
          _
        // Predicated region
        $region145: #{decoder_forward_pallas.2} parent=123 // pred_check
          %p913 = pneg %p336
        $region146: #{decoder_forward_pallas.2} parent=123 // pred_check_branch
          %915 = sbr.rel (%p913) target = $region148
        $region147: #{decoder_forward_pallas.2} parent=123 // pred_region
          %916 = dma.done [#allocation14], 256
        $region148: #{decoder_forward_pallas.2} parent=123 // pred_fallthru
          _
        // Predicated region
        $region149: #{decoder_forward_pallas.2} parent=123 // pred_check
          %p917 = pneg %p357
        $region150: #{decoder_forward_pallas.2} parent=123 // pred_check_branch
          %919 = sbr.rel (%p917) target = $region152
        $region151: #{decoder_forward_pallas.2} parent=123 // pred_region
          %920 = dma.done [#allocation14], 16
        $region152: #{decoder_forward_pallas.2} parent=123 // pred_fallthru
          _
        // Predicated region
        $region153: #{decoder_forward_pallas.2} parent=123 // pred_check
          %p921 = pneg %p378
        $region154: #{decoder_forward_pallas.2} parent=123 // pred_check_branch
          %923 = sbr.rel (%p921) target = $region156
        $region155: #{decoder_forward_pallas.2} parent=123 // pred_region
          %924 = dma.done [#allocation17], 256
        $region156: #{decoder_forward_pallas.2} parent=123 // pred_fallthru
          _
        // Predicated region
        $region157: #{decoder_forward_pallas.2} parent=123 // pred_check
          %p925 = pneg %p399
        $region158: #{decoder_forward_pallas.2} parent=123 // pred_check_branch
          %927 = sbr.rel (%p925) target = $region160
        $region159: #{decoder_forward_pallas.2} parent=123 // pred_region
          %928 = dma.done [#allocation17], 16
        $region160: #{decoder_forward_pallas.2} parent=123 // pred_fallthru
          _
        // Predicated region
        $region161: #{decoder_forward_pallas.2} parent=123 // pred_check
          %p929 = pneg %p441
        $region162: #{decoder_forward_pallas.2} parent=123 // pred_check_branch
          %931 = sbr.rel (%p929) target = $region164
        $region163: #{decoder_forward_pallas.2} parent=123 // pred_region
          %932 = dma.done [#allocation20], 16
        $region164: #{decoder_forward_pallas.2} parent=123 // pred_fallthru
          _
        // Predicated region
        $region165: #{decoder_forward_pallas.2} parent=123 // pred_check
          %p933 = pneg %p462
        $region166: #{decoder_forward_pallas.2} parent=123 // pred_check_branch
          %935 = sbr.rel (%p933) target = $region168
        $region167: #{decoder_forward_pallas.2} parent=123 // pred_region
          %936 = dma.done [#allocation20], 16
        $region168: #{decoder_forward_pallas.2} parent=123 // pred_fallthru
          _
        // Predicated region
        $region169: #{decoder_forward_pallas.2} parent=123 // pred_check
          %p937 = pneg %p483
        $region170: #{decoder_forward_pallas.2} parent=123 // pred_check_branch
          %939 = sbr.rel (%p937) target = $region172
        $region171: #{decoder_forward_pallas.2} parent=123 // pred_region
          %940 = dma.done [#allocation23], 16
        $region172: #{decoder_forward_pallas.2} parent=123 // pred_fallthru
          _
        // Predicated region
        $region173: #{decoder_forward_pallas.2} parent=123 // pred_check
          %p941 = pneg %p504
        $region174: #{decoder_forward_pallas.2} parent=123 // pred_check_branch
          %943 = sbr.rel (%p941) target = $region176
        $region175: #{decoder_forward_pallas.2} parent=123 // pred_region
          %944 = dma.done [#allocation23], 16
        $region176: #{decoder_forward_pallas.2} parent=123 // pred_fallthru
          _
        // Predicated region
        $region177: #{decoder_forward_pallas.2} parent=123 // pred_check
          %p945 = pneg %p525
        $region178: #{decoder_forward_pallas.2} parent=123 // pred_check_branch
          %947 = sbr.rel (%p945) target = $region180
        $region179: #{decoder_forward_pallas.2} parent=123 // pred_region
          %948 = dma.done [#allocation26], 16
        $region180: #{decoder_forward_pallas.2} parent=123 // pred_fallthru
          _
        // Predicated region
        $region181: #{decoder_forward_pallas.2} parent=123 // pred_check
          %p949 = pneg %p546
        $region182: #{decoder_forward_pallas.2} parent=123 // pred_check_branch
          %951 = sbr.rel (%p949) target = $region184
        $region183: #{decoder_forward_pallas.2} parent=123 // pred_region
          %952 = dma.done [#allocation26], 16
        $region184: #{decoder_forward_pallas.2} parent=123 // pred_fallthru
          _
        // Predicated region
        $region185: #{decoder_forward_pallas.2} parent=123 // pred_check
          %p953 = pneg %p567
        $region186: #{decoder_forward_pallas.2} parent=123 // pred_check_branch
          %955 = sbr.rel (%p953) target = $region188
        $region187: #{decoder_forward_pallas.2} parent=123 // pred_region
          %956 = dma.done [#allocation29], 16
        $region188: #{decoder_forward_pallas.2} parent=123 // pred_fallthru
          _
        %p957 = scmp.lt.s32.totalorder %s48, 1
        %s958 = scalar_select %p957, %s48, 1
        %s959 = smul.addr %s958, 8
        %s960 = scalar_lea.vmem %s0, %s959
        %p961 = pneg %p69
        %p962 = pneg %p66
        %p963 = scmp.lt.s32.totalorder %s48, 1
        %s964 = scalar_select %p963, %s48, 1
        %s965 = smul.addr %s964, 8
        %s966 = scalar_lea.vmem %s1, %s965
        %p967 = pneg %p95
        %p968 = pneg %p92
        %p969 = scmp.lt.s32.totalorder %s48, 1
        %s970 = scalar_select %p969, %s48, 1
        %s971 = smul.addr %s970, 8
        %s972 = scalar_lea.vmem %s2, %s971
        %p973 = pneg %p121
        %p974 = pneg %p118
        %s975 = sand.u32 %s134, 1
        %s976 = scalar_lea.sflag [#allocation6], %s975
        %s977 = sand.u32 %s134, 1
        %s978 = scalar_lea.vmem [#allocation5], %s977
        %p979 = pneg %p147
        %p980 = pneg %p144
        %p981 = pneg %p168
        %p982 = pneg %p165
        %p983 = pneg %p189
        %p984 = pneg %p186
        %p985 = pneg %p210
        %p986 = pneg %p207
        %p987 = pneg %p231
        %p988 = pneg %p228
        %p989 = pneg %p252
        %p990 = pneg %p249
        %p991 = pneg %p273
        %p992 = pneg %p270
        %p993 = pneg %p294
        %p994 = pneg %p291
        %p995 = pneg %p315
        %p996 = pneg %p312
        %p997 = pneg %p336
        %p998 = pneg %p333
        %p999 = pneg %p357
        %p1000 = pneg %p354
        %p1001 = pneg %p378
        %p1002 = pneg %p375
        %p1003 = pneg %p399
        %p1004 = pneg %p396
        %p1005 = pneg %p420
        %p1006 = pneg %p417
        %p1007 = pneg %p441
        %p1008 = pneg %p438
        %p1009 = pneg %p462
        %p1010 = pneg %p459
        %p1011 = pneg %p483
        %p1012 = pneg %p480
        %p1013 = pneg %p504
        %p1014 = pneg %p501
        %p1015 = pneg %p525
        %p1016 = pneg %p522
        %p1017 = pneg %p546
        %p1018 = pneg %p543
        %p1019 = pneg %p567
        %p1020 = pneg %p564
        %p1021 = pneg %p588
        %p1022 = pneg %p585
        %p1023 = pneg %p609
        %p1024 = pneg %p606
        %p1025 = pneg %p635
        %p1026 = pneg %p632
        %p1027 = scmp.lt.s32.totalorder %s48, 1
        %s1028 = scalar_select %p1027, %s48, 1
        %s1029 = smul.addr %s1028, 8
        %s1030 = scalar_lea.vmem %s26, %s1029
        %p1031 = scmp.lt.s32.totalorder %s48, 1
        %s1032 = scalar_select %p1031, %s48, 1
        %s1033 = smul.addr %s1032, 8
        %s1034 = scalar_lea.vmem %s0, %s1033
        %p1035 = scmp.lt.s32.totalorder %s48, 1
        %s1036 = scalar_select %p1035, %s48, 1
        %s1037 = smul.addr %s1036, 8
        %s1038 = scalar_lea.vmem %s1, %s1037
        %p1039 = scmp.lt.s32.totalorder %s48, 1
        %s1040 = scalar_select %p1039, %s48, 1
        %s1041 = smul.addr %s1040, 8
        %s1042 = scalar_lea.vmem %s2, %s1041
        %p1043 = scmp.lt.s32.totalorder %s48, 1
        %s1044 = scalar_select %p1043, %s48, 1
        %s1045 = smul.addr %s1044, 8
        %s1046 = scalar_lea.vmem %s26, %s1045
        %v1048 = vld [vmem:[%s1034] sm:$0xff]
        %v1049 = vld [vmem:[%s1038] sm:$0xff]
        %v1050 = vld [vmem:[#allocation21] sm:$0x1]
        %v1051 = vld [vmem:[#allocation22] sm:$0x1]
        %vm1052 = vcmask 261120
        %v1053 = vsel %vm1052, %v1048, 0.0
        %1054 = vadd.xlane.f32.xlu0 %v1053
        %v1055 = vpop.xlane.xlu0 %1054
        %v1056 = vrcp.pop 32.0
        %v1057 = vmul.f32 %v1055, %v1056
        %v1058 = vsub.f32 %v1048, %v1057
        %v1059 = vmul.f32 %v1058, %v1058
        %v1060 = vsel %vm1052, %v1059, 0.0
        %1061 = vadd.xlane.f32.xlu0 %v1060
        %v1062 = vpop.xlane.xlu0 %1061
        %v1063 = vmul.f32 %v1062, 0.032258064
        %v1064 = vrsqrt.pop %v1063
        %v1065 = vmul.f32 %v1063, %v1064
        %vm1066 = vcmp.eq.f32.partialorder %v1063, inf
        %v1067 = vsel %vm1066, %v1063, %v1065
        %vm1068 = vcmp.eq.f32.partialorder %v1063, 0.0
        %v1069 = vand.u32 %v1063, 2147483648
        %v1070 = vsel %vm1068, %v1069, %v1067
        %v1072 = vlaneseq
        %v1073 = vshrl.u32 %v1072, 7
        %v1074 = vsub.s32 0, %v1073
        %v1075 = vrot.slane %v1050, %v1074
        %v1077 = vmul.f32 %v1075, %v1058
        %v1078 = vadd.f32 %v1070, 1e-06
        %v1079 = vrcp.pop %v1078
        %v1080 = vmul.f32 %v1077, %v1079
        %v1082 = vlaneseq
        %v1083 = vshrl.u32 %v1082, 7
        %v1084 = vsub.s32 0, %v1083
        %v1085 = vrot.slane %v1051, %v1084
        %v1087 = vadd.f32 %v1080, %v1085
        %v1088 = vpack.c.bf16 %v1087, %v1087
        %v1089 = vld [vmem:[%s4] sm:$0xf]
        %v1090 = vld [vmem:[%s4 + $0x4] sm:$0xf]
        %v1091 = vld [vmem:[%s4 + $0x8] sm:$0xf]
        %v1092 = vld [vmem:[%s4 + $0xc] sm:$0xf]
        %v1093 = vld [vmem:[#allocation7] sm:$0x1]
        %v1095 = vlaneseq
        %v1096 = vshrl.u32 %v1095, 7
        %v1097 = vsub.s32 0, %v1096
        %v1098 = vrot.slane %v1093, %v1097
        %v1104 = vunpack.c.l.b16 %v1089
        %v1105 = vunpack.c.l.b16 %v1090
        %v1106 = vunpack.c.l.b16 %v1091
        %v1107 = vunpack.c.l.b16 %v1092
        %v1108 = vpack.c.b16 %v1105, %v1104
        %v1109 = vpack.c.b16 %v1107, %v1106
        %v1113 = vsel %vm1052, %v1088, 0
        %1115 = vmatprep.subr.bf16.mxu0 0
        %1116 = vmatpush1.bf16.msra.mxu0 0
        %1117 = vmatprep.subr.bf16.mxu0 0
        %1118 = vmatpush1.bf16.msra.mxu0 0
        %1119 = vmatprep.subr.bf16.mxu0 0
        %1120 = vmatpush1.bf16.msra.mxu0 0
        %1121 = vmatprep.subr.bf16.mxu0 0
        %1122 = vmatpush1.bf16.msra.mxu0 0
        %1123 = vmatprep.subr.bf16.mxu0 0
        %1124 = vmatpush1.bf16.msra.mxu0 0
        %1125 = vmatprep.subr.bf16.mxu0 0
        %1126 = vmatpush1.bf16.msra.mxu0 0
        %1127 = vmatprep.subr.bf16.mxu0 0
        %1128 = vmatpush1.bf16.msra.mxu0 %v1109
        %1129 = vmatprep.subr.bf16.mxu0 0
        %1130 = vmatpush1.bf16.msra.mxu0 %v1108
        %1131 = vmatprep.subr.bf16.mxu0 0
        %1132 = vmatpush2.bf16.msra.mxu0 0
        %1133 = vmatprep.subr.bf16.mxu0 0
        %1134 = vmatpush2.bf16.msra.mxu0 0
        %1135 = vmatprep.subr.bf16.mxu0 0
        %1136 = vmatpush2.bf16.msra.mxu0 0
        %1137 = vmatprep.subr.bf16.mxu0 0
        %1138 = vmatpush2.bf16.msra.mxu0 0
        %1139 = vmatprep.subr.bf16.mxu0 0
        %1140 = vmatpush2.bf16.msra.mxu0 0
        %1141 = vmatprep.subr.bf16.mxu0 0
        %1142 = vmatpush2.bf16.msra.mxu0 0
        %1143 = vmatprep.subr.bf16.mxu0 0
        %1144 = vmatpush2.bf16.msra.mxu0 0
        %1145 = vmatprep.subr.bf16.mxu0 0
        %1146 = vmatpush2.bf16.msra.mxu0 0
        %1147 = vmatprep.mubr.bf16.mxu0 0
        %1148 = vmatmul.mubr.bf16.gmra.mxu0 %v1113
        %v1149 = vpop.f32.mrf.mxu0
        %v1150 = vadd.f32 %v1098, %v1149
        %v1151 = vpop.f32.mrf.mxu0
        %v1152 = vpop.f32.mrf.mxu0
        %v1153 = vpop.f32.mrf.mxu0
        %1154 = vdwg.mxu0
        %vm1155 = vcmask 785408
        %1156 = vst.msk [vmem:[#allocation2] sm:$0xff] %vm1155, %v1150
        %v1157 = vld [vmem:[%s1042] sm:$0xff]
        %vm1158 = vcmp.ne.s32.totalorder %v1157, 0
        %v1159 = vld [vmem:[#allocation2] sm:$0xff]
        %v1160 = vpack.c.bf16 %v1159, %v1159
        %1162 = vrot.lane.b32.xlu0 %v1160, 96
        %v1163 = vpop.permute.xlu0 %1162
        %vm1164 = vcmask 64512
        %v1166 = vsel %vm1164, %v1160, 0
        %v1169 = vsel %vm1164, %v1163, 0
        %1171 = vmatprep.subr.bf16.mxu0 0
        %1172 = vmatpush1.bf16.xpose.msra.mxu0 0
        %1173 = vmatprep.subr.bf16.mxu0 0
        %1174 = vmatpush1.bf16.xpose.msra.mxu0 0
        %1175 = vmatprep.subr.bf16.mxu0 0
        %1176 = vmatpush1.bf16.xpose.msra.mxu0 0
        %1177 = vmatprep.subr.bf16.mxu0 0
        %1178 = vmatpush1.bf16.xpose.msra.mxu0 0
        %1179 = vmatprep.subr.bf16.mxu0 0
        %1180 = vmatpush1.bf16.xpose.msra.mxu0 0
        %1181 = vmatprep.subr.bf16.mxu0 0
        %1182 = vmatpush1.bf16.xpose.msra.mxu0 0
        %1183 = vmatprep.subr.bf16.mxu0 0
        %1184 = vmatpush1.bf16.xpose.msra.mxu0 0
        %1185 = vmatprep.subr.bf16.mxu0 0
        %1186 = vmatpush1.bf16.xpose.msra.mxu0 %v1169
        %1187 = vmatprep.subr.bf16.mxu0 0
        %1188 = vmatpush2.bf16.xpose.msra.mxu0 0
        %1189 = vmatprep.subr.bf16.mxu0 0
        %1190 = vmatpush2.bf16.xpose.msra.mxu0 0
        %1191 = vmatprep.subr.bf16.mxu0 0
        %1192 = vmatpush2.bf16.xpose.msra.mxu0 0
        %1193 = vmatprep.subr.bf16.mxu0 0
        %1194 = vmatpush2.bf16.xpose.msra.mxu0 0
        %1195 = vmatprep.subr.bf16.mxu0 0
        %1196 = vmatpush2.bf16.xpose.msra.mxu0 0
        %1197 = vmatprep.subr.bf16.mxu0 0
        %1198 = vmatpush2.bf16.xpose.msra.mxu0 0
        %1199 = vmatprep.subr.bf16.mxu0 0
        %1200 = vmatpush2.bf16.xpose.msra.mxu0 0
        %1201 = vmatprep.subr.bf16.mxu0 0
        %1202 = vmatpush2.bf16.xpose.msra.mxu0 0
        %1203 = vmatprep.mubr.bf16.mxu0 0
        %1204 = vmatmul.mubr.bf16.gmra.mxu0 %v1166
        %v1205 = vpop.f32.mrf.mxu0
        %v1206 = vadd.f32 0.0, %v1205
        %v1207 = vpop.f32.mrf.mxu0
        %v1208 = vpop.f32.mrf.mxu0
        %v1209 = vpop.f32.mrf.mxu0
        %1210 = vdwg.mxu0
        %v1211 = vmul.f32 %v1206, 0.35355338
        %v1212 = vsel %vm1158, %v1211, -1e+09
        %v1213 = vsel %vm1164, %v1212, -inf
        %1214 = vmax.xlane.f32.xlu0 %v1213
        %v1215 = vpop.xlane.xlu0 %1214
        %v1216 = vsub.f32 %v1212, %v1215
        %v1217 = vmul.f32 %v1216, 1.442695
        %v1218 = vpow.pop %v1217
        %v1219 = vsel %vm1164, %v1218, 0.0
        %1220 = vadd.xlane.f32.xlu0 %v1219
        %v1221 = vpop.xlane.xlu0 %1220
        %v1222 = vrcp.pop %v1221
        %v1223 = vmul.f32 %v1218, %v1222
        %v1224 = vpack.c.bf16 %v1223, %v1223
        %1225 = vrot.lane.b32.xlu0 %v1160, 64
        %v1226 = vpop.permute.xlu0 %1225
        %v1228 = vsel %vm1164, %v1224, 0
        %vm1230 = vcmask 1043456
        %v1232 = vsel %vm1230, %v1226, 0
        %1234 = vmatprep.subr.bf16.mxu0 0
        %1235 = vmatpush1.bf16.msra.mxu0 0
        %1236 = vmatprep.subr.bf16.mxu0 0
        %1237 = vmatpush1.bf16.msra.mxu0 0
        %1238 = vmatprep.subr.bf16.mxu0 0
        %1239 = vmatpush1.bf16.msra.mxu0 0
        %1240 = vmatprep.subr.bf16.mxu0 0
        %1241 = vmatpush1.bf16.msra.mxu0 0
        %1242 = vmatprep.subr.bf16.mxu0 0
        %1243 = vmatpush1.bf16.msra.mxu0 0
        %1244 = vmatprep.subr.bf16.mxu0 0
        %1245 = vmatpush1.bf16.msra.mxu0 0
        %1246 = vmatprep.subr.bf16.mxu0 0
        %1247 = vmatpush1.bf16.msra.mxu0 0
        %1248 = vmatprep.subr.bf16.mxu0 0
        %1249 = vmatpush1.bf16.msra.mxu0 %v1232
        %1250 = vmatprep.subr.bf16.mxu0 0
        %1251 = vmatpush2.bf16.msra.mxu0 0
        %1252 = vmatprep.subr.bf16.mxu0 0
        %1253 = vmatpush2.bf16.msra.mxu0 0
        %1254 = vmatprep.subr.bf16.mxu0 0
        %1255 = vmatpush2.bf16.msra.mxu0 0
        %1256 = vmatprep.subr.bf16.mxu0 0
        %1257 = vmatpush2.bf16.msra.mxu0 0
        %1258 = vmatprep.subr.bf16.mxu0 0
        %1259 = vmatpush2.bf16.msra.mxu0 0
        %1260 = vmatprep.subr.bf16.mxu0 0
        %1261 = vmatpush2.bf16.msra.mxu0 0
        %1262 = vmatprep.subr.bf16.mxu0 0
        %1263 = vmatpush2.bf16.msra.mxu0 0
        %1264 = vmatprep.subr.bf16.mxu0 0
        %1265 = vmatpush2.bf16.msra.mxu0 0
        %1266 = vmatprep.mubr.bf16.mxu0 0
        %1267 = vmatmul.mubr.bf16.gmra.mxu0 %v1228
        %v1268 = vpop.f32.mrf.mxu0
        %v1269 = vadd.f32 0.0, %v1268
        %v1270 = vpop.f32.mrf.mxu0
        %v1271 = vpop.f32.mrf.mxu0
        %v1272 = vpop.f32.mrf.mxu0
        %1273 = vdwg.mxu0
        %1274 = vst.msk [vmem:[#allocation4] sm:$0xff] %vm1164, %v1269
        %v1275 = vld [vmem:[#allocation2] sm:$0xff]
        %v1276 = vpack.c.bf16 %v1275, %v1275
        %1278 = vrot.lane.b32.xlu0 %v1276, 120
        %v1279 = vpop.permute.xlu0 %1278
        %1280 = vrot.lane.b32.xlu0 %v1276, 88
        %v1281 = vpop.permute.xlu0 %1280
        %v1283 = vsel %vm1164, %v1279, 0
        %v1286 = vsel %vm1164, %v1281, 0
        %1288 = vmatprep.subr.bf16.mxu0 0
        %1289 = vmatpush1.bf16.xpose.msra.mxu0 0
        %1290 = vmatprep.subr.bf16.mxu0 0
        %1291 = vmatpush1.bf16.xpose.msra.mxu0 0
        %1292 = vmatprep.subr.bf16.mxu0 0
        %1293 = vmatpush1.bf16.xpose.msra.mxu0 0
        %1294 = vmatprep.subr.bf16.mxu0 0
        %1295 = vmatpush1.bf16.xpose.msra.mxu0 0
        %1296 = vmatprep.subr.bf16.mxu0 0
        %1297 = vmatpush1.bf16.xpose.msra.mxu0 0
        %1298 = vmatprep.subr.bf16.mxu0 0
        %1299 = vmatpush1.bf16.xpose.msra.mxu0 0
        %1300 = vmatprep.subr.bf16.mxu0 0
        %1301 = vmatpush1.bf16.xpose.msra.mxu0 0
        %1302 = vmatprep.subr.bf16.mxu0 0
        %1303 = vmatpush1.bf16.xpose.msra.mxu0 %v1286
        %1304 = vmatprep.subr.bf16.mxu0 0
        %1305 = vmatpush2.bf16.xpose.msra.mxu0 0
        %1306 = vmatprep.subr.bf16.mxu0 0
        %1307 = vmatpush2.bf16.xpose.msra.mxu0 0
        %1308 = vmatprep.subr.bf16.mxu0 0
        %1309 = vmatpush2.bf16.xpose.msra.mxu0 0
        %1310 = vmatprep.subr.bf16.mxu0 0
        %1311 = vmatpush2.bf16.xpose.msra.mxu0 0
        %1312 = vmatprep.subr.bf16.mxu0 0
        %1313 = vmatpush2.bf16.xpose.msra.mxu0 0
        %1314 = vmatprep.subr.bf16.mxu0 0
        %1315 = vmatpush2.bf16.xpose.msra.mxu0 0
        %1316 = vmatprep.subr.bf16.mxu0 0
        %1317 = vmatpush2.bf16.xpose.msra.mxu0 0
        %1318 = vmatprep.subr.bf16.mxu0 0
        %1319 = vmatpush2.bf16.xpose.msra.mxu0 0
        %1320 = vmatprep.mubr.bf16.mxu0 0
        %1321 = vmatmul.mubr.bf16.gmra.mxu0 %v1283
        %v1322 = vpop.f32.mrf.mxu0
        %v1323 = vadd.f32 0.0, %v1322
        %v1324 = vpop.f32.mrf.mxu0
        %v1325 = vpop.f32.mrf.mxu0
        %v1326 = vpop.f32.mrf.mxu0
        %1327 = vdwg.mxu0
        %v1328 = vmul.f32 %v1323, 0.35355338
        %v1329 = vsel %vm1158, %v1328, -1e+09
        %v1330 = vsel %vm1164, %v1329, -inf
        %1331 = vmax.xlane.f32.xlu0 %v1330
        %v1332 = vpop.xlane.xlu0 %1331
        %v1333 = vsub.f32 %v1329, %v1332
        %v1334 = vmul.f32 %v1333, 1.442695
        %v1335 = vpow.pop %v1334
        %v1336 = vsel %vm1164, %v1335, 0.0
        %1337 = vadd.xlane.f32.xlu0 %v1336
        %v1338 = vpop.xlane.xlu0 %1337
        %v1339 = vrcp.pop %v1338
        %v1340 = vmul.f32 %v1335, %v1339
        %v1341 = vpack.c.bf16 %v1340, %v1340
        %1342 = vrot.lane.b32.xlu0 %v1276, 56
        %v1343 = vpop.permute.xlu0 %1342
        %v1345 = vsel %vm1164, %v1341, 0
        %v1348 = vsel %vm1230, %v1343, 0
        %1350 = vmatprep.subr.bf16.mxu0 0
        %1351 = vmatpush1.bf16.msra.mxu0 0
        %1352 = vmatprep.subr.bf16.mxu0 0
        %1353 = vmatpush1.bf16.msra.mxu0 0
        %1354 = vmatprep.subr.bf16.mxu0 0
        %1355 = vmatpush1.bf16.msra.mxu0 0
        %1356 = vmatprep.subr.bf16.mxu0 0
        %1357 = vmatpush1.bf16.msra.mxu0 0
        %1358 = vmatprep.subr.bf16.mxu0 0
        %1359 = vmatpush1.bf16.msra.mxu0 0
        %1360 = vmatprep.subr.bf16.mxu0 0
        %1361 = vmatpush1.bf16.msra.mxu0 0
        %1362 = vmatprep.subr.bf16.mxu0 0
        %1363 = vmatpush1.bf16.msra.mxu0 0
        %1364 = vmatprep.subr.bf16.mxu0 0
        %1365 = vmatpush1.bf16.msra.mxu0 %v1348
        %1366 = vmatprep.subr.bf16.mxu0 0
        %1367 = vmatpush2.bf16.msra.mxu0 0
        %1368 = vmatprep.subr.bf16.mxu0 0
        %1369 = vmatpush2.bf16.msra.mxu0 0
        %1370 = vmatprep.subr.bf16.mxu0 0
        %1371 = vmatpush2.bf16.msra.mxu0 0
        %1372 = vmatprep.subr.bf16.mxu0 0
        %1373 = vmatpush2.bf16.msra.mxu0 0
        %1374 = vmatprep.subr.bf16.mxu0 0
        %1375 = vmatpush2.bf16.msra.mxu0 0
        %1376 = vmatprep.subr.bf16.mxu0 0
        %1377 = vmatpush2.bf16.msra.mxu0 0
        %1378 = vmatprep.subr.bf16.mxu0 0
        %1379 = vmatpush2.bf16.msra.mxu0 0
        %1380 = vmatprep.subr.bf16.mxu0 0
        %1381 = vmatpush2.bf16.msra.mxu0 0
        %1382 = vmatprep.mubr.bf16.mxu0 0
        %1383 = vmatmul.mubr.bf16.gmra.mxu0 %v1345
        %v1384 = vpop.f32.mrf.mxu0
        %v1385 = vadd.f32 0.0, %v1384
        %v1386 = vpop.f32.mrf.mxu0
        %v1387 = vpop.f32.mrf.mxu0
        %v1388 = vpop.f32.mrf.mxu0
        %1389 = vdwg.mxu0
        %1391 = vrot.lane.b32.xlu0 %v1385, 8
        %v1392 = vpop.permute.xlu0 %1391
        %vm1394 = vcmask 130112
        %1395 = vst.msk [vmem:[#allocation4] sm:$0xff] %vm1394, %v1392
        %v1396 = vld [vmem:[#allocation2] sm:$0xff]
        %v1397 = vpack.c.bf16 %v1396, %v1396
        %1399 = vrot.lane.b32.xlu0 %v1397, 112
        %v1400 = vpop.permute.xlu0 %1399
        %1401 = vrot.lane.b32.xlu0 %v1397, 80
        %v1402 = vpop.permute.xlu0 %1401
        %v1404 = vsel %vm1164, %v1400, 0
        %v1407 = vsel %vm1164, %v1402, 0
        %1409 = vmatprep.subr.bf16.mxu0 0
        %1410 = vmatpush1.bf16.xpose.msra.mxu0 0
        %1411 = vmatprep.subr.bf16.mxu0 0
        %1412 = vmatpush1.bf16.xpose.msra.mxu0 0
        %1413 = vmatprep.subr.bf16.mxu0 0
        %1414 = vmatpush1.bf16.xpose.msra.mxu0 0
        %1415 = vmatprep.subr.bf16.mxu0 0
        %1416 = vmatpush1.bf16.xpose.msra.mxu0 0
        %1417 = vmatprep.subr.bf16.mxu0 0
        %1418 = vmatpush1.bf16.xpose.msra.mxu0 0
        %1419 = vmatprep.subr.bf16.mxu0 0
        %1420 = vmatpush1.bf16.xpose.msra.mxu0 0
        %1421 = vmatprep.subr.bf16.mxu0 0
        %1422 = vmatpush1.bf16.xpose.msra.mxu0 0
        %1423 = vmatprep.subr.bf16.mxu0 0
        %1424 = vmatpush1.bf16.xpose.msra.mxu0 %v1407
        %1425 = vmatprep.subr.bf16.mxu0 0
        %1426 = vmatpush2.bf16.xpose.msra.mxu0 0
        %1427 = vmatprep.subr.bf16.mxu0 0
        %1428 = vmatpush2.bf16.xpose.msra.mxu0 0
        %1429 = vmatprep.subr.bf16.mxu0 0
        %1430 = vmatpush2.bf16.xpose.msra.mxu0 0
        %1431 = vmatprep.subr.bf16.mxu0 0
        %1432 = vmatpush2.bf16.xpose.msra.mxu0 0
        %1433 = vmatprep.subr.bf16.mxu0 0
        %1434 = vmatpush2.bf16.xpose.msra.mxu0 0
        %1435 = vmatprep.subr.bf16.mxu0 0
        %1436 = vmatpush2.bf16.xpose.msra.mxu0 0
        %1437 = vmatprep.subr.bf16.mxu0 0
        %1438 = vmatpush2.bf16.xpose.msra.mxu0 0
        %1439 = vmatprep.subr.bf16.mxu0 0
        %1440 = vmatpush2.bf16.xpose.msra.mxu0 0
        %1441 = vmatprep.mubr.bf16.mxu0 0
        %1442 = vmatmul.mubr.bf16.gmra.mxu0 %v1404
        %v1443 = vpop.f32.mrf.mxu0
        %v1444 = vadd.f32 0.0, %v1443
        %v1445 = vpop.f32.mrf.mxu0
        %v1446 = vpop.f32.mrf.mxu0
        %v1447 = vpop.f32.mrf.mxu0
        %1448 = vdwg.mxu0
        %v1449 = vmul.f32 %v1444, 0.35355338
        %v1450 = vsel %vm1158, %v1449, -1e+09
        %v1451 = vsel %vm1164, %v1450, -inf
        %1452 = vmax.xlane.f32.xlu0 %v1451
        %v1453 = vpop.xlane.xlu0 %1452
        %v1454 = vsub.f32 %v1450, %v1453
        %v1455 = vmul.f32 %v1454, 1.442695
        %v1456 = vpow.pop %v1455
        %v1457 = vsel %vm1164, %v1456, 0.0
        %1458 = vadd.xlane.f32.xlu0 %v1457
        %v1459 = vpop.xlane.xlu0 %1458
        %v1460 = vrcp.pop %v1459
        %v1461 = vmul.f32 %v1456, %v1460
        %v1462 = vpack.c.bf16 %v1461, %v1461
        %1463 = vrot.lane.b32.xlu0 %v1397, 48
        %v1464 = vpop.permute.xlu0 %1463
        %v1466 = vsel %vm1164, %v1462, 0
        %v1469 = vsel %vm1230, %v1464, 0
        %1471 = vmatprep.subr.bf16.mxu0 0
        %1472 = vmatpush1.bf16.msra.mxu0 0
        %1473 = vmatprep.subr.bf16.mxu0 0
        %1474 = vmatpush1.bf16.msra.mxu0 0
        %1475 = vmatprep.subr.bf16.mxu0 0
        %1476 = vmatpush1.bf16.msra.mxu0 0
        %1477 = vmatprep.subr.bf16.mxu0 0
        %1478 = vmatpush1.bf16.msra.mxu0 0
        %1479 = vmatprep.subr.bf16.mxu0 0
        %1480 = vmatpush1.bf16.msra.mxu0 0
        %1481 = vmatprep.subr.bf16.mxu0 0
        %1482 = vmatpush1.bf16.msra.mxu0 0
        %1483 = vmatprep.subr.bf16.mxu0 0
        %1484 = vmatpush1.bf16.msra.mxu0 0
        %1485 = vmatprep.subr.bf16.mxu0 0
        %1486 = vmatpush1.bf16.msra.mxu0 %v1469
        %1487 = vmatprep.subr.bf16.mxu0 0
        %1488 = vmatpush2.bf16.msra.mxu0 0
        %1489 = vmatprep.subr.bf16.mxu0 0
        %1490 = vmatpush2.bf16.msra.mxu0 0
        %1491 = vmatprep.subr.bf16.mxu0 0
        %1492 = vmatpush2.bf16.msra.mxu0 0
        %1493 = vmatprep.subr.bf16.mxu0 0
        %1494 = vmatpush2.bf16.msra.mxu0 0
        %1495 = vmatprep.subr.bf16.mxu0 0
        %1496 = vmatpush2.bf16.msra.mxu0 0
        %1497 = vmatprep.subr.bf16.mxu0 0
        %1498 = vmatpush2.bf16.msra.mxu0 0
        %1499 = vmatprep.subr.bf16.mxu0 0
        %1500 = vmatpush2.bf16.msra.mxu0 0
        %1501 = vmatprep.subr.bf16.mxu0 0
        %1502 = vmatpush2.bf16.msra.mxu0 0
        %1503 = vmatprep.mubr.bf16.mxu0 0
        %1504 = vmatmul.mubr.bf16.gmra.mxu0 %v1466
        %v1505 = vpop.f32.mrf.mxu0
        %v1506 = vadd.f32 0.0, %v1505
        %v1507 = vpop.f32.mrf.mxu0
        %v1508 = vpop.f32.mrf.mxu0
        %v1509 = vpop.f32.mrf.mxu0
        %1510 = vdwg.mxu0
        %1512 = vrot.lane.b32.xlu0 %v1506, 16
        %v1513 = vpop.permute.xlu0 %1512
        %vm1515 = vcmask 195712
        %1516 = vst.msk [vmem:[#allocation4] sm:$0xff] %vm1515, %v1513
        %v1517 = vld [vmem:[#allocation2] sm:$0xff]
        %v1518 = vpack.c.bf16 %v1517, %v1517
        %1520 = vrot.lane.b32.xlu0 %v1518, 104
        %v1521 = vpop.permute.xlu0 %1520
        %1522 = vrot.lane.b32.xlu0 %v1518, 72
        %v1523 = vpop.permute.xlu0 %1522
        %v1525 = vsel %vm1164, %v1521, 0
        %v1528 = vsel %vm1164, %v1523, 0
        %1530 = vmatprep.subr.bf16.mxu0 0
        %1531 = vmatpush1.bf16.xpose.msra.mxu0 0
        %1532 = vmatprep.subr.bf16.mxu0 0
        %1533 = vmatpush1.bf16.xpose.msra.mxu0 0
        %1534 = vmatprep.subr.bf16.mxu0 0
        %1535 = vmatpush1.bf16.xpose.msra.mxu0 0
        %1536 = vmatprep.subr.bf16.mxu0 0
        %1537 = vmatpush1.bf16.xpose.msra.mxu0 0
        %1538 = vmatprep.subr.bf16.mxu0 0
        %1539 = vmatpush1.bf16.xpose.msra.mxu0 0
        %1540 = vmatprep.subr.bf16.mxu0 0
        %1541 = vmatpush1.bf16.xpose.msra.mxu0 0
        %1542 = vmatprep.subr.bf16.mxu0 0
        %1543 = vmatpush1.bf16.xpose.msra.mxu0 0
        %1544 = vmatprep.subr.bf16.mxu0 0
        %1545 = vmatpush1.bf16.xpose.msra.mxu0 %v1528
        %1546 = vmatprep.subr.bf16.mxu0 0
        %1547 = vmatpush2.bf16.xpose.msra.mxu0 0
        %1548 = vmatprep.subr.bf16.mxu0 0
        %1549 = vmatpush2.bf16.xpose.msra.mxu0 0
        %1550 = vmatprep.subr.bf16.mxu0 0
        %1551 = vmatpush2.bf16.xpose.msra.mxu0 0
        %1552 = vmatprep.subr.bf16.mxu0 0
        %1553 = vmatpush2.bf16.xpose.msra.mxu0 0
        %1554 = vmatprep.subr.bf16.mxu0 0
        %1555 = vmatpush2.bf16.xpose.msra.mxu0 0
        %1556 = vmatprep.subr.bf16.mxu0 0
        %1557 = vmatpush2.bf16.xpose.msra.mxu0 0
        %1558 = vmatprep.subr.bf16.mxu0 0
        %1559 = vmatpush2.bf16.xpose.msra.mxu0 0
        %1560 = vmatprep.subr.bf16.mxu0 0
        %1561 = vmatpush2.bf16.xpose.msra.mxu0 0
        %1562 = vmatprep.mubr.bf16.mxu0 0
        %1563 = vmatmul.mubr.bf16.gmra.mxu0 %v1525
        %v1564 = vpop.f32.mrf.mxu0
        %v1565 = vadd.f32 0.0, %v1564
        %v1566 = vpop.f32.mrf.mxu0
        %v1567 = vpop.f32.mrf.mxu0
        %v1568 = vpop.f32.mrf.mxu0
        %1569 = vdwg.mxu0
        %v1570 = vmul.f32 %v1565, 0.35355338
        %v1571 = vsel %vm1158, %v1570, -1e+09
        %v1572 = vsel %vm1164, %v1571, -inf
        %1573 = vmax.xlane.f32.xlu0 %v1572
        %v1574 = vpop.xlane.xlu0 %1573
        %v1575 = vsub.f32 %v1571, %v1574
        %v1576 = vmul.f32 %v1575, 1.442695
        %v1577 = vpow.pop %v1576
        %v1578 = vsel %vm1164, %v1577, 0.0
        %1579 = vadd.xlane.f32.xlu0 %v1578
        %v1580 = vpop.xlane.xlu0 %1579
        %v1581 = vrcp.pop %v1580
        %v1582 = vmul.f32 %v1577, %v1581
        %v1583 = vpack.c.bf16 %v1582, %v1582
        %1584 = vrot.lane.b32.xlu0 %v1518, 40
        %v1585 = vpop.permute.xlu0 %1584
        %v1587 = vsel %vm1164, %v1583, 0
        %v1590 = vsel %vm1230, %v1585, 0
        %1592 = vmatprep.subr.bf16.mxu0 0
        %1593 = vmatpush1.bf16.msra.mxu0 0
        %1594 = vmatprep.subr.bf16.mxu0 0
        %1595 = vmatpush1.bf16.msra.mxu0 0
        %1596 = vmatprep.subr.bf16.mxu0 0
        %1597 = vmatpush1.bf16.msra.mxu0 0
        %1598 = vmatprep.subr.bf16.mxu0 0
        %1599 = vmatpush1.bf16.msra.mxu0 0
        %1600 = vmatprep.subr.bf16.mxu0 0
        %1601 = vmatpush1.bf16.msra.mxu0 0
        %1602 = vmatprep.subr.bf16.mxu0 0
        %1603 = vmatpush1.bf16.msra.mxu0 0
        %1604 = vmatprep.subr.bf16.mxu0 0
        %1605 = vmatpush1.bf16.msra.mxu0 0
        %1606 = vmatprep.subr.bf16.mxu0 0
        %1607 = vmatpush1.bf16.msra.mxu0 %v1590
        %1608 = vmatprep.subr.bf16.mxu0 0
        %1609 = vmatpush2.bf16.msra.mxu0 0
        %1610 = vmatprep.subr.bf16.mxu0 0
        %1611 = vmatpush2.bf16.msra.mxu0 0
        %1612 = vmatprep.subr.bf16.mxu0 0
        %1613 = vmatpush2.bf16.msra.mxu0 0
        %1614 = vmatprep.subr.bf16.mxu0 0
        %1615 = vmatpush2.bf16.msra.mxu0 0
        %1616 = vmatprep.subr.bf16.mxu0 0
        %1617 = vmatpush2.bf16.msra.mxu0 0
        %1618 = vmatprep.subr.bf16.mxu0 0
        %1619 = vmatpush2.bf16.msra.mxu0 0
        %1620 = vmatprep.subr.bf16.mxu0 0
        %1621 = vmatpush2.bf16.msra.mxu0 0
        %1622 = vmatprep.subr.bf16.mxu0 0
        %1623 = vmatpush2.bf16.msra.mxu0 0
        %1624 = vmatprep.mubr.bf16.mxu0 0
        %1625 = vmatmul.mubr.bf16.gmra.mxu0 %v1587
        %v1626 = vpop.f32.mrf.mxu0
        %v1627 = vadd.f32 0.0, %v1626
        %v1628 = vpop.f32.mrf.mxu0
        %v1629 = vpop.f32.mrf.mxu0
        %v1630 = vpop.f32.mrf.mxu0
        %1631 = vdwg.mxu0
        %1633 = vrot.lane.b32.xlu0 %v1627, 24
        %v1634 = vpop.permute.xlu0 %1633
        %vm1636 = vcmask 261312
        %1637 = vst.msk [vmem:[#allocation4] sm:$0xff] %vm1636, %v1634
        %v1638 = vld [vmem:[#allocation4] sm:$0xff]
        %v1639 = vpack.c.bf16 %v1638, %v1638
        %v1640 = vld [vmem:[%s6] sm:$0xf]
        %v1641 = vld [vmem:[%s6 + $0x4] sm:$0xf]
        %v1642 = vld [vmem:[%s6 + $0x8] sm:$0xf]
        %v1643 = vld [vmem:[%s6 + $0xc] sm:$0xf]
        %v1648 = vunpack.c.l.b16 %v1640
        %v1649 = vunpack.c.l.b16 %v1641
        %v1650 = vunpack.c.l.b16 %v1642
        %v1651 = vunpack.c.l.b16 %v1643
        %v1652 = vpack.c.b16 %v1649, %v1648
        %v1653 = vpack.c.b16 %v1651, %v1650
        %v1657 = vsel %vm1052, %v1639, 0
        %1659 = vmatprep.subr.bf16.mxu0 0
        %1660 = vmatpush1.bf16.msra.mxu0 0
        %1661 = vmatprep.subr.bf16.mxu0 0
        %1662 = vmatpush1.bf16.msra.mxu0 0
        %1663 = vmatprep.subr.bf16.mxu0 0
        %1664 = vmatpush1.bf16.msra.mxu0 0
        %1665 = vmatprep.subr.bf16.mxu0 0
        %1666 = vmatpush1.bf16.msra.mxu0 0
        %1667 = vmatprep.subr.bf16.mxu0 0
        %1668 = vmatpush1.bf16.msra.mxu0 0
        %1669 = vmatprep.subr.bf16.mxu0 0
        %1670 = vmatpush1.bf16.msra.mxu0 0
        %1671 = vmatprep.subr.bf16.mxu0 0
        %1672 = vmatpush1.bf16.msra.mxu0 %v1653
        %1673 = vmatprep.subr.bf16.mxu0 0
        %1674 = vmatpush1.bf16.msra.mxu0 %v1652
        %1675 = vmatprep.subr.bf16.mxu0 0
        %1676 = vmatpush2.bf16.msra.mxu0 0
        %1677 = vmatprep.subr.bf16.mxu0 0
        %1678 = vmatpush2.bf16.msra.mxu0 0
        %1679 = vmatprep.subr.bf16.mxu0 0
        %1680 = vmatpush2.bf16.msra.mxu0 0
        %1681 = vmatprep.subr.bf16.mxu0 0
        %1682 = vmatpush2.bf16.msra.mxu0 0
        %1683 = vmatprep.subr.bf16.mxu0 0
        %1684 = vmatpush2.bf16.msra.mxu0 0
        %1685 = vmatprep.subr.bf16.mxu0 0
        %1686 = vmatpush2.bf16.msra.mxu0 0
        %1687 = vmatprep.subr.bf16.mxu0 0
        %1688 = vmatpush2.bf16.msra.mxu0 0
        %1689 = vmatprep.subr.bf16.mxu0 0
        %1690 = vmatpush2.bf16.msra.mxu0 0
        %1691 = vmatprep.mubr.bf16.mxu0 0
        %1692 = vmatmul.mubr.bf16.gmra.mxu0 %v1657
        %v1693 = vpop.f32.mrf.mxu0
        %v1694 = vadd.f32 0.0, %v1693
        %v1695 = vpop.f32.mrf.mxu0
        %v1696 = vpop.f32.mrf.mxu0
        %v1697 = vpop.f32.mrf.mxu0
        %1698 = vdwg.mxu0
        %v1699 = vadd.f32 %v1048, %v1694
        %v1700 = vld [vmem:[#allocation9] sm:$0x1]
        %v1702 = vlaneseq
        %v1703 = vshrl.u32 %v1702, 7
        %v1704 = vsub.s32 0, %v1703
        %v1705 = vrot.slane %v1700, %v1704
        %v1707 = vadd.f32 %v1699, %v1705
        %v1708 = vld [vmem:[#allocation24] sm:$0x1]
        %v1709 = vld [vmem:[#allocation25] sm:$0x1]
        %v1710 = vsel %vm1052, %v1707, 0.0
        %1711 = vadd.xlane.f32.xlu0 %v1710
        %v1712 = vpop.xlane.xlu0 %1711
        %v1713 = vmul.f32 %v1712, %v1056
        %v1714 = vsub.f32 %v1707, %v1713
        %v1715 = vmul.f32 %v1714, %v1714
        %v1716 = vsel %vm1052, %v1715, 0.0
        %1717 = vadd.xlane.f32.xlu0 %v1716
        %v1718 = vpop.xlane.xlu0 %1717
        %v1719 = vmul.f32 %v1718, 0.032258064
        %v1720 = vrsqrt.pop %v1719
        %v1721 = vmul.f32 %v1719, %v1720
        %vm1722 = vcmp.eq.f32.partialorder %v1719, inf
        %v1723 = vsel %vm1722, %v1719, %v1721
        %vm1724 = vcmp.eq.f32.partialorder %v1719, 0.0
        %v1725 = vand.u32 %v1719, 2147483648
        %v1726 = vsel %vm1724, %v1725, %v1723
        %v1728 = vlaneseq
        %v1729 = vshrl.u32 %v1728, 7
        %v1730 = vsub.s32 0, %v1729
        %v1731 = vrot.slane %v1708, %v1730
        %v1733 = vmul.f32 %v1731, %v1714
        %v1734 = vadd.f32 %v1726, 1e-06
        %v1735 = vrcp.pop %v1734
        %v1736 = vmul.f32 %v1733, %v1735
        %v1738 = vlaneseq
        %v1739 = vshrl.u32 %v1738, 7
        %v1740 = vsub.s32 0, %v1739
        %v1741 = vrot.slane %v1709, %v1740
        %v1743 = vadd.f32 %v1736, %v1741
        %v1744 = vpack.c.bf16 %v1743, %v1743
        %v1745 = vld [vmem:[%s8] sm:$0xf]
        %v1746 = vld [vmem:[%s8 + $0x4] sm:$0xf]
        %v1747 = vld [vmem:[%s8 + $0x8] sm:$0xf]
        %v1748 = vld [vmem:[%s8 + $0xc] sm:$0xf]
        %v1749 = vld [vmem:[#allocation10] sm:$0x1]
        %v1751 = vlaneseq
        %v1752 = vshrl.u32 %v1751, 7
        %v1753 = vsub.s32 0, %v1752
        %v1754 = vrot.slane %v1749, %v1753
        %v1760 = vunpack.c.l.b16 %v1745
        %v1761 = vunpack.c.l.b16 %v1746
        %v1762 = vunpack.c.l.b16 %v1747
        %v1763 = vunpack.c.l.b16 %v1748
        %v1764 = vpack.c.b16 %v1761, %v1760
        %v1765 = vpack.c.b16 %v1763, %v1762
        %v1769 = vsel %vm1052, %v1744, 0
        %1771 = vmatprep.subr.bf16.mxu0 0
        %1772 = vmatpush1.bf16.msra.mxu0 0
        %1773 = vmatprep.subr.bf16.mxu0 0
        %1774 = vmatpush1.bf16.msra.mxu0 0
        %1775 = vmatprep.subr.bf16.mxu0 0
        %1776 = vmatpush1.bf16.msra.mxu0 0
        %1777 = vmatprep.subr.bf16.mxu0 0
        %1778 = vmatpush1.bf16.msra.mxu0 0
        %1779 = vmatprep.subr.bf16.mxu0 0
        %1780 = vmatpush1.bf16.msra.mxu0 0
        %1781 = vmatprep.subr.bf16.mxu0 0
        %1782 = vmatpush1.bf16.msra.mxu0 0
        %1783 = vmatprep.subr.bf16.mxu0 0
        %1784 = vmatpush1.bf16.msra.mxu0 %v1765
        %1785 = vmatprep.subr.bf16.mxu0 0
        %1786 = vmatpush1.bf16.msra.mxu0 %v1764
        %1787 = vmatprep.subr.bf16.mxu0 0
        %1788 = vmatpush2.bf16.msra.mxu0 0
        %1789 = vmatprep.subr.bf16.mxu0 0
        %1790 = vmatpush2.bf16.msra.mxu0 0
        %1791 = vmatprep.subr.bf16.mxu0 0
        %1792 = vmatpush2.bf16.msra.mxu0 0
        %1793 = vmatprep.subr.bf16.mxu0 0
        %1794 = vmatpush2.bf16.msra.mxu0 0
        %1795 = vmatprep.subr.bf16.mxu0 0
        %1796 = vmatpush2.bf16.msra.mxu0 0
        %1797 = vmatprep.subr.bf16.mxu0 0
        %1798 = vmatpush2.bf16.msra.mxu0 0
        %1799 = vmatprep.subr.bf16.mxu0 0
        %1800 = vmatpush2.bf16.msra.mxu0 0
        %1801 = vmatprep.subr.bf16.mxu0 0
        %1802 = vmatpush2.bf16.msra.mxu0 0
        %1803 = vmatprep.mubr.bf16.mxu0 0
        %1804 = vmatmul.mubr.bf16.gmra.mxu0 %v1769
        %v1805 = vpop.f32.mrf.mxu0
        %v1806 = vadd.f32 %v1754, %v1805
        %v1807 = vpop.f32.mrf.mxu0
        %v1808 = vpop.f32.mrf.mxu0
        %v1809 = vpop.f32.mrf.mxu0
        %1810 = vdwg.mxu0
        %1811 = vst.msk [vmem:[#allocation2] sm:$0xff] %vm1052, %v1806
        %v1812 = vpack.c.bf16 %v1049, %v1049
        %v1813 = vld [vmem:[%s10] sm:$0xf]
        %v1814 = vld [vmem:[%s10 + $0x4] sm:$0xf]
        %v1815 = vld [vmem:[%s10 + $0x8] sm:$0xf]
        %v1816 = vld [vmem:[%s10 + $0xc] sm:$0xf]
        %v1817 = vld [vmem:[#allocation12] sm:$0x1]
        %v1819 = vlaneseq
        %v1820 = vshrl.u32 %v1819, 7
        %v1821 = vsub.s32 0, %v1820
        %v1822 = vrot.slane %v1817, %v1821
        %v1828 = vunpack.c.l.b16 %v1813
        %v1829 = vunpack.c.l.b16 %v1814
        %v1830 = vunpack.c.l.b16 %v1815
        %v1831 = vunpack.c.l.b16 %v1816
        %v1832 = vpack.c.b16 %v1829, %v1828
        %v1833 = vpack.c.b16 %v1831, %v1830
        %v1837 = vsel %vm1052, %v1812, 0
        %1839 = vmatprep.subr.bf16.mxu0 0
        %1840 = vmatpush1.bf16.msra.mxu0 0
        %1841 = vmatprep.subr.bf16.mxu0 0
        %1842 = vmatpush1.bf16.msra.mxu0 0
        %1843 = vmatprep.subr.bf16.mxu0 0
        %1844 = vmatpush1.bf16.msra.mxu0 0
        %1845 = vmatprep.subr.bf16.mxu0 0
        %1846 = vmatpush1.bf16.msra.mxu0 0
        %1847 = vmatprep.subr.bf16.mxu0 0
        %1848 = vmatpush1.bf16.msra.mxu0 0
        %1849 = vmatprep.subr.bf16.mxu0 0
        %1850 = vmatpush1.bf16.msra.mxu0 0
        %1851 = vmatprep.subr.bf16.mxu0 0
        %1852 = vmatpush1.bf16.msra.mxu0 %v1833
        %1853 = vmatprep.subr.bf16.mxu0 0
        %1854 = vmatpush1.bf16.msra.mxu0 %v1832
        %1855 = vmatprep.subr.bf16.mxu0 0
        %1856 = vmatpush2.bf16.msra.mxu0 0
        %1857 = vmatprep.subr.bf16.mxu0 0
        %1858 = vmatpush2.bf16.msra.mxu0 0
        %1859 = vmatprep.subr.bf16.mxu0 0
        %1860 = vmatpush2.bf16.msra.mxu0 0
        %1861 = vmatprep.subr.bf16.mxu0 0
        %1862 = vmatpush2.bf16.msra.mxu0 0
        %1863 = vmatprep.subr.bf16.mxu0 0
        %1864 = vmatpush2.bf16.msra.mxu0 0
        %1865 = vmatprep.subr.bf16.mxu0 0
        %1866 = vmatpush2.bf16.msra.mxu0 0
        %1867 = vmatprep.subr.bf16.mxu0 0
        %1868 = vmatpush2.bf16.msra.mxu0 0
        %1869 = vmatprep.subr.bf16.mxu0 0
        %1870 = vmatpush2.bf16.msra.mxu0 0
        %1871 = vmatprep.mubr.bf16.mxu0 0
        %1872 = vmatmul.mubr.bf16.gmra.mxu0 %v1837
        %v1873 = vpop.f32.mrf.mxu0
        %v1874 = vadd.f32 %v1822, %v1873
        %v1875 = vpop.f32.mrf.mxu0
        %v1876 = vpop.f32.mrf.mxu0
        %v1877 = vpop.f32.mrf.mxu0
        %1878 = vdwg.mxu0
        %vm1879 = vcmask 523264
        %1880 = vst.msk [vmem:[#allocation3] sm:$0xff] %vm1879, %v1874
        %v1881 = vld [vmem:[%s892] sm:$0x1]
        %vm1882 = vcmp.ne.s32.totalorder %v1881, 0
        %v1883 = vld [vmem:[#allocation2] sm:$0xff]
        %v1884 = vpack.c.bf16 %v1883, %v1883
        %v1885 = vld [vmem:[#allocation3] sm:$0xff]
        %v1886 = vpack.c.bf16 %v1885, %v1885
        %v1888 = vsel %vm1164, %v1884, 0
        %v1891 = vsel %vm1164, %v1886, 0
        %1893 = vmatprep.subr.bf16.mxu0 0
        %1894 = vmatpush1.bf16.xpose.msra.mxu0 0
        %1895 = vmatprep.subr.bf16.mxu0 0
        %1896 = vmatpush1.bf16.xpose.msra.mxu0 0
        %1897 = vmatprep.subr.bf16.mxu0 0
        %1898 = vmatpush1.bf16.xpose.msra.mxu0 0
        %1899 = vmatprep.subr.bf16.mxu0 0
        %1900 = vmatpush1.bf16.xpose.msra.mxu0 0
        %1901 = vmatprep.subr.bf16.mxu0 0
        %1902 = vmatpush1.bf16.xpose.msra.mxu0 0
        %1903 = vmatprep.subr.bf16.mxu0 0
        %1904 = vmatpush1.bf16.xpose.msra.mxu0 0
        %1905 = vmatprep.subr.bf16.mxu0 0
        %1906 = vmatpush1.bf16.xpose.msra.mxu0 0
        %1907 = vmatprep.subr.bf16.mxu0 0
        %1908 = vmatpush1.bf16.xpose.msra.mxu0 %v1891
        %1909 = vmatprep.subr.bf16.mxu0 0
        %1910 = vmatpush2.bf16.xpose.msra.mxu0 0
        %1911 = vmatprep.subr.bf16.mxu0 0
        %1912 = vmatpush2.bf16.xpose.msra.mxu0 0
        %1913 = vmatprep.subr.bf16.mxu0 0
        %1914 = vmatpush2.bf16.xpose.msra.mxu0 0
        %1915 = vmatprep.subr.bf16.mxu0 0
        %1916 = vmatpush2.bf16.xpose.msra.mxu0 0
        %1917 = vmatprep.subr.bf16.mxu0 0
        %1918 = vmatpush2.bf16.xpose.msra.mxu0 0
        %1919 = vmatprep.subr.bf16.mxu0 0
        %1920 = vmatpush2.bf16.xpose.msra.mxu0 0
        %1921 = vmatprep.subr.bf16.mxu0 0
        %1922 = vmatpush2.bf16.xpose.msra.mxu0 0
        %1923 = vmatprep.subr.bf16.mxu0 0
        %1924 = vmatpush2.bf16.xpose.msra.mxu0 0
        %1925 = vmatprep.mubr.bf16.mxu0 0
        %1926 = vmatmul.mubr.bf16.gmra.mxu0 %v1888
        %v1927 = vpop.f32.mrf.mxu0
        %v1928 = vadd.f32 0.0, %v1927
        %v1929 = vpop.f32.mrf.mxu0
        %v1930 = vpop.f32.mrf.mxu0
        %v1931 = vpop.f32.mrf.mxu0
        %1932 = vdwg.mxu0
        %v1933 = vmul.f32 %v1928, 0.35355338
        %v1934 = vsel %vm1882, 1, 0
        %v1935 = vlaneseq
        %v1936 = vshrl.u32 %v1935, 7
        %v1937 = vsub.s32 0, %v1936
        %v1938 = vrot.slane %v1934, %v1937
        %vm1939 = vcmp.eq.s32.totalorder %v1938, 1
        %v1940 = vsel %vm1939, %v1933, -1e+09
        %v1941 = vsel %vm1164, %v1940, -inf
        %1942 = vmax.xlane.f32.xlu0 %v1941
        %v1943 = vpop.xlane.xlu0 %1942
        %v1944 = vsub.f32 %v1940, %v1943
        %v1945 = vmul.f32 %v1944, 1.442695
        %v1946 = vpow.pop %v1945
        %v1947 = vsel %vm1164, %v1946, 0.0
        %1948 = vadd.xlane.f32.xlu0 %v1947
        %v1949 = vpop.xlane.xlu0 %1948
        %v1950 = vrcp.pop %v1949
        %v1951 = vmul.f32 %v1946, %v1950
        %v1952 = vpack.c.bf16 %v1951, %v1951
        %1954 = vrot.lane.b32.xlu0 %v1886, 96
        %v1955 = vpop.permute.xlu0 %1954
        %v1957 = vsel %vm1164, %v1952, 0
        %v1960 = vsel %vm1230, %v1955, 0
        %1962 = vmatprep.subr.bf16.mxu0 0
        %1963 = vmatpush1.bf16.msra.mxu0 0
        %1964 = vmatprep.subr.bf16.mxu0 0
        %1965 = vmatpush1.bf16.msra.mxu0 0
        %1966 = vmatprep.subr.bf16.mxu0 0
        %1967 = vmatpush1.bf16.msra.mxu0 0
        %1968 = vmatprep.subr.bf16.mxu0 0
        %1969 = vmatpush1.bf16.msra.mxu0 0
        %1970 = vmatprep.subr.bf16.mxu0 0
        %1971 = vmatpush1.bf16.msra.mxu0 0
        %1972 = vmatprep.subr.bf16.mxu0 0
        %1973 = vmatpush1.bf16.msra.mxu0 0
        %1974 = vmatprep.subr.bf16.mxu0 0
        %1975 = vmatpush1.bf16.msra.mxu0 0
        %1976 = vmatprep.subr.bf16.mxu0 0
        %1977 = vmatpush1.bf16.msra.mxu0 %v1960
        %1978 = vmatprep.subr.bf16.mxu0 0
        %1979 = vmatpush2.bf16.msra.mxu0 0
        %1980 = vmatprep.subr.bf16.mxu0 0
        %1981 = vmatpush2.bf16.msra.mxu0 0
        %1982 = vmatprep.subr.bf16.mxu0 0
        %1983 = vmatpush2.bf16.msra.mxu0 0
        %1984 = vmatprep.subr.bf16.mxu0 0
        %1985 = vmatpush2.bf16.msra.mxu0 0
        %1986 = vmatprep.subr.bf16.mxu0 0
        %1987 = vmatpush2.bf16.msra.mxu0 0
        %1988 = vmatprep.subr.bf16.mxu0 0
        %1989 = vmatpush2.bf16.msra.mxu0 0
        %1990 = vmatprep.subr.bf16.mxu0 0
        %1991 = vmatpush2.bf16.msra.mxu0 0
        %1992 = vmatprep.subr.bf16.mxu0 0
        %1993 = vmatpush2.bf16.msra.mxu0 0
        %1994 = vmatprep.mubr.bf16.mxu0 0
        %1995 = vmatmul.mubr.bf16.gmra.mxu0 %v1957
        %v1996 = vpop.f32.mrf.mxu0
        %v1997 = vadd.f32 0.0, %v1996
        %v1998 = vpop.f32.mrf.mxu0
        %v1999 = vpop.f32.mrf.mxu0
        %v2000 = vpop.f32.mrf.mxu0
        %2001 = vdwg.mxu0
        %2002 = vst.msk [vmem:[#allocation4] sm:$0xff] %vm1164, %v1997
        %v2003 = vld [vmem:[#allocation2] sm:$0xff]
        %v2004 = vpack.c.bf16 %v2003, %v2003
        %v2005 = vld [vmem:[#allocation3] sm:$0xff]
        %v2006 = vpack.c.bf16 %v2005, %v2005
        %2008 = vrot.lane.b32.xlu0 %v2004, 120
        %v2009 = vpop.permute.xlu0 %2008
        %2011 = vrot.lane.b32.xlu0 %v2006, 120
        %v2012 = vpop.permute.xlu0 %2011
        %v2014 = vsel %vm1164, %v2009, 0
        %v2017 = vsel %vm1164, %v2012, 0
        %2019 = vmatprep.subr.bf16.mxu0 0
        %2020 = vmatpush1.bf16.xpose.msra.mxu0 0
        %2021 = vmatprep.subr.bf16.mxu0 0
        %2022 = vmatpush1.bf16.xpose.msra.mxu0 0
        %2023 = vmatprep.subr.bf16.mxu0 0
        %2024 = vmatpush1.bf16.xpose.msra.mxu0 0
        %2025 = vmatprep.subr.bf16.mxu0 0
        %2026 = vmatpush1.bf16.xpose.msra.mxu0 0
        %2027 = vmatprep.subr.bf16.mxu0 0
        %2028 = vmatpush1.bf16.xpose.msra.mxu0 0
        %2029 = vmatprep.subr.bf16.mxu0 0
        %2030 = vmatpush1.bf16.xpose.msra.mxu0 0
        %2031 = vmatprep.subr.bf16.mxu0 0
        %2032 = vmatpush1.bf16.xpose.msra.mxu0 0
        %2033 = vmatprep.subr.bf16.mxu0 0
        %2034 = vmatpush1.bf16.xpose.msra.mxu0 %v2017
        %2035 = vmatprep.subr.bf16.mxu0 0
        %2036 = vmatpush2.bf16.xpose.msra.mxu0 0
        %2037 = vmatprep.subr.bf16.mxu0 0
        %2038 = vmatpush2.bf16.xpose.msra.mxu0 0
        %2039 = vmatprep.subr.bf16.mxu0 0
        %2040 = vmatpush2.bf16.xpose.msra.mxu0 0
        %2041 = vmatprep.subr.bf16.mxu0 0
        %2042 = vmatpush2.bf16.xpose.msra.mxu0 0
        %2043 = vmatprep.subr.bf16.mxu0 0
        %2044 = vmatpush2.bf16.xpose.msra.mxu0 0
        %2045 = vmatprep.subr.bf16.mxu0 0
        %2046 = vmatpush2.bf16.xpose.msra.mxu0 0
        %2047 = vmatprep.subr.bf16.mxu0 0
        %2048 = vmatpush2.bf16.xpose.msra.mxu0 0
        %2049 = vmatprep.subr.bf16.mxu0 0
        %2050 = vmatpush2.bf16.xpose.msra.mxu0 0
        %2051 = vmatprep.mubr.bf16.mxu0 0
        %2052 = vmatmul.mubr.bf16.gmra.mxu0 %v2014
        %v2053 = vpop.f32.mrf.mxu0
        %v2054 = vadd.f32 0.0, %v2053
        %v2055 = vpop.f32.mrf.mxu0
        %v2056 = vpop.f32.mrf.mxu0
        %v2057 = vpop.f32.mrf.mxu0
        %2058 = vdwg.mxu0
        %v2059 = vmul.f32 %v2054, 0.35355338
        %v2060 = vsel %vm1939, %v2059, -1e+09
        %v2061 = vsel %vm1164, %v2060, -inf
        %2062 = vmax.xlane.f32.xlu0 %v2061
        %v2063 = vpop.xlane.xlu0 %2062
        %v2064 = vsub.f32 %v2060, %v2063
        %v2065 = vmul.f32 %v2064, 1.442695
        %v2066 = vpow.pop %v2065
        %v2067 = vsel %vm1164, %v2066, 0.0
        %2068 = vadd.xlane.f32.xlu0 %v2067
        %v2069 = vpop.xlane.xlu0 %2068
        %v2070 = vrcp.pop %v2069
        %v2071 = vmul.f32 %v2066, %v2070
        %v2072 = vpack.c.bf16 %v2071, %v2071
        %2073 = vrot.lane.b32.xlu0 %v2006, 88
        %v2074 = vpop.permute.xlu0 %2073
        %v2076 = vsel %vm1164, %v2072, 0
        %v2079 = vsel %vm1230, %v2074, 0
        %2081 = vmatprep.subr.bf16.mxu0 0
        %2082 = vmatpush1.bf16.msra.mxu0 0
        %2083 = vmatprep.subr.bf16.mxu0 0
        %2084 = vmatpush1.bf16.msra.mxu0 0
        %2085 = vmatprep.subr.bf16.mxu0 0
        %2086 = vmatpush1.bf16.msra.mxu0 0
        %2087 = vmatprep.subr.bf16.mxu0 0
        %2088 = vmatpush1.bf16.msra.mxu0 0
        %2089 = vmatprep.subr.bf16.mxu0 0
        %2090 = vmatpush1.bf16.msra.mxu0 0
        %2091 = vmatprep.subr.bf16.mxu0 0
        %2092 = vmatpush1.bf16.msra.mxu0 0
        %2093 = vmatprep.subr.bf16.mxu0 0
        %2094 = vmatpush1.bf16.msra.mxu0 0
        %2095 = vmatprep.subr.bf16.mxu0 0
        %2096 = vmatpush1.bf16.msra.mxu0 %v2079
        %2097 = vmatprep.subr.bf16.mxu0 0
        %2098 = vmatpush2.bf16.msra.mxu0 0
        %2099 = vmatprep.subr.bf16.mxu0 0
        %2100 = vmatpush2.bf16.msra.mxu0 0
        %2101 = vmatprep.subr.bf16.mxu0 0
        %2102 = vmatpush2.bf16.msra.mxu0 0
        %2103 = vmatprep.subr.bf16.mxu0 0
        %2104 = vmatpush2.bf16.msra.mxu0 0
        %2105 = vmatprep.subr.bf16.mxu0 0
        %2106 = vmatpush2.bf16.msra.mxu0 0
        %2107 = vmatprep.subr.bf16.mxu0 0
        %2108 = vmatpush2.bf16.msra.mxu0 0
        %2109 = vmatprep.subr.bf16.mxu0 0
        %2110 = vmatpush2.bf16.msra.mxu0 0
        %2111 = vmatprep.subr.bf16.mxu0 0
        %2112 = vmatpush2.bf16.msra.mxu0 0
        %2113 = vmatprep.mubr.bf16.mxu0 0
        %2114 = vmatmul.mubr.bf16.gmra.mxu0 %v2076
        %v2115 = vpop.f32.mrf.mxu0
        %v2116 = vadd.f32 0.0, %v2115
        %v2117 = vpop.f32.mrf.mxu0
        %v2118 = vpop.f32.mrf.mxu0
        %v2119 = vpop.f32.mrf.mxu0
        %2120 = vdwg.mxu0
        %2122 = vrot.lane.b32.xlu0 %v2116, 8
        %v2123 = vpop.permute.xlu0 %2122
        %2125 = vst.msk [vmem:[#allocation4] sm:$0xff] %vm1394, %v2123
        %v2126 = vld [vmem:[#allocation2] sm:$0xff]
        %v2127 = vpack.c.bf16 %v2126, %v2126
        %v2128 = vld [vmem:[#allocation3] sm:$0xff]
        %v2129 = vpack.c.bf16 %v2128, %v2128
        %2131 = vrot.lane.b32.xlu0 %v2127, 112
        %v2132 = vpop.permute.xlu0 %2131
        %2134 = vrot.lane.b32.xlu0 %v2129, 112
        %v2135 = vpop.permute.xlu0 %2134
        %v2137 = vsel %vm1164, %v2132, 0
        %v2140 = vsel %vm1164, %v2135, 0
        %2142 = vmatprep.subr.bf16.mxu0 0
        %2143 = vmatpush1.bf16.xpose.msra.mxu0 0
        %2144 = vmatprep.subr.bf16.mxu0 0
        %2145 = vmatpush1.bf16.xpose.msra.mxu0 0
        %2146 = vmatprep.subr.bf16.mxu0 0
        %2147 = vmatpush1.bf16.xpose.msra.mxu0 0
        %2148 = vmatprep.subr.bf16.mxu0 0
        %2149 = vmatpush1.bf16.xpose.msra.mxu0 0
        %2150 = vmatprep.subr.bf16.mxu0 0
        %2151 = vmatpush1.bf16.xpose.msra.mxu0 0
        %2152 = vmatprep.subr.bf16.mxu0 0
        %2153 = vmatpush1.bf16.xpose.msra.mxu0 0
        %2154 = vmatprep.subr.bf16.mxu0 0
        %2155 = vmatpush1.bf16.xpose.msra.mxu0 0
        %2156 = vmatprep.subr.bf16.mxu0 0
        %2157 = vmatpush1.bf16.xpose.msra.mxu0 %v2140
        %2158 = vmatprep.subr.bf16.mxu0 0
        %2159 = vmatpush2.bf16.xpose.msra.mxu0 0
        %2160 = vmatprep.subr.bf16.mxu0 0
        %2161 = vmatpush2.bf16.xpose.msra.mxu0 0
        %2162 = vmatprep.subr.bf16.mxu0 0
        %2163 = vmatpush2.bf16.xpose.msra.mxu0 0
        %2164 = vmatprep.subr.bf16.mxu0 0
        %2165 = vmatpush2.bf16.xpose.msra.mxu0 0
        %2166 = vmatprep.subr.bf16.mxu0 0
        %2167 = vmatpush2.bf16.xpose.msra.mxu0 0
        %2168 = vmatprep.subr.bf16.mxu0 0
        %2169 = vmatpush2.bf16.xpose.msra.mxu0 0
        %2170 = vmatprep.subr.bf16.mxu0 0
        %2171 = vmatpush2.bf16.xpose.msra.mxu0 0
        %2172 = vmatprep.subr.bf16.mxu0 0
        %2173 = vmatpush2.bf16.xpose.msra.mxu0 0
        %2174 = vmatprep.mubr.bf16.mxu0 0
        %2175 = vmatmul.mubr.bf16.gmra.mxu0 %v2137
        %v2176 = vpop.f32.mrf.mxu0
        %v2177 = vadd.f32 0.0, %v2176
        %v2178 = vpop.f32.mrf.mxu0
        %v2179 = vpop.f32.mrf.mxu0
        %v2180 = vpop.f32.mrf.mxu0
        %2181 = vdwg.mxu0
        %v2182 = vmul.f32 %v2177, 0.35355338
        %v2183 = vsel %vm1939, %v2182, -1e+09
        %v2184 = vsel %vm1164, %v2183, -inf
        %2185 = vmax.xlane.f32.xlu0 %v2184
        %v2186 = vpop.xlane.xlu0 %2185
        %v2187 = vsub.f32 %v2183, %v2186
        %v2188 = vmul.f32 %v2187, 1.442695
        %v2189 = vpow.pop %v2188
        %v2190 = vsel %vm1164, %v2189, 0.0
        %2191 = vadd.xlane.f32.xlu0 %v2190
        %v2192 = vpop.xlane.xlu0 %2191
        %v2193 = vrcp.pop %v2192
        %v2194 = vmul.f32 %v2189, %v2193
        %v2195 = vpack.c.bf16 %v2194, %v2194
        %2196 = vrot.lane.b32.xlu0 %v2129, 80
        %v2197 = vpop.permute.xlu0 %2196
        %v2199 = vsel %vm1164, %v2195, 0
        %v2202 = vsel %vm1230, %v2197, 0
        %2204 = vmatprep.subr.bf16.mxu0 0
        %2205 = vmatpush1.bf16.msra.mxu0 0
        %2206 = vmatprep.subr.bf16.mxu0 0
        %2207 = vmatpush1.bf16.msra.mxu0 0
        %2208 = vmatprep.subr.bf16.mxu0 0
        %2209 = vmatpush1.bf16.msra.mxu0 0
        %2210 = vmatprep.subr.bf16.mxu0 0
        %2211 = vmatpush1.bf16.msra.mxu0 0
        %2212 = vmatprep.subr.bf16.mxu0 0
        %2213 = vmatpush1.bf16.msra.mxu0 0
        %2214 = vmatprep.subr.bf16.mxu0 0
        %2215 = vmatpush1.bf16.msra.mxu0 0
        %2216 = vmatprep.subr.bf16.mxu0 0
        %2217 = vmatpush1.bf16.msra.mxu0 0
        %2218 = vmatprep.subr.bf16.mxu0 0
        %2219 = vmatpush1.bf16.msra.mxu0 %v2202
        %2220 = vmatprep.subr.bf16.mxu0 0
        %2221 = vmatpush2.bf16.msra.mxu0 0
        %2222 = vmatprep.subr.bf16.mxu0 0
        %2223 = vmatpush2.bf16.msra.mxu0 0
        %2224 = vmatprep.subr.bf16.mxu0 0
        %2225 = vmatpush2.bf16.msra.mxu0 0
        %2226 = vmatprep.subr.bf16.mxu0 0
        %2227 = vmatpush2.bf16.msra.mxu0 0
        %2228 = vmatprep.subr.bf16.mxu0 0
        %2229 = vmatpush2.bf16.msra.mxu0 0
        %2230 = vmatprep.subr.bf16.mxu0 0
        %2231 = vmatpush2.bf16.msra.mxu0 0
        %2232 = vmatprep.subr.bf16.mxu0 0
        %2233 = vmatpush2.bf16.msra.mxu0 0
        %2234 = vmatprep.subr.bf16.mxu0 0
        %2235 = vmatpush2.bf16.msra.mxu0 0
        %2236 = vmatprep.mubr.bf16.mxu0 0
        %2237 = vmatmul.mubr.bf16.gmra.mxu0 %v2199
        %v2238 = vpop.f32.mrf.mxu0
        %v2239 = vadd.f32 0.0, %v2238
        %v2240 = vpop.f32.mrf.mxu0
        %v2241 = vpop.f32.mrf.mxu0
        %v2242 = vpop.f32.mrf.mxu0
        %2243 = vdwg.mxu0
        %2245 = vrot.lane.b32.xlu0 %v2239, 16
        %v2246 = vpop.permute.xlu0 %2245
        %2248 = vst.msk [vmem:[#allocation4] sm:$0xff] %vm1515, %v2246
        %v2249 = vld [vmem:[#allocation2] sm:$0xff]
        %v2250 = vpack.c.bf16 %v2249, %v2249
        %v2251 = vld [vmem:[#allocation3] sm:$0xff]
        %v2252 = vpack.c.bf16 %v2251, %v2251
        %2254 = vrot.lane.b32.xlu0 %v2250, 104
        %v2255 = vpop.permute.xlu0 %2254
        %2257 = vrot.lane.b32.xlu0 %v2252, 104
        %v2258 = vpop.permute.xlu0 %2257
        %v2260 = vsel %vm1164, %v2255, 0
        %v2263 = vsel %vm1164, %v2258, 0
        %2265 = vmatprep.subr.bf16.mxu0 0
        %2266 = vmatpush1.bf16.xpose.msra.mxu0 0
        %2267 = vmatprep.subr.bf16.mxu0 0
        %2268 = vmatpush1.bf16.xpose.msra.mxu0 0
        %2269 = vmatprep.subr.bf16.mxu0 0
        %2270 = vmatpush1.bf16.xpose.msra.mxu0 0
        %2271 = vmatprep.subr.bf16.mxu0 0
        %2272 = vmatpush1.bf16.xpose.msra.mxu0 0
        %2273 = vmatprep.subr.bf16.mxu0 0
        %2274 = vmatpush1.bf16.xpose.msra.mxu0 0
        %2275 = vmatprep.subr.bf16.mxu0 0
        %2276 = vmatpush1.bf16.xpose.msra.mxu0 0
        %2277 = vmatprep.subr.bf16.mxu0 0
        %2278 = vmatpush1.bf16.xpose.msra.mxu0 0
        %2279 = vmatprep.subr.bf16.mxu0 0
        %2280 = vmatpush1.bf16.xpose.msra.mxu0 %v2263
        %2281 = vmatprep.subr.bf16.mxu0 0
        %2282 = vmatpush2.bf16.xpose.msra.mxu0 0
        %2283 = vmatprep.subr.bf16.mxu0 0
        %2284 = vmatpush2.bf16.xpose.msra.mxu0 0
        %2285 = vmatprep.subr.bf16.mxu0 0
        %2286 = vmatpush2.bf16.xpose.msra.mxu0 0
        %2287 = vmatprep.subr.bf16.mxu0 0
        %2288 = vmatpush2.bf16.xpose.msra.mxu0 0
        %2289 = vmatprep.subr.bf16.mxu0 0
        %2290 = vmatpush2.bf16.xpose.msra.mxu0 0
        %2291 = vmatprep.subr.bf16.mxu0 0
        %2292 = vmatpush2.bf16.xpose.msra.mxu0 0
        %2293 = vmatprep.subr.bf16.mxu0 0
        %2294 = vmatpush2.bf16.xpose.msra.mxu0 0
        %2295 = vmatprep.subr.bf16.mxu0 0
        %2296 = vmatpush2.bf16.xpose.msra.mxu0 0
        %2297 = vmatprep.mubr.bf16.mxu0 0
        %2298 = vmatmul.mubr.bf16.gmra.mxu0 %v2260
        %v2299 = vpop.f32.mrf.mxu0
        %v2300 = vadd.f32 0.0, %v2299
        %v2301 = vpop.f32.mrf.mxu0
        %v2302 = vpop.f32.mrf.mxu0
        %v2303 = vpop.f32.mrf.mxu0
        %2304 = vdwg.mxu0
        %v2305 = vmul.f32 %v2300, 0.35355338
        %v2306 = vsel %vm1939, %v2305, -1e+09
        %v2307 = vsel %vm1164, %v2306, -inf
        %2308 = vmax.xlane.f32.xlu0 %v2307
        %v2309 = vpop.xlane.xlu0 %2308
        %v2310 = vsub.f32 %v2306, %v2309
        %v2311 = vmul.f32 %v2310, 1.442695
        %v2312 = vpow.pop %v2311
        %v2313 = vsel %vm1164, %v2312, 0.0
        %2314 = vadd.xlane.f32.xlu0 %v2313
        %v2315 = vpop.xlane.xlu0 %2314
        %v2316 = vrcp.pop %v2315
        %v2317 = vmul.f32 %v2312, %v2316
        %v2318 = vpack.c.bf16 %v2317, %v2317
        %2319 = vrot.lane.b32.xlu0 %v2252, 72
        %v2320 = vpop.permute.xlu0 %2319
        %v2322 = vsel %vm1164, %v2318, 0
        %v2325 = vsel %vm1230, %v2320, 0
        %2327 = vmatprep.subr.bf16.mxu0 0
        %2328 = vmatpush1.bf16.msra.mxu0 0
        %2329 = vmatprep.subr.bf16.mxu0 0
        %2330 = vmatpush1.bf16.msra.mxu0 0
        %2331 = vmatprep.subr.bf16.mxu0 0
        %2332 = vmatpush1.bf16.msra.mxu0 0
        %2333 = vmatprep.subr.bf16.mxu0 0
        %2334 = vmatpush1.bf16.msra.mxu0 0
        %2335 = vmatprep.subr.bf16.mxu0 0
        %2336 = vmatpush1.bf16.msra.mxu0 0
        %2337 = vmatprep.subr.bf16.mxu0 0
        %2338 = vmatpush1.bf16.msra.mxu0 0
        %2339 = vmatprep.subr.bf16.mxu0 0
        %2340 = vmatpush1.bf16.msra.mxu0 0
        %2341 = vmatprep.subr.bf16.mxu0 0
        %2342 = vmatpush1.bf16.msra.mxu0 %v2325
        %2343 = vmatprep.subr.bf16.mxu0 0
        %2344 = vmatpush2.bf16.msra.mxu0 0
        %2345 = vmatprep.subr.bf16.mxu0 0
        %2346 = vmatpush2.bf16.msra.mxu0 0
        %2347 = vmatprep.subr.bf16.mxu0 0
        %2348 = vmatpush2.bf16.msra.mxu0 0
        %2349 = vmatprep.subr.bf16.mxu0 0
        %2350 = vmatpush2.bf16.msra.mxu0 0
        %2351 = vmatprep.subr.bf16.mxu0 0
        %2352 = vmatpush2.bf16.msra.mxu0 0
        %2353 = vmatprep.subr.bf16.mxu0 0
        %2354 = vmatpush2.bf16.msra.mxu0 0
        %2355 = vmatprep.subr.bf16.mxu0 0
        %2356 = vmatpush2.bf16.msra.mxu0 0
        %2357 = vmatprep.subr.bf16.mxu0 0
        %2358 = vmatpush2.bf16.msra.mxu0 0
        %2359 = vmatprep.mubr.bf16.mxu0 0
        %2360 = vmatmul.mubr.bf16.gmra.mxu0 %v2322
        %v2361 = vpop.f32.mrf.mxu0
        %v2362 = vadd.f32 0.0, %v2361
        %v2363 = vpop.f32.mrf.mxu0
        %v2364 = vpop.f32.mrf.mxu0
        %v2365 = vpop.f32.mrf.mxu0
        %2366 = vdwg.mxu0
        %2368 = vrot.lane.b32.xlu0 %v2362, 24
        %v2369 = vpop.permute.xlu0 %2368
        %2371 = vst.msk [vmem:[#allocation4] sm:$0xff] %vm1636, %v2369
        %v2372 = vld [vmem:[#allocation4] sm:$0xff]
        %v2373 = vpack.c.bf16 %v2372, %v2372
        %v2374 = vld [vmem:[#allocation13] sm:$0xf]
        %v2375 = vld [vmem:[#allocation13 + $0x4] sm:$0xf]
        %v2376 = vld [vmem:[#allocation13 + $0x8] sm:$0xf]
        %v2377 = vld [vmem:[#allocation13 + $0xc] sm:$0xf]
        %v2382 = vunpack.c.l.b16 %v2374
        %v2383 = vunpack.c.l.b16 %v2375
        %v2384 = vunpack.c.l.b16 %v2376
        %v2385 = vunpack.c.l.b16 %v2377
        %v2386 = vpack.c.b16 %v2383, %v2382
        %v2387 = vpack.c.b16 %v2385, %v2384
        %v2391 = vsel %vm1052, %v2373, 0
        %2393 = vmatprep.subr.bf16.mxu0 0
        %2394 = vmatpush1.bf16.msra.mxu0 0
        %2395 = vmatprep.subr.bf16.mxu0 0
        %2396 = vmatpush1.bf16.msra.mxu0 0
        %2397 = vmatprep.subr.bf16.mxu0 0
        %2398 = vmatpush1.bf16.msra.mxu0 0
        %2399 = vmatprep.subr.bf16.mxu0 0
        %2400 = vmatpush1.bf16.msra.mxu0 0
        %2401 = vmatprep.subr.bf16.mxu0 0
        %2402 = vmatpush1.bf16.msra.mxu0 0
        %2403 = vmatprep.subr.bf16.mxu0 0
        %2404 = vmatpush1.bf16.msra.mxu0 0
        %2405 = vmatprep.subr.bf16.mxu0 0
        %2406 = vmatpush1.bf16.msra.mxu0 %v2387
        %2407 = vmatprep.subr.bf16.mxu0 0
        %2408 = vmatpush1.bf16.msra.mxu0 %v2386
        %2409 = vmatprep.subr.bf16.mxu0 0
        %2410 = vmatpush2.bf16.msra.mxu0 0
        %2411 = vmatprep.subr.bf16.mxu0 0
        %2412 = vmatpush2.bf16.msra.mxu0 0
        %2413 = vmatprep.subr.bf16.mxu0 0
        %2414 = vmatpush2.bf16.msra.mxu0 0
        %2415 = vmatprep.subr.bf16.mxu0 0
        %2416 = vmatpush2.bf16.msra.mxu0 0
        %2417 = vmatprep.subr.bf16.mxu0 0
        %2418 = vmatpush2.bf16.msra.mxu0 0
        %2419 = vmatprep.subr.bf16.mxu0 0
        %2420 = vmatpush2.bf16.msra.mxu0 0
        %2421 = vmatprep.subr.bf16.mxu0 0
        %2422 = vmatpush2.bf16.msra.mxu0 0
        %2423 = vmatprep.subr.bf16.mxu0 0
        %2424 = vmatpush2.bf16.msra.mxu0 0
        %2425 = vmatprep.mubr.bf16.mxu0 0
        %2426 = vmatmul.mubr.bf16.gmra.mxu0 %v2391
        %v2427 = vpop.f32.mrf.mxu0
        %v2428 = vadd.f32 0.0, %v2427
        %v2429 = vpop.f32.mrf.mxu0
        %v2430 = vpop.f32.mrf.mxu0
        %v2431 = vpop.f32.mrf.mxu0
        %2432 = vdwg.mxu0
        %v2433 = vadd.f32 %v1707, %v2428
        %v2434 = vld [vmem:[#allocation15] sm:$0x1]
        %v2436 = vlaneseq
        %v2437 = vshrl.u32 %v2436, 7
        %v2438 = vsub.s32 0, %v2437
        %v2439 = vrot.slane %v2434, %v2438
        %v2441 = vadd.f32 %v2433, %v2439
        %v2442 = vld [vmem:[#allocation27] sm:$0x1]
        %v2443 = vld [vmem:[#allocation28] sm:$0x1]
        %v2444 = vsel %vm1052, %v2441, 0.0
        %2445 = vadd.xlane.f32.xlu0 %v2444
        %v2446 = vpop.xlane.xlu0 %2445
        %v2447 = vmul.f32 %v2446, %v1056
        %v2448 = vsub.f32 %v2441, %v2447
        %v2449 = vmul.f32 %v2448, %v2448
        %v2450 = vsel %vm1052, %v2449, 0.0
        %2451 = vadd.xlane.f32.xlu0 %v2450
        %v2452 = vpop.xlane.xlu0 %2451
        %v2453 = vmul.f32 %v2452, 0.032258064
        %v2454 = vrsqrt.pop %v2453
        %v2455 = vmul.f32 %v2453, %v2454
        %vm2456 = vcmp.eq.f32.partialorder %v2453, inf
        %v2457 = vsel %vm2456, %v2453, %v2455
        %vm2458 = vcmp.eq.f32.partialorder %v2453, 0.0
        %v2459 = vand.u32 %v2453, 2147483648
        %v2460 = vsel %vm2458, %v2459, %v2457
        %v2462 = vlaneseq
        %v2463 = vshrl.u32 %v2462, 7
        %v2464 = vsub.s32 0, %v2463
        %v2465 = vrot.slane %v2442, %v2464
        %v2467 = vmul.f32 %v2465, %v2448
        %v2468 = vadd.f32 %v2460, 1e-06
        %v2469 = vrcp.pop %v2468
        %v2470 = vmul.f32 %v2467, %v2469
        %v2472 = vlaneseq
        %v2473 = vshrl.u32 %v2472, 7
        %v2474 = vsub.s32 0, %v2473
        %v2475 = vrot.slane %v2443, %v2474
        %v2477 = vadd.f32 %v2470, %v2475
        %v2478 = vpack.c.bf16 %v2477, %v2477
        %v2479 = vld [vmem:[#allocation16] sm:$0xf]
        %v2480 = vld [vmem:[#allocation16 + $0x4] sm:$0xf]
        %v2481 = vld [vmem:[#allocation16 + $0x8] sm:$0xf]
        %v2482 = vld [vmem:[#allocation16 + $0xc] sm:$0xf]
        %v2483 = vld [vmem:[#allocation18] sm:$0x1]
        %v2485 = vlaneseq
        %v2486 = vshrl.u32 %v2485, 7
        %v2487 = vsub.s32 0, %v2486
        %v2488 = vrot.slane %v2483, %v2487
        %v2494 = vunpack.c.l.b16 %v2479
        %v2495 = vunpack.c.l.b16 %v2480
        %v2496 = vunpack.c.l.b16 %v2481
        %v2497 = vunpack.c.l.b16 %v2482
        %v2498 = vpack.c.b16 %v2495, %v2494
        %v2499 = vpack.c.b16 %v2497, %v2496
        %v2503 = vsel %vm1052, %v2478, 0
        %2505 = vmatprep.subr.bf16.mxu0 0
        %2506 = vmatpush1.bf16.msra.mxu0 0
        %2507 = vmatprep.subr.bf16.mxu0 0
        %2508 = vmatpush1.bf16.msra.mxu0 0
        %2509 = vmatprep.subr.bf16.mxu0 0
        %2510 = vmatpush1.bf16.msra.mxu0 0
        %2511 = vmatprep.subr.bf16.mxu0 0
        %2512 = vmatpush1.bf16.msra.mxu0 0
        %2513 = vmatprep.subr.bf16.mxu0 0
        %2514 = vmatpush1.bf16.msra.mxu0 0
        %2515 = vmatprep.subr.bf16.mxu0 0
        %2516 = vmatpush1.bf16.msra.mxu0 0
        %2517 = vmatprep.subr.bf16.mxu0 0
        %2518 = vmatpush1.bf16.msra.mxu0 %v2499
        %2519 = vmatprep.subr.bf16.mxu0 0
        %2520 = vmatpush1.bf16.msra.mxu0 %v2498
        %2521 = vmatprep.subr.bf16.mxu0 0
        %2522 = vmatpush2.bf16.msra.mxu0 0
        %2523 = vmatprep.subr.bf16.mxu0 0
        %2524 = vmatpush2.bf16.msra.mxu0 0
        %2525 = vmatprep.subr.bf16.mxu0 0
        %2526 = vmatpush2.bf16.msra.mxu0 0
        %2527 = vmatprep.subr.bf16.mxu0 0
        %2528 = vmatpush2.bf16.msra.mxu0 0
        %2529 = vmatprep.subr.bf16.mxu0 0
        %2530 = vmatpush2.bf16.msra.mxu0 0
        %2531 = vmatprep.subr.bf16.mxu0 0
        %2532 = vmatpush2.bf16.msra.mxu0 0
        %2533 = vmatprep.subr.bf16.mxu0 0
        %2534 = vmatpush2.bf16.msra.mxu0 0
        %2535 = vmatprep.subr.bf16.mxu0 0
        %2536 = vmatpush2.bf16.msra.mxu0 0
        %2537 = vmatprep.mubr.bf16.mxu0 0
        %2538 = vmatmul.mubr.bf16.gmra.mxu0 %v2503
        %v2539 = vpop.f32.mrf.mxu0
        %v2540 = vadd.f32 %v2488, %v2539
        %v2541 = vpop.f32.mrf.mxu0
        %v2542 = vpop.f32.mrf.mxu0
        %v2543 = vpop.f32.mrf.mxu0
        %2544 = vdwg.mxu0
        %v2545 = vmax.f32 %v2540, 0.0
        %v2546 = vpack.c.bf16 %v2545, %v2545
        %v2547 = vld [vmem:[%s16] sm:$0xf]
        %v2548 = vld [vmem:[%s16 + $0x4] sm:$0xf]
        %v2549 = vld [vmem:[%s16 + $0x8] sm:$0xf]
        %v2550 = vld [vmem:[%s16 + $0xc] sm:$0xf]
        %v2551 = vld [vmem:[%s16 + $0x10] sm:$0xf]
        %v2552 = vld [vmem:[%s16 + $0x14] sm:$0xf]
        %v2553 = vld [vmem:[%s16 + $0x18] sm:$0xf]
        %v2554 = vld [vmem:[%s16 + $0x1c] sm:$0xf]
        %v2563 = vunpack.c.l.b16 %v2547
        %v2564 = vunpack.c.l.b16 %v2548
        %v2565 = vunpack.c.l.b16 %v2549
        %v2566 = vunpack.c.l.b16 %v2550
        %v2567 = vunpack.c.l.b16 %v2551
        %v2568 = vunpack.c.l.b16 %v2552
        %v2569 = vunpack.c.l.b16 %v2553
        %v2570 = vunpack.c.l.b16 %v2554
        %v2571 = vpack.c.b16 %v2564, %v2563
        %v2572 = vpack.c.b16 %v2566, %v2565
        %v2573 = vpack.c.b16 %v2568, %v2567
        %v2574 = vpack.c.b16 %v2570, %v2569
        %v2580 = vsel %vm1879, %v2546, 0
        %2582 = vmatprep.subr.bf16.mxu0 0
        %2583 = vmatpush1.bf16.msra.mxu0 0
        %2584 = vmatprep.subr.bf16.mxu0 0
        %2585 = vmatpush1.bf16.msra.mxu0 0
        %2586 = vmatprep.subr.bf16.mxu0 0
        %2587 = vmatpush1.bf16.msra.mxu0 0
        %2588 = vmatprep.subr.bf16.mxu0 0
        %2589 = vmatpush1.bf16.msra.mxu0 0
        %2590 = vmatprep.subr.bf16.mxu0 0
        %2591 = vmatpush1.bf16.msra.mxu0 %v2574
        %2592 = vmatprep.subr.bf16.mxu0 0
        %2593 = vmatpush1.bf16.msra.mxu0 %v2573
        %2594 = vmatprep.subr.bf16.mxu0 0
        %2595 = vmatpush1.bf16.msra.mxu0 %v2572
        %2596 = vmatprep.subr.bf16.mxu0 0
        %2597 = vmatpush1.bf16.msra.mxu0 %v2571
        %2598 = vmatprep.subr.bf16.mxu0 0
        %2599 = vmatpush2.bf16.msra.mxu0 0
        %2600 = vmatprep.subr.bf16.mxu0 0
        %2601 = vmatpush2.bf16.msra.mxu0 0
        %2602 = vmatprep.subr.bf16.mxu0 0
        %2603 = vmatpush2.bf16.msra.mxu0 0
        %2604 = vmatprep.subr.bf16.mxu0 0
        %2605 = vmatpush2.bf16.msra.mxu0 0
        %2606 = vmatprep.subr.bf16.mxu0 0
        %2607 = vmatpush2.bf16.msra.mxu0 0
        %2608 = vmatprep.subr.bf16.mxu0 0
        %2609 = vmatpush2.bf16.msra.mxu0 0
        %2610 = vmatprep.subr.bf16.mxu0 0
        %2611 = vmatpush2.bf16.msra.mxu0 0
        %2612 = vmatprep.subr.bf16.mxu0 0
        %2613 = vmatpush2.bf16.msra.mxu0 0
        %2614 = vmatprep.mubr.bf16.mxu0 0
        %2615 = vmatmul.mubr.bf16.gmra.mxu0 %v2580
        %v2616 = vpop.f32.mrf.mxu0
        %v2617 = vadd.f32 0.0, %v2616
        %v2618 = vpop.f32.mrf.mxu0
        %v2619 = vpop.f32.mrf.mxu0
        %v2620 = vpop.f32.mrf.mxu0
        %2621 = vdwg.mxu0
        %v2622 = vadd.f32 %v2441, %v2617
        %v2623 = vld [vmem:[#allocation19] sm:$0x1]
        %v2625 = vlaneseq
        %v2626 = vshrl.u32 %v2625, 7
        %v2627 = vsub.s32 0, %v2626
        %v2628 = vrot.slane %v2623, %v2627
        %v2630 = vadd.f32 %v2622, %v2628
        %2631 = vst.msk [vmem:[%s1046] sm:$0xff] %vm1052, %v2630
        %p2632 = scmp.lt.s32.totalorder %s48, 1
        %s2633 = scalar_select %p2632, %s48, 1
        %s2634 = smul.addr %s2633, 8
        %s2635 = scalar_lea.vmem %s26, %s2634
        // Predicated region
        $region189: #{decoder_forward_pallas.2} parent=123 // pred_check
          %p2636 = pneg %p632
        $region190: #{decoder_forward_pallas.2} parent=123 // pred_check_branch
          %2638 = sbr.rel (%p2636) target = $region192
        $region191: #{decoder_forward_pallas.2} parent=123 // pred_region
          _
        $region192: #{decoder_forward_pallas.2} parent=123 // pred_fallthru
          _
      $region124: #{decoder_forward_pallas.2} parent=5 // pred_fallthru
        _
      %p2639 = scmp.le.s32.totalorder 2, %s43
      // Predicated region
      $region193: #{decoder_forward_pallas.2} parent=5 // pred_check
        %p2640 = pneg %p2639
      $region194: #{decoder_forward_pallas.2} parent=5 // pred_check_branch
        %2642 = sbr.rel (%p2640) target = $region196
      $region195: #{decoder_forward_pallas.2} parent=5 // pred_region
        %s2643 = ssub.s32 %s43, 2
        // Predicated region
        $region197: #{decoder_forward_pallas.2} parent=195 // pred_check
          %p2644 = pneg %p638
        $region198: #{decoder_forward_pallas.2} parent=195 // pred_check_branch
          %2646 = sbr.rel (%p2644) target = $region200
        $region199: #{decoder_forward_pallas.2} parent=195 // pred_region
          %p2647 = scmp.lt.s32.totalorder %s49, 1
          %s2648 = scalar_select %p2647, %s49, 1
          %s2649 = smul.addr %s2648, 8
          %s2650 = scalar_lea.vmem %s26, %s2649
        $region200: #{decoder_forward_pallas.2} parent=195 // pred_fallthru
          _
      $region196: #{decoder_forward_pallas.2} parent=5 // pred_fallthru
        _
    $region6: #{decoder_forward_pallas.2} parent=1 // loop_footer
      %s47 = sadd.s32 1, %s43
    $region7: #{decoder_forward_pallas.2} parent=1 // loop_footer_branch
      %42 = sbr.rel target = $region3
    $region8: #{decoder_forward_pallas.2} parent=1 // loop_exit
      _
    %2651 = vsyncpa [#allocation6], 1
    %s2652 = scalar_lea.sflag [#allocation6], 1
    %2653 = vsyncpa %s2652, 1
    %2654 = vsyncpa [#allocation8], 1
    %2655 = vsyncpa [#allocation11], 1
    %2656 = vsyncpa [#allocation14], 1
    %2657 = vsyncpa [#allocation17], 1
    %2658 = vsyncpa [#allocation20], 1
    %2659 = vsyncpa [#allocation23], 1
    %2660 = vsyncpa [#allocation26], 1
    %2661 = vsyncpa [#allocation29], 1

</llo_original>
